<compile_context>
chip_gen: v7x
topology: tpu7x:2x2x1
jax: 0.10.0
libtpu: 0.0.40
codegen_flags: <defaults>
</compile_context>

<pallas_src>
import functools

import jax
import jax.numpy as jnp
from jax.experimental import pallas as pl
from jax.experimental.pallas import tpu as pltpu


_VMEM_LIMIT_BYTES = 48 * 1024 * 1024   # <= physical VMEM on v5e/v6e/v7x


# ----------------------------------------------------------------------------
# Conv kernel: in-kernel im2col via shifted lane slices, folded BN, ReLU
# ----------------------------------------------------------------------------

def _conv3x3_bn_relu_kernel(xp_ref, w_ref, shift_ref, o_ref, *, H, W, cin, cout):
    """3x3 'same' conv + folded eval-mode BN + ReLU, one sample per grid step.

      xp_ref:    (1, Cin, HW + 2W + 2) bf16  flat feature map, zero-padded by
                 (W+1) on both ends of the flattened HW axis (row halos = 0).
      w_ref:     (9, Cout, Cin)        bf16  conv taps, BN scale pre-folded.
      shift_ref: (Cout, 1)             f32   folded BN shift.
      o_ref:     (1, Cout, HW)         bf16  hooked activation.
    """
    HW = H * W
    base = W + 1
    col = jax.lax.broadcasted_iota(jnp.int32, (1, HW), 1) % W

    acc = jnp.zeros((cout, HW), jnp.float32)
    for dx in (-1, 0, 1):
        part = jnp.zeros((cout, HW), jnp.float32)
        for dy in (-1, 0, 1):
            t = (dy + 1) * 3 + (dx + 1)
            # Shifted lane slice of the padded flat feature map = tap (dy, dx).
            tap = xp_ref[0, :, pl.ds(base + dy * W + dx, HW)]    # (Cin, HW)
            w_t = w_ref[t]                                       # (Cout, Cin)
            if cin == 1:
                part += w_t.astype(jnp.float32) * tap.astype(jnp.float32)
            else:
                part += jnp.dot(w_t, tap, preferred_element_type=jnp.float32)
        # Column (dx) boundary mask; row (dy) boundaries are zeros via the pad.
        if dx == -1:
            part = jnp.where(col >= 1, part, 0.0)
        elif dx == 1:
            part = jnp.where(col <= W - 2, part, 0.0)
        acc += part

    y = acc + shift_ref[...]                      # folded BN shift
    o_ref[0] = jnp.maximum(y, 0.0).astype(o_ref.dtype)


def conv3x3_bn_relu(xp, w9, shift, H, W):
    """xp: (M, Cin, HW+2W+2) bf16 -> hooked feature (M, Cout, HW) bf16."""
    M, cin, HWP = xp.shape
    cout = w9.shape[1]
    HW = H * W
    kernel = functools.partial(_conv3x3_bn_relu_kernel,
                               H=H, W=W, cin=cin, cout=cout)
    return pl.pallas_call(
        kernel,
        out_shape=jax.ShapeDtypeStruct((M, cout, HW), jnp.bfloat16),
        grid=(M,),
        in_specs=[
            pl.BlockSpec((1, cin, HWP), lambda m: (m, 0, 0)),
            pl.BlockSpec((9, cout, cin), lambda m: (0, 0, 0)),
            pl.BlockSpec((cout, 1), lambda m: (0, 0)),
        ],
        out_specs=pl.BlockSpec((1, cout, HW), lambda m: (m, 0, 0)),
        compiler_params=pltpu.CompilerParams(
            dimension_semantics=("parallel",),
            vmem_limit_bytes=_VMEM_LIMIT_BYTES),
    )(xp, w9, shift)


# ----------------------------------------------------------------------------
# Per-layer loss kernel: HW-gridded sufficient-statistics accumulation
# ----------------------------------------------------------------------------

def _layer_loss_kernel(f_ref, o_ref,
                       gi_acc, go_acc, si_acc, so_acc, sqi_acc, sqo_acc, cr_acc,
                       *, batch, apply_norm, hw_total, feat_scale, gram_scale):
    """Accumulates raw grams and per-channel sums over HW tiles; at the last
    step applies the (optional) instance-norm correction analytically and
    writes the weighted MSE feature / gram losses.

      f_ref: (2B, C, T) bf16 block: rows [0,B) = input feats, [B,2B) = target.
      o_ref: (1, 2)     f32 SMEM: [feat_loss, gram_loss] (weights folded in).
    """
    step = pl.program_id(0)

    @pl.when(step == 0)
    def _init():
        gi_acc[...] = jnp.zeros_like(gi_acc)
        go_acc[...] = jnp.zeros_like(go_acc)
        si_acc[...] = jnp.zeros_like(si_acc)
        so_acc[...] = jnp.zeros_like(so_acc)
        sqi_acc[...] = jnp.zeros_like(sqi_acc)
        sqo_acc[...] = jnp.zeros_like(sqo_acc)
        cr_acc[...] = jnp.zeros_like(cr_acc)

    x = f_ref[...]                                # (2B, C, T) bf16
    fi = x[:batch]
    fo = x[batch:]
    dn = (((2,), (2,)), ((0,), (0,)))             # batched X @ X^T over T
    gi_acc[...] += jax.lax.dot_general(fi, fi, dn,
                                       preferred_element_type=jnp.float32)
    go_acc[...] += jax.lax.dot_general(fo, fo, dn,
                                       preferred_element_type=jnp.float32)
    fi32 = fi.astype(jnp.float32)
    fo32 = fo.astype(jnp.float32)
    si_acc[...] += jnp.sum(fi32, axis=-1, keepdims=True)
    so_acc[...] += jnp.sum(fo32, axis=-1, keepdims=True)
    sqi_acc[...] += jnp.sum(fi32 * fi32, axis=-1, keepdims=True)
    sqo_acc[...] += jnp.sum(fo32 * fo32, axis=-1, keepdims=True)
    cr_acc[...] += jnp.sum(fi32 * fo32, axis=-1, keepdims=True)

    @pl.when(step == pl.num_programs(0) - 1)
    def _finalize():
        b, c, _ = gi_acc.shape
        inv_n = 1.0 / float(hw_total)
        inv_cn = 1.0 / float(c * hw_total)
        gi = gi_acc[...]
        go = go_acc[...]
        si = si_acc[...]
        so = so_acc[...]
        sqi = sqi_acc[...]
        sqo = sqo_acc[...]
        cr = cr_acc[...]

        if apply_norm:
            # InstanceNorm2d(affine=False, eps=1e-5, biased var) folded
            # analytically into the accumulated sufficient statistics.
            eps = 1e-5
            var_i = jnp.maximum(sqi * inv_n - (si * inv_n) ** 2, 0.0)
            var_o = jnp.maximum(sqo * inv_n - (so * inv_n) ** 2, 0.0)
            a_i = jax.lax.rsqrt(var_i + eps)      # (B, C, 1)
            a_o = jax.lax.rsqrt(var_o + eps)
            ssq_i = sqi - si * si * inv_n         # sum (fi - mean_i)^2
            ssq_o = sqo - so * so * inv_n
            ssx = cr - si * so * inv_n            # sum (fi - m_i)(fo - m_o)
            feat_sse = jnp.sum(a_i * a_i * ssq_i + a_o * a_o * ssq_o
                               - 2.0 * (a_i * a_o) * ssx)

            rows = jax.lax.broadcasted_iota(jnp.int32, (c, c), 0)
            cols = jax.lax.broadcasted_iota(jnp.int32, (c, c), 1)
            eye = (rows == cols).astype(jnp.float32)
            dnm = (((2,), (1,)), ((0,), (0,)))    # batched (C,C) @ (C,C)

            def _col_scale(m, v):
                # m: (B,C,C), v: (B,C,1): scale column c' of m by v[c'].
                return jax.lax.dot_general(m, eye * v, dnm,
                                           preferred_element_type=jnp.float32)

            def _norm_gram(g, s, a):
                s_outer = _col_scale(jnp.broadcast_to(s, (b, c, c)), s)
                y = (g - s_outer * inv_n) * a     # row scale by a
                return _col_scale(y, a) * inv_cn  # column scale by a

            dg = _norm_gram(gi, si, a_i) - _norm_gram(go, so, a_o)
        else:
            feat_sse = jnp.sum(sqi + sqo - 2.0 * cr)
            dg = (gi - go) * inv_cn

        gram_sse = jnp.sum(dg * dg)
        o_ref[0, 0] = feat_sse * feat_scale
        o_ref[0, 1] = gram_sse * gram_scale


def _pick_hw_tile(hw, cap=4096):
    """Largest HW tile that is either the whole axis or a 128-multiple divisor."""
    if hw <= cap:
        return hw
    t = (cap // 128) * 128
    while t >= 128:
        if hw % t == 0:
            return t
        t -= 128
    return hw


def layer_loss(f, batch, apply_norm, wgt):
    """f: (2B, C, HW) bf16 -> (1, 2) f32 [weighted feat MSE, weighted gram MSE]."""
    M, C, HW = f.shape
    hw_tile = _pick_hw_tile(HW)
    n_tiles = HW // hw_tile
    feat_scale = float(wgt) / float(batch * C * HW)                # MSE mean * w
    gram_scale = (float(wgt) ** 2) * 5000.0 / float(batch * C * C)  # MSE mean * w^2 * 5000
    kernel = functools.partial(
        _layer_loss_kernel, batch=batch, apply_norm=apply_norm,
        hw_total=HW, feat_scale=feat_scale, gram_scale=gram_scale)
    return pl.pallas_call(
        kernel,
        out_shape=jax.ShapeDtypeStruct((1, 2), jnp.float32),
        grid=(n_tiles,),
        in_specs=[pl.BlockSpec((M, C, hw_tile), lambda h: (0, 0, h))],
        out_specs=pl.BlockSpec(memory_space=pltpu.MemorySpace.SMEM),
        scratch_shapes=[
            pltpu.VMEM((batch, C, C), jnp.float32),   # raw gram, input
            pltpu.VMEM((batch, C, C), jnp.float32),   # raw gram, target
            pltpu.VMEM((batch, C, 1), jnp.float32),   # sum fi
            pltpu.VMEM((batch, C, 1), jnp.float32),   # sum fo
            pltpu.VMEM((batch, C, 1), jnp.float32),   # sum fi^2
            pltpu.VMEM((batch, C, 1), jnp.float32),   # sum fo^2
            pltpu.VMEM((batch, C, 1), jnp.float32),   # sum fi*fo
        ],
        compiler_params=pltpu.CompilerParams(
            dimension_semantics=("arbitrary",),
            vmem_limit_bytes=_VMEM_LIMIT_BYTES),
    )(f)


# ----------------------------------------------------------------------------
# Layout plumbing (XLA side): flat-axis zero pad, 2x2 maxpool on bf16
# ----------------------------------------------------------------------------

def _flat_pad(x, W):
    """x: (M, C, HW) -> (M, C, HW + 2W + 2), zero-padded on the flat HW axis."""
    return jnp.pad(x, ((0, 0), (0, 0), (W + 1, W + 1)))


def _maxpool2x2(f, H, W):
    """f: (M, C, H*W) -> (M, C, (H//2)*(W//2)), bf16."""
    M, C, _ = f.shape
    p = jnp.max(f.reshape(M, C, H // 2, 2, W // 2, 2), axis=(3, 5))
    return p.reshape(M, C, (H // 2) * (W // 2))


# ----------------------------------------------------------------------------
# FeatureLoss module
# ----------------------------------------------------------------------------

class FeatureLoss:
    """JAX/Pallas port of the PyTorch FeatureLoss forward pass."""

    # (Cin, Cout) of the three hooked conv blocks; 2x2 maxpool after 0 and 1.
    _BLOCKS = ((3, 8), (8, 16), (16, 16))

    def __init__(self, layer_wgts=(20.0, 70.0, 10.0), without_instancenorm=1,
                 seed=0):
        self.wgts = tuple(float(w) for w in layer_wgts)
        self.without_instancenorm = int(without_instancenorm)
        key = jax.random.PRNGKey(seed)
        self.params = []
        for i, (cin, cout) in enumerate(self._BLOCKS):
            key, kw, ks, kb = jax.random.split(key, 4)
            w = jax.random.normal(kw, (3, 3, cin, cout), jnp.float32)
            w = w * (1.0 / jnp.sqrt(9.0 * cin))
            scale = 1.0 + 0.1 * jax.random.normal(ks, (cout,), jnp.float32)
            shift = 0.05 * jax.random.normal(kb, (cout,), jnp.float32)
            if i == 0:
                # Fold the reference's cat([x]*3, dim=1) channel replication
                # into the first conv: conv(cat([x]*3), w) == conv(x, sum_ci w).
                w = jnp.sum(w, axis=2, keepdims=True)
            # Fold the eval-mode BN scale (gamma / sqrt(var + eps)) into the
            # conv weights; only the additive shift stays in the kernel.
            w = w * scale[None, None, None, :]
            # Pack (3,3,Cin,Cout) -> (9, Cout, Cin): tap index t = dy*3 + dx.
            w9 = jnp.transpose(w, (0, 1, 3, 2)).reshape(9, cout, -1)
            self.params.append((w9.astype(jnp.bfloat16),
                                shift.reshape(cout, 1).astype(jnp.float32)))
        n = len(self._BLOCKS)
        self.metric_names = ([f"feat_{i}" for i in range(n)]
                             + [f"gram_{i}" for i in range(n)])

    def make_features(self, x2d):
        """x2d: (M, H, W) f32 in [-1, 1].  Returns hooked activations as
        (M, Cout, H*W) bf16 slabs (channels on sublanes, spatial lane-dense)."""
        M, H, W = x2d.shape
        h = x2d.reshape(M, 1, H * W).astype(jnp.bfloat16)
        feats = []
        for i, (w9, shift) in enumerate(self.params):
            xp = _flat_pad(h, W)                              # (M, Cin, HW+2W+2)
            f = conv3x3_bn_relu(xp, w9, shift, H, W)          # (M, Cout, HW)
            feats.append(f)                                   # hooked activation
            if i < len(self.params) - 1:
                h = _maxpool2x2(f, H, W)                      # bf16, 4x fewer bytes
                H //= 2
                W //= 2
        return feats

    def __call__(self, input_nchw, target_nchw):
        B = input_nchw.shape[0]
        # Stack input & target on the batch axis so the feature stack runs
        # once; `* 2 - 1` is applied to the single channel (the 3x channel
        # replication is folded into the block-0 weights).
        x = jnp.concatenate([input_nchw, target_nchw], axis=0)
        x = x[:, 0, :, :].astype(jnp.float32) * 2.0 - 1.0     # (2B, H, W)
        feats = self.make_features(x)

        n_norm = len(feats) - self.without_instancenorm
        feat_losses, gram_losses = [], []
        for l, f in enumerate(feats):
            sums = layer_loss(f, B, apply_norm=(l < n_norm), wgt=self.wgts[l])
            feat_losses.append(sums[0, 0])
            gram_losses.append(sums[0, 1])
        # TODO(synk): the reference's `except IndexError` fallback (host-side
        # control flow around broken hooks) is intentionally not reproduced.
        losses = feat_losses + gram_losses
        self.metrics = dict(zip(self.metric_names, losses))
        return sum(losses)


# ----------------------------------------------------------------------------

if __name__ == "__main__":
    key = jax.random.PRNGKey(0)
    kx, kt = jax.random.split(key)
    # single-channel NCHW images (the forward replicates them to 3 channels,
    # here folded into the block-0 conv weights)
    x = jax.random.uniform(kx, (2, 1, 32, 32), dtype=jnp.float32)
    t = jax.random.uniform(kt, (2, 1, 32, 32), dtype=jnp.float32)

    feature_loss = FeatureLoss(layer_wgts=(20.0, 70.0, 10.0),
                               without_instancenorm=1)
    loss = jax.jit(feature_loss.__call__)(x, t)
    jax.block_until_ready(loss)
    assert loss.shape == () and bool(jnp.isfinite(loss))
    print("KERNEL_OK")
</pallas_src>

<mosaic_0001>
module attributes {stable_mosaic.version = 11 : i64} {
  func.func @_conv3x3_bn_relu_kernel(%arg0: i32, %arg1: memref<1x1x1090xbf16, #tpu.memory_space<vmem>>, %arg2: memref<9x8x1xbf16, #tpu.memory_space<vmem>>, %arg3: memref<8x1xf32, #tpu.memory_space<vmem>>, %arg4: memref<1x8x1024xbf16, #tpu.memory_space<vmem>>) attributes {dimension_semantics = [#tpu.dimension_semantics<parallel>], iteration_bounds = array<i64: 4>, scalar_prefetch = 0 : i64, scratch_operands = 0 : i64, tpu.core_type = #tpu.core_type<tc>, window_params = [{transform_indices = @transform_0, window_bounds = array<i64: 1, 1, 1090>}, {pipeline_mode = #tpu.pipeline_mode<synchronous>, transform_indices = @transform_1, window_bounds = array<i64: 9, 8, 1>}, {pipeline_mode = #tpu.pipeline_mode<synchronous>, transform_indices = @transform_2, window_bounds = array<i64: 8, 1>}, {transform_indices = @transform_3, window_bounds = array<i64: 1, 8, 1024>}]} {
    %0 = tpu.iota {dimensions = array<i32: 1>} : vector<1x1024xi32>
    %c32_i32 = arith.constant 32 : i32
    %c0_i32 = arith.constant 0 : i32
    %1 = arith.cmpi eq, %c32_i32, %c0_i32 : i32
    %c1_i32 = arith.constant 1 : i32
    %2 = arith.select %1, %c1_i32, %c32_i32 : i32
    %3 = vector.broadcast %2 : i32 to vector<1x1024xi32>
    %4 = arith.remsi %0, %3 : vector<1x1024xi32>
    %c0_i32_0 = arith.constant 0 : i32
    %5 = vector.broadcast %c0_i32_0 : i32 to vector<1x1024xi32>
    %6 = arith.cmpi ne, %4, %5 : vector<1x1024xi32>
    %c0_i32_1 = arith.constant 0 : i32
    %7 = vector.broadcast %c0_i32_1 : i32 to vector<1x1024xi32>
    %8 = arith.cmpi slt, %4, %7 : vector<1x1024xi32>
    %c0_i32_2 = arith.constant 0 : i32
    %9 = arith.cmpi slt, %2, %c0_i32_2 : i32
    %10 = vector.broadcast %9 : i1 to vector<1x1024xi1>
    %11 = vector.broadcast %10 : vector<1x1024xi1> to vector<1x1024xi1>
    %12 = arith.xori %8, %11 : vector<1x1024xi1>
    %13 = arith.andi %12, %6 : vector<1x1024xi1>
    %14 = vector.broadcast %2 : i32 to vector<1x1024xi32>
    %15 = arith.addi %4, %14 : vector<1x1024xi32>
    %16 = arith.select %13, %15, %4 : vector<1x1024xi1>, vector<1x1024xi32>
    %cst = arith.constant 0.000000e+00 : f32
    %17 = vector.broadcast %cst : f32 to vector<8x1024xf32>
    %cst_3 = arith.constant 0.000000e+00 : f32
    %18 = vector.broadcast %cst_3 : f32 to vector<8x1024xf32>
    %c0 = arith.constant 0 : index
    %c0_4 = arith.constant 0 : index
    %c0_5 = arith.constant 0 : index
    %19 = vector.load %arg1[%c0, %c0_4, %c0_5] : memref<1x1x1090xbf16, #tpu.memory_space<vmem>>, vector<1x1x1024xbf16>
    %20 = vector.shape_cast %19 : vector<1x1x1024xbf16> to vector<1x1024xbf16>
    %c0_6 = arith.constant 0 : index
    %c0_7 = arith.constant 0 : index
    %c0_8 = arith.constant 0 : index
    %21 = vector.load %arg2[%c0_6, %c0_7, %c0_8] : memref<9x8x1xbf16, #tpu.memory_space<vmem>>, vector<1x8x1xbf16>
    %22 = vector.shape_cast %21 : vector<1x8x1xbf16> to vector<8x1xbf16>
    %23 = arith.extf %22 : vector<8x1xbf16> to vector<8x1xf32>
    %24 = arith.extf %20 : vector<1x1024xbf16> to vector<1x1024xf32>
    %25 = vector.broadcast %23 : vector<8x1xf32> to vector<8x1024xf32>
    %26 = vector.broadcast %24 : vector<1x1024xf32> to vector<8x1024xf32>
    %27 = arith.mulf %25, %26 : vector<8x1024xf32>
    %28 = arith.addf %18, %27 : vector<8x1024xf32>
    %c0_9 = arith.constant 0 : index
    %c0_10 = arith.constant 0 : index
    %c32 = arith.constant 32 : index
    %29 = vector.load %arg1[%c0_9, %c0_10, %c32] : memref<1x1x1090xbf16, #tpu.memory_space<vmem>>, vector<1x1x1024xbf16>
    %30 = vector.shape_cast %29 : vector<1x1x1024xbf16> to vector<1x1024xbf16>
    %c3 = arith.constant 3 : index
    %c0_11 = arith.constant 0 : index
    %c0_12 = arith.constant 0 : index
    %31 = vector.load %arg2[%c3, %c0_11, %c0_12] : memref<9x8x1xbf16, #tpu.memory_space<vmem>>, vector<1x8x1xbf16>
    %32 = vector.shape_cast %31 : vector<1x8x1xbf16> to vector<8x1xbf16>
    %33 = arith.extf %32 : vector<8x1xbf16> to vector<8x1xf32>
    %34 = arith.extf %30 : vector<1x1024xbf16> to vector<1x1024xf32>
    %35 = vector.broadcast %33 : vector<8x1xf32> to vector<8x1024xf32>
    %36 = vector.broadcast %34 : vector<1x1024xf32> to vector<8x1024xf32>
    %37 = arith.mulf %35, %36 : vector<8x1024xf32>
    %38 = arith.addf %28, %37 : vector<8x1024xf32>
    %c0_13 = arith.constant 0 : index
    %c0_14 = arith.constant 0 : index
    %c64 = arith.constant 64 : index
    %39 = vector.load %arg1[%c0_13, %c0_14, %c64] : memref<1x1x1090xbf16, #tpu.memory_space<vmem>>, vector<1x1x1024xbf16>
    %40 = vector.shape_cast %39 : vector<1x1x1024xbf16> to vector<1x1024xbf16>
    %c6 = arith.constant 6 : index
    %c0_15 = arith.constant 0 : index
    %c0_16 = arith.constant 0 : index
    %41 = vector.load %arg2[%c6, %c0_15, %c0_16] : memref<9x8x1xbf16, #tpu.memory_space<vmem>>, vector<1x8x1xbf16>
    %42 = vector.shape_cast %41 : vector<1x8x1xbf16> to vector<8x1xbf16>
    %43 = arith.extf %42 : vector<8x1xbf16> to vector<8x1xf32>
    %44 = arith.extf %40 : vector<1x1024xbf16> to vector<1x1024xf32>
    %45 = vector.broadcast %43 : vector<8x1xf32> to vector<8x1024xf32>
    %46 = vector.broadcast %44 : vector<1x1024xf32> to vector<8x1024xf32>
    %47 = arith.mulf %45, %46 : vector<8x1024xf32>
    %48 = arith.addf %38, %47 : vector<8x1024xf32>
    %c1_i32_17 = arith.constant 1 : i32
    %49 = vector.broadcast %c1_i32_17 : i32 to vector<1x1024xi32>
    %50 = arith.cmpi sge, %16, %49 : vector<1x1024xi32>
    %cst_18 = arith.constant 0.000000e+00 : f32
    %51 = vector.shape_cast %50 : vector<1x1024xi1> to vector<1x1024xi1>
    %52 = vector.broadcast %51 : vector<1x1024xi1> to vector<8x1024xi1>
    %53 = vector.broadcast %cst_18 : f32 to vector<8x1024xf32>
    %54 = arith.select %52, %48, %53 : vector<8x1024xi1>, vector<8x1024xf32>
    %55 = arith.addf %17, %54 : vector<8x1024xf32>
    %cst_19 = arith.constant 0.000000e+00 : f32
    %56 = vector.broadcast %cst_19 : f32 to vector<8x1024xf32>
    %c0_20 = arith.constant 0 : index
    %c0_21 = arith.constant 0 : index
    %c1 = arith.constant 1 : index
    %57 = vector.load %arg1[%c0_20, %c0_21, %c1] : memref<1x1x1090xbf16, #tpu.memory_space<vmem>>, vector<1x1x1024xbf16>
    %58 = vector.shape_cast %57 : vector<1x1x1024xbf16> to vector<1x1024xbf16>
    %c1_22 = arith.constant 1 : index
    %c0_23 = arith.constant 0 : index
    %c0_24 = arith.constant 0 : index
    %59 = vector.load %arg2[%c1_22, %c0_23, %c0_24] : memref<9x8x1xbf16, #tpu.memory_space<vmem>>, vector<1x8x1xbf16>
    %60 = vector.shape_cast %59 : vector<1x8x1xbf16> to vector<8x1xbf16>
    %61 = arith.extf %60 : vector<8x1xbf16> to vector<8x1xf32>
    %62 = arith.extf %58 : vector<1x1024xbf16> to vector<1x1024xf32>
    %63 = vector.broadcast %61 : vector<8x1xf32> to vector<8x1024xf32>
    %64 = vector.broadcast %62 : vector<1x1024xf32> to vector<8x1024xf32>
    %65 = arith.mulf %63, %64 : vector<8x1024xf32>
    %66 = arith.addf %56, %65 : vector<8x1024xf32>
    %c0_25 = arith.constant 0 : index
    %c0_26 = arith.constant 0 : index
    %c33 = arith.constant 33 : index
    %67 = vector.load %arg1[%c0_25, %c0_26, %c33] : memref<1x1x1090xbf16, #tpu.memory_space<vmem>>, vector<1x1x1024xbf16>
    %68 = vector.shape_cast %67 : vector<1x1x1024xbf16> to vector<1x1024xbf16>
    %c4 = arith.constant 4 : index
    %c0_27 = arith.constant 0 : index
    %c0_28 = arith.constant 0 : index
    %69 = vector.load %arg2[%c4, %c0_27, %c0_28] : memref<9x8x1xbf16, #tpu.memory_space<vmem>>, vector<1x8x1xbf16>
    %70 = vector.shape_cast %69 : vector<1x8x1xbf16> to vector<8x1xbf16>
    %71 = arith.extf %70 : vector<8x1xbf16> to vector<8x1xf32>
    %72 = arith.extf %68 : vector<1x1024xbf16> to vector<1x1024xf32>
    %73 = vector.broadcast %71 : vector<8x1xf32> to vector<8x1024xf32>
    %74 = vector.broadcast %72 : vector<1x1024xf32> to vector<8x1024xf32>
    %75 = arith.mulf %73, %74 : vector<8x1024xf32>
    %76 = arith.addf %66, %75 : vector<8x1024xf32>
    %c0_29 = arith.constant 0 : index
    %c0_30 = arith.constant 0 : index
    %c65 = arith.constant 65 : index
    %77 = vector.load %arg1[%c0_29, %c0_30, %c65] : memref<1x1x1090xbf16, #tpu.memory_space<vmem>>, vector<1x1x1024xbf16>
    %78 = vector.shape_cast %77 : vector<1x1x1024xbf16> to vector<1x1024xbf16>
    %c7 = arith.constant 7 : index
    %c0_31 = arith.constant 0 : index
    %c0_32 = arith.constant 0 : index
    %79 = vector.load %arg2[%c7, %c0_31, %c0_32] : memref<9x8x1xbf16, #tpu.memory_space<vmem>>, vector<1x8x1xbf16>
    %80 = vector.shape_cast %79 : vector<1x8x1xbf16> to vector<8x1xbf16>
    %81 = arith.extf %80 : vector<8x1xbf16> to vector<8x1xf32>
    %82 = arith.extf %78 : vector<1x1024xbf16> to vector<1x1024xf32>
    %83 = vector.broadcast %81 : vector<8x1xf32> to vector<8x1024xf32>
    %84 = vector.broadcast %82 : vector<1x1024xf32> to vector<8x1024xf32>
    %85 = arith.mulf %83, %84 : vector<8x1024xf32>
    %86 = arith.addf %76, %85 : vector<8x1024xf32>
    %87 = arith.addf %55, %86 : vector<8x1024xf32>
    %cst_33 = arith.constant 0.000000e+00 : f32
    %88 = vector.broadcast %cst_33 : f32 to vector<8x1024xf32>
    %c0_34 = arith.constant 0 : index
    %c0_35 = arith.constant 0 : index
    %c2 = arith.constant 2 : index
    %89 = vector.load %arg1[%c0_34, %c0_35, %c2] : memref<1x1x1090xbf16, #tpu.memory_space<vmem>>, vector<1x1x1024xbf16>
    %90 = vector.shape_cast %89 : vector<1x1x1024xbf16> to vector<1x1024xbf16>
    %c2_36 = arith.constant 2 : index
    %c0_37 = arith.constant 0 : index
    %c0_38 = arith.constant 0 : index
    %91 = vector.load %arg2[%c2_36, %c0_37, %c0_38] : memref<9x8x1xbf16, #tpu.memory_space<vmem>>, vector<1x8x1xbf16>
    %92 = vector.shape_cast %91 : vector<1x8x1xbf16> to vector<8x1xbf16>
    %93 = arith.extf %92 : vector<8x1xbf16> to vector<8x1xf32>
    %94 = arith.extf %90 : vector<1x1024xbf16> to vector<1x1024xf32>
    %95 = vector.broadcast %93 : vector<8x1xf32> to vector<8x1024xf32>
    %96 = vector.broadcast %94 : vector<1x1024xf32> to vector<8x1024xf32>
    %97 = arith.mulf %95, %96 : vector<8x1024xf32>
    %98 = arith.addf %88, %97 : vector<8x1024xf32>
    %c0_39 = arith.constant 0 : index
    %c0_40 = arith.constant 0 : index
    %c34 = arith.constant 34 : index
    %99 = vector.load %arg1[%c0_39, %c0_40, %c34] : memref<1x1x1090xbf16, #tpu.memory_space<vmem>>, vector<1x1x1024xbf16>
    %100 = vector.shape_cast %99 : vector<1x1x1024xbf16> to vector<1x1024xbf16>
    %c5 = arith.constant 5 : index
    %c0_41 = arith.constant 0 : index
    %c0_42 = arith.constant 0 : index
    %101 = vector.load %arg2[%c5, %c0_41, %c0_42] : memref<9x8x1xbf16, #tpu.memory_space<vmem>>, vector<1x8x1xbf16>
    %102 = vector.shape_cast %101 : vector<1x8x1xbf16> to vector<8x1xbf16>
    %103 = arith.extf %102 : vector<8x1xbf16> to vector<8x1xf32>
    %104 = arith.extf %100 : vector<1x1024xbf16> to vector<1x1024xf32>
    %105 = vector.broadcast %103 : vector<8x1xf32> to vector<8x1024xf32>
    %106 = vector.broadcast %104 : vector<1x1024xf32> to vector<8x1024xf32>
    %107 = arith.mulf %105, %106 : vector<8x1024xf32>
    %108 = arith.addf %98, %107 : vector<8x1024xf32>
    %c0_43 = arith.constant 0 : index
    %c0_44 = arith.constant 0 : index
    %c66 = arith.constant 66 : index
    %109 = vector.load %arg1[%c0_43, %c0_44, %c66] : memref<1x1x1090xbf16, #tpu.memory_space<vmem>>, vector<1x1x1024xbf16>
    %110 = vector.shape_cast %109 : vector<1x1x1024xbf16> to vector<1x1024xbf16>
    %c8 = arith.constant 8 : index
    %c0_45 = arith.constant 0 : index
    %c0_46 = arith.constant 0 : index
    %111 = vector.load %arg2[%c8, %c0_45, %c0_46] : memref<9x8x1xbf16, #tpu.memory_space<vmem>>, vector<1x8x1xbf16>
    %112 = vector.shape_cast %111 : vector<1x8x1xbf16> to vector<8x1xbf16>
    %113 = arith.extf %112 : vector<8x1xbf16> to vector<8x1xf32>
    %114 = arith.extf %110 : vector<1x1024xbf16> to vector<1x1024xf32>
    %115 = vector.broadcast %113 : vector<8x1xf32> to vector<8x1024xf32>
    %116 = vector.broadcast %114 : vector<1x1024xf32> to vector<8x1024xf32>
    %117 = arith.mulf %115, %116 : vector<8x1024xf32>
    %118 = arith.addf %108, %117 : vector<8x1024xf32>
    %c30_i32 = arith.constant 30 : i32
    %119 = vector.broadcast %c30_i32 : i32 to vector<1x1024xi32>
    %120 = arith.cmpi sle, %16, %119 : vector<1x1024xi32>
    %cst_47 = arith.constant 0.000000e+00 : f32
    %121 = vector.shape_cast %120 : vector<1x1024xi1> to vector<1x1024xi1>
    %122 = vector.broadcast %121 : vector<1x1024xi1> to vector<8x1024xi1>
    %123 = vector.broadcast %cst_47 : f32 to vector<8x1024xf32>
    %124 = arith.select %122, %118, %123 : vector<8x1024xi1>, vector<8x1024xf32>
    %125 = arith.addf %87, %124 : vector<8x1024xf32>
    %c0_48 = arith.constant 0 : index
    %c0_49 = arith.constant 0 : index
    %126 = vector.load %arg3[%c0_48, %c0_49] : memref<8x1xf32, #tpu.memory_space<vmem>>, vector<8x1xf32>
    %127 = vector.broadcast %126 : vector<8x1xf32> to vector<8x1024xf32>
    %128 = arith.addf %125, %127 : vector<8x1024xf32>
    %cst_50 = arith.constant 0.000000e+00 : f32
    %129 = vector.broadcast %cst_50 : f32 to vector<8x1024xf32>
    %130 = arith.maximumf %128, %129 : vector<8x1024xf32>
    %131 = arith.truncf %130 : vector<8x1024xf32> to vector<8x1024xbf16>
    %c0_51 = arith.constant 0 : index
    %c0_52 = arith.constant 0 : index
    %c0_53 = arith.constant 0 : index
    %132 = vector.load %arg4[%c0_51, %c0_52, %c0_53] : memref<1x8x1024xbf16, #tpu.memory_space<vmem>>, vector<1x8x1024xbf16>
    %133 = vector.shape_cast %132 : vector<1x8x1024xbf16> to vector<8x1024xbf16>
    %134 = vector.shape_cast %131 : vector<8x1024xbf16> to vector<1x8x1024xbf16>
    tpu.vector_store %arg4[%c0_51, %c0_52, %c0_53], %134 {strides = array<i32>} : memref<1x8x1024xbf16, #tpu.memory_space<vmem>>, vector<1x8x1024xbf16>,
    return
  }
  func.func @transform_0(%arg0: i32) -> (i32, i32, i32) {
    %c0_i32 = arith.constant 0 : i32
    %c0_i32_0 = arith.constant 0 : i32
    %c0_i32_1 = arith.constant 0 : i32
    return %arg0, %c0_i32, %c0_i32_0 : i32, i32, i32
  }
  func.func @transform_1(%arg0: i32) -> (i32, i32, i32) {
    %c0_i32 = arith.constant 0 : i32
    %c0_i32_0 = arith.constant 0 : i32
    %c0_i32_1 = arith.constant 0 : i32
    %c0_i32_2 = arith.constant 0 : i32
    return %c0_i32, %c0_i32_0, %c0_i32_1 : i32, i32, i32
  }
  func.func @transform_2(%arg0: i32) -> (i32, i32) {
    %c0_i32 = arith.constant 0 : i32
    %c0_i32_0 = arith.constant 0 : i32
    %c0_i32_1 = arith.constant 0 : i32
    return %c0_i32, %c0_i32_0 : i32, i32
  }
  func.func @transform_3(%arg0: i32) -> (i32, i32, i32) {
    %c0_i32 = arith.constant 0 : i32
    %c0_i32_0 = arith.constant 0 : i32
    %c0_i32_1 = arith.constant 0 : i32
    return %arg0, %c0_i32, %c0_i32_0 : i32, i32, i32
  }
}

module attributes {stable_mosaic.version = 11 : i64} {
  func.func @_layer_loss_kernel(%arg0: i32, %arg1: memref<4x8x1024xbf16, #tpu.memory_space<vmem>>, %arg2: memref<1x2xf32, #tpu.memory_space<smem>>, %arg3: memref<2x8x8xf32, #tpu.memory_space<vmem>>, %arg4: memref<2x8x8xf32, #tpu.memory_space<vmem>>, %arg5: memref<2x8x1xf32, #tpu.memory_space<vmem>>, %arg6: memref<2x8x1xf32, #tpu.memory_space<vmem>>, %arg7: memref<2x8x1xf32, #tpu.memory_space<vmem>>, %arg8: memref<2x8x1xf32, #tpu.memory_space<vmem>>, %arg9: memref<2x8x1xf32, #tpu.memory_space<vmem>>) attributes {dimension_semantics = [#tpu.dimension_semantics<arbitrary>], iteration_bounds = array<i64: 1>, scalar_prefetch = 0 : i64, scratch_operands = 7 : i64, tpu.core_type = #tpu.core_type<tc>, window_params = [{transform_indices = @transform_0, window_bounds = array<i64: 4, 8, 1024>}, {transform_indices = @transform_1, window_bounds = array<i64: 1, 2>}]} {
    %c0_i32 = arith.constant 0 : i32
    %0 = arith.cmpi eq, %arg0, %c0_i32 : i32
    %1 = arith.extui %0 : i1 to i32
    %c0_i32_0 = arith.constant 0 : i32
    %2 = arith.cmpi ne, %1, %c0_i32_0 : i32
    scf.if %2 {
      %cst_53 = arith.constant 0.000000e+00 : f32
      %47 = vector.broadcast %cst_53 : f32 to vector<2x8x8xf32>
      %c0_54 = arith.constant 0 : index
      %c0_55 = arith.constant 0 : index
      %c0_56 = arith.constant 0 : index
      %48 = vector.load %arg3[%c0_54, %c0_55, %c0_56] : memref<2x8x8xf32, #tpu.memory_space<vmem>>, vector<2x8x8xf32>
      tpu.vector_store %arg3[%c0_54, %c0_55, %c0_56], %47 {strides = array<i32>} : memref<2x8x8xf32, #tpu.memory_space<vmem>>, vector<2x8x8xf32>,
      %cst_57 = arith.constant 0.000000e+00 : f32
      %49 = vector.broadcast %cst_57 : f32 to vector<2x8x8xf32>
      %c0_58 = arith.constant 0 : index
      %c0_59 = arith.constant 0 : index
      %c0_60 = arith.constant 0 : index
      %50 = vector.load %arg4[%c0_58, %c0_59, %c0_60] : memref<2x8x8xf32, #tpu.memory_space<vmem>>, vector<2x8x8xf32>
      tpu.vector_store %arg4[%c0_58, %c0_59, %c0_60], %49 {strides = array<i32>} : memref<2x8x8xf32, #tpu.memory_space<vmem>>, vector<2x8x8xf32>,
      %cst_61 = arith.constant 0.000000e+00 : f32
      %51 = vector.broadcast %cst_61 : f32 to vector<2x8x1xf32>
      %c0_62 = arith.constant 0 : index
      %c0_63 = arith.constant 0 : index
      %c0_64 = arith.constant 0 : index
      %52 = vector.load %arg5[%c0_62, %c0_63, %c0_64] : memref<2x8x1xf32, #tpu.memory_space<vmem>>, vector<2x8x1xf32>
      tpu.vector_store %arg5[%c0_62, %c0_63, %c0_64], %51 {strides = array<i32>} : memref<2x8x1xf32, #tpu.memory_space<vmem>>, vector<2x8x1xf32>,
      %cst_65 = arith.constant 0.000000e+00 : f32
      %53 = vector.broadcast %cst_65 : f32 to vector<2x8x1xf32>
      %c0_66 = arith.constant 0 : index
      %c0_67 = arith.constant 0 : index
      %c0_68 = arith.constant 0 : index
      %54 = vector.load %arg6[%c0_66, %c0_67, %c0_68] : memref<2x8x1xf32, #tpu.memory_space<vmem>>, vector<2x8x1xf32>
      tpu.vector_store %arg6[%c0_66, %c0_67, %c0_68], %53 {strides = array<i32>} : memref<2x8x1xf32, #tpu.memory_space<vmem>>, vector<2x8x1xf32>,
      %cst_69 = arith.constant 0.000000e+00 : f32
      %55 = vector.broadcast %cst_69 : f32 to vector<2x8x1xf32>
      %c0_70 = arith.constant 0 : index
      %c0_71 = arith.constant 0 : index
      %c0_72 = arith.constant 0 : index
      %56 = vector.load %arg7[%c0_70, %c0_71, %c0_72] : memref<2x8x1xf32, #tpu.memory_space<vmem>>, vector<2x8x1xf32>
      tpu.vector_store %arg7[%c0_70, %c0_71, %c0_72], %55 {strides = array<i32>} : memref<2x8x1xf32, #tpu.memory_space<vmem>>, vector<2x8x1xf32>,
      %cst_73 = arith.constant 0.000000e+00 : f32
      %57 = vector.broadcast %cst_73 : f32 to vector<2x8x1xf32>
      %c0_74 = arith.constant 0 : index
      %c0_75 = arith.constant 0 : index
      %c0_76 = arith.constant 0 : index
      %58 = vector.load %arg8[%c0_74, %c0_75, %c0_76] : memref<2x8x1xf32, #tpu.memory_space<vmem>>, vector<2x8x1xf32>
      tpu.vector_store %arg8[%c0_74, %c0_75, %c0_76], %57 {strides = array<i32>} : memref<2x8x1xf32, #tpu.memory_space<vmem>>, vector<2x8x1xf32>,
      %cst_77 = arith.constant 0.000000e+00 : f32
      %59 = vector.broadcast %cst_77 : f32 to vector<2x8x1xf32>
      %c0_78 = arith.constant 0 : index
      %c0_79 = arith.constant 0 : index
      %c0_80 = arith.constant 0 : index
      %60 = vector.load %arg9[%c0_78, %c0_79, %c0_80] : memref<2x8x1xf32, #tpu.memory_space<vmem>>, vector<2x8x1xf32>
      tpu.vector_store %arg9[%c0_78, %c0_79, %c0_80], %59 {strides = array<i32>} : memref<2x8x1xf32, #tpu.memory_space<vmem>>, vector<2x8x1xf32>,
    } else {
    }
    %c0 = arith.constant 0 : index
    %c0_1 = arith.constant 0 : index
    %c0_2 = arith.constant 0 : index
    %3 = vector.load %arg1[%c0, %c0_1, %c0_2] : memref<4x8x1024xbf16, #tpu.memory_space<vmem>>, vector<4x8x1024xbf16>
    %4 = vector.extract_strided_slice %3 {offsets = [0, 0, 0], sizes = [2, 8, 1024], strides = [1, 1, 1]} : vector<4x8x1024xbf16> to vector<2x8x1024xbf16>
    %5 = vector.extract_strided_slice %3 {offsets = [2, 0, 0], sizes = [2, 8, 1024], strides = [1, 1, 1]} : vector<4x8x1024xbf16> to vector<2x8x1024xbf16>
    %c0_3 = arith.constant 0 : index
    %c0_4 = arith.constant 0 : index
    %c0_5 = arith.constant 0 : index
    %6 = vector.load %arg3[%c0_3, %c0_4, %c0_5] : memref<2x8x8xf32, #tpu.memory_space<vmem>>, vector<2x8x8xf32>
    %cst = arith.constant dense<0.000000e+00> : vector<2x8x8xf32>
    %7 = tpu.matmul %4, %4, %cst {dimension_numbers = #tpu.dot_dimension_numbers<[2], [2], [1], [1], [0, 0, 0, 1, 1, 1], [0], [0]>} : vector<2x8x1024xbf16>, vector<2x8x1024xbf16>, vector<2x8x8xf32> -> vector<2x8x8xf32>
    %8 = arith.addf %6, %7 : vector<2x8x8xf32>
    %c0_6 = arith.constant 0 : index
    %c0_7 = arith.constant 0 : index
    %c0_8 = arith.constant 0 : index
    %9 = vector.load %arg3[%c0_6, %c0_7, %c0_8] : memref<2x8x8xf32, #tpu.memory_space<vmem>>, vector<2x8x8xf32>
    tpu.vector_store %arg3[%c0_6, %c0_7, %c0_8], %8 {strides = array<i32>} : memref<2x8x8xf32, #tpu.memory_space<vmem>>, vector<2x8x8xf32>,
    %c0_9 = arith.constant 0 : index
    %c0_10 = arith.constant 0 : index
    %c0_11 = arith.constant 0 : index
    %10 = vector.load %arg4[%c0_9, %c0_10, %c0_11] : memref<2x8x8xf32, #tpu.memory_space<vmem>>, vector<2x8x8xf32>
    %cst_12 = arith.constant dense<0.000000e+00> : vector<2x8x8xf32>
    %11 = tpu.matmul %5, %5, %cst_12 {dimension_numbers = #tpu.dot_dimension_numbers<[2], [2], [1], [1], [0, 0, 0, 1, 1, 1], [0], [0]>} : vector<2x8x1024xbf16>, vector<2x8x1024xbf16>, vector<2x8x8xf32> -> vector<2x8x8xf32>
    %12 = arith.addf %10, %11 : vector<2x8x8xf32>
    %c0_13 = arith.constant 0 : index
    %c0_14 = arith.constant 0 : index
    %c0_15 = arith.constant 0 : index
    %13 = vector.load %arg4[%c0_13, %c0_14, %c0_15] : memref<2x8x8xf32, #tpu.memory_space<vmem>>, vector<2x8x8xf32>
    tpu.vector_store %arg4[%c0_13, %c0_14, %c0_15], %12 {strides = array<i32>} : memref<2x8x8xf32, #tpu.memory_space<vmem>>, vector<2x8x8xf32>,
    %14 = arith.extf %4 : vector<2x8x1024xbf16> to vector<2x8x1024xf32>
    %15 = arith.extf %5 : vector<2x8x1024xbf16> to vector<2x8x1024xf32>
    %c0_16 = arith.constant 0 : index
    %c0_17 = arith.constant 0 : index
    %c0_18 = arith.constant 0 : index
    %16 = vector.load %arg5[%c0_16, %c0_17, %c0_18] : memref<2x8x1xf32, #tpu.memory_space<vmem>>, vector<2x8x1xf32>
    %cst_19 = arith.constant dense<0.000000e+00> : vector<2x8xf32>
    %17 = vector.multi_reduction <add>, %14, %cst_19 [2] : vector<2x8x1024xf32> to vector<2x8xf32>
    %18 = vector.shape_cast %17 : vector<2x8xf32> to vector<2x8x1xf32>
    %19 = arith.addf %16, %18 : vector<2x8x1xf32>
    %c0_20 = arith.constant 0 : index
    %c0_21 = arith.constant 0 : index
    %c0_22 = arith.constant 0 : index
    %20 = vector.load %arg5[%c0_20, %c0_21, %c0_22] : memref<2x8x1xf32, #tpu.memory_space<vmem>>, vector<2x8x1xf32>
    tpu.vector_store %arg5[%c0_20, %c0_21, %c0_22], %19 {strides = array<i32>} : memref<2x8x1xf32, #tpu.memory_space<vmem>>, vector<2x8x1xf32>,
    %c0_23 = arith.constant 0 : index
    %c0_24 = arith.constant 0 : index
    %c0_25 = arith.constant 0 : index
    %21 = vector.load %arg6[%c0_23, %c0_24, %c0_25] : memref<2x8x1xf32, #tpu.memory_space<vmem>>, vector<2x8x1xf32>
    %cst_26 = arith.constant dense<0.000000e+00> : vector<2x8xf32>
    %22 = vector.multi_reduction <add>, %15, %cst_26 [2] : vector<2x8x1024xf32> to vector<2x8xf32>
    %23 = vector.shape_cast %22 : vector<2x8xf32> to vector<2x8x1xf32>
    %24 = arith.addf %21, %23 : vector<2x8x1xf32>
    %c0_27 = arith.constant 0 : index
    %c0_28 = arith.constant 0 : index
    %c0_29 = arith.constant 0 : index
    %25 = vector.load %arg6[%c0_27, %c0_28, %c0_29] : memref<2x8x1xf32, #tpu.memory_space<vmem>>, vector<2x8x1xf32>
    tpu.vector_store %arg6[%c0_27, %c0_28, %c0_29], %24 {strides = array<i32>} : memref<2x8x1xf32, #tpu.memory_space<vmem>>, vector<2x8x1xf32>,
    %c0_30 = arith.constant 0 : index
    %c0_31 = arith.constant 0 : index
    %c0_32 = arith.constant 0 : index
    %26 = vector.load %arg7[%c0_30, %c0_31, %c0_32] : memref<2x8x1xf32, #tpu.memory_space<vmem>>, vector<2x8x1xf32>
    %27 = arith.mulf %14, %14 : vector<2x8x1024xf32>
    %cst_33 = arith.constant dense<0.000000e+00> : vector<2x8xf32>
    %28 = vector.multi_reduction <add>, %27, %cst_33 [2] : vector<2x8x1024xf32> to vector<2x8xf32>
    %29 = vector.shape_cast %28 : vector<2x8xf32> to vector<2x8x1xf32>
    %30 = arith.addf %26, %29 : vector<2x8x1xf32>
    %c0_34 = arith.constant 0 : index
    %c0_35 = arith.constant 0 : index
    %c0_36 = arith.constant 0 : index
    %31 = vector.load %arg7[%c0_34, %c0_35, %c0_36] : memref<2x8x1xf32, #tpu.memory_space<vmem>>, vector<2x8x1xf32>
    tpu.vector_store %arg7[%c0_34, %c0_35, %c0_36], %30 {strides = array<i32>} : memref<2x8x1xf32, #tpu.memory_space<vmem>>, vector<2x8x1xf32>,
    %c0_37 = arith.constant 0 : index
    %c0_38 = arith.constant 0 : index
    %c0_39 = arith.constant 0 : index
    %32 = vector.load %arg8[%c0_37, %c0_38, %c0_39] : memref<2x8x1xf32, #tpu.memory_space<vmem>>, vector<2x8x1xf32>
    %33 = arith.mulf %15, %15 : vector<2x8x1024xf32>
    %cst_40 = arith.constant dense<0.000000e+00> : vector<2x8xf32>
    %34 = vector.multi_reduction <add>, %33, %cst_40 [2] : vector<2x8x1024xf32> to vector<2x8xf32>
    %35 = vector.shape_cast %34 : vector<2x8xf32> to vector<2x8x1xf32>
    %36 = arith.addf %32, %35 : vector<2x8x1xf32>
    %c0_41 = arith.constant 0 : index
    %c0_42 = arith.constant 0 : index
    %c0_43 = arith.constant 0 : index
    %37 = vector.load %arg8[%c0_41, %c0_42, %c0_43] : memref<2x8x1xf32, #tpu.memory_space<vmem>>, vector<2x8x1xf32>
    tpu.vector_store %arg8[%c0_41, %c0_42, %c0_43], %36 {strides = array<i32>} : memref<2x8x1xf32, #tpu.memory_space<vmem>>, vector<2x8x1xf32>,
    %c0_44 = arith.constant 0 : index
    %c0_45 = arith.constant 0 : index
    %c0_46 = arith.constant 0 : index
    %38 = vector.load %arg9[%c0_44, %c0_45, %c0_46] : memref<2x8x1xf32, #tpu.memory_space<vmem>>, vector<2x8x1xf32>
    %39 = arith.mulf %14, %15 : vector<2x8x1024xf32>
    %cst_47 = arith.constant dense<0.000000e+00> : vector<2x8xf32>
    %40 = vector.multi_reduction <add>, %39, %cst_47 [2] : vector<2x8x1024xf32> to vector<2x8xf32>
    %41 = vector.shape_cast %40 : vector<2x8xf32> to vector<2x8x1xf32>
    %42 = arith.addf %38, %41 : vector<2x8x1xf32>
    %c0_48 = arith.constant 0 : index
    %c0_49 = arith.constant 0 : index
    %c0_50 = arith.constant 0 : index
    %43 = vector.load %arg9[%c0_48, %c0_49, %c0_50] : memref<2x8x1xf32, #tpu.memory_space<vmem>>, vector<2x8x1xf32>
    tpu.vector_store %arg9[%c0_48, %c0_49, %c0_50], %42 {strides = array<i32>} : memref<2x8x1xf32, #tpu.memory_space<vmem>>, vector<2x8x1xf32>,
    %c0_i32_51 = arith.constant 0 : i32
    %44 = arith.cmpi eq, %arg0, %c0_i32_51 : i32
    %45 = arith.extui %44 : i1 to i32
    %c0_i32_52 = arith.constant 0 : i32
    %46 = arith.cmpi ne, %45, %c0_i32_52 : i32
    scf.if %46 {
      %c0_53 = arith.constant 0 : index
      %c0_54 = arith.constant 0 : index
      %c0_55 = arith.constant 0 : index
      %47 = vector.load %arg3[%c0_53, %c0_54, %c0_55] : memref<2x8x8xf32, #tpu.memory_space<vmem>>, vector<2x8x8xf32>
      %c0_56 = arith.constant 0 : index
      %c0_57 = arith.constant 0 : index
      %c0_58 = arith.constant 0 : index
      %48 = vector.load %arg4[%c0_56, %c0_57, %c0_58] : memref<2x8x8xf32, #tpu.memory_space<vmem>>, vector<2x8x8xf32>
      %c0_59 = arith.constant 0 : index
      %c0_60 = arith.constant 0 : index
      %c0_61 = arith.constant 0 : index
      %49 = vector.load %arg5[%c0_59, %c0_60, %c0_61] : memref<2x8x1xf32, #tpu.memory_space<vmem>>, vector<2x8x1xf32>
      %c0_62 = arith.constant 0 : index
      %c0_63 = arith.constant 0 : index
      %c0_64 = arith.constant 0 : index
      %50 = vector.load %arg6[%c0_62, %c0_63, %c0_64] : memref<2x8x1xf32, #tpu.memory_space<vmem>>, vector<2x8x1xf32>
      %c0_65 = arith.constant 0 : index
      %c0_66 = arith.constant 0 : index
      %c0_67 = arith.constant 0 : index
      %51 = vector.load %arg7[%c0_65, %c0_66, %c0_67] : memref<2x8x1xf32, #tpu.memory_space<vmem>>, vector<2x8x1xf32>
      %c0_68 = arith.constant 0 : index
      %c0_69 = arith.constant 0 : index
      %c0_70 = arith.constant 0 : index
      %52 = vector.load %arg8[%c0_68, %c0_69, %c0_70] : memref<2x8x1xf32, #tpu.memory_space<vmem>>, vector<2x8x1xf32>
      %c0_71 = arith.constant 0 : index
      %c0_72 = arith.constant 0 : index
      %c0_73 = arith.constant 0 : index
      %53 = vector.load %arg9[%c0_71, %c0_72, %c0_73] : memref<2x8x1xf32, #tpu.memory_space<vmem>>, vector<2x8x1xf32>
      %cst_74 = arith.constant 9.765625E-4 : f32
      %54 = vector.broadcast %cst_74 : f32 to vector<2x8x1xf32>
      %55 = arith.mulf %51, %54 : vector<2x8x1xf32>
      %cst_75 = arith.constant 9.765625E-4 : f32
      %56 = vector.broadcast %cst_75 : f32 to vector<2x8x1xf32>
      %57 = arith.mulf %49, %56 : vector<2x8x1xf32>
      %58 = arith.mulf %57, %57 : vector<2x8x1xf32>
      %59 = arith.subf %55, %58 : vector<2x8x1xf32>
      %cst_76 = arith.constant 0.000000e+00 : f32
      %60 = vector.broadcast %cst_76 : f32 to vector<2x8x1xf32>
      %61 = arith.maximumf %59, %60 : vector<2x8x1xf32>
      %cst_77 = arith.constant 9.765625E-4 : f32
      %62 = vector.broadcast %cst_77 : f32 to vector<2x8x1xf32>
      %63 = arith.mulf %52, %62 : vector<2x8x1xf32>
      %cst_78 = arith.constant 9.765625E-4 : f32
      %64 = vector.broadcast %cst_78 : f32 to vector<2x8x1xf32>
      %65 = arith.mulf %50, %64 : vector<2x8x1xf32>
      %66 = arith.mulf %65, %65 : vector<2x8x1xf32>
      %67 = arith.subf %63, %66 : vector<2x8x1xf32>
      %cst_79 = arith.constant 0.000000e+00 : f32
      %68 = vector.broadcast %cst_79 : f32 to vector<2x8x1xf32>
      %69 = arith.maximumf %67, %68 : vector<2x8x1xf32>
      %cst_80 = arith.constant 9.99999974E-6 : f32
      %70 = vector.broadcast %cst_80 : f32 to vector<2x8x1xf32>
      %71 = arith.addf %61, %70 : vector<2x8x1xf32>
      %72 = math.rsqrt %71 : vector<2x8x1xf32>
      %cst_81 = arith.constant 9.99999974E-6 : f32
      %73 = vector.broadcast %cst_81 : f32 to vector<2x8x1xf32>
      %74 = arith.addf %69, %73 : vector<2x8x1xf32>
      %75 = math.rsqrt %74 : vector<2x8x1xf32>
      %76 = arith.mulf %49, %49 : vector<2x8x1xf32>
      %cst_82 = arith.constant 9.765625E-4 : f32
      %77 = vector.broadcast %cst_82 : f32 to vector<2x8x1xf32>
      %78 = arith.mulf %76, %77 : vector<2x8x1xf32>
      %79 = arith.subf %51, %78 : vector<2x8x1xf32>
      %80 = arith.mulf %50, %50 : vector<2x8x1xf32>
      %cst_83 = arith.constant 9.765625E-4 : f32
      %81 = vector.broadcast %cst_83 : f32 to vector<2x8x1xf32>
      %82 = arith.mulf %80, %81 : vector<2x8x1xf32>
      %83 = arith.subf %52, %82 : vector<2x8x1xf32>
      %84 = arith.mulf %49, %50 : vector<2x8x1xf32>
      %cst_84 = arith.constant 9.765625E-4 : f32
      %85 = vector.broadcast %cst_84 : f32 to vector<2x8x1xf32>
      %86 = arith.mulf %84, %85 : vector<2x8x1xf32>
      %87 = arith.subf %53, %86 : vector<2x8x1xf32>
      %88 = arith.mulf %72, %72 : vector<2x8x1xf32>
      %89 = arith.mulf %88, %79 : vector<2x8x1xf32>
      %90 = arith.mulf %75, %75 : vector<2x8x1xf32>
      %91 = arith.mulf %90, %83 : vector<2x8x1xf32>
      %92 = arith.addf %89, %91 : vector<2x8x1xf32>
      %93 = arith.mulf %72, %75 : vector<2x8x1xf32>
      %cst_85 = arith.constant 2.000000e+00 : f32
      %94 = vector.broadcast %cst_85 : f32 to vector<2x8x1xf32>
      %95 = arith.mulf %94, %93 : vector<2x8x1xf32>
      %96 = arith.mulf %95, %87 : vector<2x8x1xf32>
      %97 = arith.subf %92, %96 : vector<2x8x1xf32>
      %98 = vector.shape_cast %97 : vector<2x8x1xf32> to vector<1x2x8x1xf32>
      %cst_86 = arith.constant dense<0.000000e+00> : vector<1xf32>
      %99 = vector.multi_reduction <add>, %98, %cst_86 [1, 2, 3] : vector<1x2x8x1xf32> to vector<1xf32>
      %100 = vector.shape_cast %99 : vector<1xf32> to vector<1x1x1x1xf32>
      %101 = vector.extract %100[0, 0, 0, 0] : f32 from vector<1x1x1x1xf32>
      %102 = tpu.iota {dimensions = array<i32: 0>} : vector<8x8xi32>
      %103 = tpu.iota {dimensions = array<i32: 1>} : vector<8x8xi32>
      %104 = arith.cmpi eq, %102, %103 : vector<8x8xi32>
      %105 = arith.extui %104 : vector<8x8xi1> to vector<8x8xi32>
      %106 = arith.sitofp %105 : vector<8x8xi32> to vector<8x8xf32>
      %107 = vector.shape_cast %49 : vector<2x8x1xf32> to vector<2x8x1xf32>
      %108 = vector.broadcast %107 : vector<2x8x1xf32> to vector<2x8x8xf32>
      %109 = vector.shape_cast %106 : vector<8x8xf32> to vector<1x8x8xf32>
      %110 = vector.broadcast %109 : vector<1x8x8xf32> to vector<2x8x8xf32>
      %111 = vector.broadcast %49 : vector<2x8x1xf32> to vector<2x8x8xf32>
      %112 = arith.mulf %110, %111 : vector<2x8x8xf32>
      %cst_87 = arith.constant dense<0.000000e+00> : vector<2x8x8xf32>
      %113 = tpu.matmul %108, %112, %cst_87 {dimension_numbers = #tpu.dot_dimension_numbers<[2], [1], [1], [2], [0, 0, 0, 1, 1, 2], [0], [0]>} : vector<2x8x8xf32>, vector<2x8x8xf32>, vector<2x8x8xf32> -> vector<2x8x8xf32>
      %cst_88 = arith.constant 9.765625E-4 : f32
      %114 = vector.broadcast %cst_88 : f32 to vector<2x8x8xf32>
      %115 = arith.mulf %113, %114 : vector<2x8x8xf32>
      %116 = arith.subf %47, %115 : vector<2x8x8xf32>
      %117 = vector.broadcast %72 : vector<2x8x1xf32> to vector<2x8x8xf32>
      %118 = arith.mulf %116, %117 : vector<2x8x8xf32>
      %119 = vector.shape_cast %106 : vector<8x8xf32> to vector<1x8x8xf32>
      %120 = vector.broadcast %119 : vector<1x8x8xf32> to vector<2x8x8xf32>
      %121 = vector.broadcast %72 : vector<2x8x1xf32> to vector<2x8x8xf32>
      %122 = arith.mulf %120, %121 : vector<2x8x8xf32>
      %cst_89 = arith.constant dense<0.000000e+00> : vector<2x8x8xf32>
      %123 = tpu.matmul %118, %122, %cst_89 {dimension_numbers = #tpu.dot_dimension_numbers<[2], [1], [1], [2], [0, 0, 0, 1, 1, 2], [0], [0]>} : vector<2x8x8xf32>, vector<2x8x8xf32>, vector<2x8x8xf32> -> vector<2x8x8xf32>
      %cst_90 = arith.constant 1.22070313E-4 : f32
      %124 = vector.broadcast %cst_90 : f32 to vector<2x8x8xf32>
      %125 = arith.mulf %123, %124 : vector<2x8x8xf32>
      %126 = vector.shape_cast %50 : vector<2x8x1xf32> to vector<2x8x1xf32>
      %127 = vector.broadcast %126 : vector<2x8x1xf32> to vector<2x8x8xf32>
      %128 = vector.shape_cast %106 : vector<8x8xf32> to vector<1x8x8xf32>
      %129 = vector.broadcast %128 : vector<1x8x8xf32> to vector<2x8x8xf32>
      %130 = vector.broadcast %50 : vector<2x8x1xf32> to vector<2x8x8xf32>
      %131 = arith.mulf %129, %130 : vector<2x8x8xf32>
      %cst_91 = arith.constant dense<0.000000e+00> : vector<2x8x8xf32>
      %132 = tpu.matmul %127, %131, %cst_91 {dimension_numbers = #tpu.dot_dimension_numbers<[2], [1], [1], [2], [0, 0, 0, 1, 1, 2], [0], [0]>} : vector<2x8x8xf32>, vector<2x8x8xf32>, vector<2x8x8xf32> -> vector<2x8x8xf32>
      %cst_92 = arith.constant 9.765625E-4 : f32
      %133 = vector.broadcast %cst_92 : f32 to vector<2x8x8xf32>
      %134 = arith.mulf %132, %133 : vector<2x8x8xf32>
      %135 = arith.subf %48, %134 : vector<2x8x8xf32>
      %136 = vector.broadcast %75 : vector<2x8x1xf32> to vector<2x8x8xf32>
      %137 = arith.mulf %135, %136 : vector<2x8x8xf32>
      %138 = vector.shape_cast %106 : vector<8x8xf32> to vector<1x8x8xf32>
      %139 = vector.broadcast %138 : vector<1x8x8xf32> to vector<2x8x8xf32>
      %140 = vector.broadcast %75 : vector<2x8x1xf32> to vector<2x8x8xf32>
      %141 = arith.mulf %139, %140 : vector<2x8x8xf32>
      %cst_93 = arith.constant dense<0.000000e+00> : vector<2x8x8xf32>
      %142 = tpu.matmul %137, %141, %cst_93 {dimension_numbers = #tpu.dot_dimension_numbers<[2], [1], [1], [2], [0, 0, 0, 1, 1, 2], [0], [0]>} : vector<2x8x8xf32>, vector<2x8x8xf32>, vector<2x8x8xf32> -> vector<2x8x8xf32>
      %cst_94 = arith.constant 1.22070313E-4 : f32
      %143 = vector.broadcast %cst_94 : f32 to vector<2x8x8xf32>
      %144 = arith.mulf %142, %143 : vector<2x8x8xf32>
      %145 = arith.subf %125, %144 : vector<2x8x8xf32>
      %146 = arith.mulf %145, %145 : vector<2x8x8xf32>
      %147 = vector.shape_cast %146 : vector<2x8x8xf32> to vector<1x2x8x8xf32>
      %cst_95 = arith.constant dense<0.000000e+00> : vector<1xf32>
      %148 = vector.multi_reduction <add>, %147, %cst_95 [1, 2, 3] : vector<1x2x8x8xf32> to vector<1xf32>
      %149 = vector.shape_cast %148 : vector<1xf32> to vector<1x1x1x1xf32>
      %150 = vector.extract %149[0, 0, 0, 0] : f32 from vector<1x1x1x1xf32>
      %cst_96 = arith.constant 0.00122070313 : f32
      %151 = arith.mulf %101, %cst_96 : f32
      %c0_97 = arith.constant 0 : index
      %c0_98 = arith.constant 0 : index
      %152 = memref.load %arg2[%c0_97, %c0_98] : memref<1x2xf32, #tpu.memory_space<smem>>
      memref.store %151, %arg2[%c0_97, %c0_98] : memref<1x2xf32, #tpu.memory_space<smem>>
      %cst_99 = arith.constant 1.562500e+04 : f32
      %153 = arith.mulf %150, %cst_99 : f32
      %c0_100 = arith.constant 0 : index
      %c1 = arith.constant 1 : index
      %154 = memref.load %arg2[%c0_100, %c1] : memref<1x2xf32, #tpu.memory_space<smem>>
      memref.store %153, %arg2[%c0_100, %c1] : memref<1x2xf32, #tpu.memory_space<smem>>
    } else {
    }
    return
  }
  func.func @transform_0(%arg0: i32) -> (i32, i32, i32) {
    %c0_i32 = arith.constant 0 : i32
    %c0_i32_0 = arith.constant 0 : i32
    %c0_i32_1 = arith.constant 0 : i32
    return %c0_i32, %c0_i32_0, %arg0 : i32, i32, i32
  }
  func.func @transform_1(%arg0: i32) -> (i32, i32) {
    %c0_i32 = arith.constant 0 : i32
    %c0_i32_0 = arith.constant 0 : i32
    %c0_i32_1 = arith.constant 0 : i32
    return %c0_i32, %c0_i32_0 : i32, i32
  }
}

module attributes {stable_mosaic.version = 11 : i64} {
  func.func @_layer_loss_kernel(%arg0: i32, %arg1: memref<4x16x256xbf16, #tpu.memory_space<vmem>>, %arg2: memref<1x2xf32, #tpu.memory_space<smem>>, %arg3: memref<2x16x16xf32, #tpu.memory_space<vmem>>, %arg4: memref<2x16x16xf32, #tpu.memory_space<vmem>>, %arg5: memref<2x16x1xf32, #tpu.memory_space<vmem>>, %arg6: memref<2x16x1xf32, #tpu.memory_space<vmem>>, %arg7: memref<2x16x1xf32, #tpu.memory_space<vmem>>, %arg8: memref<2x16x1xf32, #tpu.memory_space<vmem>>, %arg9: memref<2x16x1xf32, #tpu.memory_space<vmem>>) attributes {dimension_semantics = [#tpu.dimension_semantics<arbitrary>], iteration_bounds = array<i64: 1>, scalar_prefetch = 0 : i64, scratch_operands = 7 : i64, tpu.core_type = #tpu.core_type<tc>, window_params = [{transform_indices = @transform_0, window_bounds = array<i64: 4, 16, 256>}, {transform_indices = @transform_1, window_bounds = array<i64: 1, 2>}]} {
    %c0_i32 = arith.constant 0 : i32
    %0 = arith.cmpi eq, %arg0, %c0_i32 : i32
    %1 = arith.extui %0 : i1 to i32
    %c0_i32_0 = arith.constant 0 : i32
    %2 = arith.cmpi ne, %1, %c0_i32_0 : i32
    scf.if %2 {
      %cst_53 = arith.constant 0.000000e+00 : f32
      %47 = vector.broadcast %cst_53 : f32 to vector<2x16x16xf32>
      %c0_54 = arith.constant 0 : index
      %c0_55 = arith.constant 0 : index
      %c0_56 = arith.constant 0 : index
      %48 = vector.load %arg3[%c0_54, %c0_55, %c0_56] : memref<2x16x16xf32, #tpu.memory_space<vmem>>, vector<2x16x16xf32>
      tpu.vector_store %arg3[%c0_54, %c0_55, %c0_56], %47 {strides = array<i32>} : memref<2x16x16xf32, #tpu.memory_space<vmem>>, vector<2x16x16xf32>,
      %cst_57 = arith.constant 0.000000e+00 : f32
      %49 = vector.broadcast %cst_57 : f32 to vector<2x16x16xf32>
      %c0_58 = arith.constant 0 : index
      %c0_59 = arith.constant 0 : index
      %c0_60 = arith.constant 0 : index
      %50 = vector.load %arg4[%c0_58, %c0_59, %c0_60] : memref<2x16x16xf32, #tpu.memory_space<vmem>>, vector<2x16x16xf32>
      tpu.vector_store %arg4[%c0_58, %c0_59, %c0_60], %49 {strides = array<i32>} : memref<2x16x16xf32, #tpu.memory_space<vmem>>, vector<2x16x16xf32>,
      %cst_61 = arith.constant 0.000000e+00 : f32
      %51 = vector.broadcast %cst_61 : f32 to vector<2x16x1xf32>
      %c0_62 = arith.constant 0 : index
      %c0_63 = arith.constant 0 : index
      %c0_64 = arith.constant 0 : index
      %52 = vector.load %arg5[%c0_62, %c0_63, %c0_64] : memref<2x16x1xf32, #tpu.memory_space<vmem>>, vector<2x16x1xf32>
      tpu.vector_store %arg5[%c0_62, %c0_63, %c0_64], %51 {strides = array<i32>} : memref<2x16x1xf32, #tpu.memory_space<vmem>>, vector<2x16x1xf32>,
      %cst_65 = arith.constant 0.000000e+00 : f32
      %53 = vector.broadcast %cst_65 : f32 to vector<2x16x1xf32>
      %c0_66 = arith.constant 0 : index
      %c0_67 = arith.constant 0 : index
      %c0_68 = arith.constant 0 : index
      %54 = vector.load %arg6[%c0_66, %c0_67, %c0_68] : memref<2x16x1xf32, #tpu.memory_space<vmem>>, vector<2x16x1xf32>
      tpu.vector_store %arg6[%c0_66, %c0_67, %c0_68], %53 {strides = array<i32>} : memref<2x16x1xf32, #tpu.memory_space<vmem>>, vector<2x16x1xf32>,
      %cst_69 = arith.constant 0.000000e+00 : f32
      %55 = vector.broadcast %cst_69 : f32 to vector<2x16x1xf32>
      %c0_70 = arith.constant 0 : index
      %c0_71 = arith.constant 0 : index
      %c0_72 = arith.constant 0 : index
      %56 = vector.load %arg7[%c0_70, %c0_71, %c0_72] : memref<2x16x1xf32, #tpu.memory_space<vmem>>, vector<2x16x1xf32>
      tpu.vector_store %arg7[%c0_70, %c0_71, %c0_72], %55 {strides = array<i32>} : memref<2x16x1xf32, #tpu.memory_space<vmem>>, vector<2x16x1xf32>,
      %cst_73 = arith.constant 0.000000e+00 : f32
      %57 = vector.broadcast %cst_73 : f32 to vector<2x16x1xf32>
      %c0_74 = arith.constant 0 : index
      %c0_75 = arith.constant 0 : index
      %c0_76 = arith.constant 0 : index
      %58 = vector.load %arg8[%c0_74, %c0_75, %c0_76] : memref<2x16x1xf32, #tpu.memory_space<vmem>>, vector<2x16x1xf32>
      tpu.vector_store %arg8[%c0_74, %c0_75, %c0_76], %57 {strides = array<i32>} : memref<2x16x1xf32, #tpu.memory_space<vmem>>, vector<2x16x1xf32>,
      %cst_77 = arith.constant 0.000000e+00 : f32
      %59 = vector.broadcast %cst_77 : f32 to vector<2x16x1xf32>
      %c0_78 = arith.constant 0 : index
      %c0_79 = arith.constant 0 : index
      %c0_80 = arith.constant 0 : index
      %60 = vector.load %arg9[%c0_78, %c0_79, %c0_80] : memref<2x16x1xf32, #tpu.memory_space<vmem>>, vector<2x16x1xf32>
      tpu.vector_store %arg9[%c0_78, %c0_79, %c0_80], %59 {strides = array<i32>} : memref<2x16x1xf32, #tpu.memory_space<vmem>>, vector<2x16x1xf32>,
    } else {
    }
    %c0 = arith.constant 0 : index
    %c0_1 = arith.constant 0 : index
    %c0_2 = arith.constant 0 : index
    %3 = vector.load %arg1[%c0, %c0_1, %c0_2] : memref<4x16x256xbf16, #tpu.memory_space<vmem>>, vector<4x16x256xbf16>
    %4 = vector.extract_strided_slice %3 {offsets = [0, 0, 0], sizes = [2, 16, 256], strides = [1, 1, 1]} : vector<4x16x256xbf16> to vector<2x16x256xbf16>
    %5 = vector.extract_strided_slice %3 {offsets = [2, 0, 0], sizes = [2, 16, 256], strides = [1, 1, 1]} : vector<4x16x256xbf16> to vector<2x16x256xbf16>
    %c0_3 = arith.constant 0 : index
    %c0_4 = arith.constant 0 : index
    %c0_5 = arith.constant 0 : index
    %6 = vector.load %arg3[%c0_3, %c0_4, %c0_5] : memref<2x16x16xf32, #tpu.memory_space<vmem>>, vector<2x16x16xf32>
    %cst = arith.constant dense<0.000000e+00> : vector<2x16x16xf32>
    %7 = tpu.matmul %4, %4, %cst {dimension_numbers = #tpu.dot_dimension_numbers<[2], [2], [1], [1], [0, 0, 0, 1, 1, 1], [0], [0]>} : vector<2x16x256xbf16>, vector<2x16x256xbf16>, vector<2x16x16xf32> -> vector<2x16x16xf32>
    %8 = arith.addf %6, %7 : vector<2x16x16xf32>
    %c0_6 = arith.constant 0 : index
    %c0_7 = arith.constant 0 : index
    %c0_8 = arith.constant 0 : index
    %9 = vector.load %arg3[%c0_6, %c0_7, %c0_8] : memref<2x16x16xf32, #tpu.memory_space<vmem>>, vector<2x16x16xf32>
    tpu.vector_store %arg3[%c0_6, %c0_7, %c0_8], %8 {strides = array<i32>} : memref<2x16x16xf32, #tpu.memory_space<vmem>>, vector<2x16x16xf32>,
    %c0_9 = arith.constant 0 : index
    %c0_10 = arith.constant 0 : index
    %c0_11 = arith.constant 0 : index
    %10 = vector.load %arg4[%c0_9, %c0_10, %c0_11] : memref<2x16x16xf32, #tpu.memory_space<vmem>>, vector<2x16x16xf32>
    %cst_12 = arith.constant dense<0.000000e+00> : vector<2x16x16xf32>
    %11 = tpu.matmul %5, %5, %cst_12 {dimension_numbers = #tpu.dot_dimension_numbers<[2], [2], [1], [1], [0, 0, 0, 1, 1, 1], [0], [0]>} : vector<2x16x256xbf16>, vector<2x16x256xbf16>, vector<2x16x16xf32> -> vector<2x16x16xf32>
    %12 = arith.addf %10, %11 : vector<2x16x16xf32>
    %c0_13 = arith.constant 0 : index
    %c0_14 = arith.constant 0 : index
    %c0_15 = arith.constant 0 : index
    %13 = vector.load %arg4[%c0_13, %c0_14, %c0_15] : memref<2x16x16xf32, #tpu.memory_space<vmem>>, vector<2x16x16xf32>
    tpu.vector_store %arg4[%c0_13, %c0_14, %c0_15], %12 {strides = array<i32>} : memref<2x16x16xf32, #tpu.memory_space<vmem>>, vector<2x16x16xf32>,
    %14 = arith.extf %4 : vector<2x16x256xbf16> to vector<2x16x256xf32>
    %15 = arith.extf %5 : vector<2x16x256xbf16> to vector<2x16x256xf32>
    %c0_16 = arith.constant 0 : index
    %c0_17 = arith.constant 0 : index
    %c0_18 = arith.constant 0 : index
    %16 = vector.load %arg5[%c0_16, %c0_17, %c0_18] : memref<2x16x1xf32, #tpu.memory_space<vmem>>, vector<2x16x1xf32>
    %cst_19 = arith.constant dense<0.000000e+00> : vector<2x16xf32>
    %17 = vector.multi_reduction <add>, %14, %cst_19 [2] : vector<2x16x256xf32> to vector<2x16xf32>
    %18 = vector.shape_cast %17 : vector<2x16xf32> to vector<2x16x1xf32>
    %19 = arith.addf %16, %18 : vector<2x16x1xf32>
    %c0_20 = arith.constant 0 : index
    %c0_21 = arith.constant 0 : index
    %c0_22 = arith.constant 0 : index
    %20 = vector.load %arg5[%c0_20, %c0_21, %c0_22] : memref<2x16x1xf32, #tpu.memory_space<vmem>>, vector<2x16x1xf32>
    tpu.vector_store %arg5[%c0_20, %c0_21, %c0_22], %19 {strides = array<i32>} : memref<2x16x1xf32, #tpu.memory_space<vmem>>, vector<2x16x1xf32>,
    %c0_23 = arith.constant 0 : index
    %c0_24 = arith.constant 0 : index
    %c0_25 = arith.constant 0 : index
    %21 = vector.load %arg6[%c0_23, %c0_24, %c0_25] : memref<2x16x1xf32, #tpu.memory_space<vmem>>, vector<2x16x1xf32>
    %cst_26 = arith.constant dense<0.000000e+00> : vector<2x16xf32>
    %22 = vector.multi_reduction <add>, %15, %cst_26 [2] : vector<2x16x256xf32> to vector<2x16xf32>
    %23 = vector.shape_cast %22 : vector<2x16xf32> to vector<2x16x1xf32>
    %24 = arith.addf %21, %23 : vector<2x16x1xf32>
    %c0_27 = arith.constant 0 : index
    %c0_28 = arith.constant 0 : index
    %c0_29 = arith.constant 0 : index
    %25 = vector.load %arg6[%c0_27, %c0_28, %c0_29] : memref<2x16x1xf32, #tpu.memory_space<vmem>>, vector<2x16x1xf32>
    tpu.vector_store %arg6[%c0_27, %c0_28, %c0_29], %24 {strides = array<i32>} : memref<2x16x1xf32, #tpu.memory_space<vmem>>, vector<2x16x1xf32>,
    %c0_30 = arith.constant 0 : index
    %c0_31 = arith.constant 0 : index
    %c0_32 = arith.constant 0 : index
    %26 = vector.load %arg7[%c0_30, %c0_31, %c0_32] : memref<2x16x1xf32, #tpu.memory_space<vmem>>, vector<2x16x1xf32>
    %27 = arith.mulf %14, %14 : vector<2x16x256xf32>
    %cst_33 = arith.constant dense<0.000000e+00> : vector<2x16xf32>
    %28 = vector.multi_reduction <add>, %27, %cst_33 [2] : vector<2x16x256xf32> to vector<2x16xf32>
    %29 = vector.shape_cast %28 : vector<2x16xf32> to vector<2x16x1xf32>
    %30 = arith.addf %26, %29 : vector<2x16x1xf32>
    %c0_34 = arith.constant 0 : index
    %c0_35 = arith.constant 0 : index
    %c0_36 = arith.constant 0 : index
    %31 = vector.load %arg7[%c0_34, %c0_35, %c0_36] : memref<2x16x1xf32, #tpu.memory_space<vmem>>, vector<2x16x1xf32>
    tpu.vector_store %arg7[%c0_34, %c0_35, %c0_36], %30 {strides = array<i32>} : memref<2x16x1xf32, #tpu.memory_space<vmem>>, vector<2x16x1xf32>,
    %c0_37 = arith.constant 0 : index
    %c0_38 = arith.constant 0 : index
    %c0_39 = arith.constant 0 : index
    %32 = vector.load %arg8[%c0_37, %c0_38, %c0_39] : memref<2x16x1xf32, #tpu.memory_space<vmem>>, vector<2x16x1xf32>
    %33 = arith.mulf %15, %15 : vector<2x16x256xf32>
    %cst_40 = arith.constant dense<0.000000e+00> : vector<2x16xf32>
    %34 = vector.multi_reduction <add>, %33, %cst_40 [2] : vector<2x16x256xf32> to vector<2x16xf32>
    %35 = vector.shape_cast %34 : vector<2x16xf32> to vector<2x16x1xf32>
    %36 = arith.addf %32, %35 : vector<2x16x1xf32>
    %c0_41 = arith.constant 0 : index
    %c0_42 = arith.constant 0 : index
    %c0_43 = arith.constant 0 : index
    %37 = vector.load %arg8[%c0_41, %c0_42, %c0_43] : memref<2x16x1xf32, #tpu.memory_space<vmem>>, vector<2x16x1xf32>
    tpu.vector_store %arg8[%c0_41, %c0_42, %c0_43], %36 {strides = array<i32>} : memref<2x16x1xf32, #tpu.memory_space<vmem>>, vector<2x16x1xf32>,
    %c0_44 = arith.constant 0 : index
    %c0_45 = arith.constant 0 : index
    %c0_46 = arith.constant 0 : index
    %38 = vector.load %arg9[%c0_44, %c0_45, %c0_46] : memref<2x16x1xf32, #tpu.memory_space<vmem>>, vector<2x16x1xf32>
    %39 = arith.mulf %14, %15 : vector<2x16x256xf32>
    %cst_47 = arith.constant dense<0.000000e+00> : vector<2x16xf32>
    %40 = vector.multi_reduction <add>, %39, %cst_47 [2] : vector<2x16x256xf32> to vector<2x16xf32>
    %41 = vector.shape_cast %40 : vector<2x16xf32> to vector<2x16x1xf32>
    %42 = arith.addf %38, %41 : vector<2x16x1xf32>
    %c0_48 = arith.constant 0 : index
    %c0_49 = arith.constant 0 : index
    %c0_50 = arith.constant 0 : index
    %43 = vector.load %arg9[%c0_48, %c0_49, %c0_50] : memref<2x16x1xf32, #tpu.memory_space<vmem>>, vector<2x16x1xf32>
    tpu.vector_store %arg9[%c0_48, %c0_49, %c0_50], %42 {strides = array<i32>} : memref<2x16x1xf32, #tpu.memory_space<vmem>>, vector<2x16x1xf32>,
    %c0_i32_51 = arith.constant 0 : i32
    %44 = arith.cmpi eq, %arg0, %c0_i32_51 : i32
    %45 = arith.extui %44 : i1 to i32
    %c0_i32_52 = arith.constant 0 : i32
    %46 = arith.cmpi ne, %45, %c0_i32_52 : i32
    scf.if %46 {
      %c0_53 = arith.constant 0 : index
      %c0_54 = arith.constant 0 : index
      %c0_55 = arith.constant 0 : index
      %47 = vector.load %arg3[%c0_53, %c0_54, %c0_55] : memref<2x16x16xf32, #tpu.memory_space<vmem>>, vector<2x16x16xf32>
      %c0_56 = arith.constant 0 : index
      %c0_57 = arith.constant 0 : index
      %c0_58 = arith.constant 0 : index
      %48 = vector.load %arg4[%c0_56, %c0_57, %c0_58] : memref<2x16x16xf32, #tpu.memory_space<vmem>>, vector<2x16x16xf32>
      %c0_59 = arith.constant 0 : index
      %c0_60 = arith.constant 0 : index
      %c0_61 = arith.constant 0 : index
      %49 = vector.load %arg5[%c0_59, %c0_60, %c0_61] : memref<2x16x1xf32, #tpu.memory_space<vmem>>, vector<2x16x1xf32>
      %c0_62 = arith.constant 0 : index
      %c0_63 = arith.constant 0 : index
      %c0_64 = arith.constant 0 : index
      %50 = vector.load %arg6[%c0_62, %c0_63, %c0_64] : memref<2x16x1xf32, #tpu.memory_space<vmem>>, vector<2x16x1xf32>
      %c0_65 = arith.constant 0 : index
      %c0_66 = arith.constant 0 : index
      %c0_67 = arith.constant 0 : index
      %51 = vector.load %arg7[%c0_65, %c0_66, %c0_67] : memref<2x16x1xf32, #tpu.memory_space<vmem>>, vector<2x16x1xf32>
      %c0_68 = arith.constant 0 : index
      %c0_69 = arith.constant 0 : index
      %c0_70 = arith.constant 0 : index
      %52 = vector.load %arg8[%c0_68, %c0_69, %c0_70] : memref<2x16x1xf32, #tpu.memory_space<vmem>>, vector<2x16x1xf32>
      %c0_71 = arith.constant 0 : index
      %c0_72 = arith.constant 0 : index
      %c0_73 = arith.constant 0 : index
      %53 = vector.load %arg9[%c0_71, %c0_72, %c0_73] : memref<2x16x1xf32, #tpu.memory_space<vmem>>, vector<2x16x1xf32>
      %cst_74 = arith.constant 3.906250e-03 : f32
      %54 = vector.broadcast %cst_74 : f32 to vector<2x16x1xf32>
      %55 = arith.mulf %51, %54 : vector<2x16x1xf32>
      %cst_75 = arith.constant 3.906250e-03 : f32
      %56 = vector.broadcast %cst_75 : f32 to vector<2x16x1xf32>
      %57 = arith.mulf %49, %56 : vector<2x16x1xf32>
      %58 = arith.mulf %57, %57 : vector<2x16x1xf32>
      %59 = arith.subf %55, %58 : vector<2x16x1xf32>
      %cst_76 = arith.constant 0.000000e+00 : f32
      %60 = vector.broadcast %cst_76 : f32 to vector<2x16x1xf32>
      %61 = arith.maximumf %59, %60 : vector<2x16x1xf32>
      %cst_77 = arith.constant 3.906250e-03 : f32
      %62 = vector.broadcast %cst_77 : f32 to vector<2x16x1xf32>
      %63 = arith.mulf %52, %62 : vector<2x16x1xf32>
      %cst_78 = arith.constant 3.906250e-03 : f32
      %64 = vector.broadcast %cst_78 : f32 to vector<2x16x1xf32>
      %65 = arith.mulf %50, %64 : vector<2x16x1xf32>
      %66 = arith.mulf %65, %65 : vector<2x16x1xf32>
      %67 = arith.subf %63, %66 : vector<2x16x1xf32>
      %cst_79 = arith.constant 0.000000e+00 : f32
      %68 = vector.broadcast %cst_79 : f32 to vector<2x16x1xf32>
      %69 = arith.maximumf %67, %68 : vector<2x16x1xf32>
      %cst_80 = arith.constant 9.99999974E-6 : f32
      %70 = vector.broadcast %cst_80 : f32 to vector<2x16x1xf32>
      %71 = arith.addf %61, %70 : vector<2x16x1xf32>
      %72 = math.rsqrt %71 : vector<2x16x1xf32>
      %cst_81 = arith.constant 9.99999974E-6 : f32
      %73 = vector.broadcast %cst_81 : f32 to vector<2x16x1xf32>
      %74 = arith.addf %69, %73 : vector<2x16x1xf32>
      %75 = math.rsqrt %74 : vector<2x16x1xf32>
      %76 = arith.mulf %49, %49 : vector<2x16x1xf32>
      %cst_82 = arith.constant 3.906250e-03 : f32
      %77 = vector.broadcast %cst_82 : f32 to vector<2x16x1xf32>
      %78 = arith.mulf %76, %77 : vector<2x16x1xf32>
      %79 = arith.subf %51, %78 : vector<2x16x1xf32>
      %80 = arith.mulf %50, %50 : vector<2x16x1xf32>
      %cst_83 = arith.constant 3.906250e-03 : f32
      %81 = vector.broadcast %cst_83 : f32 to vector<2x16x1xf32>
      %82 = arith.mulf %80, %81 : vector<2x16x1xf32>
      %83 = arith.subf %52, %82 : vector<2x16x1xf32>
      %84 = arith.mulf %49, %50 : vector<2x16x1xf32>
      %cst_84 = arith.constant 3.906250e-03 : f32
      %85 = vector.broadcast %cst_84 : f32 to vector<2x16x1xf32>
      %86 = arith.mulf %84, %85 : vector<2x16x1xf32>
      %87 = arith.subf %53, %86 : vector<2x16x1xf32>
      %88 = arith.mulf %72, %72 : vector<2x16x1xf32>
      %89 = arith.mulf %88, %79 : vector<2x16x1xf32>
      %90 = arith.mulf %75, %75 : vector<2x16x1xf32>
      %91 = arith.mulf %90, %83 : vector<2x16x1xf32>
      %92 = arith.addf %89, %91 : vector<2x16x1xf32>
      %93 = arith.mulf %72, %75 : vector<2x16x1xf32>
      %cst_85 = arith.constant 2.000000e+00 : f32
      %94 = vector.broadcast %cst_85 : f32 to vector<2x16x1xf32>
      %95 = arith.mulf %94, %93 : vector<2x16x1xf32>
      %96 = arith.mulf %95, %87 : vector<2x16x1xf32>
      %97 = arith.subf %92, %96 : vector<2x16x1xf32>
      %98 = vector.shape_cast %97 : vector<2x16x1xf32> to vector<1x2x16x1xf32>
      %cst_86 = arith.constant dense<0.000000e+00> : vector<1xf32>
      %99 = vector.multi_reduction <add>, %98, %cst_86 [1, 2, 3] : vector<1x2x16x1xf32> to vector<1xf32>
      %100 = vector.shape_cast %99 : vector<1xf32> to vector<1x1x1x1xf32>
      %101 = vector.extract %100[0, 0, 0, 0] : f32 from vector<1x1x1x1xf32>
      %102 = tpu.iota {dimensions = array<i32: 0>} : vector<16x16xi32>
      %103 = tpu.iota {dimensions = array<i32: 1>} : vector<16x16xi32>
      %104 = arith.cmpi eq, %102, %103 : vector<16x16xi32>
      %105 = arith.extui %104 : vector<16x16xi1> to vector<16x16xi32>
      %106 = arith.sitofp %105 : vector<16x16xi32> to vector<16x16xf32>
      %107 = vector.shape_cast %49 : vector<2x16x1xf32> to vector<2x16x1xf32>
      %108 = vector.broadcast %107 : vector<2x16x1xf32> to vector<2x16x16xf32>
      %109 = vector.shape_cast %106 : vector<16x16xf32> to vector<1x16x16xf32>
      %110 = vector.broadcast %109 : vector<1x16x16xf32> to vector<2x16x16xf32>
      %111 = vector.broadcast %49 : vector<2x16x1xf32> to vector<2x16x16xf32>
      %112 = arith.mulf %110, %111 : vector<2x16x16xf32>
      %cst_87 = arith.constant dense<0.000000e+00> : vector<2x16x16xf32>
      %113 = tpu.matmul %108, %112, %cst_87 {dimension_numbers = #tpu.dot_dimension_numbers<[2], [1], [1], [2], [0, 0, 0, 1, 1, 2], [0], [0]>} : vector<2x16x16xf32>, vector<2x16x16xf32>, vector<2x16x16xf32> -> vector<2x16x16xf32>
      %cst_88 = arith.constant 3.906250e-03 : f32
      %114 = vector.broadcast %cst_88 : f32 to vector<2x16x16xf32>
      %115 = arith.mulf %113, %114 : vector<2x16x16xf32>
      %116 = arith.subf %47, %115 : vector<2x16x16xf32>
      %117 = vector.broadcast %72 : vector<2x16x1xf32> to vector<2x16x16xf32>
      %118 = arith.mulf %116, %117 : vector<2x16x16xf32>
      %119 = vector.shape_cast %106 : vector<16x16xf32> to vector<1x16x16xf32>
      %120 = vector.broadcast %119 : vector<1x16x16xf32> to vector<2x16x16xf32>
      %121 = vector.broadcast %72 : vector<2x16x1xf32> to vector<2x16x16xf32>
      %122 = arith.mulf %120, %121 : vector<2x16x16xf32>
      %cst_89 = arith.constant dense<0.000000e+00> : vector<2x16x16xf32>
      %123 = tpu.matmul %118, %122, %cst_89 {dimension_numbers = #tpu.dot_dimension_numbers<[2], [1], [1], [2], [0, 0, 0, 1, 1, 2], [0], [0]>} : vector<2x16x16xf32>, vector<2x16x16xf32>, vector<2x16x16xf32> -> vector<2x16x16xf32>
      %cst_90 = arith.constant 2.44140625E-4 : f32
      %124 = vector.broadcast %cst_90 : f32 to vector<2x16x16xf32>
      %125 = arith.mulf %123, %124 : vector<2x16x16xf32>
      %126 = vector.shape_cast %50 : vector<2x16x1xf32> to vector<2x16x1xf32>
      %127 = vector.broadcast %126 : vector<2x16x1xf32> to vector<2x16x16xf32>
      %128 = vector.shape_cast %106 : vector<16x16xf32> to vector<1x16x16xf32>
      %129 = vector.broadcast %128 : vector<1x16x16xf32> to vector<2x16x16xf32>
      %130 = vector.broadcast %50 : vector<2x16x1xf32> to vector<2x16x16xf32>
      %131 = arith.mulf %129, %130 : vector<2x16x16xf32>
      %cst_91 = arith.constant dense<0.000000e+00> : vector<2x16x16xf32>
      %132 = tpu.matmul %127, %131, %cst_91 {dimension_numbers = #tpu.dot_dimension_numbers<[2], [1], [1], [2], [0, 0, 0, 1, 1, 2], [0], [0]>} : vector<2x16x16xf32>, vector<2x16x16xf32>, vector<2x16x16xf32> -> vector<2x16x16xf32>
      %cst_92 = arith.constant 3.906250e-03 : f32
      %133 = vector.broadcast %cst_92 : f32 to vector<2x16x16xf32>
      %134 = arith.mulf %132, %133 : vector<2x16x16xf32>
      %135 = arith.subf %48, %134 : vector<2x16x16xf32>
      %136 = vector.broadcast %75 : vector<2x16x1xf32> to vector<2x16x16xf32>
      %137 = arith.mulf %135, %136 : vector<2x16x16xf32>
      %138 = vector.shape_cast %106 : vector<16x16xf32> to vector<1x16x16xf32>
      %139 = vector.broadcast %138 : vector<1x16x16xf32> to vector<2x16x16xf32>
      %140 = vector.broadcast %75 : vector<2x16x1xf32> to vector<2x16x16xf32>
      %141 = arith.mulf %139, %140 : vector<2x16x16xf32>
      %cst_93 = arith.constant dense<0.000000e+00> : vector<2x16x16xf32>
      %142 = tpu.matmul %137, %141, %cst_93 {dimension_numbers = #tpu.dot_dimension_numbers<[2], [1], [1], [2], [0, 0, 0, 1, 1, 2], [0], [0]>} : vector<2x16x16xf32>, vector<2x16x16xf32>, vector<2x16x16xf32> -> vector<2x16x16xf32>
      %cst_94 = arith.constant 2.44140625E-4 : f32
      %143 = vector.broadcast %cst_94 : f32 to vector<2x16x16xf32>
      %144 = arith.mulf %142, %143 : vector<2x16x16xf32>
      %145 = arith.subf %125, %144 : vector<2x16x16xf32>
      %146 = arith.mulf %145, %145 : vector<2x16x16xf32>
      %147 = vector.shape_cast %146 : vector<2x16x16xf32> to vector<1x2x16x16xf32>
      %cst_95 = arith.constant dense<0.000000e+00> : vector<1xf32>
      %148 = vector.multi_reduction <add>, %147, %cst_95 [1, 2, 3] : vector<1x2x16x16xf32> to vector<1xf32>
      %149 = vector.shape_cast %148 : vector<1xf32> to vector<1x1x1x1xf32>
      %150 = vector.extract %149[0, 0, 0, 0] : f32 from vector<1x1x1x1xf32>
      %cst_96 = arith.constant 0.00854492188 : f32
      %151 = arith.mulf %101, %cst_96 : f32
      %c0_97 = arith.constant 0 : index
      %c0_98 = arith.constant 0 : index
      %152 = memref.load %arg2[%c0_97, %c0_98] : memref<1x2xf32, #tpu.memory_space<smem>>
      memref.store %151, %arg2[%c0_97, %c0_98] : memref<1x2xf32, #tpu.memory_space<smem>>
      %cst_99 = arith.constant 47851.5625 : f32
      %153 = arith.mulf %150, %cst_99 : f32
      %c0_100 = arith.constant 0 : index
      %c1 = arith.constant 1 : index
      %154 = memref.load %arg2[%c0_100, %c1] : memref<1x2xf32, #tpu.memory_space<smem>>
      memref.store %153, %arg2[%c0_100, %c1] : memref<1x2xf32, #tpu.memory_space<smem>>
    } else {
    }
    return
  }
  func.func @transform_0(%arg0: i32) -> (i32, i32, i32) {
    %c0_i32 = arith.constant 0 : i32
    %c0_i32_0 = arith.constant 0 : i32
    %c0_i32_1 = arith.constant 0 : i32
    return %c0_i32, %c0_i32_0, %arg0 : i32, i32, i32
  }
  func.func @transform_1(%arg0: i32) -> (i32, i32) {
    %c0_i32 = arith.constant 0 : i32
    %c0_i32_0 = arith.constant 0 : i32
    %c0_i32_1 = arith.constant 0 : i32
    return %c0_i32, %c0_i32_0 : i32, i32
  }
}

module attributes {stable_mosaic.version = 11 : i64} {
  func.func @_conv3x3_bn_relu_kernel(%arg0: i32, %arg1: memref<1x8x290xbf16, #tpu.memory_space<vmem>>, %arg2: memref<9x16x8xbf16, #tpu.memory_space<vmem>>, %arg3: memref<16x1xf32, #tpu.memory_space<vmem>>, %arg4: memref<1x16x256xbf16, #tpu.memory_space<vmem>>) attributes {dimension_semantics = [#tpu.dimension_semantics<parallel>], iteration_bounds = array<i64: 4>, scalar_prefetch = 0 : i64, scratch_operands = 0 : i64, tpu.core_type = #tpu.core_type<tc>, window_params = [{transform_indices = @transform_0, window_bounds = array<i64: 1, 8, 290>}, {pipeline_mode = #tpu.pipeline_mode<synchronous>, transform_indices = @transform_1, window_bounds = array<i64: 9, 16, 8>}, {pipeline_mode = #tpu.pipeline_mode<synchronous>, transform_indices = @transform_2, window_bounds = array<i64: 16, 1>}, {transform_indices = @transform_3, window_bounds = array<i64: 1, 16, 256>}]} {
    %0 = tpu.iota {dimensions = array<i32: 1>} : vector<1x256xi32>
    %c16_i32 = arith.constant 16 : i32
    %c0_i32 = arith.constant 0 : i32
    %1 = arith.cmpi eq, %c16_i32, %c0_i32 : i32
    %c1_i32 = arith.constant 1 : i32
    %2 = arith.select %1, %c1_i32, %c16_i32 : i32
    %3 = vector.broadcast %2 : i32 to vector<1x256xi32>
    %4 = arith.remsi %0, %3 : vector<1x256xi32>
    %c0_i32_0 = arith.constant 0 : i32
    %5 = vector.broadcast %c0_i32_0 : i32 to vector<1x256xi32>
    %6 = arith.cmpi ne, %4, %5 : vector<1x256xi32>
    %c0_i32_1 = arith.constant 0 : i32
    %7 = vector.broadcast %c0_i32_1 : i32 to vector<1x256xi32>
    %8 = arith.cmpi slt, %4, %7 : vector<1x256xi32>
    %c0_i32_2 = arith.constant 0 : i32
    %9 = arith.cmpi slt, %2, %c0_i32_2 : i32
    %10 = vector.broadcast %9 : i1 to vector<1x256xi1>
    %11 = vector.broadcast %10 : vector<1x256xi1> to vector<1x256xi1>
    %12 = arith.xori %8, %11 : vector<1x256xi1>
    %13 = arith.andi %12, %6 : vector<1x256xi1>
    %14 = vector.broadcast %2 : i32 to vector<1x256xi32>
    %15 = arith.addi %4, %14 : vector<1x256xi32>
    %16 = arith.select %13, %15, %4 : vector<1x256xi1>, vector<1x256xi32>
    %cst = arith.constant 0.000000e+00 : f32
    %17 = vector.broadcast %cst : f32 to vector<16x256xf32>
    %cst_3 = arith.constant 0.000000e+00 : f32
    %18 = vector.broadcast %cst_3 : f32 to vector<16x256xf32>
    %c0 = arith.constant 0 : index
    %c0_4 = arith.constant 0 : index
    %c0_5 = arith.constant 0 : index
    %19 = vector.load %arg1[%c0, %c0_4, %c0_5] : memref<1x8x290xbf16, #tpu.memory_space<vmem>>, vector<1x8x256xbf16>
    %20 = vector.shape_cast %19 : vector<1x8x256xbf16> to vector<8x256xbf16>
    %c0_6 = arith.constant 0 : index
    %c0_7 = arith.constant 0 : index
    %c0_8 = arith.constant 0 : index
    %21 = vector.load %arg2[%c0_6, %c0_7, %c0_8] : memref<9x16x8xbf16, #tpu.memory_space<vmem>>, vector<1x16x8xbf16>
    %22 = vector.shape_cast %21 : vector<1x16x8xbf16> to vector<16x8xbf16>
    %cst_9 = arith.constant dense<0.000000e+00> : vector<16x256xf32>
    %23 = tpu.matmul %22, %20, %cst_9 {dimension_numbers = #tpu.dot_dimension_numbers<[1], [0], [0], [1], [0, 0, 1, 1], [], []>} : vector<16x8xbf16>, vector<8x256xbf16>, vector<16x256xf32> -> vector<16x256xf32>
    %24 = arith.addf %18, %23 : vector<16x256xf32>
    %c0_10 = arith.constant 0 : index
    %c0_11 = arith.constant 0 : index
    %c16 = arith.constant 16 : index
    %25 = vector.load %arg1[%c0_10, %c0_11, %c16] : memref<1x8x290xbf16, #tpu.memory_space<vmem>>, vector<1x8x256xbf16>
    %26 = vector.shape_cast %25 : vector<1x8x256xbf16> to vector<8x256xbf16>
    %c3 = arith.constant 3 : index
    %c0_12 = arith.constant 0 : index
    %c0_13 = arith.constant 0 : index
    %27 = vector.load %arg2[%c3, %c0_12, %c0_13] : memref<9x16x8xbf16, #tpu.memory_space<vmem>>, vector<1x16x8xbf16>
    %28 = vector.shape_cast %27 : vector<1x16x8xbf16> to vector<16x8xbf16>
    %cst_14 = arith.constant dense<0.000000e+00> : vector<16x256xf32>
    %29 = tpu.matmul %28, %26, %cst_14 {dimension_numbers = #tpu.dot_dimension_numbers<[1], [0], [0], [1], [0, 0, 1, 1], [], []>} : vector<16x8xbf16>, vector<8x256xbf16>, vector<16x256xf32> -> vector<16x256xf32>
    %30 = arith.addf %24, %29 : vector<16x256xf32>
    %c0_15 = arith.constant 0 : index
    %c0_16 = arith.constant 0 : index
    %c32 = arith.constant 32 : index
    %31 = vector.load %arg1[%c0_15, %c0_16, %c32] : memref<1x8x290xbf16, #tpu.memory_space<vmem>>, vector<1x8x256xbf16>
    %32 = vector.shape_cast %31 : vector<1x8x256xbf16> to vector<8x256xbf16>
    %c6 = arith.constant 6 : index
    %c0_17 = arith.constant 0 : index
    %c0_18 = arith.constant 0 : index
    %33 = vector.load %arg2[%c6, %c0_17, %c0_18] : memref<9x16x8xbf16, #tpu.memory_space<vmem>>, vector<1x16x8xbf16>
    %34 = vector.shape_cast %33 : vector<1x16x8xbf16> to vector<16x8xbf16>
    %cst_19 = arith.constant dense<0.000000e+00> : vector<16x256xf32>
    %35 = tpu.matmul %34, %32, %cst_19 {dimension_numbers = #tpu.dot_dimension_numbers<[1], [0], [0], [1], [0, 0, 1, 1], [], []>} : vector<16x8xbf16>, vector<8x256xbf16>, vector<16x256xf32> -> vector<16x256xf32>
    %36 = arith.addf %30, %35 : vector<16x256xf32>
    %c1_i32_20 = arith.constant 1 : i32
    %37 = vector.broadcast %c1_i32_20 : i32 to vector<1x256xi32>
    %38 = arith.cmpi sge, %16, %37 : vector<1x256xi32>
    %cst_21 = arith.constant 0.000000e+00 : f32
    %39 = vector.shape_cast %38 : vector<1x256xi1> to vector<1x256xi1>
    %40 = vector.broadcast %39 : vector<1x256xi1> to vector<16x256xi1>
    %41 = vector.broadcast %cst_21 : f32 to vector<16x256xf32>
    %42 = arith.select %40, %36, %41 : vector<16x256xi1>, vector<16x256xf32>
    %43 = arith.addf %17, %42 : vector<16x256xf32>
    %cst_22 = arith.constant 0.000000e+00 : f32
    %44 = vector.broadcast %cst_22 : f32 to vector<16x256xf32>
    %c0_23 = arith.constant 0 : index
    %c0_24 = arith.constant 0 : index
    %c1 = arith.constant 1 : index
    %45 = vector.load %arg1[%c0_23, %c0_24, %c1] : memref<1x8x290xbf16, #tpu.memory_space<vmem>>, vector<1x8x256xbf16>
    %46 = vector.shape_cast %45 : vector<1x8x256xbf16> to vector<8x256xbf16>
    %c1_25 = arith.constant 1 : index
    %c0_26 = arith.constant 0 : index
    %c0_27 = arith.constant 0 : index
    %47 = vector.load %arg2[%c1_25, %c0_26, %c0_27] : memref<9x16x8xbf16, #tpu.memory_space<vmem>>, vector<1x16x8xbf16>
    %48 = vector.shape_cast %47 : vector<1x16x8xbf16> to vector<16x8xbf16>
    %cst_28 = arith.constant dense<0.000000e+00> : vector<16x256xf32>
    %49 = tpu.matmul %48, %46, %cst_28 {dimension_numbers = #tpu.dot_dimension_numbers<[1], [0], [0], [1], [0, 0, 1, 1], [], []>} : vector<16x8xbf16>, vector<8x256xbf16>, vector<16x256xf32> -> vector<16x256xf32>
    %50 = arith.addf %44, %49 : vector<16x256xf32>
    %c0_29 = arith.constant 0 : index
    %c0_30 = arith.constant 0 : index
    %c17 = arith.constant 17 : index
    %51 = vector.load %arg1[%c0_29, %c0_30, %c17] : memref<1x8x290xbf16, #tpu.memory_space<vmem>>, vector<1x8x256xbf16>
    %52 = vector.shape_cast %51 : vector<1x8x256xbf16> to vector<8x256xbf16>
    %c4 = arith.constant 4 : index
    %c0_31 = arith.constant 0 : index
    %c0_32 = arith.constant 0 : index
    %53 = vector.load %arg2[%c4, %c0_31, %c0_32] : memref<9x16x8xbf16, #tpu.memory_space<vmem>>, vector<1x16x8xbf16>
    %54 = vector.shape_cast %53 : vector<1x16x8xbf16> to vector<16x8xbf16>
    %cst_33 = arith.constant dense<0.000000e+00> : vector<16x256xf32>
    %55 = tpu.matmul %54, %52, %cst_33 {dimension_numbers = #tpu.dot_dimension_numbers<[1], [0], [0], [1], [0, 0, 1, 1], [], []>} : vector<16x8xbf16>, vector<8x256xbf16>, vector<16x256xf32> -> vector<16x256xf32>
    %56 = arith.addf %50, %55 : vector<16x256xf32>
    %c0_34 = arith.constant 0 : index
    %c0_35 = arith.constant 0 : index
    %c33 = arith.constant 33 : index
    %57 = vector.load %arg1[%c0_34, %c0_35, %c33] : memref<1x8x290xbf16, #tpu.memory_space<vmem>>, vector<1x8x256xbf16>
    %58 = vector.shape_cast %57 : vector<1x8x256xbf16> to vector<8x256xbf16>
    %c7 = arith.constant 7 : index
    %c0_36 = arith.constant 0 : index
    %c0_37 = arith.constant 0 : index
    %59 = vector.load %arg2[%c7, %c0_36, %c0_37] : memref<9x16x8xbf16, #tpu.memory_space<vmem>>, vector<1x16x8xbf16>
    %60 = vector.shape_cast %59 : vector<1x16x8xbf16> to vector<16x8xbf16>
    %cst_38 = arith.constant dense<0.000000e+00> : vector<16x256xf32>
    %61 = tpu.matmul %60, %58, %cst_38 {dimension_numbers = #tpu.dot_dimension_numbers<[1], [0], [0], [1], [0, 0, 1, 1], [], []>} : vector<16x8xbf16>, vector<8x256xbf16>, vector<16x256xf32> -> vector<16x256xf32>
    %62 = arith.addf %56, %61 : vector<16x256xf32>
    %63 = arith.addf %43, %62 : vector<16x256xf32>
    %cst_39 = arith.constant 0.000000e+00 : f32
    %64 = vector.broadcast %cst_39 : f32 to vector<16x256xf32>
    %c0_40 = arith.constant 0 : index
    %c0_41 = arith.constant 0 : index
    %c2 = arith.constant 2 : index
    %65 = vector.load %arg1[%c0_40, %c0_41, %c2] : memref<1x8x290xbf16, #tpu.memory_space<vmem>>, vector<1x8x256xbf16>
    %66 = vector.shape_cast %65 : vector<1x8x256xbf16> to vector<8x256xbf16>
    %c2_42 = arith.constant 2 : index
    %c0_43 = arith.constant 0 : index
    %c0_44 = arith.constant 0 : index
    %67 = vector.load %arg2[%c2_42, %c0_43, %c0_44] : memref<9x16x8xbf16, #tpu.memory_space<vmem>>, vector<1x16x8xbf16>
    %68 = vector.shape_cast %67 : vector<1x16x8xbf16> to vector<16x8xbf16>
    %cst_45 = arith.constant dense<0.000000e+00> : vector<16x256xf32>
    %69 = tpu.matmul %68, %66, %cst_45 {dimension_numbers = #tpu.dot_dimension_numbers<[1], [0], [0], [1], [0, 0, 1, 1], [], []>} : vector<16x8xbf16>, vector<8x256xbf16>, vector<16x256xf32> -> vector<16x256xf32>
    %70 = arith.addf %64, %69 : vector<16x256xf32>
    %c0_46 = arith.constant 0 : index
    %c0_47 = arith.constant 0 : index
    %c18 = arith.constant 18 : index
    %71 = vector.load %arg1[%c0_46, %c0_47, %c18] : memref<1x8x290xbf16, #tpu.memory_space<vmem>>, vector<1x8x256xbf16>
    %72 = vector.shape_cast %71 : vector<1x8x256xbf16> to vector<8x256xbf16>
    %c5 = arith.constant 5 : index
    %c0_48 = arith.constant 0 : index
    %c0_49 = arith.constant 0 : index
    %73 = vector.load %arg2[%c5, %c0_48, %c0_49] : memref<9x16x8xbf16, #tpu.memory_space<vmem>>, vector<1x16x8xbf16>
    %74 = vector.shape_cast %73 : vector<1x16x8xbf16> to vector<16x8xbf16>
    %cst_50 = arith.constant dense<0.000000e+00> : vector<16x256xf32>
    %75 = tpu.matmul %74, %72, %cst_50 {dimension_numbers = #tpu.dot_dimension_numbers<[1], [0], [0], [1], [0, 0, 1, 1], [], []>} : vector<16x8xbf16>, vector<8x256xbf16>, vector<16x256xf32> -> vector<16x256xf32>
    %76 = arith.addf %70, %75 : vector<16x256xf32>
    %c0_51 = arith.constant 0 : index
    %c0_52 = arith.constant 0 : index
    %c34 = arith.constant 34 : index
    %77 = vector.load %arg1[%c0_51, %c0_52, %c34] : memref<1x8x290xbf16, #tpu.memory_space<vmem>>, vector<1x8x256xbf16>
    %78 = vector.shape_cast %77 : vector<1x8x256xbf16> to vector<8x256xbf16>
    %c8 = arith.constant 8 : index
    %c0_53 = arith.constant 0 : index
    %c0_54 = arith.constant 0 : index
    %79 = vector.load %arg2[%c8, %c0_53, %c0_54] : memref<9x16x8xbf16, #tpu.memory_space<vmem>>, vector<1x16x8xbf16>
    %80 = vector.shape_cast %79 : vector<1x16x8xbf16> to vector<16x8xbf16>
    %cst_55 = arith.constant dense<0.000000e+00> : vector<16x256xf32>
    %81 = tpu.matmul %80, %78, %cst_55 {dimension_numbers = #tpu.dot_dimension_numbers<[1], [0], [0], [1], [0, 0, 1, 1], [], []>} : vector<16x8xbf16>, vector<8x256xbf16>, vector<16x256xf32> -> vector<16x256xf32>
    %82 = arith.addf %76, %81 : vector<16x256xf32>
    %c14_i32 = arith.constant 14 : i32
    %83 = vector.broadcast %c14_i32 : i32 to vector<1x256xi32>
    %84 = arith.cmpi sle, %16, %83 : vector<1x256xi32>
    %cst_56 = arith.constant 0.000000e+00 : f32
    %85 = vector.shape_cast %84 : vector<1x256xi1> to vector<1x256xi1>
    %86 = vector.broadcast %85 : vector<1x256xi1> to vector<16x256xi1>
    %87 = vector.broadcast %cst_56 : f32 to vector<16x256xf32>
    %88 = arith.select %86, %82, %87 : vector<16x256xi1>, vector<16x256xf32>
    %89 = arith.addf %63, %88 : vector<16x256xf32>
    %c0_57 = arith.constant 0 : index
    %c0_58 = arith.constant 0 : index
    %90 = vector.load %arg3[%c0_57, %c0_58] : memref<16x1xf32, #tpu.memory_space<vmem>>, vector<16x1xf32>
    %91 = vector.broadcast %90 : vector<16x1xf32> to vector<16x256xf32>
    %92 = arith.addf %89, %91 : vector<16x256xf32>
    %cst_59 = arith.constant 0.000000e+00 : f32
    %93 = vector.broadcast %cst_59 : f32 to vector<16x256xf32>
    %94 = arith.maximumf %92, %93 : vector<16x256xf32>
    %95 = arith.truncf %94 : vector<16x256xf32> to vector<16x256xbf16>
    %c0_60 = arith.constant 0 : index
    %c0_61 = arith.constant 0 : index
    %c0_62 = arith.constant 0 : index
    %96 = vector.load %arg4[%c0_60, %c0_61, %c0_62] : memref<1x16x256xbf16, #tpu.memory_space<vmem>>, vector<1x16x256xbf16>
    %97 = vector.shape_cast %96 : vector<1x16x256xbf16> to vector<16x256xbf16>
    %98 = vector.shape_cast %95 : vector<16x256xbf16> to vector<1x16x256xbf16>
    tpu.vector_store %arg4[%c0_60, %c0_61, %c0_62], %98 {strides = array<i32>} : memref<1x16x256xbf16, #tpu.memory_space<vmem>>, vector<1x16x256xbf16>,
    return
  }
  func.func @transform_0(%arg0: i32) -> (i32, i32, i32) {
    %c0_i32 = arith.constant 0 : i32
    %c0_i32_0 = arith.constant 0 : i32
    %c0_i32_1 = arith.constant 0 : i32
    return %arg0, %c0_i32, %c0_i32_0 : i32, i32, i32
  }
  func.func @transform_1(%arg0: i32) -> (i32, i32, i32) {
    %c0_i32 = arith.constant 0 : i32
    %c0_i32_0 = arith.constant 0 : i32
    %c0_i32_1 = arith.constant 0 : i32
    %c0_i32_2 = arith.constant 0 : i32
    return %c0_i32, %c0_i32_0, %c0_i32_1 : i32, i32, i32
  }
  func.func @transform_2(%arg0: i32) -> (i32, i32) {
    %c0_i32 = arith.constant 0 : i32
    %c0_i32_0 = arith.constant 0 : i32
    %c0_i32_1 = arith.constant 0 : i32
    return %c0_i32, %c0_i32_0 : i32, i32
  }
  func.func @transform_3(%arg0: i32) -> (i32, i32, i32) {
    %c0_i32 = arith.constant 0 : i32
    %c0_i32_0 = arith.constant 0 : i32
    %c0_i32_1 = arith.constant 0 : i32
    return %arg0, %c0_i32, %c0_i32_0 : i32, i32, i32
  }
}

module attributes {stable_mosaic.version = 11 : i64} {
  func.func @_conv3x3_bn_relu_kernel(%arg0: i32, %arg1: memref<1x16x82xbf16, #tpu.memory_space<vmem>>, %arg2: memref<9x16x16xbf16, #tpu.memory_space<vmem>>, %arg3: memref<16x1xf32, #tpu.memory_space<vmem>>, %arg4: memref<1x16x64xbf16, #tpu.memory_space<vmem>>) attributes {dimension_semantics = [#tpu.dimension_semantics<parallel>], iteration_bounds = array<i64: 4>, scalar_prefetch = 0 : i64, scratch_operands = 0 : i64, tpu.core_type = #tpu.core_type<tc>, window_params = [{transform_indices = @transform_0, window_bounds = array<i64: 1, 16, 82>}, {pipeline_mode = #tpu.pipeline_mode<synchronous>, transform_indices = @transform_1, window_bounds = array<i64: 9, 16, 16>}, {pipeline_mode = #tpu.pipeline_mode<synchronous>, transform_indices = @transform_2, window_bounds = array<i64: 16, 1>}, {transform_indices = @transform_3, window_bounds = array<i64: 1, 16, 64>}]} {
    %0 = tpu.iota {dimensions = array<i32: 1>} : vector<1x64xi32>
    %c8_i32 = arith.constant 8 : i32
    %c0_i32 = arith.constant 0 : i32
    %1 = arith.cmpi eq, %c8_i32, %c0_i32 : i32
    %c1_i32 = arith.constant 1 : i32
    %2 = arith.select %1, %c1_i32, %c8_i32 : i32
    %3 = vector.broadcast %2 : i32 to vector<1x64xi32>
    %4 = arith.remsi %0, %3 : vector<1x64xi32>
    %c0_i32_0 = arith.constant 0 : i32
    %5 = vector.broadcast %c0_i32_0 : i32 to vector<1x64xi32>
    %6 = arith.cmpi ne, %4, %5 : vector<1x64xi32>
    %c0_i32_1 = arith.constant 0 : i32
    %7 = vector.broadcast %c0_i32_1 : i32 to vector<1x64xi32>
    %8 = arith.cmpi slt, %4, %7 : vector<1x64xi32>
    %c0_i32_2 = arith.constant 0 : i32
    %9 = arith.cmpi slt, %2, %c0_i32_2 : i32
    %10 = vector.broadcast %9 : i1 to vector<1x64xi1>
    %11 = vector.broadcast %10 : vector<1x64xi1> to vector<1x64xi1>
    %12 = arith.xori %8, %11 : vector<1x64xi1>
    %13 = arith.andi %12, %6 : vector<1x64xi1>
    %14 = vector.broadcast %2 : i32 to vector<1x64xi32>
    %15 = arith.addi %4, %14 : vector<1x64xi32>
    %16 = arith.select %13, %15, %4 : vector<1x64xi1>, vector<1x64xi32>
    %cst = arith.constant 0.000000e+00 : f32
    %17 = vector.broadcast %cst : f32 to vector<16x64xf32>
    %cst_3 = arith.constant 0.000000e+00 : f32
    %18 = vector.broadcast %cst_3 : f32 to vector<16x64xf32>
    %c0 = arith.constant 0 : index
    %c0_4 = arith.constant 0 : index
    %c0_5 = arith.constant 0 : index
    %19 = vector.load %arg1[%c0, %c0_4, %c0_5] : memref<1x16x82xbf16, #tpu.memory_space<vmem>>, vector<1x16x64xbf16>
    %20 = vector.shape_cast %19 : vector<1x16x64xbf16> to vector<16x64xbf16>
    %c0_6 = arith.constant 0 : index
    %c0_7 = arith.constant 0 : index
    %c0_8 = arith.constant 0 : index
    %21 = vector.load %arg2[%c0_6, %c0_7, %c0_8] : memref<9x16x16xbf16, #tpu.memory_space<vmem>>, vector<1x16x16xbf16>
    %22 = vector.shape_cast %21 : vector<1x16x16xbf16> to vector<16x16xbf16>
    %cst_9 = arith.constant dense<0.000000e+00> : vector<16x64xf32>
    %23 = tpu.matmul %22, %20, %cst_9 {dimension_numbers = #tpu.dot_dimension_numbers<[1], [0], [0], [1], [0, 0, 1, 1], [], []>} : vector<16x16xbf16>, vector<16x64xbf16>, vector<16x64xf32> -> vector<16x64xf32>
    %24 = arith.addf %18, %23 : vector<16x64xf32>
    %c0_10 = arith.constant 0 : index
    %c0_11 = arith.constant 0 : index
    %c8 = arith.constant 8 : index
    %25 = vector.load %arg1[%c0_10, %c0_11, %c8] : memref<1x16x82xbf16, #tpu.memory_space<vmem>>, vector<1x16x64xbf16>
    %26 = vector.shape_cast %25 : vector<1x16x64xbf16> to vector<16x64xbf16>
    %c3 = arith.constant 3 : index
    %c0_12 = arith.constant 0 : index
    %c0_13 = arith.constant 0 : index
    %27 = vector.load %arg2[%c3, %c0_12, %c0_13] : memref<9x16x16xbf16, #tpu.memory_space<vmem>>, vector<1x16x16xbf16>
    %28 = vector.shape_cast %27 : vector<1x16x16xbf16> to vector<16x16xbf16>
    %cst_14 = arith.constant dense<0.000000e+00> : vector<16x64xf32>
    %29 = tpu.matmul %28, %26, %cst_14 {dimension_numbers = #tpu.dot_dimension_numbers<[1], [0], [0], [1], [0, 0, 1, 1], [], []>} : vector<16x16xbf16>, vector<16x64xbf16>, vector<16x64xf32> -> vector<16x64xf32>
    %30 = arith.addf %24, %29 : vector<16x64xf32>
    %c0_15 = arith.constant 0 : index
    %c0_16 = arith.constant 0 : index
    %c16 = arith.constant 16 : index
    %31 = vector.load %arg1[%c0_15, %c0_16, %c16] : memref<1x16x82xbf16, #tpu.memory_space<vmem>>, vector<1x16x64xbf16>
    %32 = vector.shape_cast %31 : vector<1x16x64xbf16> to vector<16x64xbf16>
    %c6 = arith.constant 6 : index
    %c0_17 = arith.constant 0 : index
    %c0_18 = arith.constant 0 : index
    %33 = vector.load %arg2[%c6, %c0_17, %c0_18] : memref<9x16x16xbf16, #tpu.memory_space<vmem>>, vector<1x16x16xbf16>
    %34 = vector.shape_cast %33 : vector<1x16x16xbf16> to vector<16x16xbf16>
    %cst_19 = arith.constant dense<0.000000e+00> : vector<16x64xf32>
    %35 = tpu.matmul %34, %32, %cst_19 {dimension_numbers = #tpu.dot_dimension_numbers<[1], [0], [0], [1], [0, 0, 1, 1], [], []>} : vector<16x16xbf16>, vector<16x64xbf16>, vector<16x64xf32> -> vector<16x64xf32>
    %36 = arith.addf %30, %35 : vector<16x64xf32>
    %c1_i32_20 = arith.constant 1 : i32
    %37 = vector.broadcast %c1_i32_20 : i32 to vector<1x64xi32>
    %38 = arith.cmpi sge, %16, %37 : vector<1x64xi32>
    %cst_21 = arith.constant 0.000000e+00 : f32
    %39 = vector.shape_cast %38 : vector<1x64xi1> to vector<1x64xi1>
    %40 = vector.broadcast %39 : vector<1x64xi1> to vector<16x64xi1>
    %41 = vector.broadcast %cst_21 : f32 to vector<16x64xf32>
    %42 = arith.select %40, %36, %41 : vector<16x64xi1>, vector<16x64xf32>
    %43 = arith.addf %17, %42 : vector<16x64xf32>
    %cst_22 = arith.constant 0.000000e+00 : f32
    %44 = vector.broadcast %cst_22 : f32 to vector<16x64xf32>
    %c0_23 = arith.constant 0 : index
    %c0_24 = arith.constant 0 : index
    %c1 = arith.constant 1 : index
    %45 = vector.load %arg1[%c0_23, %c0_24, %c1] : memref<1x16x82xbf16, #tpu.memory_space<vmem>>, vector<1x16x64xbf16>
    %46 = vector.shape_cast %45 : vector<1x16x64xbf16> to vector<16x64xbf16>
    %c1_25 = arith.constant 1 : index
    %c0_26 = arith.constant 0 : index
    %c0_27 = arith.constant 0 : index
    %47 = vector.load %arg2[%c1_25, %c0_26, %c0_27] : memref<9x16x16xbf16, #tpu.memory_space<vmem>>, vector<1x16x16xbf16>
    %48 = vector.shape_cast %47 : vector<1x16x16xbf16> to vector<16x16xbf16>
    %cst_28 = arith.constant dense<0.000000e+00> : vector<16x64xf32>
    %49 = tpu.matmul %48, %46, %cst_28 {dimension_numbers = #tpu.dot_dimension_numbers<[1], [0], [0], [1], [0, 0, 1, 1], [], []>} : vector<16x16xbf16>, vector<16x64xbf16>, vector<16x64xf32> -> vector<16x64xf32>
    %50 = arith.addf %44, %49 : vector<16x64xf32>
    %c0_29 = arith.constant 0 : index
    %c0_30 = arith.constant 0 : index
    %c9 = arith.constant 9 : index
    %51 = vector.load %arg1[%c0_29, %c0_30, %c9] : memref<1x16x82xbf16, #tpu.memory_space<vmem>>, vector<1x16x64xbf16>
    %52 = vector.shape_cast %51 : vector<1x16x64xbf16> to vector<16x64xbf16>
    %c4 = arith.constant 4 : index
    %c0_31 = arith.constant 0 : index
    %c0_32 = arith.constant 0 : index
    %53 = vector.load %arg2[%c4, %c0_31, %c0_32] : memref<9x16x16xbf16, #tpu.memory_space<vmem>>, vector<1x16x16xbf16>
    %54 = vector.shape_cast %53 : vector<1x16x16xbf16> to vector<16x16xbf16>
    %cst_33 = arith.constant dense<0.000000e+00> : vector<16x64xf32>
    %55 = tpu.matmul %54, %52, %cst_33 {dimension_numbers = #tpu.dot_dimension_numbers<[1], [0], [0], [1], [0, 0, 1, 1], [], []>} : vector<16x16xbf16>, vector<16x64xbf16>, vector<16x64xf32> -> vector<16x64xf32>
    %56 = arith.addf %50, %55 : vector<16x64xf32>
    %c0_34 = arith.constant 0 : index
    %c0_35 = arith.constant 0 : index
    %c17 = arith.constant 17 : index
    %57 = vector.load %arg1[%c0_34, %c0_35, %c17] : memref<1x16x82xbf16, #tpu.memory_space<vmem>>, vector<1x16x64xbf16>
    %58 = vector.shape_cast %57 : vector<1x16x64xbf16> to vector<16x64xbf16>
    %c7 = arith.constant 7 : index
    %c0_36 = arith.constant 0 : index
    %c0_37 = arith.constant 0 : index
    %59 = vector.load %arg2[%c7, %c0_36, %c0_37] : memref<9x16x16xbf16, #tpu.memory_space<vmem>>, vector<1x16x16xbf16>
    %60 = vector.shape_cast %59 : vector<1x16x16xbf16> to vector<16x16xbf16>
    %cst_38 = arith.constant dense<0.000000e+00> : vector<16x64xf32>
    %61 = tpu.matmul %60, %58, %cst_38 {dimension_numbers = #tpu.dot_dimension_numbers<[1], [0], [0], [1], [0, 0, 1, 1], [], []>} : vector<16x16xbf16>, vector<16x64xbf16>, vector<16x64xf32> -> vector<16x64xf32>
    %62 = arith.addf %56, %61 : vector<16x64xf32>
    %63 = arith.addf %43, %62 : vector<16x64xf32>
    %cst_39 = arith.constant 0.000000e+00 : f32
    %64 = vector.broadcast %cst_39 : f32 to vector<16x64xf32>
    %c0_40 = arith.constant 0 : index
    %c0_41 = arith.constant 0 : index
    %c2 = arith.constant 2 : index
    %65 = vector.load %arg1[%c0_40, %c0_41, %c2] : memref<1x16x82xbf16, #tpu.memory_space<vmem>>, vector<1x16x64xbf16>
    %66 = vector.shape_cast %65 : vector<1x16x64xbf16> to vector<16x64xbf16>
    %c2_42 = arith.constant 2 : index
    %c0_43 = arith.constant 0 : index
    %c0_44 = arith.constant 0 : index
    %67 = vector.load %arg2[%c2_42, %c0_43, %c0_44] : memref<9x16x16xbf16, #tpu.memory_space<vmem>>, vector<1x16x16xbf16>
    %68 = vector.shape_cast %67 : vector<1x16x16xbf16> to vector<16x16xbf16>
    %cst_45 = arith.constant dense<0.000000e+00> : vector<16x64xf32>
    %69 = tpu.matmul %68, %66, %cst_45 {dimension_numbers = #tpu.dot_dimension_numbers<[1], [0], [0], [1], [0, 0, 1, 1], [], []>} : vector<16x16xbf16>, vector<16x64xbf16>, vector<16x64xf32> -> vector<16x64xf32>
    %70 = arith.addf %64, %69 : vector<16x64xf32>
    %c0_46 = arith.constant 0 : index
    %c0_47 = arith.constant 0 : index
    %c10 = arith.constant 10 : index
    %71 = vector.load %arg1[%c0_46, %c0_47, %c10] : memref<1x16x82xbf16, #tpu.memory_space<vmem>>, vector<1x16x64xbf16>
    %72 = vector.shape_cast %71 : vector<1x16x64xbf16> to vector<16x64xbf16>
    %c5 = arith.constant 5 : index
    %c0_48 = arith.constant 0 : index
    %c0_49 = arith.constant 0 : index
    %73 = vector.load %arg2[%c5, %c0_48, %c0_49] : memref<9x16x16xbf16, #tpu.memory_space<vmem>>, vector<1x16x16xbf16>
    %74 = vector.shape_cast %73 : vector<1x16x16xbf16> to vector<16x16xbf16>
    %cst_50 = arith.constant dense<0.000000e+00> : vector<16x64xf32>
    %75 = tpu.matmul %74, %72, %cst_50 {dimension_numbers = #tpu.dot_dimension_numbers<[1], [0], [0], [1], [0, 0, 1, 1], [], []>} : vector<16x16xbf16>, vector<16x64xbf16>, vector<16x64xf32> -> vector<16x64xf32>
    %76 = arith.addf %70, %75 : vector<16x64xf32>
    %c0_51 = arith.constant 0 : index
    %c0_52 = arith.constant 0 : index
    %c18 = arith.constant 18 : index
    %77 = vector.load %arg1[%c0_51, %c0_52, %c18] : memref<1x16x82xbf16, #tpu.memory_space<vmem>>, vector<1x16x64xbf16>
    %78 = vector.shape_cast %77 : vector<1x16x64xbf16> to vector<16x64xbf16>
    %c8_53 = arith.constant 8 : index
    %c0_54 = arith.constant 0 : index
    %c0_55 = arith.constant 0 : index
    %79 = vector.load %arg2[%c8_53, %c0_54, %c0_55] : memref<9x16x16xbf16, #tpu.memory_space<vmem>>, vector<1x16x16xbf16>
    %80 = vector.shape_cast %79 : vector<1x16x16xbf16> to vector<16x16xbf16>
    %cst_56 = arith.constant dense<0.000000e+00> : vector<16x64xf32>
    %81 = tpu.matmul %80, %78, %cst_56 {dimension_numbers = #tpu.dot_dimension_numbers<[1], [0], [0], [1], [0, 0, 1, 1], [], []>} : vector<16x16xbf16>, vector<16x64xbf16>, vector<16x64xf32> -> vector<16x64xf32>
    %82 = arith.addf %76, %81 : vector<16x64xf32>
    %c6_i32 = arith.constant 6 : i32
    %83 = vector.broadcast %c6_i32 : i32 to vector<1x64xi32>
    %84 = arith.cmpi sle, %16, %83 : vector<1x64xi32>
    %cst_57 = arith.constant 0.000000e+00 : f32
    %85 = vector.shape_cast %84 : vector<1x64xi1> to vector<1x64xi1>
    %86 = vector.broadcast %85 : vector<1x64xi1> to vector<16x64xi1>
    %87 = vector.broadcast %cst_57 : f32 to vector<16x64xf32>
    %88 = arith.select %86, %82, %87 : vector<16x64xi1>, vector<16x64xf32>
    %89 = arith.addf %63, %88 : vector<16x64xf32>
    %c0_58 = arith.constant 0 : index
    %c0_59 = arith.constant 0 : index
    %90 = vector.load %arg3[%c0_58, %c0_59] : memref<16x1xf32, #tpu.memory_space<vmem>>, vector<16x1xf32>
    %91 = vector.broadcast %90 : vector<16x1xf32> to vector<16x64xf32>
    %92 = arith.addf %89, %91 : vector<16x64xf32>
    %cst_60 = arith.constant 0.000000e+00 : f32
    %93 = vector.broadcast %cst_60 : f32 to vector<16x64xf32>
    %94 = arith.maximumf %92, %93 : vector<16x64xf32>
    %95 = arith.truncf %94 : vector<16x64xf32> to vector<16x64xbf16>
    %c0_61 = arith.constant 0 : index
    %c0_62 = arith.constant 0 : index
    %c0_63 = arith.constant 0 : index
    %96 = vector.load %arg4[%c0_61, %c0_62, %c0_63] : memref<1x16x64xbf16, #tpu.memory_space<vmem>>, vector<1x16x64xbf16>
    %97 = vector.shape_cast %96 : vector<1x16x64xbf16> to vector<16x64xbf16>
    %98 = vector.shape_cast %95 : vector<16x64xbf16> to vector<1x16x64xbf16>
    tpu.vector_store %arg4[%c0_61, %c0_62, %c0_63], %98 {strides = array<i32>} : memref<1x16x64xbf16, #tpu.memory_space<vmem>>, vector<1x16x64xbf16>,
    return
  }
  func.func @transform_0(%arg0: i32) -> (i32, i32, i32) {
    %c0_i32 = arith.constant 0 : i32
    %c0_i32_0 = arith.constant 0 : i32
    %c0_i32_1 = arith.constant 0 : i32
    return %arg0, %c0_i32, %c0_i32_0 : i32, i32, i32
  }
  func.func @transform_1(%arg0: i32) -> (i32, i32, i32) {
    %c0_i32 = arith.constant 0 : i32
    %c0_i32_0 = arith.constant 0 : i32
    %c0_i32_1 = arith.constant 0 : i32
    %c0_i32_2 = arith.constant 0 : i32
    return %c0_i32, %c0_i32_0, %c0_i32_1 : i32, i32, i32
  }
  func.func @transform_2(%arg0: i32) -> (i32, i32) {
    %c0_i32 = arith.constant 0 : i32
    %c0_i32_0 = arith.constant 0 : i32
    %c0_i32_1 = arith.constant 0 : i32
    return %c0_i32, %c0_i32_0 : i32, i32
  }
  func.func @transform_3(%arg0: i32) -> (i32, i32, i32) {
    %c0_i32 = arith.constant 0 : i32
    %c0_i32_0 = arith.constant 0 : i32
    %c0_i32_1 = arith.constant 0 : i32
    return %arg0, %c0_i32, %c0_i32_0 : i32, i32, i32
  }
}

module attributes {stable_mosaic.version = 11 : i64} {
  func.func @_layer_loss_kernel(%arg0: i32, %arg1: memref<4x16x64xbf16, #tpu.memory_space<vmem>>, %arg2: memref<1x2xf32, #tpu.memory_space<smem>>, %arg3: memref<2x16x16xf32, #tpu.memory_space<vmem>>, %arg4: memref<2x16x16xf32, #tpu.memory_space<vmem>>, %arg5: memref<2x16x1xf32, #tpu.memory_space<vmem>>, %arg6: memref<2x16x1xf32, #tpu.memory_space<vmem>>, %arg7: memref<2x16x1xf32, #tpu.memory_space<vmem>>, %arg8: memref<2x16x1xf32, #tpu.memory_space<vmem>>, %arg9: memref<2x16x1xf32, #tpu.memory_space<vmem>>) attributes {dimension_semantics = [#tpu.dimension_semantics<arbitrary>], iteration_bounds = array<i64: 1>, scalar_prefetch = 0 : i64, scratch_operands = 7 : i64, tpu.core_type = #tpu.core_type<tc>, window_params = [{transform_indices = @transform_0, window_bounds = array<i64: 4, 16, 64>}, {transform_indices = @transform_1, window_bounds = array<i64: 1, 2>}]} {
    %c0_i32 = arith.constant 0 : i32
    %0 = arith.cmpi eq, %arg0, %c0_i32 : i32
    %1 = arith.extui %0 : i1 to i32
    %c0_i32_0 = arith.constant 0 : i32
    %2 = arith.cmpi ne, %1, %c0_i32_0 : i32
    scf.if %2 {
      %cst_53 = arith.constant 0.000000e+00 : f32
      %47 = vector.broadcast %cst_53 : f32 to vector<2x16x16xf32>
      %c0_54 = arith.constant 0 : index
      %c0_55 = arith.constant 0 : index
      %c0_56 = arith.constant 0 : index
      %48 = vector.load %arg3[%c0_54, %c0_55, %c0_56] : memref<2x16x16xf32, #tpu.memory_space<vmem>>, vector<2x16x16xf32>
      tpu.vector_store %arg3[%c0_54, %c0_55, %c0_56], %47 {strides = array<i32>} : memref<2x16x16xf32, #tpu.memory_space<vmem>>, vector<2x16x16xf32>,
      %cst_57 = arith.constant 0.000000e+00 : f32
      %49 = vector.broadcast %cst_57 : f32 to vector<2x16x16xf32>
      %c0_58 = arith.constant 0 : index
      %c0_59 = arith.constant 0 : index
      %c0_60 = arith.constant 0 : index
      %50 = vector.load %arg4[%c0_58, %c0_59, %c0_60] : memref<2x16x16xf32, #tpu.memory_space<vmem>>, vector<2x16x16xf32>
      tpu.vector_store %arg4[%c0_58, %c0_59, %c0_60], %49 {strides = array<i32>} : memref<2x16x16xf32, #tpu.memory_space<vmem>>, vector<2x16x16xf32>,
      %cst_61 = arith.constant 0.000000e+00 : f32
      %51 = vector.broadcast %cst_61 : f32 to vector<2x16x1xf32>
      %c0_62 = arith.constant 0 : index
      %c0_63 = arith.constant 0 : index
      %c0_64 = arith.constant 0 : index
      %52 = vector.load %arg5[%c0_62, %c0_63, %c0_64] : memref<2x16x1xf32, #tpu.memory_space<vmem>>, vector<2x16x1xf32>
      tpu.vector_store %arg5[%c0_62, %c0_63, %c0_64], %51 {strides = array<i32>} : memref<2x16x1xf32, #tpu.memory_space<vmem>>, vector<2x16x1xf32>,
      %cst_65 = arith.constant 0.000000e+00 : f32
      %53 = vector.broadcast %cst_65 : f32 to vector<2x16x1xf32>
      %c0_66 = arith.constant 0 : index
      %c0_67 = arith.constant 0 : index
      %c0_68 = arith.constant 0 : index
      %54 = vector.load %arg6[%c0_66, %c0_67, %c0_68] : memref<2x16x1xf32, #tpu.memory_space<vmem>>, vector<2x16x1xf32>
      tpu.vector_store %arg6[%c0_66, %c0_67, %c0_68], %53 {strides = array<i32>} : memref<2x16x1xf32, #tpu.memory_space<vmem>>, vector<2x16x1xf32>,
      %cst_69 = arith.constant 0.000000e+00 : f32
      %55 = vector.broadcast %cst_69 : f32 to vector<2x16x1xf32>
      %c0_70 = arith.constant 0 : index
      %c0_71 = arith.constant 0 : index
      %c0_72 = arith.constant 0 : index
      %56 = vector.load %arg7[%c0_70, %c0_71, %c0_72] : memref<2x16x1xf32, #tpu.memory_space<vmem>>, vector<2x16x1xf32>
      tpu.vector_store %arg7[%c0_70, %c0_71, %c0_72], %55 {strides = array<i32>} : memref<2x16x1xf32, #tpu.memory_space<vmem>>, vector<2x16x1xf32>,
      %cst_73 = arith.constant 0.000000e+00 : f32
      %57 = vector.broadcast %cst_73 : f32 to vector<2x16x1xf32>
      %c0_74 = arith.constant 0 : index
      %c0_75 = arith.constant 0 : index
      %c0_76 = arith.constant 0 : index
      %58 = vector.load %arg8[%c0_74, %c0_75, %c0_76] : memref<2x16x1xf32, #tpu.memory_space<vmem>>, vector<2x16x1xf32>
      tpu.vector_store %arg8[%c0_74, %c0_75, %c0_76], %57 {strides = array<i32>} : memref<2x16x1xf32, #tpu.memory_space<vmem>>, vector<2x16x1xf32>,
      %cst_77 = arith.constant 0.000000e+00 : f32
      %59 = vector.broadcast %cst_77 : f32 to vector<2x16x1xf32>
      %c0_78 = arith.constant 0 : index
      %c0_79 = arith.constant 0 : index
      %c0_80 = arith.constant 0 : index
      %60 = vector.load %arg9[%c0_78, %c0_79, %c0_80] : memref<2x16x1xf32, #tpu.memory_space<vmem>>, vector<2x16x1xf32>
      tpu.vector_store %arg9[%c0_78, %c0_79, %c0_80], %59 {strides = array<i32>} : memref<2x16x1xf32, #tpu.memory_space<vmem>>, vector<2x16x1xf32>,
    } else {
    }
    %c0 = arith.constant 0 : index
    %c0_1 = arith.constant 0 : index
    %c0_2 = arith.constant 0 : index
    %3 = vector.load %arg1[%c0, %c0_1, %c0_2] : memref<4x16x64xbf16, #tpu.memory_space<vmem>>, vector<4x16x64xbf16>
    %4 = vector.extract_strided_slice %3 {offsets = [0, 0, 0], sizes = [2, 16, 64], strides = [1, 1, 1]} : vector<4x16x64xbf16> to vector<2x16x64xbf16>
    %5 = vector.extract_strided_slice %3 {offsets = [2, 0, 0], sizes = [2, 16, 64], strides = [1, 1, 1]} : vector<4x16x64xbf16> to vector<2x16x64xbf16>
    %c0_3 = arith.constant 0 : index
    %c0_4 = arith.constant 0 : index
    %c0_5 = arith.constant 0 : index
    %6 = vector.load %arg3[%c0_3, %c0_4, %c0_5] : memref<2x16x16xf32, #tpu.memory_space<vmem>>, vector<2x16x16xf32>
    %cst = arith.constant dense<0.000000e+00> : vector<2x16x16xf32>
    %7 = tpu.matmul %4, %4, %cst {dimension_numbers = #tpu.dot_dimension_numbers<[2], [2], [1], [1], [0, 0, 0, 1, 1, 1], [0], [0]>} : vector<2x16x64xbf16>, vector<2x16x64xbf16>, vector<2x16x16xf32> -> vector<2x16x16xf32>
    %8 = arith.addf %6, %7 : vector<2x16x16xf32>
    %c0_6 = arith.constant 0 : index
    %c0_7 = arith.constant 0 : index
    %c0_8 = arith.constant 0 : index
    %9 = vector.load %arg3[%c0_6, %c0_7, %c0_8] : memref<2x16x16xf32, #tpu.memory_space<vmem>>, vector<2x16x16xf32>
    tpu.vector_store %arg3[%c0_6, %c0_7, %c0_8], %8 {strides = array<i32>} : memref<2x16x16xf32, #tpu.memory_space<vmem>>, vector<2x16x16xf32>,
    %c0_9 = arith.constant 0 : index
    %c0_10 = arith.constant 0 : index
    %c0_11 = arith.constant 0 : index
    %10 = vector.load %arg4[%c0_9, %c0_10, %c0_11] : memref<2x16x16xf32, #tpu.memory_space<vmem>>, vector<2x16x16xf32>
    %cst_12 = arith.constant dense<0.000000e+00> : vector<2x16x16xf32>
    %11 = tpu.matmul %5, %5, %cst_12 {dimension_numbers = #tpu.dot_dimension_numbers<[2], [2], [1], [1], [0, 0, 0, 1, 1, 1], [0], [0]>} : vector<2x16x64xbf16>, vector<2x16x64xbf16>, vector<2x16x16xf32> -> vector<2x16x16xf32>
    %12 = arith.addf %10, %11 : vector<2x16x16xf32>
    %c0_13 = arith.constant 0 : index
    %c0_14 = arith.constant 0 : index
    %c0_15 = arith.constant 0 : index
    %13 = vector.load %arg4[%c0_13, %c0_14, %c0_15] : memref<2x16x16xf32, #tpu.memory_space<vmem>>, vector<2x16x16xf32>
    tpu.vector_store %arg4[%c0_13, %c0_14, %c0_15], %12 {strides = array<i32>} : memref<2x16x16xf32, #tpu.memory_space<vmem>>, vector<2x16x16xf32>,
    %14 = arith.extf %4 : vector<2x16x64xbf16> to vector<2x16x64xf32>
    %15 = arith.extf %5 : vector<2x16x64xbf16> to vector<2x16x64xf32>
    %c0_16 = arith.constant 0 : index
    %c0_17 = arith.constant 0 : index
    %c0_18 = arith.constant 0 : index
    %16 = vector.load %arg5[%c0_16, %c0_17, %c0_18] : memref<2x16x1xf32, #tpu.memory_space<vmem>>, vector<2x16x1xf32>
    %cst_19 = arith.constant dense<0.000000e+00> : vector<2x16xf32>
    %17 = vector.multi_reduction <add>, %14, %cst_19 [2] : vector<2x16x64xf32> to vector<2x16xf32>
    %18 = vector.shape_cast %17 : vector<2x16xf32> to vector<2x16x1xf32>
    %19 = arith.addf %16, %18 : vector<2x16x1xf32>
    %c0_20 = arith.constant 0 : index
    %c0_21 = arith.constant 0 : index
    %c0_22 = arith.constant 0 : index
    %20 = vector.load %arg5[%c0_20, %c0_21, %c0_22] : memref<2x16x1xf32, #tpu.memory_space<vmem>>, vector<2x16x1xf32>
    tpu.vector_store %arg5[%c0_20, %c0_21, %c0_22], %19 {strides = array<i32>} : memref<2x16x1xf32, #tpu.memory_space<vmem>>, vector<2x16x1xf32>,
    %c0_23 = arith.constant 0 : index
    %c0_24 = arith.constant 0 : index
    %c0_25 = arith.constant 0 : index
    %21 = vector.load %arg6[%c0_23, %c0_24, %c0_25] : memref<2x16x1xf32, #tpu.memory_space<vmem>>, vector<2x16x1xf32>
    %cst_26 = arith.constant dense<0.000000e+00> : vector<2x16xf32>
    %22 = vector.multi_reduction <add>, %15, %cst_26 [2] : vector<2x16x64xf32> to vector<2x16xf32>
    %23 = vector.shape_cast %22 : vector<2x16xf32> to vector<2x16x1xf32>
    %24 = arith.addf %21, %23 : vector<2x16x1xf32>
    %c0_27 = arith.constant 0 : index
    %c0_28 = arith.constant 0 : index
    %c0_29 = arith.constant 0 : index
    %25 = vector.load %arg6[%c0_27, %c0_28, %c0_29] : memref<2x16x1xf32, #tpu.memory_space<vmem>>, vector<2x16x1xf32>
    tpu.vector_store %arg6[%c0_27, %c0_28, %c0_29], %24 {strides = array<i32>} : memref<2x16x1xf32, #tpu.memory_space<vmem>>, vector<2x16x1xf32>,
    %c0_30 = arith.constant 0 : index
    %c0_31 = arith.constant 0 : index
    %c0_32 = arith.constant 0 : index
    %26 = vector.load %arg7[%c0_30, %c0_31, %c0_32] : memref<2x16x1xf32, #tpu.memory_space<vmem>>, vector<2x16x1xf32>
    %27 = arith.mulf %14, %14 : vector<2x16x64xf32>
    %cst_33 = arith.constant dense<0.000000e+00> : vector<2x16xf32>
    %28 = vector.multi_reduction <add>, %27, %cst_33 [2] : vector<2x16x64xf32> to vector<2x16xf32>
    %29 = vector.shape_cast %28 : vector<2x16xf32> to vector<2x16x1xf32>
    %30 = arith.addf %26, %29 : vector<2x16x1xf32>
    %c0_34 = arith.constant 0 : index
    %c0_35 = arith.constant 0 : index
    %c0_36 = arith.constant 0 : index
    %31 = vector.load %arg7[%c0_34, %c0_35, %c0_36] : memref<2x16x1xf32, #tpu.memory_space<vmem>>, vector<2x16x1xf32>
    tpu.vector_store %arg7[%c0_34, %c0_35, %c0_36], %30 {strides = array<i32>} : memref<2x16x1xf32, #tpu.memory_space<vmem>>, vector<2x16x1xf32>,
    %c0_37 = arith.constant 0 : index
    %c0_38 = arith.constant 0 : index
    %c0_39 = arith.constant 0 : index
    %32 = vector.load %arg8[%c0_37, %c0_38, %c0_39] : memref<2x16x1xf32, #tpu.memory_space<vmem>>, vector<2x16x1xf32>
    %33 = arith.mulf %15, %15 : vector<2x16x64xf32>
    %cst_40 = arith.constant dense<0.000000e+00> : vector<2x16xf32>
    %34 = vector.multi_reduction <add>, %33, %cst_40 [2] : vector<2x16x64xf32> to vector<2x16xf32>
    %35 = vector.shape_cast %34 : vector<2x16xf32> to vector<2x16x1xf32>
    %36 = arith.addf %32, %35 : vector<2x16x1xf32>
    %c0_41 = arith.constant 0 : index
    %c0_42 = arith.constant 0 : index
    %c0_43 = arith.constant 0 : index
    %37 = vector.load %arg8[%c0_41, %c0_42, %c0_43] : memref<2x16x1xf32, #tpu.memory_space<vmem>>, vector<2x16x1xf32>
    tpu.vector_store %arg8[%c0_41, %c0_42, %c0_43], %36 {strides = array<i32>} : memref<2x16x1xf32, #tpu.memory_space<vmem>>, vector<2x16x1xf32>,
    %c0_44 = arith.constant 0 : index
    %c0_45 = arith.constant 0 : index
    %c0_46 = arith.constant 0 : index
    %38 = vector.load %arg9[%c0_44, %c0_45, %c0_46] : memref<2x16x1xf32, #tpu.memory_space<vmem>>, vector<2x16x1xf32>
    %39 = arith.mulf %14, %15 : vector<2x16x64xf32>
    %cst_47 = arith.constant dense<0.000000e+00> : vector<2x16xf32>
    %40 = vector.multi_reduction <add>, %39, %cst_47 [2] : vector<2x16x64xf32> to vector<2x16xf32>
    %41 = vector.shape_cast %40 : vector<2x16xf32> to vector<2x16x1xf32>
    %42 = arith.addf %38, %41 : vector<2x16x1xf32>
    %c0_48 = arith.constant 0 : index
    %c0_49 = arith.constant 0 : index
    %c0_50 = arith.constant 0 : index
    %43 = vector.load %arg9[%c0_48, %c0_49, %c0_50] : memref<2x16x1xf32, #tpu.memory_space<vmem>>, vector<2x16x1xf32>
    tpu.vector_store %arg9[%c0_48, %c0_49, %c0_50], %42 {strides = array<i32>} : memref<2x16x1xf32, #tpu.memory_space<vmem>>, vector<2x16x1xf32>,
    %c0_i32_51 = arith.constant 0 : i32
    %44 = arith.cmpi eq, %arg0, %c0_i32_51 : i32
    %45 = arith.extui %44 : i1 to i32
    %c0_i32_52 = arith.constant 0 : i32
    %46 = arith.cmpi ne, %45, %c0_i32_52 : i32
    scf.if %46 {
      %c0_53 = arith.constant 0 : index
      %c0_54 = arith.constant 0 : index
      %c0_55 = arith.constant 0 : index
      %47 = vector.load %arg3[%c0_53, %c0_54, %c0_55] : memref<2x16x16xf32, #tpu.memory_space<vmem>>, vector<2x16x16xf32>
      %c0_56 = arith.constant 0 : index
      %c0_57 = arith.constant 0 : index
      %c0_58 = arith.constant 0 : index
      %48 = vector.load %arg4[%c0_56, %c0_57, %c0_58] : memref<2x16x16xf32, #tpu.memory_space<vmem>>, vector<2x16x16xf32>
      %c0_59 = arith.constant 0 : index
      %c0_60 = arith.constant 0 : index
      %c0_61 = arith.constant 0 : index
      %49 = vector.load %arg7[%c0_59, %c0_60, %c0_61] : memref<2x16x1xf32, #tpu.memory_space<vmem>>, vector<2x16x1xf32>
      %c0_62 = arith.constant 0 : index
      %c0_63 = arith.constant 0 : index
      %c0_64 = arith.constant 0 : index
      %50 = vector.load %arg8[%c0_62, %c0_63, %c0_64] : memref<2x16x1xf32, #tpu.memory_space<vmem>>, vector<2x16x1xf32>
      %c0_65 = arith.constant 0 : index
      %c0_66 = arith.constant 0 : index
      %c0_67 = arith.constant 0 : index
      %51 = vector.load %arg9[%c0_65, %c0_66, %c0_67] : memref<2x16x1xf32, #tpu.memory_space<vmem>>, vector<2x16x1xf32>
      %52 = arith.addf %49, %50 : vector<2x16x1xf32>
      %cst_68 = arith.constant 2.000000e+00 : f32
      %53 = vector.broadcast %cst_68 : f32 to vector<2x16x1xf32>
      %54 = arith.mulf %53, %51 : vector<2x16x1xf32>
      %55 = arith.subf %52, %54 : vector<2x16x1xf32>
      %56 = vector.shape_cast %55 : vector<2x16x1xf32> to vector<1x2x16x1xf32>
      %cst_69 = arith.constant dense<0.000000e+00> : vector<1xf32>
      %57 = vector.multi_reduction <add>, %56, %cst_69 [1, 2, 3] : vector<1x2x16x1xf32> to vector<1xf32>
      %58 = vector.shape_cast %57 : vector<1xf32> to vector<1x1x1x1xf32>
      %59 = vector.extract %58[0, 0, 0, 0] : f32 from vector<1x1x1x1xf32>
      %60 = arith.subf %47, %48 : vector<2x16x16xf32>
      %cst_70 = arith.constant 9.765625E-4 : f32
      %61 = vector.broadcast %cst_70 : f32 to vector<2x16x16xf32>
      %62 = arith.mulf %60, %61 : vector<2x16x16xf32>
      %63 = arith.mulf %62, %62 : vector<2x16x16xf32>
      %64 = vector.shape_cast %63 : vector<2x16x16xf32> to vector<1x2x16x16xf32>
      %cst_71 = arith.constant dense<0.000000e+00> : vector<1xf32>
      %65 = vector.multi_reduction <add>, %64, %cst_71 [1, 2, 3] : vector<1x2x16x16xf32> to vector<1xf32>
      %66 = vector.shape_cast %65 : vector<1xf32> to vector<1x1x1x1xf32>
      %67 = vector.extract %66[0, 0, 0, 0] : f32 from vector<1x1x1x1xf32>
      %cst_72 = arith.constant 0.0048828125 : f32
      %68 = arith.mulf %59, %cst_72 : f32
      %c0_73 = arith.constant 0 : index
      %c0_74 = arith.constant 0 : index
      %69 = memref.load %arg2[%c0_73, %c0_74] : memref<1x2xf32, #tpu.memory_space<smem>>
      memref.store %68, %arg2[%c0_73, %c0_74] : memref<1x2xf32, #tpu.memory_space<smem>>
      %cst_75 = arith.constant 976.5625 : f32
      %70 = arith.mulf %67, %cst_75 : f32
      %c0_76 = arith.constant 0 : index
      %c1 = arith.constant 1 : index
      %71 = memref.load %arg2[%c0_76, %c1] : memref<1x2xf32, #tpu.memory_space<smem>>
      memref.store %70, %arg2[%c0_76, %c1] : memref<1x2xf32, #tpu.memory_space<smem>>
    } else {
    }
    return
  }
  func.func @transform_0(%arg0: i32) -> (i32, i32, i32) {
    %c0_i32 = arith.constant 0 : i32
    %c0_i32_0 = arith.constant 0 : i32
    %c0_i32_1 = arith.constant 0 : i32
    return %c0_i32, %c0_i32_0, %arg0 : i32, i32, i32
  }
  func.func @transform_1(%arg0: i32) -> (i32, i32) {
    %c0_i32 = arith.constant 0 : i32
    %c0_i32_0 = arith.constant 0 : i32
    %c0_i32_1 = arith.constant 0 : i32
    return %c0_i32, %c0_i32_0 : i32, i32
  }
}

</mosaic_0001>

<llo_original>
// kernel: a_call__.6
$region0: #{a_call__.6}
  #allocation0 [shape = 'u32[]', space=smem, size = 0x4, offset = 0x4, fixed_abs, tag = 'smem constant byte address 0x4 - core index']
  #allocation1 [shape = 'u32[144,128]{1,0:T(1,128)}', space=vmem, size = 0x12000, scoped, tag = 'internal scratch']
  %s0 = inlined_call_operand.vmem [shape: bf16[4,1,1090], index: 0, kind: input, shape index: {}]
  %s1 = inlined_call_operand.vmem [shape: bf16[9,8,1], index: 1, kind: input, shape index: {}]
  %s2 = inlined_call_operand.vmem [shape: f32[8,1], index: 2, kind: input, shape index: {}]
  %s3 = inlined_call_operand.vmem [shape: bf16[4,8,1024], index: 3, kind: output, shape index: {}]
  %s4 = sld [smem:[#allocation0]]
  $region45: #{a_call__.6} parent=0
    _
  %s6 = ssub.s32 1, %s4
  %s7 = scalar_select 0, %s6, %s4
  loop: start=0, step=1, limit=6
  $region2: #{a_call__.6} parent=0 // loop_pre_header
    _
  $region3: #{a_call__.6} parent=0 // loop_header
    %s9 = sphi 0, %s13
    %p10 = scmp.ge.s32.totalorder %s9, 6
    %s19 = sphi 0, %s21
    %s22 = sphi 0, %s19
    %s23 = sphi 0, %s22
    %s39 = sphi 0, %s23
    %s43 = sphi 0, %s43
    %s45 = sphi 0, %s43
    %s46 = sphi 0, %s45
    %s60 = sphi 0, %s46
    %s64 = sphi 0, %s64
    %s66 = sphi 0, %s64
    %s67 = sphi 0, %s66
    %s81 = sphi 0, %s67
    %s87 = sphi 0, %s89
    %s90 = sphi 0, %s87
    %s91 = sphi 0, %s90
    %s107 = sphi 0, %s91
  $region4: #{a_call__.6} parent=0 // loop_header_branch
    %12 = sbr.rel (%p10) target = $region8
  $region5: #{a_call__.6} parent=0 // loop_body
    %s14 = ssub.s32 %s9, 1
    %s15 = ssub.s32 %s9, 2
    %s16 = sadd.s32 %s9, 1
    %s17 = ssub.s32 %s9, %s16
    %p18 = scmp.eq.s32.totalorder %s17, 0
    %s20 = sadd.s32 %s19, 1
    %s21 = scalar_select %p18, %s19, %s20
    %p24 = pneg %p18
    %p25 = scmp.eq.s32.totalorder %s9, 3
    %p26 = por %p24, %p25
    %p27 = scmp.ne.s32.totalorder %s19, %s22
    %p28 = scmp.eq.s32.totalorder %s9, 0
    %p29 = por %p27, %p28
    %p30 = scmp.ne.s32.totalorder %s19, %s22
    %p31 = scmp.eq.s32.totalorder %s14, 3
    %p32 = por %p30, %p31
    %p33 = scmp.ne.s32.totalorder %s22, %s23
    %p34 = scmp.eq.s32.totalorder %s14, 0
    %p35 = por %p33, %p34
    %p36 = scmp.ne.s32.totalorder %s22, %s23
    %p37 = scmp.eq.s32.totalorder %s15, 3
    %p38 = por %p36, %p37
    %p40 = scmp.ne.s32.totalorder %s23, %s39
    %p41 = scmp.eq.s32.totalorder %s15, 0
    %p42 = por %p40, %p41
    %s44 = sadd.s32 %s43, 1
    %p47 = scmp.eq.s32.totalorder %s9, 3
    %p48 = scmp.ne.s32.totalorder %s43, %s45
    %p49 = scmp.eq.s32.totalorder %s9, 0
    %p50 = por %p48, %p49
    %p51 = scmp.ne.s32.totalorder %s43, %s45
    %p52 = scmp.eq.s32.totalorder %s14, 3
    %p53 = por %p51, %p52
    %p54 = scmp.ne.s32.totalorder %s45, %s46
    %p55 = scmp.eq.s32.totalorder %s14, 0
    %p56 = por %p54, %p55
    %p57 = scmp.ne.s32.totalorder %s45, %s46
    %p58 = scmp.eq.s32.totalorder %s15, 3
    %p59 = por %p57, %p58
    %p61 = scmp.ne.s32.totalorder %s46, %s60
    %p62 = scmp.eq.s32.totalorder %s15, 0
    %p63 = por %p61, %p62
    %s65 = sadd.s32 %s64, 1
    %p68 = scmp.eq.s32.totalorder %s9, 3
    %p69 = scmp.ne.s32.totalorder %s64, %s66
    %p70 = scmp.eq.s32.totalorder %s9, 0
    %p71 = por %p69, %p70
    %p72 = scmp.ne.s32.totalorder %s64, %s66
    %p73 = scmp.eq.s32.totalorder %s14, 3
    %p74 = por %p72, %p73
    %p75 = scmp.ne.s32.totalorder %s66, %s67
    %p76 = scmp.eq.s32.totalorder %s14, 0
    %p77 = por %p75, %p76
    %p78 = scmp.ne.s32.totalorder %s66, %s67
    %p79 = scmp.eq.s32.totalorder %s15, 3
    %p80 = por %p78, %p79
    %p82 = scmp.ne.s32.totalorder %s67, %s81
    %p83 = scmp.eq.s32.totalorder %s15, 0
    %p84 = por %p82, %p83
    %s85 = ssub.s32 %s9, %s16
    %p86 = scmp.eq.s32.totalorder %s85, 0
    %s88 = sadd.s32 %s87, 1
    %s89 = scalar_select %p86, %s87, %s88
    %p92 = pneg %p86
    %p93 = scmp.eq.s32.totalorder %s9, 3
    %p94 = por %p92, %p93
    %p95 = scmp.ne.s32.totalorder %s87, %s90
    %p96 = scmp.eq.s32.totalorder %s9, 0
    %p97 = por %p95, %p96
    %p98 = scmp.ne.s32.totalorder %s87, %s90
    %p99 = scmp.eq.s32.totalorder %s14, 3
    %p100 = por %p98, %p99
    %p101 = scmp.ne.s32.totalorder %s90, %s91
    %p102 = scmp.eq.s32.totalorder %s14, 0
    %p103 = por %p101, %p102
    %p104 = scmp.ne.s32.totalorder %s90, %s91
    %p105 = scmp.eq.s32.totalorder %s15, 3
    %p106 = por %p104, %p105
    %p108 = scmp.ne.s32.totalorder %s91, %s107
    %p109 = scmp.eq.s32.totalorder %s15, 0
    %p110 = por %p108, %p109
    %p111 = scmp.le.s32.totalorder 1, %s9
    %p112 = scmp.lt.s32.totalorder %s9, 5
    %p113 = pnand %p111, %p112
    %p114 = pneg %p113
    // Predicated region
    $region9: #{a_call__.6} parent=5 // pred_check
      _
    $region10: #{a_call__.6} parent=5 // pred_check_branch
      %116 = sbr.rel (%p113) target = $region12
    $region11: #{a_call__.6} parent=5 // pred_region
      %s117 = ssub.s32 %s9, 1
      // Predicated region
      $region13: #{a_call__.6} parent=11 // pred_check
        %p118 = pneg %p56
      $region14: #{a_call__.6} parent=11 // pred_check_branch
        %120 = sbr.rel (%p118) target = $region16
      $region15: #{a_call__.6} parent=11 // pred_region
        _
      $region16: #{a_call__.6} parent=11 // pred_fallthru
        _
      // Predicated region
      $region17: #{a_call__.6} parent=11 // pred_check
        %p121 = pneg %p77
      $region18: #{a_call__.6} parent=11 // pred_check_branch
        %123 = sbr.rel (%p121) target = $region20
      $region19: #{a_call__.6} parent=11 // pred_region
        _
      $region20: #{a_call__.6} parent=11 // pred_fallthru
        _
    $region12: #{a_call__.6} parent=5 // pred_fallthru
      _
    %p124 = scmp.lt.s32.totalorder %s9, 4
    // Predicated region
    $region21: #{a_call__.6} parent=5 // pred_check
      %p125 = pneg %p124
    $region22: #{a_call__.6} parent=5 // pred_check_branch
      %127 = sbr.rel (%p125) target = $region24
    $region23: #{a_call__.6} parent=5 // pred_region
      // Predicated region
      $region25: #{a_call__.6} parent=23 // pred_check
        %p128 = pneg %p29
      $region26: #{a_call__.6} parent=23 // pred_check_branch
        %130 = sbr.rel (%p128) target = $region28
      $region27: #{a_call__.6} parent=23 // pred_region
        %p131 = scmp.lt.s32.totalorder %s9, 3
        %s132 = scalar_select %p131, %s9, 3
        %s133 = smul.addr %s132, 9
        %s134 = scalar_lea.vmem %s0, %s133
      $region28: #{a_call__.6} parent=23 // pred_fallthru
        _
    $region24: #{a_call__.6} parent=5 // pred_fallthru
      _
    %p135 = scmp.le.s32.totalorder 1, %s9
    %p136 = scmp.lt.s32.totalorder %s9, 5
    %p137 = pnand %p135, %p136
    %p138 = pneg %p137
    // Predicated region
    $region29: #{a_call__.6} parent=5 // pred_check
      _
    $region30: #{a_call__.6} parent=5 // pred_check_branch
      %140 = sbr.rel (%p137) target = $region32
    $region31: #{a_call__.6} parent=5 // pred_region
      %s141 = ssub.s32 %s9, 1
      %p142 = scmp.lt.s32.totalorder %s14, 3
      %s143 = scalar_select %p142, %s14, 3
      %s144 = smul.addr %s143, 9
      %s145 = scalar_lea.vmem %s0, %s144
      %p146 = pneg %p35
      %p147 = pneg %p32
      %p148 = pneg %p56
      %p149 = pneg %p53
      %p150 = pneg %p77
      %p151 = pneg %p74
      %p152 = pneg %p103
      %p153 = pneg %p100
      %p154 = scmp.lt.s32.totalorder %s14, 3
      %s155 = scalar_select %p154, %s14, 3
      %s156 = smul.addr %s155, 8
      %s157 = smul.addr %s156, 4
      %s158 = scalar_lea.vmem %s3, %s157
      %p159 = scmp.lt.s32.totalorder %s14, 3
      %s160 = scalar_select %p159, %s14, 3
      %s161 = smul.addr %s160, 9
      %s162 = scalar_lea.vmem %s0, %s161
      %p163 = scmp.lt.s32.totalorder %s14, 3
      %s164 = scalar_select %p163, %s14, 3
      %s165 = smul.addr %s164, 8
      %s166 = smul.addr %s165, 4
      %s167 = scalar_lea.vmem %s3, %s166
      %v168 = vlaneseq
      %v169 = vand.u32 %v168, 127
      %v170 = vadd.s32 %v169, 128
      %v171 = vadd.s32 %v169, 256
      %v172 = vadd.s32 %v169, 384
      %v173 = vadd.s32 %v169, 512
      %v174 = vadd.s32 %v169, 640
      %v175 = vadd.s32 %v169, 768
      %v176 = vadd.s32 %v169, 896
      %vm177 = vcmp.lt.s32.totalorder %v169, 0
      %v178 = vsub.s32 0, %v169
      %v179 = vsel %vm177, %v178, %v169
      %v180 = vshrl.u32 %v179, 5
      %v181 = vand.u32 %v179, 31
      %v182 = vsub.s32 0, %v181
      %v183 = vsel %vm177, %v182, %v181
      %vm184 = vcmp.lt.s32.totalorder %v170, 0
      %v185 = vsub.s32 0, %v170
      %v186 = vsel %vm184, %v185, %v170
      %v187 = vshrl.u32 %v186, 5
      %v188 = vand.u32 %v186, 31
      %v189 = vsub.s32 0, %v188
      %v190 = vsel %vm184, %v189, %v188
      %vm191 = vcmp.lt.s32.totalorder %v171, 0
      %v192 = vsub.s32 0, %v171
      %v193 = vsel %vm191, %v192, %v171
      %v194 = vshrl.u32 %v193, 5
      %v195 = vand.u32 %v193, 31
      %v196 = vsub.s32 0, %v195
      %v197 = vsel %vm191, %v196, %v195
      %vm198 = vcmp.lt.s32.totalorder %v172, 0
      %v199 = vsub.s32 0, %v172
      %v200 = vsel %vm198, %v199, %v172
      %v201 = vshrl.u32 %v200, 5
      %v202 = vand.u32 %v200, 31
      %v203 = vsub.s32 0, %v202
      %v204 = vsel %vm198, %v203, %v202
      %vm205 = vcmp.lt.s32.totalorder %v173, 0
      %v206 = vsub.s32 0, %v173
      %v207 = vsel %vm205, %v206, %v173
      %v208 = vshrl.u32 %v207, 5
      %v209 = vand.u32 %v207, 31
      %v210 = vsub.s32 0, %v209
      %v211 = vsel %vm205, %v210, %v209
      %vm212 = vcmp.lt.s32.totalorder %v174, 0
      %v213 = vsub.s32 0, %v174
      %v214 = vsel %vm212, %v213, %v174
      %v215 = vshrl.u32 %v214, 5
      %v216 = vand.u32 %v214, 31
      %v217 = vsub.s32 0, %v216
      %v218 = vsel %vm212, %v217, %v216
      %vm219 = vcmp.lt.s32.totalorder %v175, 0
      %v220 = vsub.s32 0, %v175
      %v221 = vsel %vm219, %v220, %v175
      %v222 = vshrl.u32 %v221, 5
      %v223 = vand.u32 %v221, 31
      %v224 = vsub.s32 0, %v223
      %v225 = vsel %vm219, %v224, %v223
      %vm226 = vcmp.lt.s32.totalorder %v176, 0
      %v227 = vsub.s32 0, %v176
      %v228 = vsel %vm226, %v227, %v176
      %v229 = vshrl.u32 %v228, 5
      %v230 = vand.u32 %v228, 31
      %v231 = vsub.s32 0, %v230
      %v232 = vsel %vm226, %v231, %v230
      %vm233 = vcmp.ne.s32.totalorder %v183, 0
      %vm234 = vcmp.ne.s32.totalorder %v190, 0
      %vm235 = vcmp.ne.s32.totalorder %v197, 0
      %vm236 = vcmp.ne.s32.totalorder %v204, 0
      %vm237 = vcmp.ne.s32.totalorder %v211, 0
      %vm238 = vcmp.ne.s32.totalorder %v218, 0
      %vm239 = vcmp.ne.s32.totalorder %v225, 0
      %vm240 = vcmp.ne.s32.totalorder %v232, 0
      %vm241 = vcmp.lt.s32.totalorder %v183, 0
      %vm242 = vcmp.lt.s32.totalorder %v190, 0
      %vm243 = vcmp.lt.s32.totalorder %v197, 0
      %vm244 = vcmp.lt.s32.totalorder %v204, 0
      %vm245 = vcmp.lt.s32.totalorder %v211, 0
      %vm246 = vcmp.lt.s32.totalorder %v218, 0
      %vm247 = vcmp.lt.s32.totalorder %v225, 0
      %vm248 = vcmp.lt.s32.totalorder %v232, 0
      %vm249 = vmand %vm241, %vm233
      %vm250 = vmand %vm242, %vm234
      %vm251 = vmand %vm243, %vm235
      %vm252 = vmand %vm244, %vm236
      %vm253 = vmand %vm245, %vm237
      %vm254 = vmand %vm246, %vm238
      %vm255 = vmand %vm247, %vm239
      %vm256 = vmand %vm248, %vm240
      %v257 = vadd.s32 %v183, 32
      %v258 = vadd.s32 %v190, 32
      %v259 = vadd.s32 %v197, 32
      %v260 = vadd.s32 %v204, 32
      %v261 = vadd.s32 %v211, 32
      %v262 = vadd.s32 %v218, 32
      %v263 = vadd.s32 %v225, 32
      %v264 = vadd.s32 %v232, 32
      %v265 = vsel %vm249, %v257, %v183
      %v266 = vsel %vm250, %v258, %v190
      %v267 = vsel %vm251, %v259, %v197
      %v268 = vsel %vm252, %v260, %v204
      %v269 = vsel %vm253, %v261, %v211
      %v270 = vsel %vm254, %v262, %v218
      %v271 = vsel %vm255, %v263, %v225
      %v272 = vsel %vm256, %v264, %v232
      %v273 = vld [vmem:[%s162] sm:$0xff]
      %v274 = vld [vmem:[%s1] sm:$0xf]
      %v275 = vunpack.c.l.bf16 %v274
      %v276 = vunpack.c.l.bf16 %v273
      %v277 = vunpack.c.h.bf16 %v273
      %279 = vset.pattern.permute.xlu0 0
      %280 = vperm.xlu0 %279, %v275
      %v281 = vpop.permute.xlu0 %280
      %v285 = vlaneseq
      %v286 = vshrl.u32 %v285, 7
      %v287 = vsub.s32 0, %v286
      %v288 = vrot.slane %v276, %v287
      %v289 = vlaneseq
      %v290 = vshrl.u32 %v289, 7
      %v291 = vsub.s32 2, %v290
      %v292 = vrot.slane %v276, %v291
      %v293 = vlaneseq
      %v294 = vshrl.u32 %v293, 7
      %v295 = vsub.s32 4, %v294
      %v296 = vrot.slane %v276, %v295
      %v297 = vlaneseq
      %v298 = vshrl.u32 %v297, 7
      %v299 = vsub.s32 6, %v298
      %v300 = vrot.slane %v276, %v299
      %v301 = vlaneseq
      %v302 = vshrl.u32 %v301, 7
      %v303 = vsub.s32 0, %v302
      %v304 = vrot.slane %v277, %v303
      %v305 = vlaneseq
      %v306 = vshrl.u32 %v305, 7
      %v307 = vsub.s32 2, %v306
      %v308 = vrot.slane %v277, %v307
      %v309 = vlaneseq
      %v310 = vshrl.u32 %v309, 7
      %v311 = vsub.s32 4, %v310
      %v312 = vrot.slane %v277, %v311
      %v313 = vlaneseq
      %v314 = vshrl.u32 %v313, 7
      %v315 = vsub.s32 6, %v314
      %v316 = vrot.slane %v277, %v315
      %v325 = vlaneseq
      %v326 = vshrl.u32 %v325, 7
      %v327 = vsub.s32 0, %v326
      %v328 = vrot.slane %v288, %v327
      %v329 = vlaneseq
      %v330 = vshrl.u32 %v329, 7
      %v331 = vsub.s32 0, %v330
      %v332 = vrot.slane %v292, %v331
      %v333 = vlaneseq
      %v334 = vshrl.u32 %v333, 7
      %v335 = vsub.s32 0, %v334
      %v336 = vrot.slane %v296, %v335
      %v337 = vlaneseq
      %v338 = vshrl.u32 %v337, 7
      %v339 = vsub.s32 0, %v338
      %v340 = vrot.slane %v300, %v339
      %v341 = vlaneseq
      %v342 = vshrl.u32 %v341, 7
      %v343 = vsub.s32 0, %v342
      %v344 = vrot.slane %v304, %v343
      %v345 = vlaneseq
      %v346 = vshrl.u32 %v345, 7
      %v347 = vsub.s32 0, %v346
      %v348 = vrot.slane %v308, %v347
      %v349 = vlaneseq
      %v350 = vshrl.u32 %v349, 7
      %v351 = vsub.s32 0, %v350
      %v352 = vrot.slane %v312, %v351
      %v353 = vlaneseq
      %v354 = vshrl.u32 %v353, 7
      %v355 = vsub.s32 0, %v354
      %v356 = vrot.slane %v316, %v355
      %v357 = vmul.f32 %v281, %v328
      %v358 = vmul.f32 %v281, %v332
      %v359 = vmul.f32 %v281, %v336
      %v360 = vmul.f32 %v281, %v340
      %v361 = vmul.f32 %v281, %v344
      %v362 = vmul.f32 %v281, %v348
      %v363 = vmul.f32 %v281, %v352
      %v364 = vmul.f32 %v281, %v356
      %v365 = vadd.f32 %v357, 0.0
      %v366 = vadd.f32 %v358, 0.0
      %v367 = vadd.f32 %v359, 0.0
      %v368 = vadd.f32 %v360, 0.0
      %v369 = vadd.f32 %v361, 0.0
      %v370 = vadd.f32 %v362, 0.0
      %v371 = vadd.f32 %v363, 0.0
      %v372 = vadd.f32 %v364, 0.0
      %v373 = vld [vmem:[%s162] sm:$0xff]
      %v374 = vld [vmem:[%s162 + $0x8] sm:$0x1]
      %s375 = scalar_lea.vmem %s1, 12
      %v376 = vld [vmem:[%s375] sm:$0xf]
      %v377 = vunpack.c.l.bf16 %v376
      %v378 = vunpack.c.l.bf16 %v373
      %v379 = vunpack.c.h.bf16 %v373
      %v380 = vunpack.c.l.bf16 %v374
      %382 = vset.pattern.permute.xlu0 0
      %383 = vperm.xlu0 %382, %v377
      %v384 = vpop.permute.xlu0 %383
      %v389 = vlaneseq
      %v390 = vshrl.u32 %v389, 7
      %v391 = vsub.s32 0, %v390
      %v392 = vrot.slane %v378, %v391
      %v393 = vlaneseq
      %v394 = vshrl.u32 %v393, 7
      %v395 = vsub.s32 2, %v394
      %v396 = vrot.slane %v378, %v395
      %v397 = vlaneseq
      %v398 = vshrl.u32 %v397, 7
      %v399 = vsub.s32 4, %v398
      %v400 = vrot.slane %v378, %v399
      %v401 = vlaneseq
      %v402 = vshrl.u32 %v401, 7
      %v403 = vsub.s32 6, %v402
      %v404 = vrot.slane %v378, %v403
      %v405 = vlaneseq
      %v406 = vshrl.u32 %v405, 7
      %v407 = vsub.s32 0, %v406
      %v408 = vrot.slane %v379, %v407
      %v409 = vlaneseq
      %v410 = vshrl.u32 %v409, 7
      %v411 = vsub.s32 2, %v410
      %v412 = vrot.slane %v379, %v411
      %v413 = vlaneseq
      %v414 = vshrl.u32 %v413, 7
      %v415 = vsub.s32 4, %v414
      %v416 = vrot.slane %v379, %v415
      %v417 = vlaneseq
      %v418 = vshrl.u32 %v417, 7
      %v419 = vsub.s32 6, %v418
      %v420 = vrot.slane %v379, %v419
      %v421 = vlaneseq
      %v422 = vshrl.u32 %v421, 7
      %v423 = vsub.s32 0, %v422
      %v424 = vrot.slane %v380, %v423
      %v434 = vlaneseq
      %v435 = vshrl.u32 %v434, 7
      %v436 = vsub.s32 0, %v435
      %v437 = vrot.slane %v392, %v436
      %v438 = vlaneseq
      %v439 = vshrl.u32 %v438, 7
      %v440 = vsub.s32 0, %v439
      %v441 = vrot.slane %v396, %v440
      %v442 = vlaneseq
      %v443 = vshrl.u32 %v442, 7
      %v444 = vsub.s32 0, %v443
      %v445 = vrot.slane %v400, %v444
      %v446 = vlaneseq
      %v447 = vshrl.u32 %v446, 7
      %v448 = vsub.s32 0, %v447
      %v449 = vrot.slane %v404, %v448
      %v450 = vlaneseq
      %v451 = vshrl.u32 %v450, 7
      %v452 = vsub.s32 0, %v451
      %v453 = vrot.slane %v408, %v452
      %v454 = vlaneseq
      %v455 = vshrl.u32 %v454, 7
      %v456 = vsub.s32 0, %v455
      %v457 = vrot.slane %v412, %v456
      %v458 = vlaneseq
      %v459 = vshrl.u32 %v458, 7
      %v460 = vsub.s32 0, %v459
      %v461 = vrot.slane %v416, %v460
      %v462 = vlaneseq
      %v463 = vshrl.u32 %v462, 7
      %v464 = vsub.s32 0, %v463
      %v465 = vrot.slane %v420, %v464
      %v466 = vlaneseq
      %v467 = vshrl.u32 %v466, 7
      %v468 = vsub.s32 0, %v467
      %v469 = vrot.slane %v424, %v468
      %v470 = vmul.f32 %v384, %v437
      %v471 = vmul.f32 %v384, %v441
      %v472 = vmul.f32 %v384, %v445
      %v473 = vmul.f32 %v384, %v449
      %v474 = vmul.f32 %v384, %v453
      %v475 = vmul.f32 %v384, %v457
      %v476 = vmul.f32 %v384, %v461
      %v477 = vmul.f32 %v384, %v465
      %v478 = vmul.f32 %v384, %v469
      %488 = vrot.lane.b32.xlu0 %v470, 96
      %v489 = vpop.permute.xlu0 %488
      %490 = vrot.lane.b32.xlu0 %v471, 96
      %v491 = vpop.permute.xlu0 %490
      %492 = vrot.lane.b32.xlu0 %v472, 96
      %v493 = vpop.permute.xlu0 %492
      %494 = vrot.lane.b32.xlu0 %v473, 96
      %v495 = vpop.permute.xlu0 %494
      %496 = vrot.lane.b32.xlu0 %v474, 96
      %v497 = vpop.permute.xlu0 %496
      %498 = vrot.lane.b32.xlu0 %v475, 96
      %v499 = vpop.permute.xlu0 %498
      %500 = vrot.lane.b32.xlu0 %v476, 96
      %v501 = vpop.permute.xlu0 %500
      %502 = vrot.lane.b32.xlu0 %v477, 96
      %v503 = vpop.permute.xlu0 %502
      %504 = vrot.lane.b32.xlu0 %v478, 96
      %v505 = vpop.permute.xlu0 %504
      %vm506 = vcmask 785408
      %v507 = vsel %vm506, %v489, %v491
      %v508 = vsel %vm506, %v491, %v493
      %v509 = vsel %vm506, %v493, %v495
      %v510 = vsel %vm506, %v495, %v497
      %v511 = vsel %vm506, %v497, %v499
      %v512 = vsel %vm506, %v499, %v501
      %v513 = vsel %vm506, %v501, %v503
      %v514 = vsel %vm506, %v503, %v505
      %v523 = vadd.f32 %v365, %v507
      %v524 = vadd.f32 %v366, %v508
      %v525 = vadd.f32 %v367, %v509
      %v526 = vadd.f32 %v368, %v510
      %v527 = vadd.f32 %v369, %v511
      %v528 = vadd.f32 %v370, %v512
      %v529 = vadd.f32 %v371, %v513
      %v530 = vadd.f32 %v372, %v514
      %s531 = scalar_lea.vmem %s1, 24
      %v532 = vld [vmem:[%s531] sm:$0xf]
      %v533 = vunpack.c.l.bf16 %v532
      %535 = vset.pattern.permute.xlu0 0
      %536 = vperm.xlu0 %535, %v533
      %v537 = vpop.permute.xlu0 %536
      %v539 = vmul.f32 %v537, %v437
      %v540 = vmul.f32 %v537, %v441
      %v541 = vmul.f32 %v537, %v445
      %v542 = vmul.f32 %v537, %v449
      %v543 = vmul.f32 %v537, %v453
      %v544 = vmul.f32 %v537, %v457
      %v545 = vmul.f32 %v537, %v461
      %v546 = vmul.f32 %v537, %v465
      %v547 = vmul.f32 %v537, %v469
      %557 = vrot.lane.b32.xlu0 %v539, 64
      %v558 = vpop.permute.xlu0 %557
      %559 = vrot.lane.b32.xlu0 %v540, 64
      %v560 = vpop.permute.xlu0 %559
      %561 = vrot.lane.b32.xlu0 %v541, 64
      %v562 = vpop.permute.xlu0 %561
      %563 = vrot.lane.b32.xlu0 %v542, 64
      %v564 = vpop.permute.xlu0 %563
      %565 = vrot.lane.b32.xlu0 %v543, 64
      %v566 = vpop.permute.xlu0 %565
      %567 = vrot.lane.b32.xlu0 %v544, 64
      %v568 = vpop.permute.xlu0 %567
      %569 = vrot.lane.b32.xlu0 %v545, 64
      %v570 = vpop.permute.xlu0 %569
      %571 = vrot.lane.b32.xlu0 %v546, 64
      %v572 = vpop.permute.xlu0 %571
      %573 = vrot.lane.b32.xlu0 %v547, 64
      %v574 = vpop.permute.xlu0 %573
      %vm575 = vcmask 523264
      %v576 = vsel %vm575, %v558, %v560
      %v577 = vsel %vm575, %v560, %v562
      %v578 = vsel %vm575, %v562, %v564
      %v579 = vsel %vm575, %v564, %v566
      %v580 = vsel %vm575, %v566, %v568
      %v581 = vsel %vm575, %v568, %v570
      %v582 = vsel %vm575, %v570, %v572
      %v583 = vsel %vm575, %v572, %v574
      %v592 = vadd.f32 %v523, %v576
      %v593 = vadd.f32 %v524, %v577
      %v594 = vadd.f32 %v525, %v578
      %v595 = vadd.f32 %v526, %v579
      %v596 = vadd.f32 %v527, %v580
      %v597 = vadd.f32 %v528, %v581
      %v598 = vadd.f32 %v529, %v582
      %v599 = vadd.f32 %v530, %v583
      %vm600 = vcmp.ge.s32.totalorder %v265, 1
      %vm601 = vcmp.ge.s32.totalorder %v266, 1
      %vm602 = vcmp.ge.s32.totalorder %v267, 1
      %vm603 = vcmp.ge.s32.totalorder %v268, 1
      %vm604 = vcmp.ge.s32.totalorder %v269, 1
      %vm605 = vcmp.ge.s32.totalorder %v270, 1
      %vm606 = vcmp.ge.s32.totalorder %v271, 1
      %vm607 = vcmp.ge.s32.totalorder %v272, 1
      %v608 = vsel %vm600, 1, 0
      %v609 = vsel %vm601, 1, 0
      %v610 = vsel %vm602, 1, 0
      %v611 = vsel %vm603, 1, 0
      %v612 = vsel %vm604, 1, 0
      %v613 = vsel %vm605, 1, 0
      %v614 = vsel %vm606, 1, 0
      %v615 = vsel %vm607, 1, 0
      %vm616 = vcmp.eq.s32.totalorder %v608, 1
      %vm617 = vcmp.eq.s32.totalorder %v609, 1
      %vm618 = vcmp.eq.s32.totalorder %v610, 1
      %vm619 = vcmp.eq.s32.totalorder %v611, 1
      %vm620 = vcmp.eq.s32.totalorder %v612, 1
      %vm621 = vcmp.eq.s32.totalorder %v613, 1
      %vm622 = vcmp.eq.s32.totalorder %v614, 1
      %vm623 = vcmp.eq.s32.totalorder %v615, 1
      %v624 = vsel %vm616, %v592, 0.0
      %v625 = vsel %vm617, %v593, 0.0
      %v626 = vsel %vm618, %v594, 0.0
      %v627 = vsel %vm619, %v595, 0.0
      %v628 = vsel %vm620, %v596, 0.0
      %v629 = vsel %vm621, %v597, 0.0
      %v630 = vsel %vm622, %v598, 0.0
      %v631 = vsel %vm623, %v599, 0.0
      %v632 = vadd.f32 %v624, 0.0
      %v633 = vadd.f32 %v625, 0.0
      %v634 = vadd.f32 %v626, 0.0
      %v635 = vadd.f32 %v627, 0.0
      %v636 = vadd.f32 %v628, 0.0
      %v637 = vadd.f32 %v629, 0.0
      %v638 = vadd.f32 %v630, 0.0
      %v639 = vadd.f32 %v631, 0.0
      %s640 = scalar_lea.vmem %s1, 4
      %v641 = vld [vmem:[%s640] sm:$0xf]
      %v642 = vunpack.c.l.bf16 %v641
      %644 = vset.pattern.permute.xlu0 0
      %645 = vperm.xlu0 %644, %v642
      %v646 = vpop.permute.xlu0 %645
      %v648 = vmul.f32 %v646, %v437
      %v649 = vmul.f32 %v646, %v441
      %v650 = vmul.f32 %v646, %v445
      %v651 = vmul.f32 %v646, %v449
      %v652 = vmul.f32 %v646, %v453
      %v653 = vmul.f32 %v646, %v457
      %v654 = vmul.f32 %v646, %v461
      %v655 = vmul.f32 %v646, %v465
      %v656 = vmul.f32 %v646, %v469
      %v657 = vadd.f32 %v648, 0.0
      %v658 = vadd.f32 %v649, 0.0
      %v659 = vadd.f32 %v650, 0.0
      %v660 = vadd.f32 %v651, 0.0
      %v661 = vadd.f32 %v652, 0.0
      %v662 = vadd.f32 %v653, 0.0
      %v663 = vadd.f32 %v654, 0.0
      %v664 = vadd.f32 %v655, 0.0
      %v665 = vadd.f32 %v656, 0.0
      %s666 = scalar_lea.vmem %s1, 16
      %v667 = vld [vmem:[%s666] sm:$0xf]
      %v668 = vunpack.c.l.bf16 %v667
      %670 = vset.pattern.permute.xlu0 0
      %671 = vperm.xlu0 %670, %v668
      %v672 = vpop.permute.xlu0 %671
      %v674 = vmul.f32 %v672, %v437
      %v675 = vmul.f32 %v672, %v441
      %v676 = vmul.f32 %v672, %v445
      %v677 = vmul.f32 %v672, %v449
      %v678 = vmul.f32 %v672, %v453
      %v679 = vmul.f32 %v672, %v457
      %v680 = vmul.f32 %v672, %v461
      %v681 = vmul.f32 %v672, %v465
      %v682 = vmul.f32 %v672, %v469
      %692 = vrot.lane.b32.xlu0 %v674, 96
      %v693 = vpop.permute.xlu0 %692
      %694 = vrot.lane.b32.xlu0 %v675, 96
      %v695 = vpop.permute.xlu0 %694
      %696 = vrot.lane.b32.xlu0 %v676, 96
      %v697 = vpop.permute.xlu0 %696
      %698 = vrot.lane.b32.xlu0 %v677, 96
      %v699 = vpop.permute.xlu0 %698
      %700 = vrot.lane.b32.xlu0 %v678, 96
      %v701 = vpop.permute.xlu0 %700
      %702 = vrot.lane.b32.xlu0 %v679, 96
      %v703 = vpop.permute.xlu0 %702
      %704 = vrot.lane.b32.xlu0 %v680, 96
      %v705 = vpop.permute.xlu0 %704
      %706 = vrot.lane.b32.xlu0 %v681, 96
      %v707 = vpop.permute.xlu0 %706
      %708 = vrot.lane.b32.xlu0 %v682, 96
      %v709 = vpop.permute.xlu0 %708
      %v710 = vsel %vm506, %v693, %v695
      %v711 = vsel %vm506, %v695, %v697
      %v712 = vsel %vm506, %v697, %v699
      %v713 = vsel %vm506, %v699, %v701
      %v714 = vsel %vm506, %v701, %v703
      %v715 = vsel %vm506, %v703, %v705
      %v716 = vsel %vm506, %v705, %v707
      %v717 = vsel %vm506, %v707, %v709
      %v727 = vadd.f32 %v657, %v710
      %v728 = vadd.f32 %v658, %v711
      %v729 = vadd.f32 %v659, %v712
      %v730 = vadd.f32 %v660, %v713
      %v731 = vadd.f32 %v661, %v714
      %v732 = vadd.f32 %v662, %v715
      %v733 = vadd.f32 %v663, %v716
      %v734 = vadd.f32 %v664, %v717
      %v735 = vadd.f32 %v665, %v709
      %s736 = scalar_lea.vmem %s1, 28
      %v737 = vld [vmem:[%s736] sm:$0xf]
      %v738 = vunpack.c.l.bf16 %v737
      %740 = vset.pattern.permute.xlu0 0
      %741 = vperm.xlu0 %740, %v738
      %v742 = vpop.permute.xlu0 %741
      %v744 = vmul.f32 %v742, %v437
      %v745 = vmul.f32 %v742, %v441
      %v746 = vmul.f32 %v742, %v445
      %v747 = vmul.f32 %v742, %v449
      %v748 = vmul.f32 %v742, %v453
      %v749 = vmul.f32 %v742, %v457
      %v750 = vmul.f32 %v742, %v461
      %v751 = vmul.f32 %v742, %v465
      %v752 = vmul.f32 %v742, %v469
      %762 = vrot.lane.b32.xlu0 %v744, 64
      %v763 = vpop.permute.xlu0 %762
      %764 = vrot.lane.b32.xlu0 %v745, 64
      %v765 = vpop.permute.xlu0 %764
      %766 = vrot.lane.b32.xlu0 %v746, 64
      %v767 = vpop.permute.xlu0 %766
      %768 = vrot.lane.b32.xlu0 %v747, 64
      %v769 = vpop.permute.xlu0 %768
      %770 = vrot.lane.b32.xlu0 %v748, 64
      %v771 = vpop.permute.xlu0 %770
      %772 = vrot.lane.b32.xlu0 %v749, 64
      %v773 = vpop.permute.xlu0 %772
      %774 = vrot.lane.b32.xlu0 %v750, 64
      %v775 = vpop.permute.xlu0 %774
      %776 = vrot.lane.b32.xlu0 %v751, 64
      %v777 = vpop.permute.xlu0 %776
      %778 = vrot.lane.b32.xlu0 %v752, 64
      %v779 = vpop.permute.xlu0 %778
      %v780 = vsel %vm575, %v763, %v765
      %v781 = vsel %vm575, %v765, %v767
      %v782 = vsel %vm575, %v767, %v769
      %v783 = vsel %vm575, %v769, %v771
      %v784 = vsel %vm575, %v771, %v773
      %v785 = vsel %vm575, %v773, %v775
      %v786 = vsel %vm575, %v775, %v777
      %v787 = vsel %vm575, %v777, %v779
      %v797 = vadd.f32 %v727, %v780
      %v798 = vadd.f32 %v728, %v781
      %v799 = vadd.f32 %v729, %v782
      %v800 = vadd.f32 %v730, %v783
      %v801 = vadd.f32 %v731, %v784
      %v802 = vadd.f32 %v732, %v785
      %v803 = vadd.f32 %v733, %v786
      %v804 = vadd.f32 %v734, %v787
      %v805 = vadd.f32 %v735, %v779
      %815 = vrot.lane.b32.xlu0 %v797, 127
      %v816 = vpop.permute.xlu0 %815
      %817 = vrot.lane.b32.xlu0 %v798, 127
      %v818 = vpop.permute.xlu0 %817
      %819 = vrot.lane.b32.xlu0 %v799, 127
      %v820 = vpop.permute.xlu0 %819
      %821 = vrot.lane.b32.xlu0 %v800, 127
      %v822 = vpop.permute.xlu0 %821
      %823 = vrot.lane.b32.xlu0 %v801, 127
      %v824 = vpop.permute.xlu0 %823
      %825 = vrot.lane.b32.xlu0 %v802, 127
      %v826 = vpop.permute.xlu0 %825
      %827 = vrot.lane.b32.xlu0 %v803, 127
      %v828 = vpop.permute.xlu0 %827
      %829 = vrot.lane.b32.xlu0 %v804, 127
      %v830 = vpop.permute.xlu0 %829
      %831 = vrot.lane.b32.xlu0 %v805, 127
      %v832 = vpop.permute.xlu0 %831
      %vm833 = vcmask 1039360
      %v834 = vsel %vm833, %v816, %v818
      %v835 = vsel %vm833, %v818, %v820
      %v836 = vsel %vm833, %v820, %v822
      %v837 = vsel %vm833, %v822, %v824
      %v838 = vsel %vm833, %v824, %v826
      %v839 = vsel %vm833, %v826, %v828
      %v840 = vsel %vm833, %v828, %v830
      %v841 = vsel %vm833, %v830, %v832
      %v850 = vadd.f32 %v632, %v834
      %v851 = vadd.f32 %v633, %v835
      %v852 = vadd.f32 %v634, %v836
      %v853 = vadd.f32 %v635, %v837
      %v854 = vadd.f32 %v636, %v838
      %v855 = vadd.f32 %v637, %v839
      %v856 = vadd.f32 %v638, %v840
      %v857 = vadd.f32 %v639, %v841
      %s858 = scalar_lea.vmem %s1, 8
      %v859 = vld [vmem:[%s858] sm:$0xf]
      %v860 = vunpack.c.l.bf16 %v859
      %862 = vset.pattern.permute.xlu0 0
      %863 = vperm.xlu0 %862, %v860
      %v864 = vpop.permute.xlu0 %863
      %v866 = vmul.f32 %v864, %v437
      %v867 = vmul.f32 %v864, %v441
      %v868 = vmul.f32 %v864, %v445
      %v869 = vmul.f32 %v864, %v449
      %v870 = vmul.f32 %v864, %v453
      %v871 = vmul.f32 %v864, %v457
      %v872 = vmul.f32 %v864, %v461
      %v873 = vmul.f32 %v864, %v465
      %v874 = vmul.f32 %v864, %v469
      %v875 = vadd.f32 %v866, 0.0
      %v876 = vadd.f32 %v867, 0.0
      %v877 = vadd.f32 %v868, 0.0
      %v878 = vadd.f32 %v869, 0.0
      %v879 = vadd.f32 %v870, 0.0
      %v880 = vadd.f32 %v871, 0.0
      %v881 = vadd.f32 %v872, 0.0
      %v882 = vadd.f32 %v873, 0.0
      %v883 = vadd.f32 %v874, 0.0
      %s884 = scalar_lea.vmem %s1, 20
      %v885 = vld [vmem:[%s884] sm:$0xf]
      %v886 = vunpack.c.l.bf16 %v885
      %888 = vset.pattern.permute.xlu0 0
      %889 = vperm.xlu0 %888, %v886
      %v890 = vpop.permute.xlu0 %889
      %v892 = vmul.f32 %v890, %v437
      %v893 = vmul.f32 %v890, %v441
      %v894 = vmul.f32 %v890, %v445
      %v895 = vmul.f32 %v890, %v449
      %v896 = vmul.f32 %v890, %v453
      %v897 = vmul.f32 %v890, %v457
      %v898 = vmul.f32 %v890, %v461
      %v899 = vmul.f32 %v890, %v465
      %v900 = vmul.f32 %v890, %v469
      %910 = vrot.lane.b32.xlu0 %v892, 96
      %v911 = vpop.permute.xlu0 %910
      %912 = vrot.lane.b32.xlu0 %v893, 96
      %v913 = vpop.permute.xlu0 %912
      %914 = vrot.lane.b32.xlu0 %v894, 96
      %v915 = vpop.permute.xlu0 %914
      %916 = vrot.lane.b32.xlu0 %v895, 96
      %v917 = vpop.permute.xlu0 %916
      %918 = vrot.lane.b32.xlu0 %v896, 96
      %v919 = vpop.permute.xlu0 %918
      %920 = vrot.lane.b32.xlu0 %v897, 96
      %v921 = vpop.permute.xlu0 %920
      %922 = vrot.lane.b32.xlu0 %v898, 96
      %v923 = vpop.permute.xlu0 %922
      %924 = vrot.lane.b32.xlu0 %v899, 96
      %v925 = vpop.permute.xlu0 %924
      %926 = vrot.lane.b32.xlu0 %v900, 96
      %v927 = vpop.permute.xlu0 %926
      %v928 = vsel %vm506, %v911, %v913
      %v929 = vsel %vm506, %v913, %v915
      %v930 = vsel %vm506, %v915, %v917
      %v931 = vsel %vm506, %v917, %v919
      %v932 = vsel %vm506, %v919, %v921
      %v933 = vsel %vm506, %v921, %v923
      %v934 = vsel %vm506, %v923, %v925
      %v935 = vsel %vm506, %v925, %v927
      %v945 = vadd.f32 %v875, %v928
      %v946 = vadd.f32 %v876, %v929
      %v947 = vadd.f32 %v877, %v930
      %v948 = vadd.f32 %v878, %v931
      %v949 = vadd.f32 %v879, %v932
      %v950 = vadd.f32 %v880, %v933
      %v951 = vadd.f32 %v881, %v934
      %v952 = vadd.f32 %v882, %v935
      %v953 = vadd.f32 %v883, %v927
      %s954 = scalar_lea.vmem %s1, 32
      %v955 = vld [vmem:[%s954] sm:$0xf]
      %v956 = vunpack.c.l.bf16 %v955
      %958 = vset.pattern.permute.xlu0 0
      %959 = vperm.xlu0 %958, %v956
      %v960 = vpop.permute.xlu0 %959
      %v962 = vmul.f32 %v960, %v437
      %v963 = vmul.f32 %v960, %v441
      %v964 = vmul.f32 %v960, %v445
      %v965 = vmul.f32 %v960, %v449
      %v966 = vmul.f32 %v960, %v453
      %v967 = vmul.f32 %v960, %v457
      %v968 = vmul.f32 %v960, %v461
      %v969 = vmul.f32 %v960, %v465
      %v970 = vmul.f32 %v960, %v469
      %980 = vrot.lane.b32.xlu0 %v962, 64
      %v981 = vpop.permute.xlu0 %980
      %982 = vrot.lane.b32.xlu0 %v963, 64
      %v983 = vpop.permute.xlu0 %982
      %984 = vrot.lane.b32.xlu0 %v964, 64
      %v985 = vpop.permute.xlu0 %984
      %986 = vrot.lane.b32.xlu0 %v965, 64
      %v987 = vpop.permute.xlu0 %986
      %988 = vrot.lane.b32.xlu0 %v966, 64
      %v989 = vpop.permute.xlu0 %988
      %990 = vrot.lane.b32.xlu0 %v967, 64
      %v991 = vpop.permute.xlu0 %990
      %992 = vrot.lane.b32.xlu0 %v968, 64
      %v993 = vpop.permute.xlu0 %992
      %994 = vrot.lane.b32.xlu0 %v969, 64
      %v995 = vpop.permute.xlu0 %994
      %996 = vrot.lane.b32.xlu0 %v970, 64
      %v997 = vpop.permute.xlu0 %996
      %v998 = vsel %vm575, %v981, %v983
      %v999 = vsel %vm575, %v983, %v985
      %v1000 = vsel %vm575, %v985, %v987
      %v1001 = vsel %vm575, %v987, %v989
      %v1002 = vsel %vm575, %v989, %v991
      %v1003 = vsel %vm575, %v991, %v993
      %v1004 = vsel %vm575, %v993, %v995
      %v1005 = vsel %vm575, %v995, %v997
      %v1015 = vadd.f32 %v945, %v998
      %v1016 = vadd.f32 %v946, %v999
      %v1017 = vadd.f32 %v947, %v1000
      %v1018 = vadd.f32 %v948, %v1001
      %v1019 = vadd.f32 %v949, %v1002
      %v1020 = vadd.f32 %v950, %v1003
      %v1021 = vadd.f32 %v951, %v1004
      %v1022 = vadd.f32 %v952, %v1005
      %v1023 = vadd.f32 %v953, %v997
      %vm1024 = vcmp.le.s32.totalorder %v265, 30
      %vm1025 = vcmp.le.s32.totalorder %v266, 30
      %vm1026 = vcmp.le.s32.totalorder %v267, 30
      %vm1027 = vcmp.le.s32.totalorder %v268, 30
      %vm1028 = vcmp.le.s32.totalorder %v269, 30
      %vm1029 = vcmp.le.s32.totalorder %v270, 30
      %vm1030 = vcmp.le.s32.totalorder %v271, 30
      %vm1031 = vcmp.le.s32.totalorder %v272, 30
      %v1032 = vsel %vm1024, 1, 0
      %v1033 = vsel %vm1025, 1, 0
      %v1034 = vsel %vm1026, 1, 0
      %v1035 = vsel %vm1027, 1, 0
      %v1036 = vsel %vm1028, 1, 0
      %v1037 = vsel %vm1029, 1, 0
      %v1038 = vsel %vm1030, 1, 0
      %v1039 = vsel %vm1031, 1, 0
      %vm1040 = vcmp.eq.s32.totalorder %v1032, 1
      %vm1041 = vcmp.eq.s32.totalorder %v1033, 1
      %vm1042 = vcmp.eq.s32.totalorder %v1034, 1
      %vm1043 = vcmp.eq.s32.totalorder %v1035, 1
      %vm1044 = vcmp.eq.s32.totalorder %v1036, 1
      %vm1045 = vcmp.eq.s32.totalorder %v1037, 1
      %vm1046 = vcmp.eq.s32.totalorder %v1038, 1
      %vm1047 = vcmp.eq.s32.totalorder %v1039, 1
      %1057 = vrot.lane.b32.xlu0 %v1015, 126
      %v1058 = vpop.permute.xlu0 %1057
      %1059 = vrot.lane.b32.xlu0 %v1016, 126
      %v1060 = vpop.permute.xlu0 %1059
      %1061 = vrot.lane.b32.xlu0 %v1017, 126
      %v1062 = vpop.permute.xlu0 %1061
      %1063 = vrot.lane.b32.xlu0 %v1018, 126
      %v1064 = vpop.permute.xlu0 %1063
      %1065 = vrot.lane.b32.xlu0 %v1019, 126
      %v1066 = vpop.permute.xlu0 %1065
      %1067 = vrot.lane.b32.xlu0 %v1020, 126
      %v1068 = vpop.permute.xlu0 %1067
      %1069 = vrot.lane.b32.xlu0 %v1021, 126
      %v1070 = vpop.permute.xlu0 %1069
      %1071 = vrot.lane.b32.xlu0 %v1022, 126
      %v1072 = vpop.permute.xlu0 %1071
      %1073 = vrot.lane.b32.xlu0 %v1023, 126
      %v1074 = vpop.permute.xlu0 %1073
      %vm1075 = vcmask 1031168
      %v1076 = vsel %vm1075, %v1058, %v1060
      %v1077 = vsel %vm1075, %v1060, %v1062
      %v1078 = vsel %vm1075, %v1062, %v1064
      %v1079 = vsel %vm1075, %v1064, %v1066
      %v1080 = vsel %vm1075, %v1066, %v1068
      %v1081 = vsel %vm1075, %v1068, %v1070
      %v1082 = vsel %vm1075, %v1070, %v1072
      %v1083 = vsel %vm1075, %v1072, %v1074
      %v1092 = vsel %vm1040, %v1076, 0.0
      %v1093 = vsel %vm1041, %v1077, 0.0
      %v1094 = vsel %vm1042, %v1078, 0.0
      %v1095 = vsel %vm1043, %v1079, 0.0
      %v1096 = vsel %vm1044, %v1080, 0.0
      %v1097 = vsel %vm1045, %v1081, 0.0
      %v1098 = vsel %vm1046, %v1082, 0.0
      %v1099 = vsel %vm1047, %v1083, 0.0
      %v1100 = vadd.f32 %v850, %v1092
      %v1101 = vadd.f32 %v851, %v1093
      %v1102 = vadd.f32 %v852, %v1094
      %v1103 = vadd.f32 %v853, %v1095
      %v1104 = vadd.f32 %v854, %v1096
      %v1105 = vadd.f32 %v855, %v1097
      %v1106 = vadd.f32 %v856, %v1098
      %v1107 = vadd.f32 %v857, %v1099
      %v1108 = vld [vmem:[%s2] sm:$0xff]
      %1110 = vset.pattern.permute.xlu0 0
      %1111 = vperm.xlu0 %1110, %v1108
      %v1112 = vpop.permute.xlu0 %1111
      %v1114 = vadd.f32 %v1100, %v1112
      %v1115 = vadd.f32 %v1101, %v1112
      %v1116 = vadd.f32 %v1102, %v1112
      %v1117 = vadd.f32 %v1103, %v1112
      %v1118 = vadd.f32 %v1104, %v1112
      %v1119 = vadd.f32 %v1105, %v1112
      %v1120 = vadd.f32 %v1106, %v1112
      %v1121 = vadd.f32 %v1107, %v1112
      %v1122 = vmax.f32 %v1114, 0.0
      %v1123 = vmax.f32 %v1115, 0.0
      %v1124 = vmax.f32 %v1116, 0.0
      %v1125 = vmax.f32 %v1117, 0.0
      %v1126 = vmax.f32 %v1118, 0.0
      %v1127 = vmax.f32 %v1119, 0.0
      %v1128 = vmax.f32 %v1120, 0.0
      %v1129 = vmax.f32 %v1121, 0.0
      %v1130 = vpack.c.bf16 %v1122, %v1122
      %v1131 = vpack.c.bf16 %v1123, %v1123
      %v1132 = vpack.c.bf16 %v1124, %v1124
      %v1133 = vpack.c.bf16 %v1125, %v1125
      %v1134 = vpack.c.bf16 %v1126, %v1126
      %v1135 = vpack.c.bf16 %v1127, %v1127
      %v1136 = vpack.c.bf16 %v1128, %v1128
      %v1137 = vpack.c.bf16 %v1129, %v1129
      %v1146 = vunpack.c.l.b16 %v1130
      %v1147 = vunpack.c.l.b16 %v1131
      %v1148 = vunpack.c.l.b16 %v1132
      %v1149 = vunpack.c.l.b16 %v1133
      %v1150 = vunpack.c.l.b16 %v1134
      %v1151 = vunpack.c.l.b16 %v1135
      %v1152 = vunpack.c.l.b16 %v1136
      %v1153 = vunpack.c.l.b16 %v1137
      %v1154 = vpack.c.b16 %v1147, %v1146
      %v1155 = vpack.c.b16 %v1149, %v1148
      %v1156 = vpack.c.b16 %v1151, %v1150
      %v1157 = vpack.c.b16 %v1153, %v1152
      %1162 = vst [vmem:[%s167] sm:$0xff] %v1154
      %1163 = vst [vmem:[%s167 + $0x8] sm:$0xff] %v1155
      %1164 = vst [vmem:[%s167 + $0x10] sm:$0xff] %v1156
      %1165 = vst [vmem:[%s167 + $0x18] sm:$0xff] %v1157
      %p1166 = scmp.lt.s32.totalorder %s14, 3
      %s1167 = scalar_select %p1166, %s14, 3
      %s1168 = smul.addr %s1167, 8
      %s1169 = smul.addr %s1168, 4
      %s1170 = scalar_lea.vmem %s3, %s1169
      // Predicated region
      $region33: #{a_call__.6} parent=31 // pred_check
        %p1171 = pneg %p100
      $region34: #{a_call__.6} parent=31 // pred_check_branch
        %1173 = sbr.rel (%p1171) target = $region36
      $region35: #{a_call__.6} parent=31 // pred_region
        _
      $region36: #{a_call__.6} parent=31 // pred_fallthru
        _
    $region32: #{a_call__.6} parent=5 // pred_fallthru
      _
    %p1174 = scmp.le.s32.totalorder 2, %s9
    // Predicated region
    $region37: #{a_call__.6} parent=5 // pred_check
      %p1175 = pneg %p1174
    $region38: #{a_call__.6} parent=5 // pred_check_branch
      %1177 = sbr.rel (%p1175) target = $region40
    $region39: #{a_call__.6} parent=5 // pred_region
      %s1178 = ssub.s32 %s9, 2
      // Predicated region
      $region41: #{a_call__.6} parent=39 // pred_check
        %p1179 = pneg %p106
      $region42: #{a_call__.6} parent=39 // pred_check_branch
        %1181 = sbr.rel (%p1179) target = $region44
      $region43: #{a_call__.6} parent=39 // pred_region
        %p1182 = scmp.lt.s32.totalorder %s15, 3
        %s1183 = scalar_select %p1182, %s15, 3
        %s1184 = smul.addr %s1183, 8
        %s1185 = smul.addr %s1184, 4
        %s1186 = scalar_lea.vmem %s3, %s1185
      $region44: #{a_call__.6} parent=39 // pred_fallthru
        _
    $region40: #{a_call__.6} parent=5 // pred_fallthru
      _
  $region6: #{a_call__.6} parent=0 // loop_footer
    %s13 = sadd.s32 1, %s9
  $region7: #{a_call__.6} parent=0 // loop_footer_branch
    %8 = sbr.rel target = $region3
  $region8: #{a_call__.6} parent=0 // loop_exit
    _

// kernel: a_call__.9
$region0: #{a_call__.9}
  #allocation0 [shape = 'u32[]', space=smem, size = 0x4, offset = 0x4, fixed_abs, tag = 'smem constant byte address 0x4 - core index']
  #allocation1 [shape = 'u32[144,128]{1,0:T(1,128)}', space=vmem, size = 0x12000, scoped, tag = 'internal scratch']
  #allocation2 [shape = 'f32[2,8,8]{2,1,0:T(8,128)}', space=vmem, size = 0x2000, scoped, tag = 'scratch operand']
  #allocation3 [shape = 'f32[2,8,8]{2,1,0:T(8,128)}', space=vmem, size = 0x2000, scoped, tag = 'scratch operand']
  #allocation4 [shape = 'f32[2,8,1]{2,1,0:T(8,128)}', space=vmem, size = 0x2000, scoped, tag = 'scratch operand']
  #allocation5 [shape = 'f32[2,8,1]{2,1,0:T(8,128)}', space=vmem, size = 0x2000, scoped, tag = 'scratch operand']
  #allocation6 [shape = 'f32[2,8,1]{2,1,0:T(8,128)}', space=vmem, size = 0x2000, scoped, tag = 'scratch operand']
  #allocation7 [shape = 'f32[2,8,1]{2,1,0:T(8,128)}', space=vmem, size = 0x2000, scoped, tag = 'scratch operand']
  #allocation8 [shape = 'f32[2,8,1]{2,1,0:T(8,128)}', space=vmem, size = 0x2000, scoped, tag = 'scratch operand']
  %s0 = inlined_call_operand.vmem [shape: bf16[4,8,1024], index: 0, kind: input, shape index: {}]
  %s1 = inlined_call_operand.vmem [shape: f32[1,2], index: 1, kind: output, shape index: {}]
  %s2 = sld [smem:[#allocation0]]
  $region22: #{a_call__.9} parent=0
    _
  %s4 = ssub.s32 1, %s2
  %s5 = scalar_select 0, %s4, %s2
  $region1: #{a_call__.9} parent=0
    #allocation9 [shape = 'u8[512]{0}', space=smem, size = 0x200, scoped, tag = 'output window, operand 0, single buffered']
    #allocation10 [shape = 's32[1]{0}', space=sflag, size = 0x4, scoped, tag = 'scoped memory for a_call__.9']
    %6 = vsyncpa [#allocation10], 0
    // Predicated region
    $region2: #{a_call__.9} parent=1 // pred_check
      _
    $region3: #{a_call__.9} parent=1 // pred_check_branch
      %8 = sbr.rel (0) target = $region5
    $region4: #{a_call__.9} parent=1 // pred_region
      _
    $region5: #{a_call__.9} parent=1 // pred_fallthru
      _
    %p10 = scmp.eq.s32.totalorder 0, 0
    // Predicated region
    $region6: #{a_call__.9} parent=1 // pred_check
      %p11 = pneg %p10
    $region7: #{a_call__.9} parent=1 // pred_check_branch
      %13 = sbr.rel (%p11) target = $region9
    $region8: #{a_call__.9} parent=1 // pred_region
      %vm14 = vcmask 64512
      %15 = vst.msk [vmem:[#allocation2] sm:$0xff] %vm14, 0.0
      %16 = vst.msk [vmem:[#allocation2 + $0x8] sm:$0xff] %vm14, 0.0
      %17 = vst.msk [vmem:[#allocation3] sm:$0xff] %vm14, 0.0
      %18 = vst.msk [vmem:[#allocation3 + $0x8] sm:$0xff] %vm14, 0.0
      %vm19 = vcmask 7168
      %20 = vst.msk [vmem:[#allocation4] sm:$0xff] %vm19, 0.0
      %21 = vst.msk [vmem:[#allocation4 + $0x8] sm:$0xff] %vm19, 0.0
      %22 = vst.msk [vmem:[#allocation5] sm:$0xff] %vm19, 0.0
      %23 = vst.msk [vmem:[#allocation5 + $0x8] sm:$0xff] %vm19, 0.0
      %24 = vst.msk [vmem:[#allocation6] sm:$0xff] %vm19, 0.0
      %25 = vst.msk [vmem:[#allocation6 + $0x8] sm:$0xff] %vm19, 0.0
      %26 = vst.msk [vmem:[#allocation7] sm:$0xff] %vm19, 0.0
      %27 = vst.msk [vmem:[#allocation7 + $0x8] sm:$0xff] %vm19, 0.0
      %28 = vst.msk [vmem:[#allocation8] sm:$0xff] %vm19, 0.0
      %29 = vst.msk [vmem:[#allocation8 + $0x8] sm:$0xff] %vm19, 0.0
    $region9: #{a_call__.9} parent=1 // pred_fallthru
      _
    %v30 = vld [vmem:[%s0] sm:$0xff]
    %v31 = vld [vmem:[%s0 + $0x8] sm:$0xff]
    %v32 = vld [vmem:[%s0 + $0x10] sm:$0xff]
    %v33 = vld [vmem:[%s0 + $0x18] sm:$0xff]
    %v34 = vld [vmem:[%s0 + $0x20] sm:$0xff]
    %v35 = vld [vmem:[%s0 + $0x28] sm:$0xff]
    %v36 = vld [vmem:[%s0 + $0x30] sm:$0xff]
    %v37 = vld [vmem:[%s0 + $0x38] sm:$0xff]
    %v38 = vld [vmem:[%s0 + $0x40] sm:$0xff]
    %v39 = vld [vmem:[%s0 + $0x48] sm:$0xff]
    %v40 = vld [vmem:[%s0 + $0x50] sm:$0xff]
    %v41 = vld [vmem:[%s0 + $0x58] sm:$0xff]
    %v42 = vld [vmem:[%s0 + $0x60] sm:$0xff]
    %v43 = vld [vmem:[%s0 + $0x68] sm:$0xff]
    %v44 = vld [vmem:[%s0 + $0x70] sm:$0xff]
    %v45 = vld [vmem:[%s0 + $0x78] sm:$0xff]
    %v46 = vld [vmem:[#allocation2] sm:$0xff]
    %v47 = vld [vmem:[#allocation2 + $0x8] sm:$0xff]
    %v52 = vunpack.c.l.b16 %v30
    %v53 = vunpack.c.h.b16 %v30
    %v54 = vunpack.c.l.b16 %v31
    %v55 = vunpack.c.h.b16 %v31
    %v56 = vunpack.c.l.b16 %v32
    %v57 = vunpack.c.h.b16 %v32
    %v58 = vunpack.c.l.b16 %v33
    %v59 = vunpack.c.h.b16 %v33
    %v60 = vpack.c.b16 %v52, %v52
    %v61 = vpack.c.b16 %v53, %v53
    %v62 = vpack.c.b16 %v54, %v54
    %v63 = vpack.c.b16 %v55, %v55
    %v64 = vpack.c.b16 %v56, %v56
    %v65 = vpack.c.b16 %v57, %v57
    %v66 = vpack.c.b16 %v58, %v58
    %v67 = vpack.c.b16 %v59, %v59
    %76 = vmatprep.subr.bf16.mxu0 %v61
    %77 = vmatpush1.bf16.xpose.msra.mxu0 %v60
    %78 = vmatprep.subr.bf16.mxu0 0
    %79 = vmatpush1.bf16.xpose.msra.mxu0 0
    %80 = vmatprep.subr.bf16.mxu0 0
    %81 = vmatpush1.bf16.xpose.msra.mxu0 0
    %82 = vmatprep.subr.bf16.mxu0 0
    %83 = vmatpush1.bf16.xpose.msra.mxu0 0
    %84 = vmatprep.subr.bf16.mxu0 0
    %85 = vmatpush1.bf16.xpose.msra.mxu0 0
    %86 = vmatprep.subr.bf16.mxu0 0
    %87 = vmatpush1.bf16.xpose.msra.mxu0 0
    %88 = vmatprep.subr.bf16.mxu0 0
    %89 = vmatpush1.bf16.xpose.msra.mxu0 0
    %90 = vmatprep.subr.bf16.mxu0 0
    %91 = vmatpush1.bf16.xpose.msra.mxu0 0
    %92 = vmatprep.subr.bf16.mxu0 0
    %93 = vmatpush1.bf16.xpose.msra.mxu0 0
    %94 = vmatprep.subr.bf16.mxu0 0
    %95 = vmatpush1.bf16.xpose.msra.mxu0 0
    %96 = vmatprep.subr.bf16.mxu0 0
    %97 = vmatpush1.bf16.xpose.msra.mxu0 0
    %98 = vmatprep.subr.bf16.mxu0 0
    %99 = vmatpush1.bf16.xpose.msra.mxu0 0
    %100 = vmatprep.subr.bf16.mxu0 0
    %101 = vmatpush1.bf16.xpose.msra.mxu0 0
    %102 = vmatprep.subr.bf16.mxu0 0
    %103 = vmatpush1.bf16.xpose.msra.mxu0 0
    %104 = vmatprep.subr.bf16.mxu0 0
    %105 = vmatpush1.bf16.xpose.msra.mxu0 0
    %106 = vmatprep.subr.bf16.mxu0 0
    %107 = vmatpush1.bf16.xpose.msra.mxu0 0
    %108 = vmatprep.mubr.bf16.mxu0 %v61
    %109 = vmatmul.mubr.bf16.gmra.mrb[0].mxu0 %v60
    %v110 = vpop.f32.mrb[0].mxu0
    %v111 = vadd.f32 0.0, %v110
    %v112 = vpop.f32.mrb[0].mxu0
    %v113 = vpop.f32.mrb[0].mxu0
    %v114 = vpop.f32.mrb[0].mxu0
    %115 = vdwg.mxu0
    %116 = vmatprep.subr.bf16.mxu0 %v63
    %117 = vmatpush1.bf16.xpose.msra.mxu0 %v62
    %118 = vmatprep.subr.bf16.mxu0 0
    %119 = vmatpush1.bf16.xpose.msra.mxu0 0
    %120 = vmatprep.subr.bf16.mxu0 0
    %121 = vmatpush1.bf16.xpose.msra.mxu0 0
    %122 = vmatprep.subr.bf16.mxu0 0
    %123 = vmatpush1.bf16.xpose.msra.mxu0 0
    %124 = vmatprep.subr.bf16.mxu0 0
    %125 = vmatpush1.bf16.xpose.msra.mxu0 0
    %126 = vmatprep.subr.bf16.mxu0 0
    %127 = vmatpush1.bf16.xpose.msra.mxu0 0
    %128 = vmatprep.subr.bf16.mxu0 0
    %129 = vmatpush1.bf16.xpose.msra.mxu0 0
    %130 = vmatprep.subr.bf16.mxu0 0
    %131 = vmatpush1.bf16.xpose.msra.mxu0 0
    %132 = vmatprep.subr.bf16.mxu0 0
    %133 = vmatpush1.bf16.xpose.msra.mxu0 0
    %134 = vmatprep.subr.bf16.mxu0 0
    %135 = vmatpush1.bf16.xpose.msra.mxu0 0
    %136 = vmatprep.subr.bf16.mxu0 0
    %137 = vmatpush1.bf16.xpose.msra.mxu0 0
    %138 = vmatprep.subr.bf16.mxu0 0
    %139 = vmatpush1.bf16.xpose.msra.mxu0 0
    %140 = vmatprep.subr.bf16.mxu0 0
    %141 = vmatpush1.bf16.xpose.msra.mxu0 0
    %142 = vmatprep.subr.bf16.mxu0 0
    %143 = vmatpush1.bf16.xpose.msra.mxu0 0
    %144 = vmatprep.subr.bf16.mxu0 0
    %145 = vmatpush1.bf16.xpose.msra.mxu0 0
    %146 = vmatprep.subr.bf16.mxu0 0
    %147 = vmatpush1.bf16.xpose.msra.mxu0 0
    %148 = vmatprep.mubr.bf16.mxu0 %v63
    %149 = vmatmul.mubr.bf16.gmra.mrb[0].mxu0 %v62
    %v150 = vpop.f32.mrb[0].mxu0
    %v151 = vadd.f32 %v111, %v150
    %v152 = vpop.f32.mrb[0].mxu0
    %v153 = vpop.f32.mrb[0].mxu0
    %v154 = vpop.f32.mrb[0].mxu0
    %155 = vdwg.mxu0
    %156 = vmatprep.subr.bf16.mxu0 %v65
    %157 = vmatpush1.bf16.xpose.msra.mxu0 %v64
    %158 = vmatprep.subr.bf16.mxu0 0
    %159 = vmatpush1.bf16.xpose.msra.mxu0 0
    %160 = vmatprep.subr.bf16.mxu0 0
    %161 = vmatpush1.bf16.xpose.msra.mxu0 0
    %162 = vmatprep.subr.bf16.mxu0 0
    %163 = vmatpush1.bf16.xpose.msra.mxu0 0
    %164 = vmatprep.subr.bf16.mxu0 0
    %165 = vmatpush1.bf16.xpose.msra.mxu0 0
    %166 = vmatprep.subr.bf16.mxu0 0
    %167 = vmatpush1.bf16.xpose.msra.mxu0 0
    %168 = vmatprep.subr.bf16.mxu0 0
    %169 = vmatpush1.bf16.xpose.msra.mxu0 0
    %170 = vmatprep.subr.bf16.mxu0 0
    %171 = vmatpush1.bf16.xpose.msra.mxu0 0
    %172 = vmatprep.subr.bf16.mxu0 0
    %173 = vmatpush1.bf16.xpose.msra.mxu0 0
    %174 = vmatprep.subr.bf16.mxu0 0
    %175 = vmatpush1.bf16.xpose.msra.mxu0 0
    %176 = vmatprep.subr.bf16.mxu0 0
    %177 = vmatpush1.bf16.xpose.msra.mxu0 0
    %178 = vmatprep.subr.bf16.mxu0 0
    %179 = vmatpush1.bf16.xpose.msra.mxu0 0
    %180 = vmatprep.subr.bf16.mxu0 0
    %181 = vmatpush1.bf16.xpose.msra.mxu0 0
    %182 = vmatprep.subr.bf16.mxu0 0
    %183 = vmatpush1.bf16.xpose.msra.mxu0 0
    %184 = vmatprep.subr.bf16.mxu0 0
    %185 = vmatpush1.bf16.xpose.msra.mxu0 0
    %186 = vmatprep.subr.bf16.mxu0 0
    %187 = vmatpush1.bf16.xpose.msra.mxu0 0
    %188 = vmatprep.mubr.bf16.mxu0 %v65
    %189 = vmatmul.mubr.bf16.gmra.mrb[0].mxu0 %v64
    %v190 = vpop.f32.mrb[0].mxu0
    %v191 = vadd.f32 %v151, %v190
    %v192 = vpop.f32.mrb[0].mxu0
    %v193 = vpop.f32.mrb[0].mxu0
    %v194 = vpop.f32.mrb[0].mxu0
    %195 = vdwg.mxu0
    %196 = vmatprep.subr.bf16.mxu0 %v67
    %197 = vmatpush1.bf16.xpose.msra.mxu0 %v66
    %198 = vmatprep.subr.bf16.mxu0 0
    %199 = vmatpush1.bf16.xpose.msra.mxu0 0
    %200 = vmatprep.subr.bf16.mxu0 0
    %201 = vmatpush1.bf16.xpose.msra.mxu0 0
    %202 = vmatprep.subr.bf16.mxu0 0
    %203 = vmatpush1.bf16.xpose.msra.mxu0 0
    %204 = vmatprep.subr.bf16.mxu0 0
    %205 = vmatpush1.bf16.xpose.msra.mxu0 0
    %206 = vmatprep.subr.bf16.mxu0 0
    %207 = vmatpush1.bf16.xpose.msra.mxu0 0
    %208 = vmatprep.subr.bf16.mxu0 0
    %209 = vmatpush1.bf16.xpose.msra.mxu0 0
    %210 = vmatprep.subr.bf16.mxu0 0
    %211 = vmatpush1.bf16.xpose.msra.mxu0 0
    %212 = vmatprep.subr.bf16.mxu0 0
    %213 = vmatpush1.bf16.xpose.msra.mxu0 0
    %214 = vmatprep.subr.bf16.mxu0 0
    %215 = vmatpush1.bf16.xpose.msra.mxu0 0
    %216 = vmatprep.subr.bf16.mxu0 0
    %217 = vmatpush1.bf16.xpose.msra.mxu0 0
    %218 = vmatprep.subr.bf16.mxu0 0
    %219 = vmatpush1.bf16.xpose.msra.mxu0 0
    %220 = vmatprep.subr.bf16.mxu0 0
    %221 = vmatpush1.bf16.xpose.msra.mxu0 0
    %222 = vmatprep.subr.bf16.mxu0 0
    %223 = vmatpush1.bf16.xpose.msra.mxu0 0
    %224 = vmatprep.subr.bf16.mxu0 0
    %225 = vmatpush1.bf16.xpose.msra.mxu0 0
    %226 = vmatprep.subr.bf16.mxu0 0
    %227 = vmatpush1.bf16.xpose.msra.mxu0 0
    %228 = vmatprep.mubr.bf16.mxu0 %v67
    %229 = vmatmul.mubr.bf16.gmra.mrb[0].mxu0 %v66
    %v230 = vpop.f32.mrb[0].mxu0
    %v231 = vadd.f32 %v191, %v230
    %v232 = vpop.f32.mrb[0].mxu0
    %v233 = vpop.f32.mrb[0].mxu0
    %v234 = vpop.f32.mrb[0].mxu0
    %235 = vdwg.mxu0
    %v240 = vunpack.c.l.b16 %v34
    %v241 = vunpack.c.h.b16 %v34
    %v242 = vunpack.c.l.b16 %v35
    %v243 = vunpack.c.h.b16 %v35
    %v244 = vunpack.c.l.b16 %v36
    %v245 = vunpack.c.h.b16 %v36
    %v246 = vunpack.c.l.b16 %v37
    %v247 = vunpack.c.h.b16 %v37
    %v248 = vpack.c.b16 %v240, %v240
    %v249 = vpack.c.b16 %v241, %v241
    %v250 = vpack.c.b16 %v242, %v242
    %v251 = vpack.c.b16 %v243, %v243
    %v252 = vpack.c.b16 %v244, %v244
    %v253 = vpack.c.b16 %v245, %v245
    %v254 = vpack.c.b16 %v246, %v246
    %v255 = vpack.c.b16 %v247, %v247
    %264 = vmatprep.subr.bf16.mxu0 %v249
    %265 = vmatpush1.bf16.xpose.msra.mxu0 %v248
    %266 = vmatprep.subr.bf16.mxu0 0
    %267 = vmatpush1.bf16.xpose.msra.mxu0 0
    %268 = vmatprep.subr.bf16.mxu0 0
    %269 = vmatpush1.bf16.xpose.msra.mxu0 0
    %270 = vmatprep.subr.bf16.mxu0 0
    %271 = vmatpush1.bf16.xpose.msra.mxu0 0
    %272 = vmatprep.subr.bf16.mxu0 0
    %273 = vmatpush1.bf16.xpose.msra.mxu0 0
    %274 = vmatprep.subr.bf16.mxu0 0
    %275 = vmatpush1.bf16.xpose.msra.mxu0 0
    %276 = vmatprep.subr.bf16.mxu0 0
    %277 = vmatpush1.bf16.xpose.msra.mxu0 0
    %278 = vmatprep.subr.bf16.mxu0 0
    %279 = vmatpush1.bf16.xpose.msra.mxu0 0
    %280 = vmatprep.subr.bf16.mxu0 0
    %281 = vmatpush1.bf16.xpose.msra.mxu0 0
    %282 = vmatprep.subr.bf16.mxu0 0
    %283 = vmatpush1.bf16.xpose.msra.mxu0 0
    %284 = vmatprep.subr.bf16.mxu0 0
    %285 = vmatpush1.bf16.xpose.msra.mxu0 0
    %286 = vmatprep.subr.bf16.mxu0 0
    %287 = vmatpush1.bf16.xpose.msra.mxu0 0
    %288 = vmatprep.subr.bf16.mxu0 0
    %289 = vmatpush1.bf16.xpose.msra.mxu0 0
    %290 = vmatprep.subr.bf16.mxu0 0
    %291 = vmatpush1.bf16.xpose.msra.mxu0 0
    %292 = vmatprep.subr.bf16.mxu0 0
    %293 = vmatpush1.bf16.xpose.msra.mxu0 0
    %294 = vmatprep.subr.bf16.mxu0 0
    %295 = vmatpush1.bf16.xpose.msra.mxu0 0
    %296 = vmatprep.mubr.bf16.mxu0 %v249
    %297 = vmatmul.mubr.bf16.gmra.mrb[0].mxu0 %v248
    %v298 = vpop.f32.mrb[0].mxu0
    %v299 = vadd.f32 0.0, %v298
    %v300 = vpop.f32.mrb[0].mxu0
    %v301 = vpop.f32.mrb[0].mxu0
    %v302 = vpop.f32.mrb[0].mxu0
    %303 = vdwg.mxu0
    %304 = vmatprep.subr.bf16.mxu0 %v251
    %305 = vmatpush1.bf16.xpose.msra.mxu0 %v250
    %306 = vmatprep.subr.bf16.mxu0 0
    %307 = vmatpush1.bf16.xpose.msra.mxu0 0
    %308 = vmatprep.subr.bf16.mxu0 0
    %309 = vmatpush1.bf16.xpose.msra.mxu0 0
    %310 = vmatprep.subr.bf16.mxu0 0
    %311 = vmatpush1.bf16.xpose.msra.mxu0 0
    %312 = vmatprep.subr.bf16.mxu0 0
    %313 = vmatpush1.bf16.xpose.msra.mxu0 0
    %314 = vmatprep.subr.bf16.mxu0 0
    %315 = vmatpush1.bf16.xpose.msra.mxu0 0
    %316 = vmatprep.subr.bf16.mxu0 0
    %317 = vmatpush1.bf16.xpose.msra.mxu0 0
    %318 = vmatprep.subr.bf16.mxu0 0
    %319 = vmatpush1.bf16.xpose.msra.mxu0 0
    %320 = vmatprep.subr.bf16.mxu0 0
    %321 = vmatpush1.bf16.xpose.msra.mxu0 0
    %322 = vmatprep.subr.bf16.mxu0 0
    %323 = vmatpush1.bf16.xpose.msra.mxu0 0
    %324 = vmatprep.subr.bf16.mxu0 0
    %325 = vmatpush1.bf16.xpose.msra.mxu0 0
    %326 = vmatprep.subr.bf16.mxu0 0
    %327 = vmatpush1.bf16.xpose.msra.mxu0 0
    %328 = vmatprep.subr.bf16.mxu0 0
    %329 = vmatpush1.bf16.xpose.msra.mxu0 0
    %330 = vmatprep.subr.bf16.mxu0 0
    %331 = vmatpush1.bf16.xpose.msra.mxu0 0
    %332 = vmatprep.subr.bf16.mxu0 0
    %333 = vmatpush1.bf16.xpose.msra.mxu0 0
    %334 = vmatprep.subr.bf16.mxu0 0
    %335 = vmatpush1.bf16.xpose.msra.mxu0 0
    %336 = vmatprep.mubr.bf16.mxu0 %v251
    %337 = vmatmul.mubr.bf16.gmra.mrb[0].mxu0 %v250
    %v338 = vpop.f32.mrb[0].mxu0
    %v339 = vadd.f32 %v299, %v338
    %v340 = vpop.f32.mrb[0].mxu0
    %v341 = vpop.f32.mrb[0].mxu0
    %v342 = vpop.f32.mrb[0].mxu0
    %343 = vdwg.mxu0
    %344 = vmatprep.subr.bf16.mxu0 %v253
    %345 = vmatpush1.bf16.xpose.msra.mxu0 %v252
    %346 = vmatprep.subr.bf16.mxu0 0
    %347 = vmatpush1.bf16.xpose.msra.mxu0 0
    %348 = vmatprep.subr.bf16.mxu0 0
    %349 = vmatpush1.bf16.xpose.msra.mxu0 0
    %350 = vmatprep.subr.bf16.mxu0 0
    %351 = vmatpush1.bf16.xpose.msra.mxu0 0
    %352 = vmatprep.subr.bf16.mxu0 0
    %353 = vmatpush1.bf16.xpose.msra.mxu0 0
    %354 = vmatprep.subr.bf16.mxu0 0
    %355 = vmatpush1.bf16.xpose.msra.mxu0 0
    %356 = vmatprep.subr.bf16.mxu0 0
    %357 = vmatpush1.bf16.xpose.msra.mxu0 0
    %358 = vmatprep.subr.bf16.mxu0 0
    %359 = vmatpush1.bf16.xpose.msra.mxu0 0
    %360 = vmatprep.subr.bf16.mxu0 0
    %361 = vmatpush1.bf16.xpose.msra.mxu0 0
    %362 = vmatprep.subr.bf16.mxu0 0
    %363 = vmatpush1.bf16.xpose.msra.mxu0 0
    %364 = vmatprep.subr.bf16.mxu0 0
    %365 = vmatpush1.bf16.xpose.msra.mxu0 0
    %366 = vmatprep.subr.bf16.mxu0 0
    %367 = vmatpush1.bf16.xpose.msra.mxu0 0
    %368 = vmatprep.subr.bf16.mxu0 0
    %369 = vmatpush1.bf16.xpose.msra.mxu0 0
    %370 = vmatprep.subr.bf16.mxu0 0
    %371 = vmatpush1.bf16.xpose.msra.mxu0 0
    %372 = vmatprep.subr.bf16.mxu0 0
    %373 = vmatpush1.bf16.xpose.msra.mxu0 0
    %374 = vmatprep.subr.bf16.mxu0 0
    %375 = vmatpush1.bf16.xpose.msra.mxu0 0
    %376 = vmatprep.mubr.bf16.mxu0 %v253
    %377 = vmatmul.mubr.bf16.gmra.mrb[0].mxu0 %v252
    %v378 = vpop.f32.mrb[0].mxu0
    %v379 = vadd.f32 %v339, %v378
    %v380 = vpop.f32.mrb[0].mxu0
    %v381 = vpop.f32.mrb[0].mxu0
    %v382 = vpop.f32.mrb[0].mxu0
    %383 = vdwg.mxu0
    %384 = vmatprep.subr.bf16.mxu0 %v255
    %385 = vmatpush1.bf16.xpose.msra.mxu0 %v254
    %386 = vmatprep.subr.bf16.mxu0 0
    %387 = vmatpush1.bf16.xpose.msra.mxu0 0
    %388 = vmatprep.subr.bf16.mxu0 0
    %389 = vmatpush1.bf16.xpose.msra.mxu0 0
    %390 = vmatprep.subr.bf16.mxu0 0
    %391 = vmatpush1.bf16.xpose.msra.mxu0 0
    %392 = vmatprep.subr.bf16.mxu0 0
    %393 = vmatpush1.bf16.xpose.msra.mxu0 0
    %394 = vmatprep.subr.bf16.mxu0 0
    %395 = vmatpush1.bf16.xpose.msra.mxu0 0
    %396 = vmatprep.subr.bf16.mxu0 0
    %397 = vmatpush1.bf16.xpose.msra.mxu0 0
    %398 = vmatprep.subr.bf16.mxu0 0
    %399 = vmatpush1.bf16.xpose.msra.mxu0 0
    %400 = vmatprep.subr.bf16.mxu0 0
    %401 = vmatpush1.bf16.xpose.msra.mxu0 0
    %402 = vmatprep.subr.bf16.mxu0 0
    %403 = vmatpush1.bf16.xpose.msra.mxu0 0
    %404 = vmatprep.subr.bf16.mxu0 0
    %405 = vmatpush1.bf16.xpose.msra.mxu0 0
    %406 = vmatprep.subr.bf16.mxu0 0
    %407 = vmatpush1.bf16.xpose.msra.mxu0 0
    %408 = vmatprep.subr.bf16.mxu0 0
    %409 = vmatpush1.bf16.xpose.msra.mxu0 0
    %410 = vmatprep.subr.bf16.mxu0 0
    %411 = vmatpush1.bf16.xpose.msra.mxu0 0
    %412 = vmatprep.subr.bf16.mxu0 0
    %413 = vmatpush1.bf16.xpose.msra.mxu0 0
    %414 = vmatprep.subr.bf16.mxu0 0
    %415 = vmatpush1.bf16.xpose.msra.mxu0 0
    %416 = vmatprep.mubr.bf16.mxu0 %v255
    %417 = vmatmul.mubr.bf16.gmra.mrb[0].mxu0 %v254
    %v418 = vpop.f32.mrb[0].mxu0
    %v419 = vadd.f32 %v379, %v418
    %v420 = vpop.f32.mrb[0].mxu0
    %v421 = vpop.f32.mrb[0].mxu0
    %v422 = vpop.f32.mrb[0].mxu0
    %423 = vdwg.mxu0
    %v424 = vadd.f32 %v46, %v231
    %v425 = vadd.f32 %v47, %v419
    %vm426 = vcmask 64512
    %427 = vst.msk [vmem:[#allocation2] sm:$0xff] %vm426, %v424
    %428 = vst.msk [vmem:[#allocation2 + $0x8] sm:$0xff] %vm426, %v425
    %v429 = vld [vmem:[#allocation3] sm:$0xff]
    %v430 = vld [vmem:[#allocation3 + $0x8] sm:$0xff]
    %v435 = vunpack.c.l.b16 %v38
    %v436 = vunpack.c.h.b16 %v38
    %v437 = vunpack.c.l.b16 %v39
    %v438 = vunpack.c.h.b16 %v39
    %v439 = vunpack.c.l.b16 %v40
    %v440 = vunpack.c.h.b16 %v40
    %v441 = vunpack.c.l.b16 %v41
    %v442 = vunpack.c.h.b16 %v41
    %v443 = vpack.c.b16 %v435, %v435
    %v444 = vpack.c.b16 %v436, %v436
    %v445 = vpack.c.b16 %v437, %v437
    %v446 = vpack.c.b16 %v438, %v438
    %v447 = vpack.c.b16 %v439, %v439
    %v448 = vpack.c.b16 %v440, %v440
    %v449 = vpack.c.b16 %v441, %v441
    %v450 = vpack.c.b16 %v442, %v442
    %459 = vmatprep.subr.bf16.mxu0 %v444
    %460 = vmatpush1.bf16.xpose.msra.mxu0 %v443
    %461 = vmatprep.subr.bf16.mxu0 0
    %462 = vmatpush1.bf16.xpose.msra.mxu0 0
    %463 = vmatprep.subr.bf16.mxu0 0
    %464 = vmatpush1.bf16.xpose.msra.mxu0 0
    %465 = vmatprep.subr.bf16.mxu0 0
    %466 = vmatpush1.bf16.xpose.msra.mxu0 0
    %467 = vmatprep.subr.bf16.mxu0 0
    %468 = vmatpush1.bf16.xpose.msra.mxu0 0
    %469 = vmatprep.subr.bf16.mxu0 0
    %470 = vmatpush1.bf16.xpose.msra.mxu0 0
    %471 = vmatprep.subr.bf16.mxu0 0
    %472 = vmatpush1.bf16.xpose.msra.mxu0 0
    %473 = vmatprep.subr.bf16.mxu0 0
    %474 = vmatpush1.bf16.xpose.msra.mxu0 0
    %475 = vmatprep.subr.bf16.mxu0 0
    %476 = vmatpush1.bf16.xpose.msra.mxu0 0
    %477 = vmatprep.subr.bf16.mxu0 0
    %478 = vmatpush1.bf16.xpose.msra.mxu0 0
    %479 = vmatprep.subr.bf16.mxu0 0
    %480 = vmatpush1.bf16.xpose.msra.mxu0 0
    %481 = vmatprep.subr.bf16.mxu0 0
    %482 = vmatpush1.bf16.xpose.msra.mxu0 0
    %483 = vmatprep.subr.bf16.mxu0 0
    %484 = vmatpush1.bf16.xpose.msra.mxu0 0
    %485 = vmatprep.subr.bf16.mxu0 0
    %486 = vmatpush1.bf16.xpose.msra.mxu0 0
    %487 = vmatprep.subr.bf16.mxu0 0
    %488 = vmatpush1.bf16.xpose.msra.mxu0 0
    %489 = vmatprep.subr.bf16.mxu0 0
    %490 = vmatpush1.bf16.xpose.msra.mxu0 0
    %491 = vmatprep.mubr.bf16.mxu0 %v444
    %492 = vmatmul.mubr.bf16.gmra.mrb[0].mxu0 %v443
    %v493 = vpop.f32.mrb[0].mxu0
    %v494 = vadd.f32 0.0, %v493
    %v495 = vpop.f32.mrb[0].mxu0
    %v496 = vpop.f32.mrb[0].mxu0
    %v497 = vpop.f32.mrb[0].mxu0
    %498 = vdwg.mxu0
    %499 = vmatprep.subr.bf16.mxu0 %v446
    %500 = vmatpush1.bf16.xpose.msra.mxu0 %v445
    %501 = vmatprep.subr.bf16.mxu0 0
    %502 = vmatpush1.bf16.xpose.msra.mxu0 0
    %503 = vmatprep.subr.bf16.mxu0 0
    %504 = vmatpush1.bf16.xpose.msra.mxu0 0
    %505 = vmatprep.subr.bf16.mxu0 0
    %506 = vmatpush1.bf16.xpose.msra.mxu0 0
    %507 = vmatprep.subr.bf16.mxu0 0
    %508 = vmatpush1.bf16.xpose.msra.mxu0 0
    %509 = vmatprep.subr.bf16.mxu0 0
    %510 = vmatpush1.bf16.xpose.msra.mxu0 0
    %511 = vmatprep.subr.bf16.mxu0 0
    %512 = vmatpush1.bf16.xpose.msra.mxu0 0
    %513 = vmatprep.subr.bf16.mxu0 0
    %514 = vmatpush1.bf16.xpose.msra.mxu0 0
    %515 = vmatprep.subr.bf16.mxu0 0
    %516 = vmatpush1.bf16.xpose.msra.mxu0 0
    %517 = vmatprep.subr.bf16.mxu0 0
    %518 = vmatpush1.bf16.xpose.msra.mxu0 0
    %519 = vmatprep.subr.bf16.mxu0 0
    %520 = vmatpush1.bf16.xpose.msra.mxu0 0
    %521 = vmatprep.subr.bf16.mxu0 0
    %522 = vmatpush1.bf16.xpose.msra.mxu0 0
    %523 = vmatprep.subr.bf16.mxu0 0
    %524 = vmatpush1.bf16.xpose.msra.mxu0 0
    %525 = vmatprep.subr.bf16.mxu0 0
    %526 = vmatpush1.bf16.xpose.msra.mxu0 0
    %527 = vmatprep.subr.bf16.mxu0 0
    %528 = vmatpush1.bf16.xpose.msra.mxu0 0
    %529 = vmatprep.subr.bf16.mxu0 0
    %530 = vmatpush1.bf16.xpose.msra.mxu0 0
    %531 = vmatprep.mubr.bf16.mxu0 %v446
    %532 = vmatmul.mubr.bf16.gmra.mrb[0].mxu0 %v445
    %v533 = vpop.f32.mrb[0].mxu0
    %v534 = vadd.f32 %v494, %v533
    %v535 = vpop.f32.mrb[0].mxu0
    %v536 = vpop.f32.mrb[0].mxu0
    %v537 = vpop.f32.mrb[0].mxu0
    %538 = vdwg.mxu0
    %539 = vmatprep.subr.bf16.mxu0 %v448
    %540 = vmatpush1.bf16.xpose.msra.mxu0 %v447
    %541 = vmatprep.subr.bf16.mxu0 0
    %542 = vmatpush1.bf16.xpose.msra.mxu0 0
    %543 = vmatprep.subr.bf16.mxu0 0
    %544 = vmatpush1.bf16.xpose.msra.mxu0 0
    %545 = vmatprep.subr.bf16.mxu0 0
    %546 = vmatpush1.bf16.xpose.msra.mxu0 0
    %547 = vmatprep.subr.bf16.mxu0 0
    %548 = vmatpush1.bf16.xpose.msra.mxu0 0
    %549 = vmatprep.subr.bf16.mxu0 0
    %550 = vmatpush1.bf16.xpose.msra.mxu0 0
    %551 = vmatprep.subr.bf16.mxu0 0
    %552 = vmatpush1.bf16.xpose.msra.mxu0 0
    %553 = vmatprep.subr.bf16.mxu0 0
    %554 = vmatpush1.bf16.xpose.msra.mxu0 0
    %555 = vmatprep.subr.bf16.mxu0 0
    %556 = vmatpush1.bf16.xpose.msra.mxu0 0
    %557 = vmatprep.subr.bf16.mxu0 0
    %558 = vmatpush1.bf16.xpose.msra.mxu0 0
    %559 = vmatprep.subr.bf16.mxu0 0
    %560 = vmatpush1.bf16.xpose.msra.mxu0 0
    %561 = vmatprep.subr.bf16.mxu0 0
    %562 = vmatpush1.bf16.xpose.msra.mxu0 0
    %563 = vmatprep.subr.bf16.mxu0 0
    %564 = vmatpush1.bf16.xpose.msra.mxu0 0
    %565 = vmatprep.subr.bf16.mxu0 0
    %566 = vmatpush1.bf16.xpose.msra.mxu0 0
    %567 = vmatprep.subr.bf16.mxu0 0
    %568 = vmatpush1.bf16.xpose.msra.mxu0 0
    %569 = vmatprep.subr.bf16.mxu0 0
    %570 = vmatpush1.bf16.xpose.msra.mxu0 0
    %571 = vmatprep.mubr.bf16.mxu0 %v448
    %572 = vmatmul.mubr.bf16.gmra.mrb[0].mxu0 %v447
    %v573 = vpop.f32.mrb[0].mxu0
    %v574 = vadd.f32 %v534, %v573
    %v575 = vpop.f32.mrb[0].mxu0
    %v576 = vpop.f32.mrb[0].mxu0
    %v577 = vpop.f32.mrb[0].mxu0
    %578 = vdwg.mxu0
    %579 = vmatprep.subr.bf16.mxu0 %v450
    %580 = vmatpush1.bf16.xpose.msra.mxu0 %v449
    %581 = vmatprep.subr.bf16.mxu0 0
    %582 = vmatpush1.bf16.xpose.msra.mxu0 0
    %583 = vmatprep.subr.bf16.mxu0 0
    %584 = vmatpush1.bf16.xpose.msra.mxu0 0
    %585 = vmatprep.subr.bf16.mxu0 0
    %586 = vmatpush1.bf16.xpose.msra.mxu0 0
    %587 = vmatprep.subr.bf16.mxu0 0
    %588 = vmatpush1.bf16.xpose.msra.mxu0 0
    %589 = vmatprep.subr.bf16.mxu0 0
    %590 = vmatpush1.bf16.xpose.msra.mxu0 0
    %591 = vmatprep.subr.bf16.mxu0 0
    %592 = vmatpush1.bf16.xpose.msra.mxu0 0
    %593 = vmatprep.subr.bf16.mxu0 0
    %594 = vmatpush1.bf16.xpose.msra.mxu0 0
    %595 = vmatprep.subr.bf16.mxu0 0
    %596 = vmatpush1.bf16.xpose.msra.mxu0 0
    %597 = vmatprep.subr.bf16.mxu0 0
    %598 = vmatpush1.bf16.xpose.msra.mxu0 0
    %599 = vmatprep.subr.bf16.mxu0 0
    %600 = vmatpush1.bf16.xpose.msra.mxu0 0
    %601 = vmatprep.subr.bf16.mxu0 0
    %602 = vmatpush1.bf16.xpose.msra.mxu0 0
    %603 = vmatprep.subr.bf16.mxu0 0
    %604 = vmatpush1.bf16.xpose.msra.mxu0 0
    %605 = vmatprep.subr.bf16.mxu0 0
    %606 = vmatpush1.bf16.xpose.msra.mxu0 0
    %607 = vmatprep.subr.bf16.mxu0 0
    %608 = vmatpush1.bf16.xpose.msra.mxu0 0
    %609 = vmatprep.subr.bf16.mxu0 0
    %610 = vmatpush1.bf16.xpose.msra.mxu0 0
    %611 = vmatprep.mubr.bf16.mxu0 %v450
    %612 = vmatmul.mubr.bf16.gmra.mrb[0].mxu0 %v449
    %v613 = vpop.f32.mrb[0].mxu0
    %v614 = vadd.f32 %v574, %v613
    %v615 = vpop.f32.mrb[0].mxu0
    %v616 = vpop.f32.mrb[0].mxu0
    %v617 = vpop.f32.mrb[0].mxu0
    %618 = vdwg.mxu0
    %v623 = vunpack.c.l.b16 %v42
    %v624 = vunpack.c.h.b16 %v42
    %v625 = vunpack.c.l.b16 %v43
    %v626 = vunpack.c.h.b16 %v43
    %v627 = vunpack.c.l.b16 %v44
    %v628 = vunpack.c.h.b16 %v44
    %v629 = vunpack.c.l.b16 %v45
    %v630 = vunpack.c.h.b16 %v45
    %v631 = vpack.c.b16 %v623, %v623
    %v632 = vpack.c.b16 %v624, %v624
    %v633 = vpack.c.b16 %v625, %v625
    %v634 = vpack.c.b16 %v626, %v626
    %v635 = vpack.c.b16 %v627, %v627
    %v636 = vpack.c.b16 %v628, %v628
    %v637 = vpack.c.b16 %v629, %v629
    %v638 = vpack.c.b16 %v630, %v630
    %647 = vmatprep.subr.bf16.mxu0 %v632
    %648 = vmatpush1.bf16.xpose.msra.mxu0 %v631
    %649 = vmatprep.subr.bf16.mxu0 0
    %650 = vmatpush1.bf16.xpose.msra.mxu0 0
    %651 = vmatprep.subr.bf16.mxu0 0
    %652 = vmatpush1.bf16.xpose.msra.mxu0 0
    %653 = vmatprep.subr.bf16.mxu0 0
    %654 = vmatpush1.bf16.xpose.msra.mxu0 0
    %655 = vmatprep.subr.bf16.mxu0 0
    %656 = vmatpush1.bf16.xpose.msra.mxu0 0
    %657 = vmatprep.subr.bf16.mxu0 0
    %658 = vmatpush1.bf16.xpose.msra.mxu0 0
    %659 = vmatprep.subr.bf16.mxu0 0
    %660 = vmatpush1.bf16.xpose.msra.mxu0 0
    %661 = vmatprep.subr.bf16.mxu0 0
    %662 = vmatpush1.bf16.xpose.msra.mxu0 0
    %663 = vmatprep.subr.bf16.mxu0 0
    %664 = vmatpush1.bf16.xpose.msra.mxu0 0
    %665 = vmatprep.subr.bf16.mxu0 0
    %666 = vmatpush1.bf16.xpose.msra.mxu0 0
    %667 = vmatprep.subr.bf16.mxu0 0
    %668 = vmatpush1.bf16.xpose.msra.mxu0 0
    %669 = vmatprep.subr.bf16.mxu0 0
    %670 = vmatpush1.bf16.xpose.msra.mxu0 0
    %671 = vmatprep.subr.bf16.mxu0 0
    %672 = vmatpush1.bf16.xpose.msra.mxu0 0
    %673 = vmatprep.subr.bf16.mxu0 0
    %674 = vmatpush1.bf16.xpose.msra.mxu0 0
    %675 = vmatprep.subr.bf16.mxu0 0
    %676 = vmatpush1.bf16.xpose.msra.mxu0 0
    %677 = vmatprep.subr.bf16.mxu0 0
    %678 = vmatpush1.bf16.xpose.msra.mxu0 0
    %679 = vmatprep.mubr.bf16.mxu0 %v632
    %680 = vmatmul.mubr.bf16.gmra.mrb[0].mxu0 %v631
    %v681 = vpop.f32.mrb[0].mxu0
    %v682 = vadd.f32 0.0, %v681
    %v683 = vpop.f32.mrb[0].mxu0
    %v684 = vpop.f32.mrb[0].mxu0
    %v685 = vpop.f32.mrb[0].mxu0
    %686 = vdwg.mxu0
    %687 = vmatprep.subr.bf16.mxu0 %v634
    %688 = vmatpush1.bf16.xpose.msra.mxu0 %v633
    %689 = vmatprep.subr.bf16.mxu0 0
    %690 = vmatpush1.bf16.xpose.msra.mxu0 0
    %691 = vmatprep.subr.bf16.mxu0 0
    %692 = vmatpush1.bf16.xpose.msra.mxu0 0
    %693 = vmatprep.subr.bf16.mxu0 0
    %694 = vmatpush1.bf16.xpose.msra.mxu0 0
    %695 = vmatprep.subr.bf16.mxu0 0
    %696 = vmatpush1.bf16.xpose.msra.mxu0 0
    %697 = vmatprep.subr.bf16.mxu0 0
    %698 = vmatpush1.bf16.xpose.msra.mxu0 0
    %699 = vmatprep.subr.bf16.mxu0 0
    %700 = vmatpush1.bf16.xpose.msra.mxu0 0
    %701 = vmatprep.subr.bf16.mxu0 0
    %702 = vmatpush1.bf16.xpose.msra.mxu0 0
    %703 = vmatprep.subr.bf16.mxu0 0
    %704 = vmatpush1.bf16.xpose.msra.mxu0 0
    %705 = vmatprep.subr.bf16.mxu0 0
    %706 = vmatpush1.bf16.xpose.msra.mxu0 0
    %707 = vmatprep.subr.bf16.mxu0 0
    %708 = vmatpush1.bf16.xpose.msra.mxu0 0
    %709 = vmatprep.subr.bf16.mxu0 0
    %710 = vmatpush1.bf16.xpose.msra.mxu0 0
    %711 = vmatprep.subr.bf16.mxu0 0
    %712 = vmatpush1.bf16.xpose.msra.mxu0 0
    %713 = vmatprep.subr.bf16.mxu0 0
    %714 = vmatpush1.bf16.xpose.msra.mxu0 0
    %715 = vmatprep.subr.bf16.mxu0 0
    %716 = vmatpush1.bf16.xpose.msra.mxu0 0
    %717 = vmatprep.subr.bf16.mxu0 0
    %718 = vmatpush1.bf16.xpose.msra.mxu0 0
    %719 = vmatprep.mubr.bf16.mxu0 %v634
    %720 = vmatmul.mubr.bf16.gmra.mrb[0].mxu0 %v633
    %v721 = vpop.f32.mrb[0].mxu0
    %v722 = vadd.f32 %v682, %v721
    %v723 = vpop.f32.mrb[0].mxu0
    %v724 = vpop.f32.mrb[0].mxu0
    %v725 = vpop.f32.mrb[0].mxu0
    %726 = vdwg.mxu0
    %727 = vmatprep.subr.bf16.mxu0 %v636
    %728 = vmatpush1.bf16.xpose.msra.mxu0 %v635
    %729 = vmatprep.subr.bf16.mxu0 0
    %730 = vmatpush1.bf16.xpose.msra.mxu0 0
    %731 = vmatprep.subr.bf16.mxu0 0
    %732 = vmatpush1.bf16.xpose.msra.mxu0 0
    %733 = vmatprep.subr.bf16.mxu0 0
    %734 = vmatpush1.bf16.xpose.msra.mxu0 0
    %735 = vmatprep.subr.bf16.mxu0 0
    %736 = vmatpush1.bf16.xpose.msra.mxu0 0
    %737 = vmatprep.subr.bf16.mxu0 0
    %738 = vmatpush1.bf16.xpose.msra.mxu0 0
    %739 = vmatprep.subr.bf16.mxu0 0
    %740 = vmatpush1.bf16.xpose.msra.mxu0 0
    %741 = vmatprep.subr.bf16.mxu0 0
    %742 = vmatpush1.bf16.xpose.msra.mxu0 0
    %743 = vmatprep.subr.bf16.mxu0 0
    %744 = vmatpush1.bf16.xpose.msra.mxu0 0
    %745 = vmatprep.subr.bf16.mxu0 0
    %746 = vmatpush1.bf16.xpose.msra.mxu0 0
    %747 = vmatprep.subr.bf16.mxu0 0
    %748 = vmatpush1.bf16.xpose.msra.mxu0 0
    %749 = vmatprep.subr.bf16.mxu0 0
    %750 = vmatpush1.bf16.xpose.msra.mxu0 0
    %751 = vmatprep.subr.bf16.mxu0 0
    %752 = vmatpush1.bf16.xpose.msra.mxu0 0
    %753 = vmatprep.subr.bf16.mxu0 0
    %754 = vmatpush1.bf16.xpose.msra.mxu0 0
    %755 = vmatprep.subr.bf16.mxu0 0
    %756 = vmatpush1.bf16.xpose.msra.mxu0 0
    %757 = vmatprep.subr.bf16.mxu0 0
    %758 = vmatpush1.bf16.xpose.msra.mxu0 0
    %759 = vmatprep.mubr.bf16.mxu0 %v636
    %760 = vmatmul.mubr.bf16.gmra.mrb[0].mxu0 %v635
    %v761 = vpop.f32.mrb[0].mxu0
    %v762 = vadd.f32 %v722, %v761
    %v763 = vpop.f32.mrb[0].mxu0
    %v764 = vpop.f32.mrb[0].mxu0
    %v765 = vpop.f32.mrb[0].mxu0
    %766 = vdwg.mxu0
    %767 = vmatprep.subr.bf16.mxu0 %v638
    %768 = vmatpush1.bf16.xpose.msra.mxu0 %v637
    %769 = vmatprep.subr.bf16.mxu0 0
    %770 = vmatpush1.bf16.xpose.msra.mxu0 0
    %771 = vmatprep.subr.bf16.mxu0 0
    %772 = vmatpush1.bf16.xpose.msra.mxu0 0
    %773 = vmatprep.subr.bf16.mxu0 0
    %774 = vmatpush1.bf16.xpose.msra.mxu0 0
    %775 = vmatprep.subr.bf16.mxu0 0
    %776 = vmatpush1.bf16.xpose.msra.mxu0 0
    %777 = vmatprep.subr.bf16.mxu0 0
    %778 = vmatpush1.bf16.xpose.msra.mxu0 0
    %779 = vmatprep.subr.bf16.mxu0 0
    %780 = vmatpush1.bf16.xpose.msra.mxu0 0
    %781 = vmatprep.subr.bf16.mxu0 0
    %782 = vmatpush1.bf16.xpose.msra.mxu0 0
    %783 = vmatprep.subr.bf16.mxu0 0
    %784 = vmatpush1.bf16.xpose.msra.mxu0 0
    %785 = vmatprep.subr.bf16.mxu0 0
    %786 = vmatpush1.bf16.xpose.msra.mxu0 0
    %787 = vmatprep.subr.bf16.mxu0 0
    %788 = vmatpush1.bf16.xpose.msra.mxu0 0
    %789 = vmatprep.subr.bf16.mxu0 0
    %790 = vmatpush1.bf16.xpose.msra.mxu0 0
    %791 = vmatprep.subr.bf16.mxu0 0
    %792 = vmatpush1.bf16.xpose.msra.mxu0 0
    %793 = vmatprep.subr.bf16.mxu0 0
    %794 = vmatpush1.bf16.xpose.msra.mxu0 0
    %795 = vmatprep.subr.bf16.mxu0 0
    %796 = vmatpush1.bf16.xpose.msra.mxu0 0
    %797 = vmatprep.subr.bf16.mxu0 0
    %798 = vmatpush1.bf16.xpose.msra.mxu0 0
    %799 = vmatprep.mubr.bf16.mxu0 %v638
    %800 = vmatmul.mubr.bf16.gmra.mrb[0].mxu0 %v637
    %v801 = vpop.f32.mrb[0].mxu0
    %v802 = vadd.f32 %v762, %v801
    %v803 = vpop.f32.mrb[0].mxu0
    %v804 = vpop.f32.mrb[0].mxu0
    %v805 = vpop.f32.mrb[0].mxu0
    %806 = vdwg.mxu0
    %v807 = vadd.f32 %v429, %v614
    %v808 = vadd.f32 %v430, %v802
    %809 = vst.msk [vmem:[#allocation3] sm:$0xff] %vm426, %v807
    %810 = vst.msk [vmem:[#allocation3 + $0x8] sm:$0xff] %vm426, %v808
    %v811 = vunpack.c.l.bf16 %v30
    %v812 = vunpack.c.h.bf16 %v30
    %v813 = vunpack.c.l.bf16 %v31
    %v814 = vunpack.c.h.bf16 %v31
    %v815 = vunpack.c.l.bf16 %v32
    %v816 = vunpack.c.h.bf16 %v32
    %v817 = vunpack.c.l.bf16 %v33
    %v818 = vunpack.c.h.bf16 %v33
    %v819 = vunpack.c.l.bf16 %v34
    %v820 = vunpack.c.h.bf16 %v34
    %v821 = vunpack.c.l.bf16 %v35
    %v822 = vunpack.c.h.bf16 %v35
    %v823 = vunpack.c.l.bf16 %v36
    %v824 = vunpack.c.h.bf16 %v36
    %v825 = vunpack.c.l.bf16 %v37
    %v826 = vunpack.c.h.bf16 %v37
    %v827 = vunpack.c.l.bf16 %v38
    %v828 = vunpack.c.h.bf16 %v38
    %v829 = vunpack.c.l.bf16 %v39
    %v830 = vunpack.c.h.bf16 %v39
    %v831 = vunpack.c.l.bf16 %v40
    %v832 = vunpack.c.h.bf16 %v40
    %v833 = vunpack.c.l.bf16 %v41
    %v834 = vunpack.c.h.bf16 %v41
    %v835 = vunpack.c.l.bf16 %v42
    %v836 = vunpack.c.h.bf16 %v42
    %v837 = vunpack.c.l.bf16 %v43
    %v838 = vunpack.c.h.bf16 %v43
    %v839 = vunpack.c.l.bf16 %v44
    %v840 = vunpack.c.h.bf16 %v44
    %v841 = vunpack.c.l.bf16 %v45
    %v842 = vunpack.c.h.bf16 %v45
    %v843 = vld [vmem:[#allocation4] sm:$0xff]
    %v844 = vld [vmem:[#allocation4 + $0x8] sm:$0xff]
    %v845 = vadd.f32 %v811, %v812
    %v846 = vadd.f32 %v845, %v813
    %v847 = vadd.f32 %v846, %v814
    %v848 = vadd.f32 %v847, %v815
    %v849 = vadd.f32 %v848, %v816
    %v850 = vadd.f32 %v849, %v817
    %v851 = vadd.f32 %v850, %v818
    %852 = vadd.xlane.f32.xlu0 %v851
    %v853 = vpop.xlane.xlu0 %852
    %v854 = vadd.f32 %v819, %v820
    %v855 = vadd.f32 %v854, %v821
    %v856 = vadd.f32 %v855, %v822
    %v857 = vadd.f32 %v856, %v823
    %v858 = vadd.f32 %v857, %v824
    %v859 = vadd.f32 %v858, %v825
    %v860 = vadd.f32 %v859, %v826
    %861 = vadd.xlane.f32.xlu0 %v860
    %v862 = vpop.xlane.xlu0 %861
    %v863 = vadd.f32 %v843, %v853
    %v864 = vadd.f32 %v844, %v862
    %vm865 = vcmask 7168
    %866 = vst.msk [vmem:[#allocation4] sm:$0xff] %vm865, %v863
    %867 = vst.msk [vmem:[#allocation4 + $0x8] sm:$0xff] %vm865, %v864
    %v868 = vld [vmem:[#allocation5] sm:$0xff]
    %v869 = vld [vmem:[#allocation5 + $0x8] sm:$0xff]
    %v870 = vadd.f32 %v827, %v828
    %v871 = vadd.f32 %v870, %v829
    %v872 = vadd.f32 %v871, %v830
    %v873 = vadd.f32 %v872, %v831
    %v874 = vadd.f32 %v873, %v832
    %v875 = vadd.f32 %v874, %v833
    %v876 = vadd.f32 %v875, %v834
    %877 = vadd.xlane.f32.xlu0 %v876
    %v878 = vpop.xlane.xlu0 %877
    %v879 = vadd.f32 %v835, %v836
    %v880 = vadd.f32 %v879, %v837
    %v881 = vadd.f32 %v880, %v838
    %v882 = vadd.f32 %v881, %v839
    %v883 = vadd.f32 %v882, %v840
    %v884 = vadd.f32 %v883, %v841
    %v885 = vadd.f32 %v884, %v842
    %886 = vadd.xlane.f32.xlu0 %v885
    %v887 = vpop.xlane.xlu0 %886
    %v888 = vadd.f32 %v868, %v878
    %v889 = vadd.f32 %v869, %v887
    %890 = vst.msk [vmem:[#allocation5] sm:$0xff] %vm865, %v888
    %891 = vst.msk [vmem:[#allocation5 + $0x8] sm:$0xff] %vm865, %v889
    %v892 = vld [vmem:[#allocation6] sm:$0xff]
    %v893 = vld [vmem:[#allocation6 + $0x8] sm:$0xff]
    %v894 = vmul.f32 %v811, %v811
    %v895 = vmul.f32 %v812, %v812
    %v896 = vmul.f32 %v813, %v813
    %v897 = vmul.f32 %v814, %v814
    %v898 = vmul.f32 %v815, %v815
    %v899 = vmul.f32 %v816, %v816
    %v900 = vmul.f32 %v817, %v817
    %v901 = vmul.f32 %v818, %v818
    %v902 = vmul.f32 %v819, %v819
    %v903 = vmul.f32 %v820, %v820
    %v904 = vmul.f32 %v821, %v821
    %v905 = vmul.f32 %v822, %v822
    %v906 = vmul.f32 %v823, %v823
    %v907 = vmul.f32 %v824, %v824
    %v908 = vmul.f32 %v825, %v825
    %v909 = vmul.f32 %v826, %v826
    %v910 = vadd.f32 %v894, %v895
    %v911 = vadd.f32 %v910, %v896
    %v912 = vadd.f32 %v911, %v897
    %v913 = vadd.f32 %v912, %v898
    %v914 = vadd.f32 %v913, %v899
    %v915 = vadd.f32 %v914, %v900
    %v916 = vadd.f32 %v915, %v901
    %917 = vadd.xlane.f32.xlu0 %v916
    %v918 = vpop.xlane.xlu0 %917
    %v919 = vadd.f32 %v902, %v903
    %v920 = vadd.f32 %v919, %v904
    %v921 = vadd.f32 %v920, %v905
    %v922 = vadd.f32 %v921, %v906
    %v923 = vadd.f32 %v922, %v907
    %v924 = vadd.f32 %v923, %v908
    %v925 = vadd.f32 %v924, %v909
    %926 = vadd.xlane.f32.xlu0 %v925
    %v927 = vpop.xlane.xlu0 %926
    %v928 = vadd.f32 %v892, %v918
    %v929 = vadd.f32 %v893, %v927
    %930 = vst.msk [vmem:[#allocation6] sm:$0xff] %vm865, %v928
    %931 = vst.msk [vmem:[#allocation6 + $0x8] sm:$0xff] %vm865, %v929
    %v932 = vld [vmem:[#allocation7] sm:$0xff]
    %v933 = vld [vmem:[#allocation7 + $0x8] sm:$0xff]
    %v934 = vmul.f32 %v827, %v827
    %v935 = vmul.f32 %v828, %v828
    %v936 = vmul.f32 %v829, %v829
    %v937 = vmul.f32 %v830, %v830
    %v938 = vmul.f32 %v831, %v831
    %v939 = vmul.f32 %v832, %v832
    %v940 = vmul.f32 %v833, %v833
    %v941 = vmul.f32 %v834, %v834
    %v942 = vmul.f32 %v835, %v835
    %v943 = vmul.f32 %v836, %v836
    %v944 = vmul.f32 %v837, %v837
    %v945 = vmul.f32 %v838, %v838
    %v946 = vmul.f32 %v839, %v839
    %v947 = vmul.f32 %v840, %v840
    %v948 = vmul.f32 %v841, %v841
    %v949 = vmul.f32 %v842, %v842
    %v950 = vadd.f32 %v934, %v935
    %v951 = vadd.f32 %v950, %v936
    %v952 = vadd.f32 %v951, %v937
    %v953 = vadd.f32 %v952, %v938
    %v954 = vadd.f32 %v953, %v939
    %v955 = vadd.f32 %v954, %v940
    %v956 = vadd.f32 %v955, %v941
    %957 = vadd.xlane.f32.xlu0 %v956
    %v958 = vpop.xlane.xlu0 %957
    %v959 = vadd.f32 %v942, %v943
    %v960 = vadd.f32 %v959, %v944
    %v961 = vadd.f32 %v960, %v945
    %v962 = vadd.f32 %v961, %v946
    %v963 = vadd.f32 %v962, %v947
    %v964 = vadd.f32 %v963, %v948
    %v965 = vadd.f32 %v964, %v949
    %966 = vadd.xlane.f32.xlu0 %v965
    %v967 = vpop.xlane.xlu0 %966
    %v968 = vadd.f32 %v932, %v958
    %v969 = vadd.f32 %v933, %v967
    %970 = vst.msk [vmem:[#allocation7] sm:$0xff] %vm865, %v968
    %971 = vst.msk [vmem:[#allocation7 + $0x8] sm:$0xff] %vm865, %v969
    %v972 = vld [vmem:[#allocation8] sm:$0xff]
    %v973 = vld [vmem:[#allocation8 + $0x8] sm:$0xff]
    %v974 = vmul.f32 %v811, %v827
    %v975 = vmul.f32 %v812, %v828
    %v976 = vmul.f32 %v813, %v829
    %v977 = vmul.f32 %v814, %v830
    %v978 = vmul.f32 %v815, %v831
    %v979 = vmul.f32 %v816, %v832
    %v980 = vmul.f32 %v817, %v833
    %v981 = vmul.f32 %v818, %v834
    %v982 = vmul.f32 %v819, %v835
    %v983 = vmul.f32 %v820, %v836
    %v984 = vmul.f32 %v821, %v837
    %v985 = vmul.f32 %v822, %v838
    %v986 = vmul.f32 %v823, %v839
    %v987 = vmul.f32 %v824, %v840
    %v988 = vmul.f32 %v825, %v841
    %v989 = vmul.f32 %v826, %v842
    %v990 = vadd.f32 %v974, %v975
    %v991 = vadd.f32 %v990, %v976
    %v992 = vadd.f32 %v991, %v977
    %v993 = vadd.f32 %v992, %v978
    %v994 = vadd.f32 %v993, %v979
    %v995 = vadd.f32 %v994, %v980
    %v996 = vadd.f32 %v995, %v981
    %997 = vadd.xlane.f32.xlu0 %v996
    %v998 = vpop.xlane.xlu0 %997
    %v999 = vadd.f32 %v982, %v983
    %v1000 = vadd.f32 %v999, %v984
    %v1001 = vadd.f32 %v1000, %v985
    %v1002 = vadd.f32 %v1001, %v986
    %v1003 = vadd.f32 %v1002, %v987
    %v1004 = vadd.f32 %v1003, %v988
    %v1005 = vadd.f32 %v1004, %v989
    %1006 = vadd.xlane.f32.xlu0 %v1005
    %v1007 = vpop.xlane.xlu0 %1006
    %v1008 = vadd.f32 %v972, %v998
    %v1009 = vadd.f32 %v973, %v1007
    %1010 = vst.msk [vmem:[#allocation8] sm:$0xff] %vm865, %v1008
    %1011 = vst.msk [vmem:[#allocation8 + $0x8] sm:$0xff] %vm865, %v1009
    // Predicated region
    $region10: #{a_call__.9} parent=1 // pred_check
      %p1012 = pneg %p10
    $region11: #{a_call__.9} parent=1 // pred_check_branch
      %1014 = sbr.rel (%p1012) target = $region13
    $region12: #{a_call__.9} parent=1 // pred_region
      %v1015 = vld [vmem:[#allocation2] sm:$0xff]
      %v1016 = vld [vmem:[#allocation2 + $0x8] sm:$0xff]
      %v1017 = vld [vmem:[#allocation3] sm:$0xff]
      %v1018 = vld [vmem:[#allocation3 + $0x8] sm:$0xff]
      %v1019 = vld [vmem:[#allocation4] sm:$0xff]
      %v1020 = vld [vmem:[#allocation4 + $0x8] sm:$0xff]
      %v1021 = vld [vmem:[#allocation5] sm:$0xff]
      %v1022 = vld [vmem:[#allocation5 + $0x8] sm:$0xff]
      %v1023 = vld [vmem:[#allocation6] sm:$0xff]
      %v1024 = vld [vmem:[#allocation6 + $0x8] sm:$0xff]
      %v1025 = vld [vmem:[#allocation7] sm:$0xff]
      %v1026 = vld [vmem:[#allocation7 + $0x8] sm:$0xff]
      %v1027 = vld [vmem:[#allocation8] sm:$0xff]
      %v1028 = vld [vmem:[#allocation8 + $0x8] sm:$0xff]
      %v1029 = vmul.f32 %v1023, 0.0009765625
      %v1030 = vmul.f32 %v1024, 0.0009765625
      %v1031 = vmul.f32 %v1019, 0.0009765625
      %v1032 = vmul.f32 %v1020, 0.0009765625
      %v1033 = vmul.f32 %v1031, %v1031
      %v1034 = vmul.f32 %v1032, %v1032
      %v1035 = vsub.f32 %v1029, %v1033
      %v1036 = vsub.f32 %v1030, %v1034
      %v1037 = vmax.f32 %v1035, 0.0
      %v1038 = vmax.f32 %v1036, 0.0
      %v1039 = vmul.f32 %v1025, 0.0009765625
      %v1040 = vmul.f32 %v1026, 0.0009765625
      %v1041 = vmul.f32 %v1021, 0.0009765625
      %v1042 = vmul.f32 %v1022, 0.0009765625
      %v1043 = vmul.f32 %v1041, %v1041
      %v1044 = vmul.f32 %v1042, %v1042
      %v1045 = vsub.f32 %v1039, %v1043
      %v1046 = vsub.f32 %v1040, %v1044
      %v1047 = vmax.f32 %v1045, 0.0
      %v1048 = vmax.f32 %v1046, 0.0
      %v1049 = vadd.f32 %v1037, 1e-05
      %v1050 = vadd.f32 %v1038, 1e-05
      %v1051 = vrsqrt.pop %v1049
      %v1052 = vrsqrt.pop %v1050
      %v1053 = vadd.f32 %v1047, 1e-05
      %v1054 = vadd.f32 %v1048, 1e-05
      %v1055 = vrsqrt.pop %v1053
      %v1056 = vrsqrt.pop %v1054
      %v1057 = vmul.f32 %v1019, %v1019
      %v1058 = vmul.f32 %v1020, %v1020
      %v1059 = vmul.f32 %v1057, 0.0009765625
      %v1060 = vmul.f32 %v1058, 0.0009765625
      %v1061 = vsub.f32 %v1023, %v1059
      %v1062 = vsub.f32 %v1024, %v1060
      %v1063 = vmul.f32 %v1021, %v1021
      %v1064 = vmul.f32 %v1022, %v1022
      %v1065 = vmul.f32 %v1063, 0.0009765625
      %v1066 = vmul.f32 %v1064, 0.0009765625
      %v1067 = vsub.f32 %v1025, %v1065
      %v1068 = vsub.f32 %v1026, %v1066
      %v1069 = vmul.f32 %v1019, %v1021
      %v1070 = vmul.f32 %v1020, %v1022
      %v1071 = vmul.f32 %v1069, 0.0009765625
      %v1072 = vmul.f32 %v1070, 0.0009765625
      %v1073 = vsub.f32 %v1027, %v1071
      %v1074 = vsub.f32 %v1028, %v1072
      %v1075 = vmul.f32 %v1051, %v1051
      %v1076 = vmul.f32 %v1052, %v1052
      %v1077 = vmul.f32 %v1075, %v1061
      %v1078 = vmul.f32 %v1076, %v1062
      %v1079 = vmul.f32 %v1055, %v1055
      %v1080 = vmul.f32 %v1056, %v1056
      %v1081 = vmul.f32 %v1079, %v1067
      %v1082 = vmul.f32 %v1080, %v1068
      %v1083 = vadd.f32 %v1077, %v1081
      %v1084 = vadd.f32 %v1078, %v1082
      %v1085 = vmul.f32 %v1051, %v1055
      %v1086 = vmul.f32 %v1052, %v1056
      %v1087 = vmul.f32 %v1085, 2.0
      %v1088 = vmul.f32 %v1086, 2.0
      %v1089 = vmul.f32 %v1087, %v1073
      %v1090 = vmul.f32 %v1088, %v1074
      %v1091 = vsub.f32 %v1083, %v1089
      %v1092 = vsub.f32 %v1084, %v1090
      %v1093 = vsel %vm865, %v1091, 0.0
      %v1094 = vsel %vm865, %v1092, 0.0
      %v1095 = vadd.f32 %v1093, %v1094
      %1096 = vadd.xlane.f32.xlu0 %v1095
      %v1097 = vpop.xlane.xlu0 %1096
      %v1098 = vrot.slane %v1097, 4
      %v1099 = vadd.f32 %v1097, %v1098
      %v1100 = vrot.slane %v1099, 2
      %v1101 = vadd.f32 %v1099, %v1100
      %v1102 = vrot.slane %v1101, 1
      %v1103 = vadd.f32 %v1101, %v1102
      %s1104 = vtos %v1103
      %v1105 = vlaneseq
      %v1106 = vshrl.u32 %v1105, 7
      %v1107 = vlaneseq
      %v1108 = vand.u32 %v1107, 127
      %vm1109 = vcmp.eq.s32.totalorder %v1106, %v1108
      %v1110 = vsel %vm1109, 1, 0
      %v1111 = vcvt.s32.f32 %v1110
      %1113 = vset.pattern.permute.xlu0 0
      %1114 = vperm.xlu0 %1113, %v1019
      %v1115 = vpop.permute.xlu0 %1114
      %1118 = vset.pattern.permute.xlu0 0
      %1119 = vperm.xlu0 %1118, %v1020
      %v1120 = vpop.permute.xlu0 %1119
      %v1122 = vmul.f32 %v1111, %v1115
      %v1123 = vmul.f32 %v1111, %v1120
      %v1124 = vsel %vm426, %v1115, 0
      %1126 = vmatprep.subr.mxu0 0.0
      %1127 = vmatpush1.msra.mxu0 %v1122
      %1128 = vmatprep.subr.mxu0 0.0
      %1129 = vmatpush1.msra.mxu0 0.0
      %1130 = vmatprep.subr.mxu0 0.0
      %1131 = vmatpush1.msra.mxu0 0.0
      %1132 = vmatprep.subr.mxu0 0.0
      %1133 = vmatpush1.msra.mxu0 0.0
      %1134 = vmatprep.subr.mxu0 0.0
      %1135 = vmatpush1.msra.mxu0 0.0
      %1136 = vmatprep.subr.mxu0 0.0
      %1137 = vmatpush1.msra.mxu0 0.0
      %1138 = vmatprep.subr.mxu0 0.0
      %1139 = vmatpush1.msra.mxu0 0.0
      %1140 = vmatprep.subr.mxu0 0.0
      %1141 = vmatpush1.msra.mxu0 0.0
      %1142 = vmatprep.subr.mxu0 0.0
      %1143 = vmatpush1.msra.mxu0 0.0
      %1144 = vmatprep.subr.mxu0 0.0
      %1145 = vmatpush1.msra.mxu0 0.0
      %1146 = vmatprep.subr.mxu0 0.0
      %1147 = vmatpush1.msra.mxu0 0.0
      %1148 = vmatprep.subr.mxu0 0.0
      %1149 = vmatpush1.msra.mxu0 0.0
      %1150 = vmatprep.subr.mxu0 0.0
      %1151 = vmatpush1.msra.mxu0 0.0
      %1152 = vmatprep.subr.mxu0 0.0
      %1153 = vmatpush1.msra.mxu0 0.0
      %1154 = vmatprep.subr.mxu0 0.0
      %1155 = vmatpush1.msra.mxu0 0.0
      %1156 = vmatprep.subr.mxu0 0.0
      %1157 = vmatpush1.msra.mxu0 0.0
      %1158 = vmatprep.subr.mxu0 0.0
      %1159 = vmatpush1.msra.mxu0 0.0
      %1160 = vmatprep.subr.mxu0 0.0
      %1161 = vmatpush1.msra.mxu0 0.0
      %1162 = vmatprep.subr.mxu0 0.0
      %1163 = vmatpush1.msra.mxu0 0.0
      %1164 = vmatprep.subr.mxu0 0.0
      %1165 = vmatpush1.msra.mxu0 0.0
      %1166 = vmatprep.subr.mxu0 0.0
      %1167 = vmatpush1.msra.mxu0 0.0
      %1168 = vmatprep.subr.mxu0 0.0
      %1169 = vmatpush1.msra.mxu0 0.0
      %1170 = vmatprep.subr.mxu0 0.0
      %1171 = vmatpush1.msra.mxu0 0.0
      %1172 = vmatprep.subr.mxu0 0.0
      %1173 = vmatpush1.msra.mxu0 0.0
      %1174 = vmatprep.subr.mxu0 0.0
      %1175 = vmatpush1.msra.mxu0 0.0
      %1176 = vmatprep.subr.mxu0 0.0
      %1177 = vmatpush1.msra.mxu0 0.0
      %1178 = vmatprep.subr.mxu0 0.0
      %1179 = vmatpush1.msra.mxu0 0.0
      %1180 = vmatprep.subr.mxu0 0.0
      %1181 = vmatpush1.msra.mxu0 0.0
      %1182 = vmatprep.subr.mxu0 0.0
      %1183 = vmatpush1.msra.mxu0 0.0
      %1184 = vmatprep.subr.mxu0 0.0
      %1185 = vmatpush1.msra.mxu0 0.0
      %1186 = vmatprep.subr.mxu0 0.0
      %1187 = vmatpush1.msra.mxu0 0.0
      %1188 = vmatprep.subr.mxu0 0.0
      %1189 = vmatpush1.msra.mxu0 0.0
      %1190 = vmatprep.mubr.f32.mxu0 0.0
      %1191 = vmatmul.mubr.f32.gmra.mrb[0].mxu0 %v1124
      %v1192 = vpop.f32.mrb[0].mxu0
      %v1193 = vadd.f32 0.0, %v1192
      %v1194 = vpop.f32.mrb[0].mxu0
      %1195 = vdwg.mxu0
      %v1196 = vsel %vm426, %v1120, 0
      %1198 = vmatprep.subr.mxu0 0.0
      %1199 = vmatpush1.msra.mxu0 %v1123
      %1200 = vmatprep.subr.mxu0 0.0
      %1201 = vmatpush1.msra.mxu0 0.0
      %1202 = vmatprep.subr.mxu0 0.0
      %1203 = vmatpush1.msra.mxu0 0.0
      %1204 = vmatprep.subr.mxu0 0.0
      %1205 = vmatpush1.msra.mxu0 0.0
      %1206 = vmatprep.subr.mxu0 0.0
      %1207 = vmatpush1.msra.mxu0 0.0
      %1208 = vmatprep.subr.mxu0 0.0
      %1209 = vmatpush1.msra.mxu0 0.0
      %1210 = vmatprep.subr.mxu0 0.0
      %1211 = vmatpush1.msra.mxu0 0.0
      %1212 = vmatprep.subr.mxu0 0.0
      %1213 = vmatpush1.msra.mxu0 0.0
      %1214 = vmatprep.subr.mxu0 0.0
      %1215 = vmatpush1.msra.mxu0 0.0
      %1216 = vmatprep.subr.mxu0 0.0
      %1217 = vmatpush1.msra.mxu0 0.0
      %1218 = vmatprep.subr.mxu0 0.0
      %1219 = vmatpush1.msra.mxu0 0.0
      %1220 = vmatprep.subr.mxu0 0.0
      %1221 = vmatpush1.msra.mxu0 0.0
      %1222 = vmatprep.subr.mxu0 0.0
      %1223 = vmatpush1.msra.mxu0 0.0
      %1224 = vmatprep.subr.mxu0 0.0
      %1225 = vmatpush1.msra.mxu0 0.0
      %1226 = vmatprep.subr.mxu0 0.0
      %1227 = vmatpush1.msra.mxu0 0.0
      %1228 = vmatprep.subr.mxu0 0.0
      %1229 = vmatpush1.msra.mxu0 0.0
      %1230 = vmatprep.subr.mxu0 0.0
      %1231 = vmatpush1.msra.mxu0 0.0
      %1232 = vmatprep.subr.mxu0 0.0
      %1233 = vmatpush1.msra.mxu0 0.0
      %1234 = vmatprep.subr.mxu0 0.0
      %1235 = vmatpush1.msra.mxu0 0.0
      %1236 = vmatprep.subr.mxu0 0.0
      %1237 = vmatpush1.msra.mxu0 0.0
      %1238 = vmatprep.subr.mxu0 0.0
      %1239 = vmatpush1.msra.mxu0 0.0
      %1240 = vmatprep.subr.mxu0 0.0
      %1241 = vmatpush1.msra.mxu0 0.0
      %1242 = vmatprep.subr.mxu0 0.0
      %1243 = vmatpush1.msra.mxu0 0.0
      %1244 = vmatprep.subr.mxu0 0.0
      %1245 = vmatpush1.msra.mxu0 0.0
      %1246 = vmatprep.subr.mxu0 0.0
      %1247 = vmatpush1.msra.mxu0 0.0
      %1248 = vmatprep.subr.mxu0 0.0
      %1249 = vmatpush1.msra.mxu0 0.0
      %1250 = vmatprep.subr.mxu0 0.0
      %1251 = vmatpush1.msra.mxu0 0.0
      %1252 = vmatprep.subr.mxu0 0.0
      %1253 = vmatpush1.msra.mxu0 0.0
      %1254 = vmatprep.subr.mxu0 0.0
      %1255 = vmatpush1.msra.mxu0 0.0
      %1256 = vmatprep.subr.mxu0 0.0
      %1257 = vmatpush1.msra.mxu0 0.0
      %1258 = vmatprep.subr.mxu0 0.0
      %1259 = vmatpush1.msra.mxu0 0.0
      %1260 = vmatprep.subr.mxu0 0.0
      %1261 = vmatpush1.msra.mxu0 0.0
      %1262 = vmatprep.mubr.f32.mxu0 0.0
      %1263 = vmatmul.mubr.f32.gmra.mrb[0].mxu0 %v1196
      %v1264 = vpop.f32.mrb[0].mxu0
      %v1265 = vadd.f32 0.0, %v1264
      %v1266 = vpop.f32.mrb[0].mxu0
      %1267 = vdwg.mxu0
      %v1268 = vmul.f32 %v1193, 0.0009765625
      %v1269 = vmul.f32 %v1265, 0.0009765625
      %v1270 = vsub.f32 %v1015, %v1268
      %v1271 = vsub.f32 %v1016, %v1269
      %1273 = vset.pattern.permute.xlu0 0
      %1274 = vperm.xlu0 %1273, %v1051
      %v1275 = vpop.permute.xlu0 %1274
      %1278 = vset.pattern.permute.xlu0 0
      %1279 = vperm.xlu0 %1278, %v1052
      %v1280 = vpop.permute.xlu0 %1279
      %v1282 = vmul.f32 %v1270, %v1275
      %v1283 = vmul.f32 %v1271, %v1280
      %v1284 = vmul.f32 %v1111, %v1275
      %v1285 = vmul.f32 %v1111, %v1280
      %v1287 = vsel %vm426, %v1282, 0
      %1289 = vmatprep.subr.mxu0 0.0
      %1290 = vmatpush1.msra.mxu0 %v1284
      %1291 = vmatprep.subr.mxu0 0.0
      %1292 = vmatpush1.msra.mxu0 0.0
      %1293 = vmatprep.subr.mxu0 0.0
      %1294 = vmatpush1.msra.mxu0 0.0
      %1295 = vmatprep.subr.mxu0 0.0
      %1296 = vmatpush1.msra.mxu0 0.0
      %1297 = vmatprep.subr.mxu0 0.0
      %1298 = vmatpush1.msra.mxu0 0.0
      %1299 = vmatprep.subr.mxu0 0.0
      %1300 = vmatpush1.msra.mxu0 0.0
      %1301 = vmatprep.subr.mxu0 0.0
      %1302 = vmatpush1.msra.mxu0 0.0
      %1303 = vmatprep.subr.mxu0 0.0
      %1304 = vmatpush1.msra.mxu0 0.0
      %1305 = vmatprep.subr.mxu0 0.0
      %1306 = vmatpush1.msra.mxu0 0.0
      %1307 = vmatprep.subr.mxu0 0.0
      %1308 = vmatpush1.msra.mxu0 0.0
      %1309 = vmatprep.subr.mxu0 0.0
      %1310 = vmatpush1.msra.mxu0 0.0
      %1311 = vmatprep.subr.mxu0 0.0
      %1312 = vmatpush1.msra.mxu0 0.0
      %1313 = vmatprep.subr.mxu0 0.0
      %1314 = vmatpush1.msra.mxu0 0.0
      %1315 = vmatprep.subr.mxu0 0.0
      %1316 = vmatpush1.msra.mxu0 0.0
      %1317 = vmatprep.subr.mxu0 0.0
      %1318 = vmatpush1.msra.mxu0 0.0
      %1319 = vmatprep.subr.mxu0 0.0
      %1320 = vmatpush1.msra.mxu0 0.0
      %1321 = vmatprep.subr.mxu0 0.0
      %1322 = vmatpush1.msra.mxu0 0.0
      %1323 = vmatprep.subr.mxu0 0.0
      %1324 = vmatpush1.msra.mxu0 0.0
      %1325 = vmatprep.subr.mxu0 0.0
      %1326 = vmatpush1.msra.mxu0 0.0
      %1327 = vmatprep.subr.mxu0 0.0
      %1328 = vmatpush1.msra.mxu0 0.0
      %1329 = vmatprep.subr.mxu0 0.0
      %1330 = vmatpush1.msra.mxu0 0.0
      %1331 = vmatprep.subr.mxu0 0.0
      %1332 = vmatpush1.msra.mxu0 0.0
      %1333 = vmatprep.subr.mxu0 0.0
      %1334 = vmatpush1.msra.mxu0 0.0
      %1335 = vmatprep.subr.mxu0 0.0
      %1336 = vmatpush1.msra.mxu0 0.0
      %1337 = vmatprep.subr.mxu0 0.0
      %1338 = vmatpush1.msra.mxu0 0.0
      %1339 = vmatprep.subr.mxu0 0.0
      %1340 = vmatpush1.msra.mxu0 0.0
      %1341 = vmatprep.subr.mxu0 0.0
      %1342 = vmatpush1.msra.mxu0 0.0
      %1343 = vmatprep.subr.mxu0 0.0
      %1344 = vmatpush1.msra.mxu0 0.0
      %1345 = vmatprep.subr.mxu0 0.0
      %1346 = vmatpush1.msra.mxu0 0.0
      %1347 = vmatprep.subr.mxu0 0.0
      %1348 = vmatpush1.msra.mxu0 0.0
      %1349 = vmatprep.subr.mxu0 0.0
      %1350 = vmatpush1.msra.mxu0 0.0
      %1351 = vmatprep.subr.mxu0 0.0
      %1352 = vmatpush1.msra.mxu0 0.0
      %1353 = vmatprep.mubr.f32.mxu0 0.0
      %1354 = vmatmul.mubr.f32.gmra.mrb[0].mxu0 %v1287
      %v1355 = vpop.f32.mrb[0].mxu0
      %v1356 = vadd.f32 0.0, %v1355
      %v1357 = vpop.f32.mrb[0].mxu0
      %1358 = vdwg.mxu0
      %v1360 = vsel %vm426, %v1283, 0
      %1362 = vmatprep.subr.mxu0 0.0
      %1363 = vmatpush1.msra.mxu0 %v1285
      %1364 = vmatprep.subr.mxu0 0.0
      %1365 = vmatpush1.msra.mxu0 0.0
      %1366 = vmatprep.subr.mxu0 0.0
      %1367 = vmatpush1.msra.mxu0 0.0
      %1368 = vmatprep.subr.mxu0 0.0
      %1369 = vmatpush1.msra.mxu0 0.0
      %1370 = vmatprep.subr.mxu0 0.0
      %1371 = vmatpush1.msra.mxu0 0.0
      %1372 = vmatprep.subr.mxu0 0.0
      %1373 = vmatpush1.msra.mxu0 0.0
      %1374 = vmatprep.subr.mxu0 0.0
      %1375 = vmatpush1.msra.mxu0 0.0
      %1376 = vmatprep.subr.mxu0 0.0
      %1377 = vmatpush1.msra.mxu0 0.0
      %1378 = vmatprep.subr.mxu0 0.0
      %1379 = vmatpush1.msra.mxu0 0.0
      %1380 = vmatprep.subr.mxu0 0.0
      %1381 = vmatpush1.msra.mxu0 0.0
      %1382 = vmatprep.subr.mxu0 0.0
      %1383 = vmatpush1.msra.mxu0 0.0
      %1384 = vmatprep.subr.mxu0 0.0
      %1385 = vmatpush1.msra.mxu0 0.0
      %1386 = vmatprep.subr.mxu0 0.0
      %1387 = vmatpush1.msra.mxu0 0.0
      %1388 = vmatprep.subr.mxu0 0.0
      %1389 = vmatpush1.msra.mxu0 0.0
      %1390 = vmatprep.subr.mxu0 0.0
      %1391 = vmatpush1.msra.mxu0 0.0
      %1392 = vmatprep.subr.mxu0 0.0
      %1393 = vmatpush1.msra.mxu0 0.0
      %1394 = vmatprep.subr.mxu0 0.0
      %1395 = vmatpush1.msra.mxu0 0.0
      %1396 = vmatprep.subr.mxu0 0.0
      %1397 = vmatpush1.msra.mxu0 0.0
      %1398 = vmatprep.subr.mxu0 0.0
      %1399 = vmatpush1.msra.mxu0 0.0
      %1400 = vmatprep.subr.mxu0 0.0
      %1401 = vmatpush1.msra.mxu0 0.0
      %1402 = vmatprep.subr.mxu0 0.0
      %1403 = vmatpush1.msra.mxu0 0.0
      %1404 = vmatprep.subr.mxu0 0.0
      %1405 = vmatpush1.msra.mxu0 0.0
      %1406 = vmatprep.subr.mxu0 0.0
      %1407 = vmatpush1.msra.mxu0 0.0
      %1408 = vmatprep.subr.mxu0 0.0
      %1409 = vmatpush1.msra.mxu0 0.0
      %1410 = vmatprep.subr.mxu0 0.0
      %1411 = vmatpush1.msra.mxu0 0.0
      %1412 = vmatprep.subr.mxu0 0.0
      %1413 = vmatpush1.msra.mxu0 0.0
      %1414 = vmatprep.subr.mxu0 0.0
      %1415 = vmatpush1.msra.mxu0 0.0
      %1416 = vmatprep.subr.mxu0 0.0
      %1417 = vmatpush1.msra.mxu0 0.0
      %1418 = vmatprep.subr.mxu0 0.0
      %1419 = vmatpush1.msra.mxu0 0.0
      %1420 = vmatprep.subr.mxu0 0.0
      %1421 = vmatpush1.msra.mxu0 0.0
      %1422 = vmatprep.subr.mxu0 0.0
      %1423 = vmatpush1.msra.mxu0 0.0
      %1424 = vmatprep.subr.mxu0 0.0
      %1425 = vmatpush1.msra.mxu0 0.0
      %1426 = vmatprep.mubr.f32.mxu0 0.0
      %1427 = vmatmul.mubr.f32.gmra.mrb[0].mxu0 %v1360
      %v1428 = vpop.f32.mrb[0].mxu0
      %v1429 = vadd.f32 0.0, %v1428
      %v1430 = vpop.f32.mrb[0].mxu0
      %1431 = vdwg.mxu0
      %v1432 = vmul.f32 %v1356, 0.00012207031
      %v1433 = vmul.f32 %v1429, 0.00012207031
      %1435 = vset.pattern.permute.xlu0 0
      %1436 = vperm.xlu0 %1435, %v1021
      %v1437 = vpop.permute.xlu0 %1436
      %1440 = vset.pattern.permute.xlu0 0
      %1441 = vperm.xlu0 %1440, %v1022
      %v1442 = vpop.permute.xlu0 %1441
      %v1444 = vmul.f32 %v1111, %v1437
      %v1445 = vmul.f32 %v1111, %v1442
      %v1446 = vsel %vm426, %v1437, 0
      %1448 = vmatprep.subr.mxu0 0.0
      %1449 = vmatpush1.msra.mxu0 %v1444
      %1450 = vmatprep.subr.mxu0 0.0
      %1451 = vmatpush1.msra.mxu0 0.0
      %1452 = vmatprep.subr.mxu0 0.0
      %1453 = vmatpush1.msra.mxu0 0.0
      %1454 = vmatprep.subr.mxu0 0.0
      %1455 = vmatpush1.msra.mxu0 0.0
      %1456 = vmatprep.subr.mxu0 0.0
      %1457 = vmatpush1.msra.mxu0 0.0
      %1458 = vmatprep.subr.mxu0 0.0
      %1459 = vmatpush1.msra.mxu0 0.0
      %1460 = vmatprep.subr.mxu0 0.0
      %1461 = vmatpush1.msra.mxu0 0.0
      %1462 = vmatprep.subr.mxu0 0.0
      %1463 = vmatpush1.msra.mxu0 0.0
      %1464 = vmatprep.subr.mxu0 0.0
      %1465 = vmatpush1.msra.mxu0 0.0
      %1466 = vmatprep.subr.mxu0 0.0
      %1467 = vmatpush1.msra.mxu0 0.0
      %1468 = vmatprep.subr.mxu0 0.0
      %1469 = vmatpush1.msra.mxu0 0.0
      %1470 = vmatprep.subr.mxu0 0.0
      %1471 = vmatpush1.msra.mxu0 0.0
      %1472 = vmatprep.subr.mxu0 0.0
      %1473 = vmatpush1.msra.mxu0 0.0
      %1474 = vmatprep.subr.mxu0 0.0
      %1475 = vmatpush1.msra.mxu0 0.0
      %1476 = vmatprep.subr.mxu0 0.0
      %1477 = vmatpush1.msra.mxu0 0.0
      %1478 = vmatprep.subr.mxu0 0.0
      %1479 = vmatpush1.msra.mxu0 0.0
      %1480 = vmatprep.subr.mxu0 0.0
      %1481 = vmatpush1.msra.mxu0 0.0
      %1482 = vmatprep.subr.mxu0 0.0
      %1483 = vmatpush1.msra.mxu0 0.0
      %1484 = vmatprep.subr.mxu0 0.0
      %1485 = vmatpush1.msra.mxu0 0.0
      %1486 = vmatprep.subr.mxu0 0.0
      %1487 = vmatpush1.msra.mxu0 0.0
      %1488 = vmatprep.subr.mxu0 0.0
      %1489 = vmatpush1.msra.mxu0 0.0
      %1490 = vmatprep.subr.mxu0 0.0
      %1491 = vmatpush1.msra.mxu0 0.0
      %1492 = vmatprep.subr.mxu0 0.0
      %1493 = vmatpush1.msra.mxu0 0.0
      %1494 = vmatprep.subr.mxu0 0.0
      %1495 = vmatpush1.msra.mxu0 0.0
      %1496 = vmatprep.subr.mxu0 0.0
      %1497 = vmatpush1.msra.mxu0 0.0
      %1498 = vmatprep.subr.mxu0 0.0
      %1499 = vmatpush1.msra.mxu0 0.0
      %1500 = vmatprep.subr.mxu0 0.0
      %1501 = vmatpush1.msra.mxu0 0.0
      %1502 = vmatprep.subr.mxu0 0.0
      %1503 = vmatpush1.msra.mxu0 0.0
      %1504 = vmatprep.subr.mxu0 0.0
      %1505 = vmatpush1.msra.mxu0 0.0
      %1506 = vmatprep.subr.mxu0 0.0
      %1507 = vmatpush1.msra.mxu0 0.0
      %1508 = vmatprep.subr.mxu0 0.0
      %1509 = vmatpush1.msra.mxu0 0.0
      %1510 = vmatprep.subr.mxu0 0.0
      %1511 = vmatpush1.msra.mxu0 0.0
      %1512 = vmatprep.mubr.f32.mxu0 0.0
      %1513 = vmatmul.mubr.f32.gmra.mrb[0].mxu0 %v1446
      %v1514 = vpop.f32.mrb[0].mxu0
      %v1515 = vadd.f32 0.0, %v1514
      %v1516 = vpop.f32.mrb[0].mxu0
      %1517 = vdwg.mxu0
      %v1518 = vsel %vm426, %v1442, 0
      %1520 = vmatprep.subr.mxu0 0.0
      %1521 = vmatpush1.msra.mxu0 %v1445
      %1522 = vmatprep.subr.mxu0 0.0
      %1523 = vmatpush1.msra.mxu0 0.0
      %1524 = vmatprep.subr.mxu0 0.0
      %1525 = vmatpush1.msra.mxu0 0.0
      %1526 = vmatprep.subr.mxu0 0.0
      %1527 = vmatpush1.msra.mxu0 0.0
      %1528 = vmatprep.subr.mxu0 0.0
      %1529 = vmatpush1.msra.mxu0 0.0
      %1530 = vmatprep.subr.mxu0 0.0
      %1531 = vmatpush1.msra.mxu0 0.0
      %1532 = vmatprep.subr.mxu0 0.0
      %1533 = vmatpush1.msra.mxu0 0.0
      %1534 = vmatprep.subr.mxu0 0.0
      %1535 = vmatpush1.msra.mxu0 0.0
      %1536 = vmatprep.subr.mxu0 0.0
      %1537 = vmatpush1.msra.mxu0 0.0
      %1538 = vmatprep.subr.mxu0 0.0
      %1539 = vmatpush1.msra.mxu0 0.0
      %1540 = vmatprep.subr.mxu0 0.0
      %1541 = vmatpush1.msra.mxu0 0.0
      %1542 = vmatprep.subr.mxu0 0.0
      %1543 = vmatpush1.msra.mxu0 0.0
      %1544 = vmatprep.subr.mxu0 0.0
      %1545 = vmatpush1.msra.mxu0 0.0
      %1546 = vmatprep.subr.mxu0 0.0
      %1547 = vmatpush1.msra.mxu0 0.0
      %1548 = vmatprep.subr.mxu0 0.0
      %1549 = vmatpush1.msra.mxu0 0.0
      %1550 = vmatprep.subr.mxu0 0.0
      %1551 = vmatpush1.msra.mxu0 0.0
      %1552 = vmatprep.subr.mxu0 0.0
      %1553 = vmatpush1.msra.mxu0 0.0
      %1554 = vmatprep.subr.mxu0 0.0
      %1555 = vmatpush1.msra.mxu0 0.0
      %1556 = vmatprep.subr.mxu0 0.0
      %1557 = vmatpush1.msra.mxu0 0.0
      %1558 = vmatprep.subr.mxu0 0.0
      %1559 = vmatpush1.msra.mxu0 0.0
      %1560 = vmatprep.subr.mxu0 0.0
      %1561 = vmatpush1.msra.mxu0 0.0
      %1562 = vmatprep.subr.mxu0 0.0
      %1563 = vmatpush1.msra.mxu0 0.0
      %1564 = vmatprep.subr.mxu0 0.0
      %1565 = vmatpush1.msra.mxu0 0.0
      %1566 = vmatprep.subr.mxu0 0.0
      %1567 = vmatpush1.msra.mxu0 0.0
      %1568 = vmatprep.subr.mxu0 0.0
      %1569 = vmatpush1.msra.mxu0 0.0
      %1570 = vmatprep.subr.mxu0 0.0
      %1571 = vmatpush1.msra.mxu0 0.0
      %1572 = vmatprep.subr.mxu0 0.0
      %1573 = vmatpush1.msra.mxu0 0.0
      %1574 = vmatprep.subr.mxu0 0.0
      %1575 = vmatpush1.msra.mxu0 0.0
      %1576 = vmatprep.subr.mxu0 0.0
      %1577 = vmatpush1.msra.mxu0 0.0
      %1578 = vmatprep.subr.mxu0 0.0
      %1579 = vmatpush1.msra.mxu0 0.0
      %1580 = vmatprep.subr.mxu0 0.0
      %1581 = vmatpush1.msra.mxu0 0.0
      %1582 = vmatprep.subr.mxu0 0.0
      %1583 = vmatpush1.msra.mxu0 0.0
      %1584 = vmatprep.mubr.f32.mxu0 0.0
      %1585 = vmatmul.mubr.f32.gmra.mrb[0].mxu0 %v1518
      %v1586 = vpop.f32.mrb[0].mxu0
      %v1587 = vadd.f32 0.0, %v1586
      %v1588 = vpop.f32.mrb[0].mxu0
      %1589 = vdwg.mxu0
      %v1590 = vmul.f32 %v1515, 0.0009765625
      %v1591 = vmul.f32 %v1587, 0.0009765625
      %v1592 = vsub.f32 %v1017, %v1590
      %v1593 = vsub.f32 %v1018, %v1591
      %1595 = vset.pattern.permute.xlu0 0
      %1596 = vperm.xlu0 %1595, %v1055
      %v1597 = vpop.permute.xlu0 %1596
      %1600 = vset.pattern.permute.xlu0 0
      %1601 = vperm.xlu0 %1600, %v1056
      %v1602 = vpop.permute.xlu0 %1601
      %v1604 = vmul.f32 %v1592, %v1597
      %v1605 = vmul.f32 %v1593, %v1602
      %v1606 = vmul.f32 %v1111, %v1597
      %v1607 = vmul.f32 %v1111, %v1602
      %v1609 = vsel %vm426, %v1604, 0
      %1611 = vmatprep.subr.mxu0 0.0
      %1612 = vmatpush1.msra.mxu0 %v1606
      %1613 = vmatprep.subr.mxu0 0.0
      %1614 = vmatpush1.msra.mxu0 0.0
      %1615 = vmatprep.subr.mxu0 0.0
      %1616 = vmatpush1.msra.mxu0 0.0
      %1617 = vmatprep.subr.mxu0 0.0
      %1618 = vmatpush1.msra.mxu0 0.0
      %1619 = vmatprep.subr.mxu0 0.0
      %1620 = vmatpush1.msra.mxu0 0.0
      %1621 = vmatprep.subr.mxu0 0.0
      %1622 = vmatpush1.msra.mxu0 0.0
      %1623 = vmatprep.subr.mxu0 0.0
      %1624 = vmatpush1.msra.mxu0 0.0
      %1625 = vmatprep.subr.mxu0 0.0
      %1626 = vmatpush1.msra.mxu0 0.0
      %1627 = vmatprep.subr.mxu0 0.0
      %1628 = vmatpush1.msra.mxu0 0.0
      %1629 = vmatprep.subr.mxu0 0.0
      %1630 = vmatpush1.msra.mxu0 0.0
      %1631 = vmatprep.subr.mxu0 0.0
      %1632 = vmatpush1.msra.mxu0 0.0
      %1633 = vmatprep.subr.mxu0 0.0
      %1634 = vmatpush1.msra.mxu0 0.0
      %1635 = vmatprep.subr.mxu0 0.0
      %1636 = vmatpush1.msra.mxu0 0.0
      %1637 = vmatprep.subr.mxu0 0.0
      %1638 = vmatpush1.msra.mxu0 0.0
      %1639 = vmatprep.subr.mxu0 0.0
      %1640 = vmatpush1.msra.mxu0 0.0
      %1641 = vmatprep.subr.mxu0 0.0
      %1642 = vmatpush1.msra.mxu0 0.0
      %1643 = vmatprep.subr.mxu0 0.0
      %1644 = vmatpush1.msra.mxu0 0.0
      %1645 = vmatprep.subr.mxu0 0.0
      %1646 = vmatpush1.msra.mxu0 0.0
      %1647 = vmatprep.subr.mxu0 0.0
      %1648 = vmatpush1.msra.mxu0 0.0
      %1649 = vmatprep.subr.mxu0 0.0
      %1650 = vmatpush1.msra.mxu0 0.0
      %1651 = vmatprep.subr.mxu0 0.0
      %1652 = vmatpush1.msra.mxu0 0.0
      %1653 = vmatprep.subr.mxu0 0.0
      %1654 = vmatpush1.msra.mxu0 0.0
      %1655 = vmatprep.subr.mxu0 0.0
      %1656 = vmatpush1.msra.mxu0 0.0
      %1657 = vmatprep.subr.mxu0 0.0
      %1658 = vmatpush1.msra.mxu0 0.0
      %1659 = vmatprep.subr.mxu0 0.0
      %1660 = vmatpush1.msra.mxu0 0.0
      %1661 = vmatprep.subr.mxu0 0.0
      %1662 = vmatpush1.msra.mxu0 0.0
      %1663 = vmatprep.subr.mxu0 0.0
      %1664 = vmatpush1.msra.mxu0 0.0
      %1665 = vmatprep.subr.mxu0 0.0
      %1666 = vmatpush1.msra.mxu0 0.0
      %1667 = vmatprep.subr.mxu0 0.0
      %1668 = vmatpush1.msra.mxu0 0.0
      %1669 = vmatprep.subr.mxu0 0.0
      %1670 = vmatpush1.msra.mxu0 0.0
      %1671 = vmatprep.subr.mxu0 0.0
      %1672 = vmatpush1.msra.mxu0 0.0
      %1673 = vmatprep.subr.mxu0 0.0
      %1674 = vmatpush1.msra.mxu0 0.0
      %1675 = vmatprep.mubr.f32.mxu0 0.0
      %1676 = vmatmul.mubr.f32.gmra.mrb[0].mxu0 %v1609
      %v1677 = vpop.f32.mrb[0].mxu0
      %v1678 = vadd.f32 0.0, %v1677
      %v1679 = vpop.f32.mrb[0].mxu0
      %1680 = vdwg.mxu0
      %v1682 = vsel %vm426, %v1605, 0
      %1684 = vmatprep.subr.mxu0 0.0
      %1685 = vmatpush1.msra.mxu0 %v1607
      %1686 = vmatprep.subr.mxu0 0.0
      %1687 = vmatpush1.msra.mxu0 0.0
      %1688 = vmatprep.subr.mxu0 0.0
      %1689 = vmatpush1.msra.mxu0 0.0
      %1690 = vmatprep.subr.mxu0 0.0
      %1691 = vmatpush1.msra.mxu0 0.0
      %1692 = vmatprep.subr.mxu0 0.0
      %1693 = vmatpush1.msra.mxu0 0.0
      %1694 = vmatprep.subr.mxu0 0.0
      %1695 = vmatpush1.msra.mxu0 0.0
      %1696 = vmatprep.subr.mxu0 0.0
      %1697 = vmatpush1.msra.mxu0 0.0
      %1698 = vmatprep.subr.mxu0 0.0
      %1699 = vmatpush1.msra.mxu0 0.0
      %1700 = vmatprep.subr.mxu0 0.0
      %1701 = vmatpush1.msra.mxu0 0.0
      %1702 = vmatprep.subr.mxu0 0.0
      %1703 = vmatpush1.msra.mxu0 0.0
      %1704 = vmatprep.subr.mxu0 0.0
      %1705 = vmatpush1.msra.mxu0 0.0
      %1706 = vmatprep.subr.mxu0 0.0
      %1707 = vmatpush1.msra.mxu0 0.0
      %1708 = vmatprep.subr.mxu0 0.0
      %1709 = vmatpush1.msra.mxu0 0.0
      %1710 = vmatprep.subr.mxu0 0.0
      %1711 = vmatpush1.msra.mxu0 0.0
      %1712 = vmatprep.subr.mxu0 0.0
      %1713 = vmatpush1.msra.mxu0 0.0
      %1714 = vmatprep.subr.mxu0 0.0
      %1715 = vmatpush1.msra.mxu0 0.0
      %1716 = vmatprep.subr.mxu0 0.0
      %1717 = vmatpush1.msra.mxu0 0.0
      %1718 = vmatprep.subr.mxu0 0.0
      %1719 = vmatpush1.msra.mxu0 0.0
      %1720 = vmatprep.subr.mxu0 0.0
      %1721 = vmatpush1.msra.mxu0 0.0
      %1722 = vmatprep.subr.mxu0 0.0
      %1723 = vmatpush1.msra.mxu0 0.0
      %1724 = vmatprep.subr.mxu0 0.0
      %1725 = vmatpush1.msra.mxu0 0.0
      %1726 = vmatprep.subr.mxu0 0.0
      %1727 = vmatpush1.msra.mxu0 0.0
      %1728 = vmatprep.subr.mxu0 0.0
      %1729 = vmatpush1.msra.mxu0 0.0
      %1730 = vmatprep.subr.mxu0 0.0
      %1731 = vmatpush1.msra.mxu0 0.0
      %1732 = vmatprep.subr.mxu0 0.0
      %1733 = vmatpush1.msra.mxu0 0.0
      %1734 = vmatprep.subr.mxu0 0.0
      %1735 = vmatpush1.msra.mxu0 0.0
      %1736 = vmatprep.subr.mxu0 0.0
      %1737 = vmatpush1.msra.mxu0 0.0
      %1738 = vmatprep.subr.mxu0 0.0
      %1739 = vmatpush1.msra.mxu0 0.0
      %1740 = vmatprep.subr.mxu0 0.0
      %1741 = vmatpush1.msra.mxu0 0.0
      %1742 = vmatprep.subr.mxu0 0.0
      %1743 = vmatpush1.msra.mxu0 0.0
      %1744 = vmatprep.subr.mxu0 0.0
      %1745 = vmatpush1.msra.mxu0 0.0
      %1746 = vmatprep.subr.mxu0 0.0
      %1747 = vmatpush1.msra.mxu0 0.0
      %1748 = vmatprep.mubr.f32.mxu0 0.0
      %1749 = vmatmul.mubr.f32.gmra.mrb[0].mxu0 %v1682
      %v1750 = vpop.f32.mrb[0].mxu0
      %v1751 = vadd.f32 0.0, %v1750
      %v1752 = vpop.f32.mrb[0].mxu0
      %1753 = vdwg.mxu0
      %v1754 = vmul.f32 %v1678, 0.00012207031
      %v1755 = vmul.f32 %v1751, 0.00012207031
      %v1756 = vsub.f32 %v1432, %v1754
      %v1757 = vsub.f32 %v1433, %v1755
      %v1758 = vmul.f32 %v1756, %v1756
      %v1759 = vmul.f32 %v1757, %v1757
      %v1760 = vsel %vm426, %v1758, 0.0
      %v1761 = vsel %vm426, %v1759, 0.0
      %v1762 = vadd.f32 %v1760, %v1761
      %1763 = vadd.xlane.f32.xlu0 %v1762
      %v1764 = vpop.xlane.xlu0 %1763
      %v1765 = vrot.slane %v1764, 4
      %v1766 = vadd.f32 %v1764, %v1765
      %v1767 = vrot.slane %v1766, 2
      %v1768 = vadd.f32 %v1766, %v1767
      %v1769 = vrot.slane %v1768, 1
      %v1770 = vadd.f32 %v1768, %v1769
      %s1771 = vtos %v1770
      %s1772 = smul.f32 %s1104, 0.0012207031
      %s1773 = scalar_lea.smem [#allocation9], 0
      %1774 = sst [smem:[%s1773]] %s1772
      %s1775 = smul.f32 %s1771, 15625.0
      %s1776 = scalar_lea.smem [#allocation9], 1
      %1777 = sst [smem:[%s1776]] %s1775
    $region13: #{a_call__.9} parent=1 // pred_fallthru
      _
    // Predicated region
    $region14: #{a_call__.9} parent=1 // pred_check
      _
    $region15: #{a_call__.9} parent=1 // pred_check_branch
      %1779 = sbr.rel (0) target = $region17
    $region16: #{a_call__.9} parent=1 // pred_region
      %s1781 = ssub.s32 16, 16
      %1782 = vsyncadd [#allocation10], %s1781
      %s1784 = sshll.u32 %s1, 4
      %s1785 = int_to_ptr.vmem [resolvable:$true] %s1784
      %1787 = dma.smem_to_vmem [#allocation9], 16, %s1785, [#allocation10]
    $region17: #{a_call__.9} parent=1 // pred_fallthru
      _
    // Predicated region
    $region18: #{a_call__.9} parent=1 // pred_check
      _
    $region19: #{a_call__.9} parent=1 // pred_check_branch
      %1789 = sbr.rel (0) target = $region21
    $region20: #{a_call__.9} parent=1 // pred_region
      %1790 = dma.done [#allocation10], 16
    $region21: #{a_call__.9} parent=1 // pred_fallthru
      _
    %1791 = sfence
    %1792 = vsyncpa [#allocation10], 1

// kernel: a_call__.7
$region0: #{a_call__.7}
  #allocation0 [shape = 'u32[]', space=smem, size = 0x4, offset = 0x4, fixed_abs, tag = 'smem constant byte address 0x4 - core index']
  #allocation1 [shape = 'u32[144,128]{1,0:T(1,128)}', space=vmem, size = 0x12000, scoped, tag = 'internal scratch']
  %s0 = inlined_call_operand.vmem [shape: bf16[4,8,290], index: 0, kind: input, shape index: {}]
  %s1 = inlined_call_operand.vmem [shape: bf16[9,16,8], index: 1, kind: input, shape index: {}]
  %s2 = inlined_call_operand.vmem [shape: f32[16,1], index: 2, kind: input, shape index: {}]
  %s3 = inlined_call_operand.vmem [shape: bf16[4,16,256], index: 3, kind: output, shape index: {}]
  %s4 = sld [smem:[#allocation0]]
  $region45: #{a_call__.7} parent=0
    _
  %s6 = ssub.s32 1, %s4
  %s7 = scalar_select 0, %s6, %s4
  loop: start=0, step=1, limit=6
  $region2: #{a_call__.7} parent=0 // loop_pre_header
    _
  $region3: #{a_call__.7} parent=0 // loop_header
    %s9 = sphi 0, %s13
    %p10 = scmp.ge.s32.totalorder %s9, 6
    %s19 = sphi 0, %s21
    %s22 = sphi 0, %s19
    %s23 = sphi 0, %s22
    %s39 = sphi 0, %s23
    %s43 = sphi 0, %s43
    %s45 = sphi 0, %s43
    %s46 = sphi 0, %s45
    %s60 = sphi 0, %s46
    %s64 = sphi 0, %s64
    %s66 = sphi 0, %s64
    %s67 = sphi 0, %s66
    %s81 = sphi 0, %s67
    %s87 = sphi 0, %s89
    %s90 = sphi 0, %s87
    %s91 = sphi 0, %s90
    %s107 = sphi 0, %s91
  $region4: #{a_call__.7} parent=0 // loop_header_branch
    %12 = sbr.rel (%p10) target = $region8
  $region5: #{a_call__.7} parent=0 // loop_body
    %s14 = ssub.s32 %s9, 1
    %s15 = ssub.s32 %s9, 2
    %s16 = sadd.s32 %s9, 1
    %s17 = ssub.s32 %s9, %s16
    %p18 = scmp.eq.s32.totalorder %s17, 0
    %s20 = sadd.s32 %s19, 1
    %s21 = scalar_select %p18, %s19, %s20
    %p24 = pneg %p18
    %p25 = scmp.eq.s32.totalorder %s9, 3
    %p26 = por %p24, %p25
    %p27 = scmp.ne.s32.totalorder %s19, %s22
    %p28 = scmp.eq.s32.totalorder %s9, 0
    %p29 = por %p27, %p28
    %p30 = scmp.ne.s32.totalorder %s19, %s22
    %p31 = scmp.eq.s32.totalorder %s14, 3
    %p32 = por %p30, %p31
    %p33 = scmp.ne.s32.totalorder %s22, %s23
    %p34 = scmp.eq.s32.totalorder %s14, 0
    %p35 = por %p33, %p34
    %p36 = scmp.ne.s32.totalorder %s22, %s23
    %p37 = scmp.eq.s32.totalorder %s15, 3
    %p38 = por %p36, %p37
    %p40 = scmp.ne.s32.totalorder %s23, %s39
    %p41 = scmp.eq.s32.totalorder %s15, 0
    %p42 = por %p40, %p41
    %s44 = sadd.s32 %s43, 1
    %p47 = scmp.eq.s32.totalorder %s9, 3
    %p48 = scmp.ne.s32.totalorder %s43, %s45
    %p49 = scmp.eq.s32.totalorder %s9, 0
    %p50 = por %p48, %p49
    %p51 = scmp.ne.s32.totalorder %s43, %s45
    %p52 = scmp.eq.s32.totalorder %s14, 3
    %p53 = por %p51, %p52
    %p54 = scmp.ne.s32.totalorder %s45, %s46
    %p55 = scmp.eq.s32.totalorder %s14, 0
    %p56 = por %p54, %p55
    %p57 = scmp.ne.s32.totalorder %s45, %s46
    %p58 = scmp.eq.s32.totalorder %s15, 3
    %p59 = por %p57, %p58
    %p61 = scmp.ne.s32.totalorder %s46, %s60
    %p62 = scmp.eq.s32.totalorder %s15, 0
    %p63 = por %p61, %p62
    %s65 = sadd.s32 %s64, 1
    %p68 = scmp.eq.s32.totalorder %s9, 3
    %p69 = scmp.ne.s32.totalorder %s64, %s66
    %p70 = scmp.eq.s32.totalorder %s9, 0
    %p71 = por %p69, %p70
    %p72 = scmp.ne.s32.totalorder %s64, %s66
    %p73 = scmp.eq.s32.totalorder %s14, 3
    %p74 = por %p72, %p73
    %p75 = scmp.ne.s32.totalorder %s66, %s67
    %p76 = scmp.eq.s32.totalorder %s14, 0
    %p77 = por %p75, %p76
    %p78 = scmp.ne.s32.totalorder %s66, %s67
    %p79 = scmp.eq.s32.totalorder %s15, 3
    %p80 = por %p78, %p79
    %p82 = scmp.ne.s32.totalorder %s67, %s81
    %p83 = scmp.eq.s32.totalorder %s15, 0
    %p84 = por %p82, %p83
    %s85 = ssub.s32 %s9, %s16
    %p86 = scmp.eq.s32.totalorder %s85, 0
    %s88 = sadd.s32 %s87, 1
    %s89 = scalar_select %p86, %s87, %s88
    %p92 = pneg %p86
    %p93 = scmp.eq.s32.totalorder %s9, 3
    %p94 = por %p92, %p93
    %p95 = scmp.ne.s32.totalorder %s87, %s90
    %p96 = scmp.eq.s32.totalorder %s9, 0
    %p97 = por %p95, %p96
    %p98 = scmp.ne.s32.totalorder %s87, %s90
    %p99 = scmp.eq.s32.totalorder %s14, 3
    %p100 = por %p98, %p99
    %p101 = scmp.ne.s32.totalorder %s90, %s91
    %p102 = scmp.eq.s32.totalorder %s14, 0
    %p103 = por %p101, %p102
    %p104 = scmp.ne.s32.totalorder %s90, %s91
    %p105 = scmp.eq.s32.totalorder %s15, 3
    %p106 = por %p104, %p105
    %p108 = scmp.ne.s32.totalorder %s91, %s107
    %p109 = scmp.eq.s32.totalorder %s15, 0
    %p110 = por %p108, %p109
    %p111 = scmp.le.s32.totalorder 1, %s9
    %p112 = scmp.lt.s32.totalorder %s9, 5
    %p113 = pnand %p111, %p112
    %p114 = pneg %p113
    // Predicated region
    $region9: #{a_call__.7} parent=5 // pred_check
      _
    $region10: #{a_call__.7} parent=5 // pred_check_branch
      %116 = sbr.rel (%p113) target = $region12
    $region11: #{a_call__.7} parent=5 // pred_region
      %s117 = ssub.s32 %s9, 1
      // Predicated region
      $region13: #{a_call__.7} parent=11 // pred_check
        %p118 = pneg %p56
      $region14: #{a_call__.7} parent=11 // pred_check_branch
        %120 = sbr.rel (%p118) target = $region16
      $region15: #{a_call__.7} parent=11 // pred_region
        _
      $region16: #{a_call__.7} parent=11 // pred_fallthru
        _
      // Predicated region
      $region17: #{a_call__.7} parent=11 // pred_check
        %p121 = pneg %p77
      $region18: #{a_call__.7} parent=11 // pred_check_branch
        %123 = sbr.rel (%p121) target = $region20
      $region19: #{a_call__.7} parent=11 // pred_region
        _
      $region20: #{a_call__.7} parent=11 // pred_fallthru
        _
    $region12: #{a_call__.7} parent=5 // pred_fallthru
      _
    %p124 = scmp.lt.s32.totalorder %s9, 4
    // Predicated region
    $region21: #{a_call__.7} parent=5 // pred_check
      %p125 = pneg %p124
    $region22: #{a_call__.7} parent=5 // pred_check_branch
      %127 = sbr.rel (%p125) target = $region24
    $region23: #{a_call__.7} parent=5 // pred_region
      // Predicated region
      $region25: #{a_call__.7} parent=23 // pred_check
        %p128 = pneg %p29
      $region26: #{a_call__.7} parent=23 // pred_check_branch
        %130 = sbr.rel (%p128) target = $region28
      $region27: #{a_call__.7} parent=23 // pred_region
        %p131 = scmp.lt.s32.totalorder %s9, 3
        %s132 = scalar_select %p131, %s9, 3
        %s133 = smul.addr %s132, 3
        %s134 = smul.addr %s133, 4
        %s135 = scalar_lea.vmem %s0, %s134
      $region28: #{a_call__.7} parent=23 // pred_fallthru
        _
    $region24: #{a_call__.7} parent=5 // pred_fallthru
      _
    %p136 = scmp.le.s32.totalorder 1, %s9
    %p137 = scmp.lt.s32.totalorder %s9, 5
    %p138 = pnand %p136, %p137
    %p139 = pneg %p138
    // Predicated region
    $region29: #{a_call__.7} parent=5 // pred_check
      _
    $region30: #{a_call__.7} parent=5 // pred_check_branch
      %141 = sbr.rel (%p138) target = $region32
    $region31: #{a_call__.7} parent=5 // pred_region
      %s142 = ssub.s32 %s9, 1
      %p143 = scmp.lt.s32.totalorder %s14, 3
      %s144 = scalar_select %p143, %s14, 3
      %s145 = smul.addr %s144, 3
      %s146 = smul.addr %s145, 4
      %s147 = scalar_lea.vmem %s0, %s146
      %p148 = pneg %p35
      %p149 = pneg %p32
      %p150 = pneg %p56
      %p151 = pneg %p53
      %p152 = pneg %p77
      %p153 = pneg %p74
      %p154 = pneg %p103
      %p155 = pneg %p100
      %p156 = scmp.lt.s32.totalorder %s14, 3
      %s157 = scalar_select %p156, %s14, 3
      %s158 = smul.addr %s157, 4
      %s159 = smul.addr %s158, 4
      %s160 = scalar_lea.vmem %s3, %s159
      %p161 = scmp.lt.s32.totalorder %s14, 3
      %s162 = scalar_select %p161, %s14, 3
      %s163 = smul.addr %s162, 3
      %s164 = smul.addr %s163, 4
      %s165 = scalar_lea.vmem %s0, %s164
      %p166 = scmp.lt.s32.totalorder %s14, 3
      %s167 = scalar_select %p166, %s14, 3
      %s168 = smul.addr %s167, 4
      %s169 = smul.addr %s168, 4
      %s170 = scalar_lea.vmem %s3, %s169
      %v172 = vlaneseq
      %v173 = vand.u32 %v172, 127
      %v174 = vadd.s32 %v173, 128
      %vm175 = vcmp.lt.s32.totalorder %v173, 0
      %v176 = vsub.s32 0, %v173
      %v177 = vsel %vm175, %v176, %v173
      %v178 = vshrl.u32 %v177, 4
      %v179 = vand.u32 %v177, 15
      %v180 = vsub.s32 0, %v179
      %v181 = vsel %vm175, %v180, %v179
      %vm182 = vcmp.lt.s32.totalorder %v174, 0
      %v183 = vsub.s32 0, %v174
      %v184 = vsel %vm182, %v183, %v174
      %v185 = vshrl.u32 %v184, 4
      %v186 = vand.u32 %v184, 15
      %v187 = vsub.s32 0, %v186
      %v188 = vsel %vm182, %v187, %v186
      %vm189 = vcmp.ne.s32.totalorder %v181, 0
      %vm190 = vcmp.ne.s32.totalorder %v188, 0
      %vm191 = vcmp.lt.s32.totalorder %v181, 0
      %vm192 = vcmp.lt.s32.totalorder %v188, 0
      %vm193 = vmand %vm191, %vm189
      %vm194 = vmand %vm192, %vm190
      %v195 = vadd.s32 %v181, 16
      %v196 = vadd.s32 %v188, 16
      %v197 = vsel %vm193, %v195, %v181
      %v198 = vsel %vm194, %v196, %v188
      %v199 = vld [vmem:[%s165] sm:$0xff]
      %v200 = vld [vmem:[%s1] sm:$0xf]
      %v201 = vld [vmem:[%s1 + $0x4] sm:$0xf]
      %v202 = vld [vmem:[%s165 + $0x8] sm:$0xf]
      %s203 = scalar_lea.vmem %s1, 24
      %v204 = vld [vmem:[%s203] sm:$0xf]
      %v205 = vld [vmem:[%s203 + $0x4] sm:$0xf]
      %v208 = vunpack.c.l.b16 %v204
      %v209 = vunpack.c.l.b16 %v205
      %v210 = vpack.c.b16 %v209, %v208
      %v213 = vunpack.c.l.b16 %v199
      %v214 = vunpack.c.h.b16 %v199
      %v215 = vunpack.c.l.b16 %v202
      %v216 = vpack.c.b16 %v213, %v213
      %v217 = vpack.c.b16 %v214, %v214
      %v218 = vpack.c.b16 %v215, %v215
      %219 = vrot.lane.b32.xlu0 %v216, 112
      %v220 = vpop.permute.xlu0 %219
      %221 = vrot.lane.b32.xlu0 %v217, 112
      %v222 = vpop.permute.xlu0 %221
      %223 = vrot.lane.b32.xlu0 %v218, 112
      %v224 = vpop.permute.xlu0 %223
      %vm225 = vcmask 916480
      %v226 = vsel %vm225, %v220, %v222
      %v227 = vsel %vm225, %v222, %v224
      %vm228 = vcmask 64512
      %v230 = vsel %vm228, %v210, 0
      %vm232 = vcmask 1043456
      %v234 = vsel %vm232, %v226, 0
      %v237 = vsel %vm232, %v227, 0
      %239 = vmatprep.subr.bf16.mxu0 %v237
      %240 = vmatpush1.bf16.msra.mxu0 %v234
      %241 = vmatprep.subr.bf16.mxu0 0
      %242 = vmatpush1.bf16.msra.mxu0 0
      %243 = vmatprep.subr.bf16.mxu0 0
      %244 = vmatpush1.bf16.msra.mxu0 0
      %245 = vmatprep.subr.bf16.mxu0 0
      %246 = vmatpush1.bf16.msra.mxu0 0
      %247 = vmatprep.subr.bf16.mxu0 0
      %248 = vmatpush1.bf16.msra.mxu0 0
      %249 = vmatprep.subr.bf16.mxu0 0
      %250 = vmatpush1.bf16.msra.mxu0 0
      %251 = vmatprep.subr.bf16.mxu0 0
      %252 = vmatpush1.bf16.msra.mxu0 0
      %253 = vmatprep.subr.bf16.mxu0 0
      %254 = vmatpush1.bf16.msra.mxu0 0
      %255 = vmatprep.subr.bf16.mxu0 0
      %256 = vmatpush1.bf16.msra.mxu0 0
      %257 = vmatprep.subr.bf16.mxu0 0
      %258 = vmatpush1.bf16.msra.mxu0 0
      %259 = vmatprep.subr.bf16.mxu0 0
      %260 = vmatpush1.bf16.msra.mxu0 0
      %261 = vmatprep.subr.bf16.mxu0 0
      %262 = vmatpush1.bf16.msra.mxu0 0
      %263 = vmatprep.subr.bf16.mxu0 0
      %264 = vmatpush1.bf16.msra.mxu0 0
      %265 = vmatprep.subr.bf16.mxu0 0
      %266 = vmatpush1.bf16.msra.mxu0 0
      %267 = vmatprep.subr.bf16.mxu0 0
      %268 = vmatpush1.bf16.msra.mxu0 0
      %269 = vmatprep.subr.bf16.mxu0 0
      %270 = vmatpush1.bf16.msra.mxu0 0
      %271 = vmatprep.mubr.bf16.mxu0 0
      %272 = vmatmul.mubr.bf16.gmra.mrb[0].mxu0 %v230
      %v273 = vpop.f32.mrb[0].mxu0
      %v274 = vadd.f32 0.0, %v273
      %v275 = vpop.f32.mrb[0].mxu0
      %v276 = vadd.f32 0.0, %v275
      %v277 = vpop.f32.mrb[0].mxu0
      %v278 = vadd.f32 0.0, %v277
      %v279 = vpop.f32.mrb[0].mxu0
      %v280 = vadd.f32 0.0, %v279
      %281 = vdwg.mxu0
      %v284 = vunpack.c.l.b16 %v200
      %v285 = vunpack.c.l.b16 %v201
      %v286 = vpack.c.b16 %v285, %v284
      %v288 = vsel %vm228, %v286, 0
      %v291 = vsel %vm232, %v216, 0
      %v294 = vsel %vm232, %v217, 0
      %296 = vmatprep.subr.bf16.mxu0 %v294
      %297 = vmatpush1.bf16.msra.mxu0 %v291
      %298 = vmatprep.subr.bf16.mxu0 0
      %299 = vmatpush1.bf16.msra.mxu0 0
      %300 = vmatprep.subr.bf16.mxu0 0
      %301 = vmatpush1.bf16.msra.mxu0 0
      %302 = vmatprep.subr.bf16.mxu0 0
      %303 = vmatpush1.bf16.msra.mxu0 0
      %304 = vmatprep.subr.bf16.mxu0 0
      %305 = vmatpush1.bf16.msra.mxu0 0
      %306 = vmatprep.subr.bf16.mxu0 0
      %307 = vmatpush1.bf16.msra.mxu0 0
      %308 = vmatprep.subr.bf16.mxu0 0
      %309 = vmatpush1.bf16.msra.mxu0 0
      %310 = vmatprep.subr.bf16.mxu0 0
      %311 = vmatpush1.bf16.msra.mxu0 0
      %312 = vmatprep.subr.bf16.mxu0 0
      %313 = vmatpush1.bf16.msra.mxu0 0
      %314 = vmatprep.subr.bf16.mxu0 0
      %315 = vmatpush1.bf16.msra.mxu0 0
      %316 = vmatprep.subr.bf16.mxu0 0
      %317 = vmatpush1.bf16.msra.mxu0 0
      %318 = vmatprep.subr.bf16.mxu0 0
      %319 = vmatpush1.bf16.msra.mxu0 0
      %320 = vmatprep.subr.bf16.mxu0 0
      %321 = vmatpush1.bf16.msra.mxu0 0
      %322 = vmatprep.subr.bf16.mxu0 0
      %323 = vmatpush1.bf16.msra.mxu0 0
      %324 = vmatprep.subr.bf16.mxu0 0
      %325 = vmatpush1.bf16.msra.mxu0 0
      %326 = vmatprep.subr.bf16.mxu0 0
      %327 = vmatpush1.bf16.msra.mxu0 0
      %328 = vmatprep.mubr.bf16.mxu0 0
      %329 = vmatmul.mubr.bf16.gmra.mrb[0].mxu0 %v288
      %v330 = vpop.f32.mrb[0].mxu0
      %v331 = vadd.f32 %v274, %v330
      %v332 = vpop.f32.mrb[0].mxu0
      %v333 = vadd.f32 %v276, %v332
      %v334 = vpop.f32.mrb[0].mxu0
      %v335 = vadd.f32 %v278, %v334
      %v336 = vpop.f32.mrb[0].mxu0
      %v337 = vadd.f32 %v280, %v336
      %338 = vdwg.mxu0
      %s339 = scalar_lea.vmem %s1, 48
      %v340 = vld [vmem:[%s339] sm:$0xf]
      %v341 = vld [vmem:[%s339 + $0x4] sm:$0xf]
      %v344 = vunpack.c.l.b16 %v340
      %v345 = vunpack.c.l.b16 %v341
      %v346 = vpack.c.b16 %v345, %v344
      %347 = vrot.lane.b32.xlu0 %v216, 96
      %v348 = vpop.permute.xlu0 %347
      %349 = vrot.lane.b32.xlu0 %v217, 96
      %v350 = vpop.permute.xlu0 %349
      %351 = vrot.lane.b32.xlu0 %v218, 96
      %v352 = vpop.permute.xlu0 %351
      %vm353 = vcmask 785408
      %v354 = vsel %vm353, %v348, %v350
      %v355 = vsel %vm353, %v350, %v352
      %v357 = vsel %vm228, %v346, 0
      %v360 = vsel %vm232, %v354, 0
      %v363 = vsel %vm232, %v355, 0
      %365 = vmatprep.subr.bf16.mxu0 %v363
      %366 = vmatpush1.bf16.msra.mxu0 %v360
      %367 = vmatprep.subr.bf16.mxu0 0
      %368 = vmatpush1.bf16.msra.mxu0 0
      %369 = vmatprep.subr.bf16.mxu0 0
      %370 = vmatpush1.bf16.msra.mxu0 0
      %371 = vmatprep.subr.bf16.mxu0 0
      %372 = vmatpush1.bf16.msra.mxu0 0
      %373 = vmatprep.subr.bf16.mxu0 0
      %374 = vmatpush1.bf16.msra.mxu0 0
      %375 = vmatprep.subr.bf16.mxu0 0
      %376 = vmatpush1.bf16.msra.mxu0 0
      %377 = vmatprep.subr.bf16.mxu0 0
      %378 = vmatpush1.bf16.msra.mxu0 0
      %379 = vmatprep.subr.bf16.mxu0 0
      %380 = vmatpush1.bf16.msra.mxu0 0
      %381 = vmatprep.subr.bf16.mxu0 0
      %382 = vmatpush1.bf16.msra.mxu0 0
      %383 = vmatprep.subr.bf16.mxu0 0
      %384 = vmatpush1.bf16.msra.mxu0 0
      %385 = vmatprep.subr.bf16.mxu0 0
      %386 = vmatpush1.bf16.msra.mxu0 0
      %387 = vmatprep.subr.bf16.mxu0 0
      %388 = vmatpush1.bf16.msra.mxu0 0
      %389 = vmatprep.subr.bf16.mxu0 0
      %390 = vmatpush1.bf16.msra.mxu0 0
      %391 = vmatprep.subr.bf16.mxu0 0
      %392 = vmatpush1.bf16.msra.mxu0 0
      %393 = vmatprep.subr.bf16.mxu0 0
      %394 = vmatpush1.bf16.msra.mxu0 0
      %395 = vmatprep.subr.bf16.mxu0 0
      %396 = vmatpush1.bf16.msra.mxu0 0
      %397 = vmatprep.mubr.bf16.mxu0 0
      %398 = vmatmul.mubr.bf16.gmra.mrb[0].mxu0 %v357
      %v399 = vpop.f32.mrb[0].mxu0
      %v400 = vadd.f32 0.0, %v399
      %v401 = vpop.f32.mrb[0].mxu0
      %v402 = vadd.f32 0.0, %v401
      %v403 = vpop.f32.mrb[0].mxu0
      %v404 = vadd.f32 0.0, %v403
      %v405 = vpop.f32.mrb[0].mxu0
      %v406 = vadd.f32 0.0, %v405
      %407 = vdwg.mxu0
      %v408 = vadd.f32 %v331, %v400
      %v409 = vadd.f32 %v333, %v402
      %v410 = vadd.f32 %v335, %v404
      %v411 = vadd.f32 %v337, %v406
      %vm412 = vcmp.ge.s32.totalorder %v197, 1
      %vm413 = vcmp.ge.s32.totalorder %v198, 1
      %v414 = vsel %vm412, 1, 0
      %v415 = vsel %vm413, 1, 0
      %vm416 = vcmp.eq.s32.totalorder %v414, 1
      %vm417 = vcmp.eq.s32.totalorder %v415, 1
      %v418 = vsel %vm416, %v408, 0.0
      %v419 = vsel %vm417, %v409, 0.0
      %v420 = vsel %vm416, %v410, 0.0
      %v421 = vsel %vm417, %v411, 0.0
      %v422 = vadd.f32 %v418, 0.0
      %v423 = vadd.f32 %v419, 0.0
      %v424 = vadd.f32 %v420, 0.0
      %v425 = vadd.f32 %v421, 0.0
      %s426 = scalar_lea.vmem %s1, 8
      %v427 = vld [vmem:[%s426] sm:$0xf]
      %v428 = vld [vmem:[%s426 + $0x4] sm:$0xf]
      %s429 = scalar_lea.vmem %s1, 32
      %v430 = vld [vmem:[%s429] sm:$0xf]
      %v431 = vld [vmem:[%s429 + $0x4] sm:$0xf]
      %v434 = vunpack.c.l.b16 %v430
      %v435 = vunpack.c.l.b16 %v431
      %v436 = vpack.c.b16 %v435, %v434
      %437 = vrot.lane.b32.xlu0 %v216, 111
      %v438 = vpop.permute.xlu0 %437
      %439 = vrot.lane.b32.xlu0 %v217, 111
      %v440 = vpop.permute.xlu0 %439
      %441 = vrot.lane.b32.xlu0 %v218, 111
      %v442 = vpop.permute.xlu0 %441
      %vm443 = vcmask 908288
      %v444 = vsel %vm443, %v438, %v440
      %v445 = vsel %vm443, %v440, %v442
      %v447 = vsel %vm228, %v436, 0
      %v450 = vsel %vm232, %v444, 0
      %v453 = vsel %vm232, %v445, 0
      %455 = vmatprep.subr.bf16.mxu0 %v453
      %456 = vmatpush1.bf16.msra.mxu0 %v450
      %457 = vmatprep.subr.bf16.mxu0 0
      %458 = vmatpush1.bf16.msra.mxu0 0
      %459 = vmatprep.subr.bf16.mxu0 0
      %460 = vmatpush1.bf16.msra.mxu0 0
      %461 = vmatprep.subr.bf16.mxu0 0
      %462 = vmatpush1.bf16.msra.mxu0 0
      %463 = vmatprep.subr.bf16.mxu0 0
      %464 = vmatpush1.bf16.msra.mxu0 0
      %465 = vmatprep.subr.bf16.mxu0 0
      %466 = vmatpush1.bf16.msra.mxu0 0
      %467 = vmatprep.subr.bf16.mxu0 0
      %468 = vmatpush1.bf16.msra.mxu0 0
      %469 = vmatprep.subr.bf16.mxu0 0
      %470 = vmatpush1.bf16.msra.mxu0 0
      %471 = vmatprep.subr.bf16.mxu0 0
      %472 = vmatpush1.bf16.msra.mxu0 0
      %473 = vmatprep.subr.bf16.mxu0 0
      %474 = vmatpush1.bf16.msra.mxu0 0
      %475 = vmatprep.subr.bf16.mxu0 0
      %476 = vmatpush1.bf16.msra.mxu0 0
      %477 = vmatprep.subr.bf16.mxu0 0
      %478 = vmatpush1.bf16.msra.mxu0 0
      %479 = vmatprep.subr.bf16.mxu0 0
      %480 = vmatpush1.bf16.msra.mxu0 0
      %481 = vmatprep.subr.bf16.mxu0 0
      %482 = vmatpush1.bf16.msra.mxu0 0
      %483 = vmatprep.subr.bf16.mxu0 0
      %484 = vmatpush1.bf16.msra.mxu0 0
      %485 = vmatprep.subr.bf16.mxu0 0
      %486 = vmatpush1.bf16.msra.mxu0 0
      %487 = vmatprep.mubr.bf16.mxu0 0
      %488 = vmatmul.mubr.bf16.gmra.mrb[0].mxu0 %v447
      %v489 = vpop.f32.mrb[0].mxu0
      %v490 = vadd.f32 0.0, %v489
      %v491 = vpop.f32.mrb[0].mxu0
      %v492 = vadd.f32 0.0, %v491
      %v493 = vpop.f32.mrb[0].mxu0
      %v494 = vadd.f32 0.0, %v493
      %v495 = vpop.f32.mrb[0].mxu0
      %v496 = vadd.f32 0.0, %v495
      %497 = vdwg.mxu0
      %v500 = vunpack.c.l.b16 %v427
      %v501 = vunpack.c.l.b16 %v428
      %v502 = vpack.c.b16 %v501, %v500
      %503 = vrot.lane.b32.xlu0 %v216, 127
      %v504 = vpop.permute.xlu0 %503
      %505 = vrot.lane.b32.xlu0 %v217, 127
      %v506 = vpop.permute.xlu0 %505
      %507 = vrot.lane.b32.xlu0 %v218, 127
      %v508 = vpop.permute.xlu0 %507
      %vm509 = vcmask 1039360
      %v510 = vsel %vm509, %v504, %v506
      %v511 = vsel %vm509, %v506, %v508
      %v513 = vsel %vm228, %v502, 0
      %v516 = vsel %vm232, %v510, 0
      %v519 = vsel %vm232, %v511, 0
      %521 = vmatprep.subr.bf16.mxu0 %v519
      %522 = vmatpush1.bf16.msra.mxu0 %v516
      %523 = vmatprep.subr.bf16.mxu0 0
      %524 = vmatpush1.bf16.msra.mxu0 0
      %525 = vmatprep.subr.bf16.mxu0 0
      %526 = vmatpush1.bf16.msra.mxu0 0
      %527 = vmatprep.subr.bf16.mxu0 0
      %528 = vmatpush1.bf16.msra.mxu0 0
      %529 = vmatprep.subr.bf16.mxu0 0
      %530 = vmatpush1.bf16.msra.mxu0 0
      %531 = vmatprep.subr.bf16.mxu0 0
      %532 = vmatpush1.bf16.msra.mxu0 0
      %533 = vmatprep.subr.bf16.mxu0 0
      %534 = vmatpush1.bf16.msra.mxu0 0
      %535 = vmatprep.subr.bf16.mxu0 0
      %536 = vmatpush1.bf16.msra.mxu0 0
      %537 = vmatprep.subr.bf16.mxu0 0
      %538 = vmatpush1.bf16.msra.mxu0 0
      %539 = vmatprep.subr.bf16.mxu0 0
      %540 = vmatpush1.bf16.msra.mxu0 0
      %541 = vmatprep.subr.bf16.mxu0 0
      %542 = vmatpush1.bf16.msra.mxu0 0
      %543 = vmatprep.subr.bf16.mxu0 0
      %544 = vmatpush1.bf16.msra.mxu0 0
      %545 = vmatprep.subr.bf16.mxu0 0
      %546 = vmatpush1.bf16.msra.mxu0 0
      %547 = vmatprep.subr.bf16.mxu0 0
      %548 = vmatpush1.bf16.msra.mxu0 0
      %549 = vmatprep.subr.bf16.mxu0 0
      %550 = vmatpush1.bf16.msra.mxu0 0
      %551 = vmatprep.subr.bf16.mxu0 0
      %552 = vmatpush1.bf16.msra.mxu0 0
      %553 = vmatprep.mubr.bf16.mxu0 0
      %554 = vmatmul.mubr.bf16.gmra.mrb[0].mxu0 %v513
      %v555 = vpop.f32.mrb[0].mxu0
      %v556 = vadd.f32 %v490, %v555
      %v557 = vpop.f32.mrb[0].mxu0
      %v558 = vadd.f32 %v492, %v557
      %v559 = vpop.f32.mrb[0].mxu0
      %v560 = vadd.f32 %v494, %v559
      %v561 = vpop.f32.mrb[0].mxu0
      %v562 = vadd.f32 %v496, %v561
      %563 = vdwg.mxu0
      %s564 = scalar_lea.vmem %s1, 56
      %v565 = vld [vmem:[%s564] sm:$0xf]
      %v566 = vld [vmem:[%s564 + $0x4] sm:$0xf]
      %v569 = vunpack.c.l.b16 %v565
      %v570 = vunpack.c.l.b16 %v566
      %v571 = vpack.c.b16 %v570, %v569
      %572 = vrot.lane.b32.xlu0 %v216, 95
      %v573 = vpop.permute.xlu0 %572
      %574 = vrot.lane.b32.xlu0 %v217, 95
      %v575 = vpop.permute.xlu0 %574
      %576 = vrot.lane.b32.xlu0 %v218, 95
      %v577 = vpop.permute.xlu0 %576
      %vm578 = vcmask 777216
      %v579 = vsel %vm578, %v573, %v575
      %v580 = vsel %vm578, %v575, %v577
      %v582 = vsel %vm228, %v571, 0
      %v585 = vsel %vm232, %v579, 0
      %v588 = vsel %vm232, %v580, 0
      %590 = vmatprep.subr.bf16.mxu0 %v588
      %591 = vmatpush1.bf16.msra.mxu0 %v585
      %592 = vmatprep.subr.bf16.mxu0 0
      %593 = vmatpush1.bf16.msra.mxu0 0
      %594 = vmatprep.subr.bf16.mxu0 0
      %595 = vmatpush1.bf16.msra.mxu0 0
      %596 = vmatprep.subr.bf16.mxu0 0
      %597 = vmatpush1.bf16.msra.mxu0 0
      %598 = vmatprep.subr.bf16.mxu0 0
      %599 = vmatpush1.bf16.msra.mxu0 0
      %600 = vmatprep.subr.bf16.mxu0 0
      %601 = vmatpush1.bf16.msra.mxu0 0
      %602 = vmatprep.subr.bf16.mxu0 0
      %603 = vmatpush1.bf16.msra.mxu0 0
      %604 = vmatprep.subr.bf16.mxu0 0
      %605 = vmatpush1.bf16.msra.mxu0 0
      %606 = vmatprep.subr.bf16.mxu0 0
      %607 = vmatpush1.bf16.msra.mxu0 0
      %608 = vmatprep.subr.bf16.mxu0 0
      %609 = vmatpush1.bf16.msra.mxu0 0
      %610 = vmatprep.subr.bf16.mxu0 0
      %611 = vmatpush1.bf16.msra.mxu0 0
      %612 = vmatprep.subr.bf16.mxu0 0
      %613 = vmatpush1.bf16.msra.mxu0 0
      %614 = vmatprep.subr.bf16.mxu0 0
      %615 = vmatpush1.bf16.msra.mxu0 0
      %616 = vmatprep.subr.bf16.mxu0 0
      %617 = vmatpush1.bf16.msra.mxu0 0
      %618 = vmatprep.subr.bf16.mxu0 0
      %619 = vmatpush1.bf16.msra.mxu0 0
      %620 = vmatprep.subr.bf16.mxu0 0
      %621 = vmatpush1.bf16.msra.mxu0 0
      %622 = vmatprep.mubr.bf16.mxu0 0
      %623 = vmatmul.mubr.bf16.gmra.mrb[0].mxu0 %v582
      %v624 = vpop.f32.mrb[0].mxu0
      %v625 = vadd.f32 0.0, %v624
      %v626 = vpop.f32.mrb[0].mxu0
      %v627 = vadd.f32 0.0, %v626
      %v628 = vpop.f32.mrb[0].mxu0
      %v629 = vadd.f32 0.0, %v628
      %v630 = vpop.f32.mrb[0].mxu0
      %v631 = vadd.f32 0.0, %v630
      %632 = vdwg.mxu0
      %v633 = vadd.f32 %v556, %v625
      %v634 = vadd.f32 %v558, %v627
      %v635 = vadd.f32 %v560, %v629
      %v636 = vadd.f32 %v562, %v631
      %v637 = vadd.f32 %v422, %v633
      %v638 = vadd.f32 %v423, %v634
      %v639 = vadd.f32 %v424, %v635
      %v640 = vadd.f32 %v425, %v636
      %s641 = scalar_lea.vmem %s1, 16
      %v642 = vld [vmem:[%s641] sm:$0xf]
      %v643 = vld [vmem:[%s641 + $0x4] sm:$0xf]
      %s644 = scalar_lea.vmem %s1, 40
      %v645 = vld [vmem:[%s644] sm:$0xf]
      %v646 = vld [vmem:[%s644 + $0x4] sm:$0xf]
      %v649 = vunpack.c.l.b16 %v645
      %v650 = vunpack.c.l.b16 %v646
      %v651 = vpack.c.b16 %v650, %v649
      %652 = vrot.lane.b32.xlu0 %v216, 110
      %v653 = vpop.permute.xlu0 %652
      %654 = vrot.lane.b32.xlu0 %v217, 110
      %v655 = vpop.permute.xlu0 %654
      %656 = vrot.lane.b32.xlu0 %v218, 110
      %v657 = vpop.permute.xlu0 %656
      %vm658 = vcmask 900096
      %v659 = vsel %vm658, %v653, %v655
      %v660 = vsel %vm658, %v655, %v657
      %v662 = vsel %vm228, %v651, 0
      %v665 = vsel %vm232, %v659, 0
      %v668 = vsel %vm232, %v660, 0
      %670 = vmatprep.subr.bf16.mxu0 %v668
      %671 = vmatpush1.bf16.msra.mxu0 %v665
      %672 = vmatprep.subr.bf16.mxu0 0
      %673 = vmatpush1.bf16.msra.mxu0 0
      %674 = vmatprep.subr.bf16.mxu0 0
      %675 = vmatpush1.bf16.msra.mxu0 0
      %676 = vmatprep.subr.bf16.mxu0 0
      %677 = vmatpush1.bf16.msra.mxu0 0
      %678 = vmatprep.subr.bf16.mxu0 0
      %679 = vmatpush1.bf16.msra.mxu0 0
      %680 = vmatprep.subr.bf16.mxu0 0
      %681 = vmatpush1.bf16.msra.mxu0 0
      %682 = vmatprep.subr.bf16.mxu0 0
      %683 = vmatpush1.bf16.msra.mxu0 0
      %684 = vmatprep.subr.bf16.mxu0 0
      %685 = vmatpush1.bf16.msra.mxu0 0
      %686 = vmatprep.subr.bf16.mxu0 0
      %687 = vmatpush1.bf16.msra.mxu0 0
      %688 = vmatprep.subr.bf16.mxu0 0
      %689 = vmatpush1.bf16.msra.mxu0 0
      %690 = vmatprep.subr.bf16.mxu0 0
      %691 = vmatpush1.bf16.msra.mxu0 0
      %692 = vmatprep.subr.bf16.mxu0 0
      %693 = vmatpush1.bf16.msra.mxu0 0
      %694 = vmatprep.subr.bf16.mxu0 0
      %695 = vmatpush1.bf16.msra.mxu0 0
      %696 = vmatprep.subr.bf16.mxu0 0
      %697 = vmatpush1.bf16.msra.mxu0 0
      %698 = vmatprep.subr.bf16.mxu0 0
      %699 = vmatpush1.bf16.msra.mxu0 0
      %700 = vmatprep.subr.bf16.mxu0 0
      %701 = vmatpush1.bf16.msra.mxu0 0
      %702 = vmatprep.mubr.bf16.mxu0 0
      %703 = vmatmul.mubr.bf16.gmra.mrb[0].mxu0 %v662
      %v704 = vpop.f32.mrb[0].mxu0
      %v705 = vadd.f32 0.0, %v704
      %v706 = vpop.f32.mrb[0].mxu0
      %v707 = vadd.f32 0.0, %v706
      %v708 = vpop.f32.mrb[0].mxu0
      %v709 = vadd.f32 0.0, %v708
      %v710 = vpop.f32.mrb[0].mxu0
      %v711 = vadd.f32 0.0, %v710
      %712 = vdwg.mxu0
      %v715 = vunpack.c.l.b16 %v642
      %v716 = vunpack.c.l.b16 %v643
      %v717 = vpack.c.b16 %v716, %v715
      %718 = vrot.lane.b32.xlu0 %v216, 126
      %v719 = vpop.permute.xlu0 %718
      %720 = vrot.lane.b32.xlu0 %v217, 126
      %v721 = vpop.permute.xlu0 %720
      %722 = vrot.lane.b32.xlu0 %v218, 126
      %v723 = vpop.permute.xlu0 %722
      %vm724 = vcmask 1031168
      %v725 = vsel %vm724, %v719, %v721
      %v726 = vsel %vm724, %v721, %v723
      %v728 = vsel %vm228, %v717, 0
      %v731 = vsel %vm232, %v725, 0
      %v734 = vsel %vm232, %v726, 0
      %736 = vmatprep.subr.bf16.mxu0 %v734
      %737 = vmatpush1.bf16.msra.mxu0 %v731
      %738 = vmatprep.subr.bf16.mxu0 0
      %739 = vmatpush1.bf16.msra.mxu0 0
      %740 = vmatprep.subr.bf16.mxu0 0
      %741 = vmatpush1.bf16.msra.mxu0 0
      %742 = vmatprep.subr.bf16.mxu0 0
      %743 = vmatpush1.bf16.msra.mxu0 0
      %744 = vmatprep.subr.bf16.mxu0 0
      %745 = vmatpush1.bf16.msra.mxu0 0
      %746 = vmatprep.subr.bf16.mxu0 0
      %747 = vmatpush1.bf16.msra.mxu0 0
      %748 = vmatprep.subr.bf16.mxu0 0
      %749 = vmatpush1.bf16.msra.mxu0 0
      %750 = vmatprep.subr.bf16.mxu0 0
      %751 = vmatpush1.bf16.msra.mxu0 0
      %752 = vmatprep.subr.bf16.mxu0 0
      %753 = vmatpush1.bf16.msra.mxu0 0
      %754 = vmatprep.subr.bf16.mxu0 0
      %755 = vmatpush1.bf16.msra.mxu0 0
      %756 = vmatprep.subr.bf16.mxu0 0
      %757 = vmatpush1.bf16.msra.mxu0 0
      %758 = vmatprep.subr.bf16.mxu0 0
      %759 = vmatpush1.bf16.msra.mxu0 0
      %760 = vmatprep.subr.bf16.mxu0 0
      %761 = vmatpush1.bf16.msra.mxu0 0
      %762 = vmatprep.subr.bf16.mxu0 0
      %763 = vmatpush1.bf16.msra.mxu0 0
      %764 = vmatprep.subr.bf16.mxu0 0
      %765 = vmatpush1.bf16.msra.mxu0 0
      %766 = vmatprep.subr.bf16.mxu0 0
      %767 = vmatpush1.bf16.msra.mxu0 0
      %768 = vmatprep.mubr.bf16.mxu0 0
      %769 = vmatmul.mubr.bf16.gmra.mrb[0].mxu0 %v728
      %v770 = vpop.f32.mrb[0].mxu0
      %v771 = vadd.f32 %v705, %v770
      %v772 = vpop.f32.mrb[0].mxu0
      %v773 = vadd.f32 %v707, %v772
      %v774 = vpop.f32.mrb[0].mxu0
      %v775 = vadd.f32 %v709, %v774
      %v776 = vpop.f32.mrb[0].mxu0
      %v777 = vadd.f32 %v711, %v776
      %778 = vdwg.mxu0
      %s779 = scalar_lea.vmem %s1, 64
      %v780 = vld [vmem:[%s779] sm:$0xf]
      %v781 = vld [vmem:[%s779 + $0x4] sm:$0xf]
      %v784 = vunpack.c.l.b16 %v780
      %v785 = vunpack.c.l.b16 %v781
      %v786 = vpack.c.b16 %v785, %v784
      %787 = vrot.lane.b32.xlu0 %v216, 94
      %v788 = vpop.permute.xlu0 %787
      %789 = vrot.lane.b32.xlu0 %v217, 94
      %v790 = vpop.permute.xlu0 %789
      %791 = vrot.lane.b32.xlu0 %v218, 94
      %v792 = vpop.permute.xlu0 %791
      %vm793 = vcmask 769024
      %v794 = vsel %vm793, %v788, %v790
      %v795 = vsel %vm793, %v790, %v792
      %v797 = vsel %vm228, %v786, 0
      %v800 = vsel %vm232, %v794, 0
      %v803 = vsel %vm232, %v795, 0
      %805 = vmatprep.subr.bf16.mxu0 %v803
      %806 = vmatpush1.bf16.msra.mxu0 %v800
      %807 = vmatprep.subr.bf16.mxu0 0
      %808 = vmatpush1.bf16.msra.mxu0 0
      %809 = vmatprep.subr.bf16.mxu0 0
      %810 = vmatpush1.bf16.msra.mxu0 0
      %811 = vmatprep.subr.bf16.mxu0 0
      %812 = vmatpush1.bf16.msra.mxu0 0
      %813 = vmatprep.subr.bf16.mxu0 0
      %814 = vmatpush1.bf16.msra.mxu0 0
      %815 = vmatprep.subr.bf16.mxu0 0
      %816 = vmatpush1.bf16.msra.mxu0 0
      %817 = vmatprep.subr.bf16.mxu0 0
      %818 = vmatpush1.bf16.msra.mxu0 0
      %819 = vmatprep.subr.bf16.mxu0 0
      %820 = vmatpush1.bf16.msra.mxu0 0
      %821 = vmatprep.subr.bf16.mxu0 0
      %822 = vmatpush1.bf16.msra.mxu0 0
      %823 = vmatprep.subr.bf16.mxu0 0
      %824 = vmatpush1.bf16.msra.mxu0 0
      %825 = vmatprep.subr.bf16.mxu0 0
      %826 = vmatpush1.bf16.msra.mxu0 0
      %827 = vmatprep.subr.bf16.mxu0 0
      %828 = vmatpush1.bf16.msra.mxu0 0
      %829 = vmatprep.subr.bf16.mxu0 0
      %830 = vmatpush1.bf16.msra.mxu0 0
      %831 = vmatprep.subr.bf16.mxu0 0
      %832 = vmatpush1.bf16.msra.mxu0 0
      %833 = vmatprep.subr.bf16.mxu0 0
      %834 = vmatpush1.bf16.msra.mxu0 0
      %835 = vmatprep.subr.bf16.mxu0 0
      %836 = vmatpush1.bf16.msra.mxu0 0
      %837 = vmatprep.mubr.bf16.mxu0 0
      %838 = vmatmul.mubr.bf16.gmra.mrb[0].mxu0 %v797
      %v839 = vpop.f32.mrb[0].mxu0
      %v840 = vadd.f32 0.0, %v839
      %v841 = vpop.f32.mrb[0].mxu0
      %v842 = vadd.f32 0.0, %v841
      %v843 = vpop.f32.mrb[0].mxu0
      %v844 = vadd.f32 0.0, %v843
      %v845 = vpop.f32.mrb[0].mxu0
      %v846 = vadd.f32 0.0, %v845
      %847 = vdwg.mxu0
      %v848 = vadd.f32 %v771, %v840
      %v849 = vadd.f32 %v773, %v842
      %v850 = vadd.f32 %v775, %v844
      %v851 = vadd.f32 %v777, %v846
      %vm852 = vcmp.le.s32.totalorder %v197, 14
      %vm853 = vcmp.le.s32.totalorder %v198, 14
      %v854 = vsel %vm852, 1, 0
      %v855 = vsel %vm853, 1, 0
      %vm856 = vcmp.eq.s32.totalorder %v854, 1
      %vm857 = vcmp.eq.s32.totalorder %v855, 1
      %v858 = vsel %vm856, %v848, 0.0
      %v859 = vsel %vm857, %v849, 0.0
      %v860 = vsel %vm856, %v850, 0.0
      %v861 = vsel %vm857, %v851, 0.0
      %v862 = vadd.f32 %v637, %v858
      %v863 = vadd.f32 %v638, %v859
      %v864 = vadd.f32 %v639, %v860
      %v865 = vadd.f32 %v640, %v861
      %v866 = vld [vmem:[%s2] sm:$0xff]
      %v867 = vld [vmem:[%s2 + $0x8] sm:$0xff]
      %869 = vset.pattern.permute.xlu0 0
      %870 = vperm.xlu0 %869, %v866
      %v871 = vpop.permute.xlu0 %870
      %874 = vset.pattern.permute.xlu0 0
      %875 = vperm.xlu0 %874, %v867
      %v876 = vpop.permute.xlu0 %875
      %v878 = vadd.f32 %v862, %v871
      %v879 = vadd.f32 %v863, %v871
      %v880 = vadd.f32 %v864, %v876
      %v881 = vadd.f32 %v865, %v876
      %v882 = vmax.f32 %v878, 0.0
      %v883 = vmax.f32 %v879, 0.0
      %v884 = vmax.f32 %v880, 0.0
      %v885 = vmax.f32 %v881, 0.0
      %v886 = vpack.c.bf16 %v884, %v882
      %v887 = vpack.c.bf16 %v885, %v883
      %v890 = vunpack.c.l.b16 %v886
      %v891 = vunpack.c.l.b16 %v887
      %v892 = vunpack.c.h.b16 %v886
      %v893 = vunpack.c.h.b16 %v887
      %v894 = vpack.c.b16 %v891, %v890
      %v895 = vpack.c.b16 %v893, %v892
      %898 = vst [vmem:[%s170] sm:$0xff] %v894
      %899 = vst [vmem:[%s170 + $0x8] sm:$0xff] %v895
      %p900 = scmp.lt.s32.totalorder %s14, 3
      %s901 = scalar_select %p900, %s14, 3
      %s902 = smul.addr %s901, 4
      %s903 = smul.addr %s902, 4
      %s904 = scalar_lea.vmem %s3, %s903
      // Predicated region
      $region33: #{a_call__.7} parent=31 // pred_check
        %p905 = pneg %p100
      $region34: #{a_call__.7} parent=31 // pred_check_branch
        %907 = sbr.rel (%p905) target = $region36
      $region35: #{a_call__.7} parent=31 // pred_region
        _
      $region36: #{a_call__.7} parent=31 // pred_fallthru
        _
    $region32: #{a_call__.7} parent=5 // pred_fallthru
      _
    %p908 = scmp.le.s32.totalorder 2, %s9
    // Predicated region
    $region37: #{a_call__.7} parent=5 // pred_check
      %p909 = pneg %p908
    $region38: #{a_call__.7} parent=5 // pred_check_branch
      %911 = sbr.rel (%p909) target = $region40
    $region39: #{a_call__.7} parent=5 // pred_region
      %s912 = ssub.s32 %s9, 2
      // Predicated region
      $region41: #{a_call__.7} parent=39 // pred_check
        %p913 = pneg %p106
      $region42: #{a_call__.7} parent=39 // pred_check_branch
        %915 = sbr.rel (%p913) target = $region44
      $region43: #{a_call__.7} parent=39 // pred_region
        %p916 = scmp.lt.s32.totalorder %s15, 3
        %s917 = scalar_select %p916, %s15, 3
        %s918 = smul.addr %s917, 4
        %s919 = smul.addr %s918, 4
        %s920 = scalar_lea.vmem %s3, %s919
      $region44: #{a_call__.7} parent=39 // pred_fallthru
        _
    $region40: #{a_call__.7} parent=5 // pred_fallthru
      _
  $region6: #{a_call__.7} parent=0 // loop_footer
    %s13 = sadd.s32 1, %s9
  $region7: #{a_call__.7} parent=0 // loop_footer_branch
    %8 = sbr.rel target = $region3
  $region8: #{a_call__.7} parent=0 // loop_exit
    _

// kernel: a_call__.10
$region0: #{a_call__.10}
  #allocation0 [shape = 'u32[]', space=smem, size = 0x4, offset = 0x4, fixed_abs, tag = 'smem constant byte address 0x4 - core index']
  #allocation1 [shape = 'u32[144,128]{1,0:T(1,128)}', space=vmem, size = 0x12000, scoped, tag = 'internal scratch']
  #allocation2 [shape = 'f32[2,16,16]{2,1,0:T(8,128)}', space=vmem, size = 0x4000, scoped, tag = 'scratch operand']
  #allocation3 [shape = 'f32[2,16,16]{2,1,0:T(8,128)}', space=vmem, size = 0x4000, scoped, tag = 'scratch operand']
  #allocation4 [shape = 'f32[2,16,1]{2,1,0:T(8,128)}', space=vmem, size = 0x4000, scoped, tag = 'scratch operand']
  #allocation5 [shape = 'f32[2,16,1]{2,1,0:T(8,128)}', space=vmem, size = 0x4000, scoped, tag = 'scratch operand']
  #allocation6 [shape = 'f32[2,16,1]{2,1,0:T(8,128)}', space=vmem, size = 0x4000, scoped, tag = 'scratch operand']
  #allocation7 [shape = 'f32[2,16,1]{2,1,0:T(8,128)}', space=vmem, size = 0x4000, scoped, tag = 'scratch operand']
  #allocation8 [shape = 'f32[2,16,1]{2,1,0:T(8,128)}', space=vmem, size = 0x4000, scoped, tag = 'scratch operand']
  %s0 = inlined_call_operand.vmem [shape: bf16[4,16,256], index: 0, kind: input, shape index: {}]
  %s1 = inlined_call_operand.vmem [shape: f32[1,2], index: 1, kind: output, shape index: {}]
  %s2 = sld [smem:[#allocation0]]
  $region22: #{a_call__.10} parent=0
    _
  %s4 = ssub.s32 1, %s2
  %s5 = scalar_select 0, %s4, %s2
  $region1: #{a_call__.10} parent=0
    #allocation9 [shape = 'u8[512]{0}', space=smem, size = 0x200, scoped, tag = 'output window, operand 0, single buffered']
    #allocation10 [shape = 's32[1]{0}', space=sflag, size = 0x4, scoped, tag = 'scoped memory for a_call__.10']
    %6 = vsyncpa [#allocation10], 0
    // Predicated region
    $region2: #{a_call__.10} parent=1 // pred_check
      _
    $region3: #{a_call__.10} parent=1 // pred_check_branch
      %8 = sbr.rel (0) target = $region5
    $region4: #{a_call__.10} parent=1 // pred_region
      _
    $region5: #{a_call__.10} parent=1 // pred_fallthru
      _
    %p10 = scmp.eq.s32.totalorder 0, 0
    // Predicated region
    $region6: #{a_call__.10} parent=1 // pred_check
      %p11 = pneg %p10
    $region7: #{a_call__.10} parent=1 // pred_check_branch
      %13 = sbr.rel (%p11) target = $region9
    $region8: #{a_call__.10} parent=1 // pred_region
      %vm14 = vcmask 130048
      %15 = vst.msk [vmem:[#allocation2] sm:$0xff] %vm14, 0.0
      %16 = vst.msk [vmem:[#allocation2 + $0x8] sm:$0xff] %vm14, 0.0
      %17 = vst.msk [vmem:[#allocation2 + $0x10] sm:$0xff] %vm14, 0.0
      %18 = vst.msk [vmem:[#allocation2 + $0x18] sm:$0xff] %vm14, 0.0
      %19 = vst.msk [vmem:[#allocation3] sm:$0xff] %vm14, 0.0
      %20 = vst.msk [vmem:[#allocation3 + $0x8] sm:$0xff] %vm14, 0.0
      %21 = vst.msk [vmem:[#allocation3 + $0x10] sm:$0xff] %vm14, 0.0
      %22 = vst.msk [vmem:[#allocation3 + $0x18] sm:$0xff] %vm14, 0.0
      %vm23 = vcmask 7168
      %24 = vst.msk [vmem:[#allocation4] sm:$0xff] %vm23, 0.0
      %25 = vst.msk [vmem:[#allocation4 + $0x8] sm:$0xff] %vm23, 0.0
      %26 = vst.msk [vmem:[#allocation4 + $0x10] sm:$0xff] %vm23, 0.0
      %27 = vst.msk [vmem:[#allocation4 + $0x18] sm:$0xff] %vm23, 0.0
      %28 = vst.msk [vmem:[#allocation5] sm:$0xff] %vm23, 0.0
      %29 = vst.msk [vmem:[#allocation5 + $0x8] sm:$0xff] %vm23, 0.0
      %30 = vst.msk [vmem:[#allocation5 + $0x10] sm:$0xff] %vm23, 0.0
      %31 = vst.msk [vmem:[#allocation5 + $0x18] sm:$0xff] %vm23, 0.0
      %32 = vst.msk [vmem:[#allocation6] sm:$0xff] %vm23, 0.0
      %33 = vst.msk [vmem:[#allocation6 + $0x8] sm:$0xff] %vm23, 0.0
      %34 = vst.msk [vmem:[#allocation6 + $0x10] sm:$0xff] %vm23, 0.0
      %35 = vst.msk [vmem:[#allocation6 + $0x18] sm:$0xff] %vm23, 0.0
      %36 = vst.msk [vmem:[#allocation7] sm:$0xff] %vm23, 0.0
      %37 = vst.msk [vmem:[#allocation7 + $0x8] sm:$0xff] %vm23, 0.0
      %38 = vst.msk [vmem:[#allocation7 + $0x10] sm:$0xff] %vm23, 0.0
      %39 = vst.msk [vmem:[#allocation7 + $0x18] sm:$0xff] %vm23, 0.0
      %40 = vst.msk [vmem:[#allocation8] sm:$0xff] %vm23, 0.0
      %41 = vst.msk [vmem:[#allocation8 + $0x8] sm:$0xff] %vm23, 0.0
      %42 = vst.msk [vmem:[#allocation8 + $0x10] sm:$0xff] %vm23, 0.0
      %43 = vst.msk [vmem:[#allocation8 + $0x18] sm:$0xff] %vm23, 0.0
    $region9: #{a_call__.10} parent=1 // pred_fallthru
      _
    %v44 = vld [vmem:[%s0] sm:$0xff]
    %v45 = vld [vmem:[%s0 + $0x8] sm:$0xff]
    %v46 = vld [vmem:[%s0 + $0x10] sm:$0xff]
    %v47 = vld [vmem:[%s0 + $0x18] sm:$0xff]
    %v48 = vld [vmem:[%s0 + $0x20] sm:$0xff]
    %v49 = vld [vmem:[%s0 + $0x28] sm:$0xff]
    %v50 = vld [vmem:[%s0 + $0x30] sm:$0xff]
    %v51 = vld [vmem:[%s0 + $0x38] sm:$0xff]
    %v52 = vld [vmem:[#allocation2] sm:$0xff]
    %v53 = vld [vmem:[#allocation2 + $0x8] sm:$0xff]
    %v54 = vld [vmem:[#allocation2 + $0x10] sm:$0xff]
    %v55 = vld [vmem:[#allocation2 + $0x18] sm:$0xff]
    %v58 = vunpack.c.l.b16 %v44
    %v59 = vunpack.c.h.b16 %v44
    %v60 = vunpack.c.l.b16 %v45
    %v61 = vunpack.c.h.b16 %v45
    %v62 = vpack.c.b16 %v60, %v58
    %v63 = vpack.c.b16 %v61, %v59
    %66 = vmatprep.subr.bf16.mxu0 %v63
    %67 = vmatpush1.bf16.xpose.msra.mxu0 %v62
    %68 = vmatprep.subr.bf16.mxu0 0
    %69 = vmatpush1.bf16.xpose.msra.mxu0 0
    %70 = vmatprep.subr.bf16.mxu0 0
    %71 = vmatpush1.bf16.xpose.msra.mxu0 0
    %72 = vmatprep.subr.bf16.mxu0 0
    %73 = vmatpush1.bf16.xpose.msra.mxu0 0
    %74 = vmatprep.subr.bf16.mxu0 0
    %75 = vmatpush1.bf16.xpose.msra.mxu0 0
    %76 = vmatprep.subr.bf16.mxu0 0
    %77 = vmatpush1.bf16.xpose.msra.mxu0 0
    %78 = vmatprep.subr.bf16.mxu0 0
    %79 = vmatpush1.bf16.xpose.msra.mxu0 0
    %80 = vmatprep.subr.bf16.mxu0 0
    %81 = vmatpush1.bf16.xpose.msra.mxu0 0
    %82 = vmatprep.subr.bf16.mxu0 0
    %83 = vmatpush1.bf16.xpose.msra.mxu0 0
    %84 = vmatprep.subr.bf16.mxu0 0
    %85 = vmatpush1.bf16.xpose.msra.mxu0 0
    %86 = vmatprep.subr.bf16.mxu0 0
    %87 = vmatpush1.bf16.xpose.msra.mxu0 0
    %88 = vmatprep.subr.bf16.mxu0 0
    %89 = vmatpush1.bf16.xpose.msra.mxu0 0
    %90 = vmatprep.subr.bf16.mxu0 0
    %91 = vmatpush1.bf16.xpose.msra.mxu0 0
    %92 = vmatprep.subr.bf16.mxu0 0
    %93 = vmatpush1.bf16.xpose.msra.mxu0 0
    %94 = vmatprep.subr.bf16.mxu0 0
    %95 = vmatpush1.bf16.xpose.msra.mxu0 0
    %96 = vmatprep.subr.bf16.mxu0 0
    %97 = vmatpush1.bf16.xpose.msra.mxu0 0
    %98 = vmatprep.mubr.bf16.mxu0 %v63
    %99 = vmatmul.mubr.bf16.gmra.mrb[0].mxu0 %v62
    %v100 = vpop.f32.mrb[0].mxu0
    %v101 = vadd.f32 0.0, %v100
    %v102 = vpop.f32.mrb[0].mxu0
    %v103 = vpop.f32.mrb[0].mxu0
    %v104 = vadd.f32 0.0, %v103
    %v105 = vpop.f32.mrb[0].mxu0
    %106 = vdwg.mxu0
    %v109 = vunpack.c.l.b16 %v46
    %v110 = vunpack.c.h.b16 %v46
    %v111 = vunpack.c.l.b16 %v47
    %v112 = vunpack.c.h.b16 %v47
    %v113 = vpack.c.b16 %v111, %v109
    %v114 = vpack.c.b16 %v112, %v110
    %117 = vmatprep.subr.bf16.mxu0 %v114
    %118 = vmatpush1.bf16.xpose.msra.mxu0 %v113
    %119 = vmatprep.subr.bf16.mxu0 0
    %120 = vmatpush1.bf16.xpose.msra.mxu0 0
    %121 = vmatprep.subr.bf16.mxu0 0
    %122 = vmatpush1.bf16.xpose.msra.mxu0 0
    %123 = vmatprep.subr.bf16.mxu0 0
    %124 = vmatpush1.bf16.xpose.msra.mxu0 0
    %125 = vmatprep.subr.bf16.mxu0 0
    %126 = vmatpush1.bf16.xpose.msra.mxu0 0
    %127 = vmatprep.subr.bf16.mxu0 0
    %128 = vmatpush1.bf16.xpose.msra.mxu0 0
    %129 = vmatprep.subr.bf16.mxu0 0
    %130 = vmatpush1.bf16.xpose.msra.mxu0 0
    %131 = vmatprep.subr.bf16.mxu0 0
    %132 = vmatpush1.bf16.xpose.msra.mxu0 0
    %133 = vmatprep.subr.bf16.mxu0 0
    %134 = vmatpush1.bf16.xpose.msra.mxu0 0
    %135 = vmatprep.subr.bf16.mxu0 0
    %136 = vmatpush1.bf16.xpose.msra.mxu0 0
    %137 = vmatprep.subr.bf16.mxu0 0
    %138 = vmatpush1.bf16.xpose.msra.mxu0 0
    %139 = vmatprep.subr.bf16.mxu0 0
    %140 = vmatpush1.bf16.xpose.msra.mxu0 0
    %141 = vmatprep.subr.bf16.mxu0 0
    %142 = vmatpush1.bf16.xpose.msra.mxu0 0
    %143 = vmatprep.subr.bf16.mxu0 0
    %144 = vmatpush1.bf16.xpose.msra.mxu0 0
    %145 = vmatprep.subr.bf16.mxu0 0
    %146 = vmatpush1.bf16.xpose.msra.mxu0 0
    %147 = vmatprep.subr.bf16.mxu0 0
    %148 = vmatpush1.bf16.xpose.msra.mxu0 0
    %149 = vmatprep.mubr.bf16.mxu0 %v114
    %150 = vmatmul.mubr.bf16.gmra.mrb[0].mxu0 %v113
    %v151 = vpop.f32.mrb[0].mxu0
    %v152 = vadd.f32 0.0, %v151
    %v153 = vpop.f32.mrb[0].mxu0
    %v154 = vpop.f32.mrb[0].mxu0
    %v155 = vadd.f32 0.0, %v154
    %v156 = vpop.f32.mrb[0].mxu0
    %157 = vdwg.mxu0
    %v158 = vadd.f32 %v52, %v101
    %v159 = vadd.f32 %v53, %v104
    %v160 = vadd.f32 %v54, %v152
    %v161 = vadd.f32 %v55, %v155
    %vm162 = vcmask 130048
    %163 = vst.msk [vmem:[#allocation2] sm:$0xff] %vm162, %v158
    %164 = vst.msk [vmem:[#allocation2 + $0x8] sm:$0xff] %vm162, %v159
    %165 = vst.msk [vmem:[#allocation2 + $0x10] sm:$0xff] %vm162, %v160
    %166 = vst.msk [vmem:[#allocation2 + $0x18] sm:$0xff] %vm162, %v161
    %v167 = vld [vmem:[#allocation3] sm:$0xff]
    %v168 = vld [vmem:[#allocation3 + $0x8] sm:$0xff]
    %v169 = vld [vmem:[#allocation3 + $0x10] sm:$0xff]
    %v170 = vld [vmem:[#allocation3 + $0x18] sm:$0xff]
    %v173 = vunpack.c.l.b16 %v48
    %v174 = vunpack.c.h.b16 %v48
    %v175 = vunpack.c.l.b16 %v49
    %v176 = vunpack.c.h.b16 %v49
    %v177 = vpack.c.b16 %v175, %v173
    %v178 = vpack.c.b16 %v176, %v174
    %181 = vmatprep.subr.bf16.mxu0 %v178
    %182 = vmatpush1.bf16.xpose.msra.mxu0 %v177
    %183 = vmatprep.subr.bf16.mxu0 0
    %184 = vmatpush1.bf16.xpose.msra.mxu0 0
    %185 = vmatprep.subr.bf16.mxu0 0
    %186 = vmatpush1.bf16.xpose.msra.mxu0 0
    %187 = vmatprep.subr.bf16.mxu0 0
    %188 = vmatpush1.bf16.xpose.msra.mxu0 0
    %189 = vmatprep.subr.bf16.mxu0 0
    %190 = vmatpush1.bf16.xpose.msra.mxu0 0
    %191 = vmatprep.subr.bf16.mxu0 0
    %192 = vmatpush1.bf16.xpose.msra.mxu0 0
    %193 = vmatprep.subr.bf16.mxu0 0
    %194 = vmatpush1.bf16.xpose.msra.mxu0 0
    %195 = vmatprep.subr.bf16.mxu0 0
    %196 = vmatpush1.bf16.xpose.msra.mxu0 0
    %197 = vmatprep.subr.bf16.mxu0 0
    %198 = vmatpush1.bf16.xpose.msra.mxu0 0
    %199 = vmatprep.subr.bf16.mxu0 0
    %200 = vmatpush1.bf16.xpose.msra.mxu0 0
    %201 = vmatprep.subr.bf16.mxu0 0
    %202 = vmatpush1.bf16.xpose.msra.mxu0 0
    %203 = vmatprep.subr.bf16.mxu0 0
    %204 = vmatpush1.bf16.xpose.msra.mxu0 0
    %205 = vmatprep.subr.bf16.mxu0 0
    %206 = vmatpush1.bf16.xpose.msra.mxu0 0
    %207 = vmatprep.subr.bf16.mxu0 0
    %208 = vmatpush1.bf16.xpose.msra.mxu0 0
    %209 = vmatprep.subr.bf16.mxu0 0
    %210 = vmatpush1.bf16.xpose.msra.mxu0 0
    %211 = vmatprep.subr.bf16.mxu0 0
    %212 = vmatpush1.bf16.xpose.msra.mxu0 0
    %213 = vmatprep.mubr.bf16.mxu0 %v178
    %214 = vmatmul.mubr.bf16.gmra.mrb[0].mxu0 %v177
    %v215 = vpop.f32.mrb[0].mxu0
    %v216 = vadd.f32 0.0, %v215
    %v217 = vpop.f32.mrb[0].mxu0
    %v218 = vpop.f32.mrb[0].mxu0
    %v219 = vadd.f32 0.0, %v218
    %v220 = vpop.f32.mrb[0].mxu0
    %221 = vdwg.mxu0
    %v224 = vunpack.c.l.b16 %v50
    %v225 = vunpack.c.h.b16 %v50
    %v226 = vunpack.c.l.b16 %v51
    %v227 = vunpack.c.h.b16 %v51
    %v228 = vpack.c.b16 %v226, %v224
    %v229 = vpack.c.b16 %v227, %v225
    %232 = vmatprep.subr.bf16.mxu0 %v229
    %233 = vmatpush1.bf16.xpose.msra.mxu0 %v228
    %234 = vmatprep.subr.bf16.mxu0 0
    %235 = vmatpush1.bf16.xpose.msra.mxu0 0
    %236 = vmatprep.subr.bf16.mxu0 0
    %237 = vmatpush1.bf16.xpose.msra.mxu0 0
    %238 = vmatprep.subr.bf16.mxu0 0
    %239 = vmatpush1.bf16.xpose.msra.mxu0 0
    %240 = vmatprep.subr.bf16.mxu0 0
    %241 = vmatpush1.bf16.xpose.msra.mxu0 0
    %242 = vmatprep.subr.bf16.mxu0 0
    %243 = vmatpush1.bf16.xpose.msra.mxu0 0
    %244 = vmatprep.subr.bf16.mxu0 0
    %245 = vmatpush1.bf16.xpose.msra.mxu0 0
    %246 = vmatprep.subr.bf16.mxu0 0
    %247 = vmatpush1.bf16.xpose.msra.mxu0 0
    %248 = vmatprep.subr.bf16.mxu0 0
    %249 = vmatpush1.bf16.xpose.msra.mxu0 0
    %250 = vmatprep.subr.bf16.mxu0 0
    %251 = vmatpush1.bf16.xpose.msra.mxu0 0
    %252 = vmatprep.subr.bf16.mxu0 0
    %253 = vmatpush1.bf16.xpose.msra.mxu0 0
    %254 = vmatprep.subr.bf16.mxu0 0
    %255 = vmatpush1.bf16.xpose.msra.mxu0 0
    %256 = vmatprep.subr.bf16.mxu0 0
    %257 = vmatpush1.bf16.xpose.msra.mxu0 0
    %258 = vmatprep.subr.bf16.mxu0 0
    %259 = vmatpush1.bf16.xpose.msra.mxu0 0
    %260 = vmatprep.subr.bf16.mxu0 0
    %261 = vmatpush1.bf16.xpose.msra.mxu0 0
    %262 = vmatprep.subr.bf16.mxu0 0
    %263 = vmatpush1.bf16.xpose.msra.mxu0 0
    %264 = vmatprep.mubr.bf16.mxu0 %v229
    %265 = vmatmul.mubr.bf16.gmra.mrb[0].mxu0 %v228
    %v266 = vpop.f32.mrb[0].mxu0
    %v267 = vadd.f32 0.0, %v266
    %v268 = vpop.f32.mrb[0].mxu0
    %v269 = vpop.f32.mrb[0].mxu0
    %v270 = vadd.f32 0.0, %v269
    %v271 = vpop.f32.mrb[0].mxu0
    %272 = vdwg.mxu0
    %v273 = vadd.f32 %v167, %v216
    %v274 = vadd.f32 %v168, %v219
    %v275 = vadd.f32 %v169, %v267
    %v276 = vadd.f32 %v170, %v270
    %277 = vst.msk [vmem:[#allocation3] sm:$0xff] %vm162, %v273
    %278 = vst.msk [vmem:[#allocation3 + $0x8] sm:$0xff] %vm162, %v274
    %279 = vst.msk [vmem:[#allocation3 + $0x10] sm:$0xff] %vm162, %v275
    %280 = vst.msk [vmem:[#allocation3 + $0x18] sm:$0xff] %vm162, %v276
    %v281 = vunpack.c.l.bf16 %v44
    %v282 = vunpack.c.h.bf16 %v44
    %v283 = vunpack.c.l.bf16 %v45
    %v284 = vunpack.c.h.bf16 %v45
    %v285 = vunpack.c.l.bf16 %v46
    %v286 = vunpack.c.h.bf16 %v46
    %v287 = vunpack.c.l.bf16 %v47
    %v288 = vunpack.c.h.bf16 %v47
    %v289 = vunpack.c.l.bf16 %v48
    %v290 = vunpack.c.h.bf16 %v48
    %v291 = vunpack.c.l.bf16 %v49
    %v292 = vunpack.c.h.bf16 %v49
    %v293 = vunpack.c.l.bf16 %v50
    %v294 = vunpack.c.h.bf16 %v50
    %v295 = vunpack.c.l.bf16 %v51
    %v296 = vunpack.c.h.bf16 %v51
    %v297 = vld [vmem:[#allocation4] sm:$0xff]
    %v298 = vld [vmem:[#allocation4 + $0x8] sm:$0xff]
    %v299 = vld [vmem:[#allocation4 + $0x10] sm:$0xff]
    %v300 = vld [vmem:[#allocation4 + $0x18] sm:$0xff]
    %v301 = vadd.f32 %v281, %v282
    %302 = vadd.xlane.f32.xlu0 %v301
    %v303 = vpop.xlane.xlu0 %302
    %v304 = vadd.f32 %v283, %v284
    %305 = vadd.xlane.f32.xlu0 %v304
    %v306 = vpop.xlane.xlu0 %305
    %v307 = vadd.f32 %v285, %v286
    %308 = vadd.xlane.f32.xlu0 %v307
    %v309 = vpop.xlane.xlu0 %308
    %v310 = vadd.f32 %v287, %v288
    %311 = vadd.xlane.f32.xlu0 %v310
    %v312 = vpop.xlane.xlu0 %311
    %v313 = vadd.f32 %v297, %v303
    %v314 = vadd.f32 %v298, %v306
    %v315 = vadd.f32 %v299, %v309
    %v316 = vadd.f32 %v300, %v312
    %vm317 = vcmask 7168
    %318 = vst.msk [vmem:[#allocation4] sm:$0xff] %vm317, %v313
    %319 = vst.msk [vmem:[#allocation4 + $0x8] sm:$0xff] %vm317, %v314
    %320 = vst.msk [vmem:[#allocation4 + $0x10] sm:$0xff] %vm317, %v315
    %321 = vst.msk [vmem:[#allocation4 + $0x18] sm:$0xff] %vm317, %v316
    %v322 = vld [vmem:[#allocation5] sm:$0xff]
    %v323 = vld [vmem:[#allocation5 + $0x8] sm:$0xff]
    %v324 = vld [vmem:[#allocation5 + $0x10] sm:$0xff]
    %v325 = vld [vmem:[#allocation5 + $0x18] sm:$0xff]
    %v326 = vadd.f32 %v289, %v290
    %327 = vadd.xlane.f32.xlu0 %v326
    %v328 = vpop.xlane.xlu0 %327
    %v329 = vadd.f32 %v291, %v292
    %330 = vadd.xlane.f32.xlu0 %v329
    %v331 = vpop.xlane.xlu0 %330
    %v332 = vadd.f32 %v293, %v294
    %333 = vadd.xlane.f32.xlu0 %v332
    %v334 = vpop.xlane.xlu0 %333
    %v335 = vadd.f32 %v295, %v296
    %336 = vadd.xlane.f32.xlu0 %v335
    %v337 = vpop.xlane.xlu0 %336
    %v338 = vadd.f32 %v322, %v328
    %v339 = vadd.f32 %v323, %v331
    %v340 = vadd.f32 %v324, %v334
    %v341 = vadd.f32 %v325, %v337
    %342 = vst.msk [vmem:[#allocation5] sm:$0xff] %vm317, %v338
    %343 = vst.msk [vmem:[#allocation5 + $0x8] sm:$0xff] %vm317, %v339
    %344 = vst.msk [vmem:[#allocation5 + $0x10] sm:$0xff] %vm317, %v340
    %345 = vst.msk [vmem:[#allocation5 + $0x18] sm:$0xff] %vm317, %v341
    %v346 = vld [vmem:[#allocation6] sm:$0xff]
    %v347 = vld [vmem:[#allocation6 + $0x8] sm:$0xff]
    %v348 = vld [vmem:[#allocation6 + $0x10] sm:$0xff]
    %v349 = vld [vmem:[#allocation6 + $0x18] sm:$0xff]
    %v350 = vmul.f32 %v281, %v281
    %v351 = vmul.f32 %v282, %v282
    %v352 = vmul.f32 %v283, %v283
    %v353 = vmul.f32 %v284, %v284
    %v354 = vmul.f32 %v285, %v285
    %v355 = vmul.f32 %v286, %v286
    %v356 = vmul.f32 %v287, %v287
    %v357 = vmul.f32 %v288, %v288
    %v358 = vadd.f32 %v350, %v351
    %359 = vadd.xlane.f32.xlu0 %v358
    %v360 = vpop.xlane.xlu0 %359
    %v361 = vadd.f32 %v352, %v353
    %362 = vadd.xlane.f32.xlu0 %v361
    %v363 = vpop.xlane.xlu0 %362
    %v364 = vadd.f32 %v354, %v355
    %365 = vadd.xlane.f32.xlu0 %v364
    %v366 = vpop.xlane.xlu0 %365
    %v367 = vadd.f32 %v356, %v357
    %368 = vadd.xlane.f32.xlu0 %v367
    %v369 = vpop.xlane.xlu0 %368
    %v370 = vadd.f32 %v346, %v360
    %v371 = vadd.f32 %v347, %v363
    %v372 = vadd.f32 %v348, %v366
    %v373 = vadd.f32 %v349, %v369
    %374 = vst.msk [vmem:[#allocation6] sm:$0xff] %vm317, %v370
    %375 = vst.msk [vmem:[#allocation6 + $0x8] sm:$0xff] %vm317, %v371
    %376 = vst.msk [vmem:[#allocation6 + $0x10] sm:$0xff] %vm317, %v372
    %377 = vst.msk [vmem:[#allocation6 + $0x18] sm:$0xff] %vm317, %v373
    %v378 = vld [vmem:[#allocation7] sm:$0xff]
    %v379 = vld [vmem:[#allocation7 + $0x8] sm:$0xff]
    %v380 = vld [vmem:[#allocation7 + $0x10] sm:$0xff]
    %v381 = vld [vmem:[#allocation7 + $0x18] sm:$0xff]
    %v382 = vmul.f32 %v289, %v289
    %v383 = vmul.f32 %v290, %v290
    %v384 = vmul.f32 %v291, %v291
    %v385 = vmul.f32 %v292, %v292
    %v386 = vmul.f32 %v293, %v293
    %v387 = vmul.f32 %v294, %v294
    %v388 = vmul.f32 %v295, %v295
    %v389 = vmul.f32 %v296, %v296
    %v390 = vadd.f32 %v382, %v383
    %391 = vadd.xlane.f32.xlu0 %v390
    %v392 = vpop.xlane.xlu0 %391
    %v393 = vadd.f32 %v384, %v385
    %394 = vadd.xlane.f32.xlu0 %v393
    %v395 = vpop.xlane.xlu0 %394
    %v396 = vadd.f32 %v386, %v387
    %397 = vadd.xlane.f32.xlu0 %v396
    %v398 = vpop.xlane.xlu0 %397
    %v399 = vadd.f32 %v388, %v389
    %400 = vadd.xlane.f32.xlu0 %v399
    %v401 = vpop.xlane.xlu0 %400
    %v402 = vadd.f32 %v378, %v392
    %v403 = vadd.f32 %v379, %v395
    %v404 = vadd.f32 %v380, %v398
    %v405 = vadd.f32 %v381, %v401
    %406 = vst.msk [vmem:[#allocation7] sm:$0xff] %vm317, %v402
    %407 = vst.msk [vmem:[#allocation7 + $0x8] sm:$0xff] %vm317, %v403
    %408 = vst.msk [vmem:[#allocation7 + $0x10] sm:$0xff] %vm317, %v404
    %409 = vst.msk [vmem:[#allocation7 + $0x18] sm:$0xff] %vm317, %v405
    %v410 = vld [vmem:[#allocation8] sm:$0xff]
    %v411 = vld [vmem:[#allocation8 + $0x8] sm:$0xff]
    %v412 = vld [vmem:[#allocation8 + $0x10] sm:$0xff]
    %v413 = vld [vmem:[#allocation8 + $0x18] sm:$0xff]
    %v414 = vmul.f32 %v281, %v289
    %v415 = vmul.f32 %v282, %v290
    %v416 = vmul.f32 %v283, %v291
    %v417 = vmul.f32 %v284, %v292
    %v418 = vmul.f32 %v285, %v293
    %v419 = vmul.f32 %v286, %v294
    %v420 = vmul.f32 %v287, %v295
    %v421 = vmul.f32 %v288, %v296
    %v422 = vadd.f32 %v414, %v415
    %423 = vadd.xlane.f32.xlu0 %v422
    %v424 = vpop.xlane.xlu0 %423
    %v425 = vadd.f32 %v416, %v417
    %426 = vadd.xlane.f32.xlu0 %v425
    %v427 = vpop.xlane.xlu0 %426
    %v428 = vadd.f32 %v418, %v419
    %429 = vadd.xlane.f32.xlu0 %v428
    %v430 = vpop.xlane.xlu0 %429
    %v431 = vadd.f32 %v420, %v421
    %432 = vadd.xlane.f32.xlu0 %v431
    %v433 = vpop.xlane.xlu0 %432
    %v434 = vadd.f32 %v410, %v424
    %v435 = vadd.f32 %v411, %v427
    %v436 = vadd.f32 %v412, %v430
    %v437 = vadd.f32 %v413, %v433
    %438 = vst.msk [vmem:[#allocation8] sm:$0xff] %vm317, %v434
    %439 = vst.msk [vmem:[#allocation8 + $0x8] sm:$0xff] %vm317, %v435
    %440 = vst.msk [vmem:[#allocation8 + $0x10] sm:$0xff] %vm317, %v436
    %441 = vst.msk [vmem:[#allocation8 + $0x18] sm:$0xff] %vm317, %v437
    // Predicated region
    $region10: #{a_call__.10} parent=1 // pred_check
      %p442 = pneg %p10
    $region11: #{a_call__.10} parent=1 // pred_check_branch
      %444 = sbr.rel (%p442) target = $region13
    $region12: #{a_call__.10} parent=1 // pred_region
      %v445 = vld [vmem:[#allocation2] sm:$0xff]
      %v446 = vld [vmem:[#allocation2 + $0x8] sm:$0xff]
      %v447 = vld [vmem:[#allocation2 + $0x10] sm:$0xff]
      %v448 = vld [vmem:[#allocation2 + $0x18] sm:$0xff]
      %v449 = vld [vmem:[#allocation3] sm:$0xff]
      %v450 = vld [vmem:[#allocation3 + $0x8] sm:$0xff]
      %v451 = vld [vmem:[#allocation3 + $0x10] sm:$0xff]
      %v452 = vld [vmem:[#allocation3 + $0x18] sm:$0xff]
      %v453 = vld [vmem:[#allocation4] sm:$0xff]
      %v454 = vld [vmem:[#allocation4 + $0x8] sm:$0xff]
      %v455 = vld [vmem:[#allocation4 + $0x10] sm:$0xff]
      %v456 = vld [vmem:[#allocation4 + $0x18] sm:$0xff]
      %v457 = vld [vmem:[#allocation5] sm:$0xff]
      %v458 = vld [vmem:[#allocation5 + $0x8] sm:$0xff]
      %v459 = vld [vmem:[#allocation5 + $0x10] sm:$0xff]
      %v460 = vld [vmem:[#allocation5 + $0x18] sm:$0xff]
      %v461 = vld [vmem:[#allocation6] sm:$0xff]
      %v462 = vld [vmem:[#allocation6 + $0x8] sm:$0xff]
      %v463 = vld [vmem:[#allocation6 + $0x10] sm:$0xff]
      %v464 = vld [vmem:[#allocation6 + $0x18] sm:$0xff]
      %v465 = vld [vmem:[#allocation7] sm:$0xff]
      %v466 = vld [vmem:[#allocation7 + $0x8] sm:$0xff]
      %v467 = vld [vmem:[#allocation7 + $0x10] sm:$0xff]
      %v468 = vld [vmem:[#allocation7 + $0x18] sm:$0xff]
      %v469 = vld [vmem:[#allocation8] sm:$0xff]
      %v470 = vld [vmem:[#allocation8 + $0x8] sm:$0xff]
      %v471 = vld [vmem:[#allocation8 + $0x10] sm:$0xff]
      %v472 = vld [vmem:[#allocation8 + $0x18] sm:$0xff]
      %v473 = vmul.f32 %v461, 0.00390625
      %v474 = vmul.f32 %v462, 0.00390625
      %v475 = vmul.f32 %v463, 0.00390625
      %v476 = vmul.f32 %v464, 0.00390625
      %v477 = vmul.f32 %v453, 0.00390625
      %v478 = vmul.f32 %v454, 0.00390625
      %v479 = vmul.f32 %v455, 0.00390625
      %v480 = vmul.f32 %v456, 0.00390625
      %v481 = vmul.f32 %v477, %v477
      %v482 = vmul.f32 %v478, %v478
      %v483 = vmul.f32 %v479, %v479
      %v484 = vmul.f32 %v480, %v480
      %v485 = vsub.f32 %v473, %v481
      %v486 = vsub.f32 %v474, %v482
      %v487 = vsub.f32 %v475, %v483
      %v488 = vsub.f32 %v476, %v484
      %v489 = vmax.f32 %v485, 0.0
      %v490 = vmax.f32 %v486, 0.0
      %v491 = vmax.f32 %v487, 0.0
      %v492 = vmax.f32 %v488, 0.0
      %v493 = vmul.f32 %v465, 0.00390625
      %v494 = vmul.f32 %v466, 0.00390625
      %v495 = vmul.f32 %v467, 0.00390625
      %v496 = vmul.f32 %v468, 0.00390625
      %v497 = vmul.f32 %v457, 0.00390625
      %v498 = vmul.f32 %v458, 0.00390625
      %v499 = vmul.f32 %v459, 0.00390625
      %v500 = vmul.f32 %v460, 0.00390625
      %v501 = vmul.f32 %v497, %v497
      %v502 = vmul.f32 %v498, %v498
      %v503 = vmul.f32 %v499, %v499
      %v504 = vmul.f32 %v500, %v500
      %v505 = vsub.f32 %v493, %v501
      %v506 = vsub.f32 %v494, %v502
      %v507 = vsub.f32 %v495, %v503
      %v508 = vsub.f32 %v496, %v504
      %v509 = vmax.f32 %v505, 0.0
      %v510 = vmax.f32 %v506, 0.0
      %v511 = vmax.f32 %v507, 0.0
      %v512 = vmax.f32 %v508, 0.0
      %v513 = vadd.f32 %v489, 1e-05
      %v514 = vadd.f32 %v490, 1e-05
      %v515 = vadd.f32 %v491, 1e-05
      %v516 = vadd.f32 %v492, 1e-05
      %v517 = vrsqrt.pop %v513
      %v518 = vrsqrt.pop %v514
      %v519 = vrsqrt.pop %v515
      %v520 = vrsqrt.pop %v516
      %v521 = vadd.f32 %v509, 1e-05
      %v522 = vadd.f32 %v510, 1e-05
      %v523 = vadd.f32 %v511, 1e-05
      %v524 = vadd.f32 %v512, 1e-05
      %v525 = vrsqrt.pop %v521
      %v526 = vrsqrt.pop %v522
      %v527 = vrsqrt.pop %v523
      %v528 = vrsqrt.pop %v524
      %v529 = vmul.f32 %v453, %v453
      %v530 = vmul.f32 %v454, %v454
      %v531 = vmul.f32 %v455, %v455
      %v532 = vmul.f32 %v456, %v456
      %v533 = vmul.f32 %v529, 0.00390625
      %v534 = vmul.f32 %v530, 0.00390625
      %v535 = vmul.f32 %v531, 0.00390625
      %v536 = vmul.f32 %v532, 0.00390625
      %v537 = vsub.f32 %v461, %v533
      %v538 = vsub.f32 %v462, %v534
      %v539 = vsub.f32 %v463, %v535
      %v540 = vsub.f32 %v464, %v536
      %v541 = vmul.f32 %v457, %v457
      %v542 = vmul.f32 %v458, %v458
      %v543 = vmul.f32 %v459, %v459
      %v544 = vmul.f32 %v460, %v460
      %v545 = vmul.f32 %v541, 0.00390625
      %v546 = vmul.f32 %v542, 0.00390625
      %v547 = vmul.f32 %v543, 0.00390625
      %v548 = vmul.f32 %v544, 0.00390625
      %v549 = vsub.f32 %v465, %v545
      %v550 = vsub.f32 %v466, %v546
      %v551 = vsub.f32 %v467, %v547
      %v552 = vsub.f32 %v468, %v548
      %v553 = vmul.f32 %v453, %v457
      %v554 = vmul.f32 %v454, %v458
      %v555 = vmul.f32 %v455, %v459
      %v556 = vmul.f32 %v456, %v460
      %v557 = vmul.f32 %v553, 0.00390625
      %v558 = vmul.f32 %v554, 0.00390625
      %v559 = vmul.f32 %v555, 0.00390625
      %v560 = vmul.f32 %v556, 0.00390625
      %v561 = vsub.f32 %v469, %v557
      %v562 = vsub.f32 %v470, %v558
      %v563 = vsub.f32 %v471, %v559
      %v564 = vsub.f32 %v472, %v560
      %v565 = vmul.f32 %v517, %v517
      %v566 = vmul.f32 %v518, %v518
      %v567 = vmul.f32 %v519, %v519
      %v568 = vmul.f32 %v520, %v520
      %v569 = vmul.f32 %v565, %v537
      %v570 = vmul.f32 %v566, %v538
      %v571 = vmul.f32 %v567, %v539
      %v572 = vmul.f32 %v568, %v540
      %v573 = vmul.f32 %v525, %v525
      %v574 = vmul.f32 %v526, %v526
      %v575 = vmul.f32 %v527, %v527
      %v576 = vmul.f32 %v528, %v528
      %v577 = vmul.f32 %v573, %v549
      %v578 = vmul.f32 %v574, %v550
      %v579 = vmul.f32 %v575, %v551
      %v580 = vmul.f32 %v576, %v552
      %v581 = vadd.f32 %v569, %v577
      %v582 = vadd.f32 %v570, %v578
      %v583 = vadd.f32 %v571, %v579
      %v584 = vadd.f32 %v572, %v580
      %v585 = vmul.f32 %v517, %v525
      %v586 = vmul.f32 %v518, %v526
      %v587 = vmul.f32 %v519, %v527
      %v588 = vmul.f32 %v520, %v528
      %v589 = vmul.f32 %v585, 2.0
      %v590 = vmul.f32 %v586, 2.0
      %v591 = vmul.f32 %v587, 2.0
      %v592 = vmul.f32 %v588, 2.0
      %v593 = vmul.f32 %v589, %v561
      %v594 = vmul.f32 %v590, %v562
      %v595 = vmul.f32 %v591, %v563
      %v596 = vmul.f32 %v592, %v564
      %v597 = vsub.f32 %v581, %v593
      %v598 = vsub.f32 %v582, %v594
      %v599 = vsub.f32 %v583, %v595
      %v600 = vsub.f32 %v584, %v596
      %v601 = vsel %vm317, %v597, 0.0
      %v602 = vsel %vm317, %v598, 0.0
      %v603 = vadd.f32 %v601, %v602
      %v604 = vsel %vm317, %v599, 0.0
      %v605 = vadd.f32 %v603, %v604
      %v606 = vsel %vm317, %v600, 0.0
      %v607 = vadd.f32 %v605, %v606
      %608 = vadd.xlane.f32.xlu0 %v607
      %v609 = vpop.xlane.xlu0 %608
      %v610 = vrot.slane %v609, 4
      %v611 = vadd.f32 %v609, %v610
      %v612 = vrot.slane %v611, 2
      %v613 = vadd.f32 %v611, %v612
      %v614 = vrot.slane %v613, 1
      %v615 = vadd.f32 %v613, %v614
      %s616 = vtos %v615
      %v617 = vlaneseq
      %v618 = vshrl.u32 %v617, 7
      %v619 = vadd.s32 %v618, 8
      %v620 = vlaneseq
      %v621 = vand.u32 %v620, 127
      %vm622 = vcmp.eq.s32.totalorder %v618, %v621
      %vm623 = vcmp.eq.s32.totalorder %v619, %v621
      %v624 = vsel %vm622, 1, 0
      %v625 = vsel %vm623, 1, 0
      %v626 = vcvt.s32.f32 %v624
      %v627 = vcvt.s32.f32 %v625
      %629 = vset.pattern.permute.xlu0 0
      %630 = vperm.xlu0 %629, %v453
      %v631 = vpop.permute.xlu0 %630
      %634 = vset.pattern.permute.xlu0 0
      %635 = vperm.xlu0 %634, %v454
      %v636 = vpop.permute.xlu0 %635
      %639 = vset.pattern.permute.xlu0 0
      %640 = vperm.xlu0 %639, %v455
      %v641 = vpop.permute.xlu0 %640
      %644 = vset.pattern.permute.xlu0 0
      %645 = vperm.xlu0 %644, %v456
      %v646 = vpop.permute.xlu0 %645
      %v648 = vmul.f32 %v626, %v631
      %v649 = vmul.f32 %v627, %v636
      %v650 = vmul.f32 %v626, %v641
      %v651 = vmul.f32 %v627, %v646
      %v652 = vsel %vm162, %v631, 0
      %v654 = vsel %vm162, %v636, 0
      %656 = vmatprep.subr.mxu0 0.0
      %657 = vmatpush1.msra.mxu0 %v648
      %658 = vmatprep.subr.mxu0 0.0
      %659 = vmatpush1.msra.mxu0 %v649
      %660 = vmatprep.subr.mxu0 0.0
      %661 = vmatpush1.msra.mxu0 0.0
      %662 = vmatprep.subr.mxu0 0.0
      %663 = vmatpush1.msra.mxu0 0.0
      %664 = vmatprep.subr.mxu0 0.0
      %665 = vmatpush1.msra.mxu0 0.0
      %666 = vmatprep.subr.mxu0 0.0
      %667 = vmatpush1.msra.mxu0 0.0
      %668 = vmatprep.subr.mxu0 0.0
      %669 = vmatpush1.msra.mxu0 0.0
      %670 = vmatprep.subr.mxu0 0.0
      %671 = vmatpush1.msra.mxu0 0.0
      %672 = vmatprep.subr.mxu0 0.0
      %673 = vmatpush1.msra.mxu0 0.0
      %674 = vmatprep.subr.mxu0 0.0
      %675 = vmatpush1.msra.mxu0 0.0
      %676 = vmatprep.subr.mxu0 0.0
      %677 = vmatpush1.msra.mxu0 0.0
      %678 = vmatprep.subr.mxu0 0.0
      %679 = vmatpush1.msra.mxu0 0.0
      %680 = vmatprep.subr.mxu0 0.0
      %681 = vmatpush1.msra.mxu0 0.0
      %682 = vmatprep.subr.mxu0 0.0
      %683 = vmatpush1.msra.mxu0 0.0
      %684 = vmatprep.subr.mxu0 0.0
      %685 = vmatpush1.msra.mxu0 0.0
      %686 = vmatprep.subr.mxu0 0.0
      %687 = vmatpush1.msra.mxu0 0.0
      %688 = vmatprep.subr.mxu0 0.0
      %689 = vmatpush1.msra.mxu0 0.0
      %690 = vmatprep.subr.mxu0 0.0
      %691 = vmatpush1.msra.mxu0 0.0
      %692 = vmatprep.subr.mxu0 0.0
      %693 = vmatpush1.msra.mxu0 0.0
      %694 = vmatprep.subr.mxu0 0.0
      %695 = vmatpush1.msra.mxu0 0.0
      %696 = vmatprep.subr.mxu0 0.0
      %697 = vmatpush1.msra.mxu0 0.0
      %698 = vmatprep.subr.mxu0 0.0
      %699 = vmatpush1.msra.mxu0 0.0
      %700 = vmatprep.subr.mxu0 0.0
      %701 = vmatpush1.msra.mxu0 0.0
      %702 = vmatprep.subr.mxu0 0.0
      %703 = vmatpush1.msra.mxu0 0.0
      %704 = vmatprep.subr.mxu0 0.0
      %705 = vmatpush1.msra.mxu0 0.0
      %706 = vmatprep.subr.mxu0 0.0
      %707 = vmatpush1.msra.mxu0 0.0
      %708 = vmatprep.subr.mxu0 0.0
      %709 = vmatpush1.msra.mxu0 0.0
      %710 = vmatprep.subr.mxu0 0.0
      %711 = vmatpush1.msra.mxu0 0.0
      %712 = vmatprep.subr.mxu0 0.0
      %713 = vmatpush1.msra.mxu0 0.0
      %714 = vmatprep.subr.mxu0 0.0
      %715 = vmatpush1.msra.mxu0 0.0
      %716 = vmatprep.subr.mxu0 0.0
      %717 = vmatpush1.msra.mxu0 0.0
      %718 = vmatprep.subr.mxu0 0.0
      %719 = vmatpush1.msra.mxu0 0.0
      %720 = vmatprep.mubr.f32.mxu0 0.0
      %721 = vmatmul.mubr.f32.gmra.mrb[0].mxu0 %v652
      %v722 = vpop.f32.mrb[0].mxu0
      %v723 = vadd.f32 0.0, %v722
      %v724 = vpop.f32.mrb[0].mxu0
      %725 = vmatprep.mubr.f32.mxu0 0.0
      %726 = vmatmul.mubr.f32.gmra.mrb[0].mxu0 %v654
      %v727 = vpop.f32.mrb[0].mxu0
      %v728 = vadd.f32 0.0, %v727
      %v729 = vpop.f32.mrb[0].mxu0
      %730 = vdwg.mxu0
      %v731 = vsel %vm162, %v641, 0
      %v733 = vsel %vm162, %v646, 0
      %735 = vmatprep.subr.mxu0 0.0
      %736 = vmatpush1.msra.mxu0 %v650
      %737 = vmatprep.subr.mxu0 0.0
      %738 = vmatpush1.msra.mxu0 %v651
      %739 = vmatprep.subr.mxu0 0.0
      %740 = vmatpush1.msra.mxu0 0.0
      %741 = vmatprep.subr.mxu0 0.0
      %742 = vmatpush1.msra.mxu0 0.0
      %743 = vmatprep.subr.mxu0 0.0
      %744 = vmatpush1.msra.mxu0 0.0
      %745 = vmatprep.subr.mxu0 0.0
      %746 = vmatpush1.msra.mxu0 0.0
      %747 = vmatprep.subr.mxu0 0.0
      %748 = vmatpush1.msra.mxu0 0.0
      %749 = vmatprep.subr.mxu0 0.0
      %750 = vmatpush1.msra.mxu0 0.0
      %751 = vmatprep.subr.mxu0 0.0
      %752 = vmatpush1.msra.mxu0 0.0
      %753 = vmatprep.subr.mxu0 0.0
      %754 = vmatpush1.msra.mxu0 0.0
      %755 = vmatprep.subr.mxu0 0.0
      %756 = vmatpush1.msra.mxu0 0.0
      %757 = vmatprep.subr.mxu0 0.0
      %758 = vmatpush1.msra.mxu0 0.0
      %759 = vmatprep.subr.mxu0 0.0
      %760 = vmatpush1.msra.mxu0 0.0
      %761 = vmatprep.subr.mxu0 0.0
      %762 = vmatpush1.msra.mxu0 0.0
      %763 = vmatprep.subr.mxu0 0.0
      %764 = vmatpush1.msra.mxu0 0.0
      %765 = vmatprep.subr.mxu0 0.0
      %766 = vmatpush1.msra.mxu0 0.0
      %767 = vmatprep.subr.mxu0 0.0
      %768 = vmatpush1.msra.mxu0 0.0
      %769 = vmatprep.subr.mxu0 0.0
      %770 = vmatpush1.msra.mxu0 0.0
      %771 = vmatprep.subr.mxu0 0.0
      %772 = vmatpush1.msra.mxu0 0.0
      %773 = vmatprep.subr.mxu0 0.0
      %774 = vmatpush1.msra.mxu0 0.0
      %775 = vmatprep.subr.mxu0 0.0
      %776 = vmatpush1.msra.mxu0 0.0
      %777 = vmatprep.subr.mxu0 0.0
      %778 = vmatpush1.msra.mxu0 0.0
      %779 = vmatprep.subr.mxu0 0.0
      %780 = vmatpush1.msra.mxu0 0.0
      %781 = vmatprep.subr.mxu0 0.0
      %782 = vmatpush1.msra.mxu0 0.0
      %783 = vmatprep.subr.mxu0 0.0
      %784 = vmatpush1.msra.mxu0 0.0
      %785 = vmatprep.subr.mxu0 0.0
      %786 = vmatpush1.msra.mxu0 0.0
      %787 = vmatprep.subr.mxu0 0.0
      %788 = vmatpush1.msra.mxu0 0.0
      %789 = vmatprep.subr.mxu0 0.0
      %790 = vmatpush1.msra.mxu0 0.0
      %791 = vmatprep.subr.mxu0 0.0
      %792 = vmatpush1.msra.mxu0 0.0
      %793 = vmatprep.subr.mxu0 0.0
      %794 = vmatpush1.msra.mxu0 0.0
      %795 = vmatprep.subr.mxu0 0.0
      %796 = vmatpush1.msra.mxu0 0.0
      %797 = vmatprep.subr.mxu0 0.0
      %798 = vmatpush1.msra.mxu0 0.0
      %799 = vmatprep.mubr.f32.mxu0 0.0
      %800 = vmatmul.mubr.f32.gmra.mrb[0].mxu0 %v731
      %v801 = vpop.f32.mrb[0].mxu0
      %v802 = vadd.f32 0.0, %v801
      %v803 = vpop.f32.mrb[0].mxu0
      %804 = vmatprep.mubr.f32.mxu0 0.0
      %805 = vmatmul.mubr.f32.gmra.mrb[0].mxu0 %v733
      %v806 = vpop.f32.mrb[0].mxu0
      %v807 = vadd.f32 0.0, %v806
      %v808 = vpop.f32.mrb[0].mxu0
      %809 = vdwg.mxu0
      %v810 = vmul.f32 %v723, 0.00390625
      %v811 = vmul.f32 %v728, 0.00390625
      %v812 = vmul.f32 %v802, 0.00390625
      %v813 = vmul.f32 %v807, 0.00390625
      %v814 = vsub.f32 %v445, %v810
      %v815 = vsub.f32 %v446, %v811
      %v816 = vsub.f32 %v447, %v812
      %v817 = vsub.f32 %v448, %v813
      %819 = vset.pattern.permute.xlu0 0
      %820 = vperm.xlu0 %819, %v517
      %v821 = vpop.permute.xlu0 %820
      %824 = vset.pattern.permute.xlu0 0
      %825 = vperm.xlu0 %824, %v518
      %v826 = vpop.permute.xlu0 %825
      %829 = vset.pattern.permute.xlu0 0
      %830 = vperm.xlu0 %829, %v519
      %v831 = vpop.permute.xlu0 %830
      %834 = vset.pattern.permute.xlu0 0
      %835 = vperm.xlu0 %834, %v520
      %v836 = vpop.permute.xlu0 %835
      %v838 = vmul.f32 %v814, %v821
      %v839 = vmul.f32 %v815, %v826
      %v840 = vmul.f32 %v816, %v831
      %v841 = vmul.f32 %v817, %v836
      %v842 = vmul.f32 %v626, %v821
      %v843 = vmul.f32 %v627, %v826
      %v844 = vmul.f32 %v626, %v831
      %v845 = vmul.f32 %v627, %v836
      %v847 = vsel %vm162, %v838, 0
      %v850 = vsel %vm162, %v839, 0
      %852 = vmatprep.subr.mxu0 0.0
      %853 = vmatpush1.msra.mxu0 %v842
      %854 = vmatprep.subr.mxu0 0.0
      %855 = vmatpush1.msra.mxu0 %v843
      %856 = vmatprep.subr.mxu0 0.0
      %857 = vmatpush1.msra.mxu0 0.0
      %858 = vmatprep.subr.mxu0 0.0
      %859 = vmatpush1.msra.mxu0 0.0
      %860 = vmatprep.subr.mxu0 0.0
      %861 = vmatpush1.msra.mxu0 0.0
      %862 = vmatprep.subr.mxu0 0.0
      %863 = vmatpush1.msra.mxu0 0.0
      %864 = vmatprep.subr.mxu0 0.0
      %865 = vmatpush1.msra.mxu0 0.0
      %866 = vmatprep.subr.mxu0 0.0
      %867 = vmatpush1.msra.mxu0 0.0
      %868 = vmatprep.subr.mxu0 0.0
      %869 = vmatpush1.msra.mxu0 0.0
      %870 = vmatprep.subr.mxu0 0.0
      %871 = vmatpush1.msra.mxu0 0.0
      %872 = vmatprep.subr.mxu0 0.0
      %873 = vmatpush1.msra.mxu0 0.0
      %874 = vmatprep.subr.mxu0 0.0
      %875 = vmatpush1.msra.mxu0 0.0
      %876 = vmatprep.subr.mxu0 0.0
      %877 = vmatpush1.msra.mxu0 0.0
      %878 = vmatprep.subr.mxu0 0.0
      %879 = vmatpush1.msra.mxu0 0.0
      %880 = vmatprep.subr.mxu0 0.0
      %881 = vmatpush1.msra.mxu0 0.0
      %882 = vmatprep.subr.mxu0 0.0
      %883 = vmatpush1.msra.mxu0 0.0
      %884 = vmatprep.subr.mxu0 0.0
      %885 = vmatpush1.msra.mxu0 0.0
      %886 = vmatprep.subr.mxu0 0.0
      %887 = vmatpush1.msra.mxu0 0.0
      %888 = vmatprep.subr.mxu0 0.0
      %889 = vmatpush1.msra.mxu0 0.0
      %890 = vmatprep.subr.mxu0 0.0
      %891 = vmatpush1.msra.mxu0 0.0
      %892 = vmatprep.subr.mxu0 0.0
      %893 = vmatpush1.msra.mxu0 0.0
      %894 = vmatprep.subr.mxu0 0.0
      %895 = vmatpush1.msra.mxu0 0.0
      %896 = vmatprep.subr.mxu0 0.0
      %897 = vmatpush1.msra.mxu0 0.0
      %898 = vmatprep.subr.mxu0 0.0
      %899 = vmatpush1.msra.mxu0 0.0
      %900 = vmatprep.subr.mxu0 0.0
      %901 = vmatpush1.msra.mxu0 0.0
      %902 = vmatprep.subr.mxu0 0.0
      %903 = vmatpush1.msra.mxu0 0.0
      %904 = vmatprep.subr.mxu0 0.0
      %905 = vmatpush1.msra.mxu0 0.0
      %906 = vmatprep.subr.mxu0 0.0
      %907 = vmatpush1.msra.mxu0 0.0
      %908 = vmatprep.subr.mxu0 0.0
      %909 = vmatpush1.msra.mxu0 0.0
      %910 = vmatprep.subr.mxu0 0.0
      %911 = vmatpush1.msra.mxu0 0.0
      %912 = vmatprep.subr.mxu0 0.0
      %913 = vmatpush1.msra.mxu0 0.0
      %914 = vmatprep.subr.mxu0 0.0
      %915 = vmatpush1.msra.mxu0 0.0
      %916 = vmatprep.mubr.f32.mxu0 0.0
      %917 = vmatmul.mubr.f32.gmra.mrb[0].mxu0 %v847
      %v918 = vpop.f32.mrb[0].mxu0
      %v919 = vadd.f32 0.0, %v918
      %v920 = vpop.f32.mrb[0].mxu0
      %921 = vmatprep.mubr.f32.mxu0 0.0
      %922 = vmatmul.mubr.f32.gmra.mrb[0].mxu0 %v850
      %v923 = vpop.f32.mrb[0].mxu0
      %v924 = vadd.f32 0.0, %v923
      %v925 = vpop.f32.mrb[0].mxu0
      %926 = vdwg.mxu0
      %v928 = vsel %vm162, %v840, 0
      %v931 = vsel %vm162, %v841, 0
      %933 = vmatprep.subr.mxu0 0.0
      %934 = vmatpush1.msra.mxu0 %v844
      %935 = vmatprep.subr.mxu0 0.0
      %936 = vmatpush1.msra.mxu0 %v845
      %937 = vmatprep.subr.mxu0 0.0
      %938 = vmatpush1.msra.mxu0 0.0
      %939 = vmatprep.subr.mxu0 0.0
      %940 = vmatpush1.msra.mxu0 0.0
      %941 = vmatprep.subr.mxu0 0.0
      %942 = vmatpush1.msra.mxu0 0.0
      %943 = vmatprep.subr.mxu0 0.0
      %944 = vmatpush1.msra.mxu0 0.0
      %945 = vmatprep.subr.mxu0 0.0
      %946 = vmatpush1.msra.mxu0 0.0
      %947 = vmatprep.subr.mxu0 0.0
      %948 = vmatpush1.msra.mxu0 0.0
      %949 = vmatprep.subr.mxu0 0.0
      %950 = vmatpush1.msra.mxu0 0.0
      %951 = vmatprep.subr.mxu0 0.0
      %952 = vmatpush1.msra.mxu0 0.0
      %953 = vmatprep.subr.mxu0 0.0
      %954 = vmatpush1.msra.mxu0 0.0
      %955 = vmatprep.subr.mxu0 0.0
      %956 = vmatpush1.msra.mxu0 0.0
      %957 = vmatprep.subr.mxu0 0.0
      %958 = vmatpush1.msra.mxu0 0.0
      %959 = vmatprep.subr.mxu0 0.0
      %960 = vmatpush1.msra.mxu0 0.0
      %961 = vmatprep.subr.mxu0 0.0
      %962 = vmatpush1.msra.mxu0 0.0
      %963 = vmatprep.subr.mxu0 0.0
      %964 = vmatpush1.msra.mxu0 0.0
      %965 = vmatprep.subr.mxu0 0.0
      %966 = vmatpush1.msra.mxu0 0.0
      %967 = vmatprep.subr.mxu0 0.0
      %968 = vmatpush1.msra.mxu0 0.0
      %969 = vmatprep.subr.mxu0 0.0
      %970 = vmatpush1.msra.mxu0 0.0
      %971 = vmatprep.subr.mxu0 0.0
      %972 = vmatpush1.msra.mxu0 0.0
      %973 = vmatprep.subr.mxu0 0.0
      %974 = vmatpush1.msra.mxu0 0.0
      %975 = vmatprep.subr.mxu0 0.0
      %976 = vmatpush1.msra.mxu0 0.0
      %977 = vmatprep.subr.mxu0 0.0
      %978 = vmatpush1.msra.mxu0 0.0
      %979 = vmatprep.subr.mxu0 0.0
      %980 = vmatpush1.msra.mxu0 0.0
      %981 = vmatprep.subr.mxu0 0.0
      %982 = vmatpush1.msra.mxu0 0.0
      %983 = vmatprep.subr.mxu0 0.0
      %984 = vmatpush1.msra.mxu0 0.0
      %985 = vmatprep.subr.mxu0 0.0
      %986 = vmatpush1.msra.mxu0 0.0
      %987 = vmatprep.subr.mxu0 0.0
      %988 = vmatpush1.msra.mxu0 0.0
      %989 = vmatprep.subr.mxu0 0.0
      %990 = vmatpush1.msra.mxu0 0.0
      %991 = vmatprep.subr.mxu0 0.0
      %992 = vmatpush1.msra.mxu0 0.0
      %993 = vmatprep.subr.mxu0 0.0
      %994 = vmatpush1.msra.mxu0 0.0
      %995 = vmatprep.subr.mxu0 0.0
      %996 = vmatpush1.msra.mxu0 0.0
      %997 = vmatprep.mubr.f32.mxu0 0.0
      %998 = vmatmul.mubr.f32.gmra.mrb[0].mxu0 %v928
      %v999 = vpop.f32.mrb[0].mxu0
      %v1000 = vadd.f32 0.0, %v999
      %v1001 = vpop.f32.mrb[0].mxu0
      %1002 = vmatprep.mubr.f32.mxu0 0.0
      %1003 = vmatmul.mubr.f32.gmra.mrb[0].mxu0 %v931
      %v1004 = vpop.f32.mrb[0].mxu0
      %v1005 = vadd.f32 0.0, %v1004
      %v1006 = vpop.f32.mrb[0].mxu0
      %1007 = vdwg.mxu0
      %v1008 = vmul.f32 %v919, 0.00024414063
      %v1009 = vmul.f32 %v924, 0.00024414063
      %v1010 = vmul.f32 %v1000, 0.00024414063
      %v1011 = vmul.f32 %v1005, 0.00024414063
      %1013 = vset.pattern.permute.xlu0 0
      %1014 = vperm.xlu0 %1013, %v457
      %v1015 = vpop.permute.xlu0 %1014
      %1018 = vset.pattern.permute.xlu0 0
      %1019 = vperm.xlu0 %1018, %v458
      %v1020 = vpop.permute.xlu0 %1019
      %1023 = vset.pattern.permute.xlu0 0
      %1024 = vperm.xlu0 %1023, %v459
      %v1025 = vpop.permute.xlu0 %1024
      %1028 = vset.pattern.permute.xlu0 0
      %1029 = vperm.xlu0 %1028, %v460
      %v1030 = vpop.permute.xlu0 %1029
      %v1032 = vmul.f32 %v626, %v1015
      %v1033 = vmul.f32 %v627, %v1020
      %v1034 = vmul.f32 %v626, %v1025
      %v1035 = vmul.f32 %v627, %v1030
      %v1036 = vsel %vm162, %v1015, 0
      %v1038 = vsel %vm162, %v1020, 0
      %1040 = vmatprep.subr.mxu0 0.0
      %1041 = vmatpush1.msra.mxu0 %v1032
      %1042 = vmatprep.subr.mxu0 0.0
      %1043 = vmatpush1.msra.mxu0 %v1033
      %1044 = vmatprep.subr.mxu0 0.0
      %1045 = vmatpush1.msra.mxu0 0.0
      %1046 = vmatprep.subr.mxu0 0.0
      %1047 = vmatpush1.msra.mxu0 0.0
      %1048 = vmatprep.subr.mxu0 0.0
      %1049 = vmatpush1.msra.mxu0 0.0
      %1050 = vmatprep.subr.mxu0 0.0
      %1051 = vmatpush1.msra.mxu0 0.0
      %1052 = vmatprep.subr.mxu0 0.0
      %1053 = vmatpush1.msra.mxu0 0.0
      %1054 = vmatprep.subr.mxu0 0.0
      %1055 = vmatpush1.msra.mxu0 0.0
      %1056 = vmatprep.subr.mxu0 0.0
      %1057 = vmatpush1.msra.mxu0 0.0
      %1058 = vmatprep.subr.mxu0 0.0
      %1059 = vmatpush1.msra.mxu0 0.0
      %1060 = vmatprep.subr.mxu0 0.0
      %1061 = vmatpush1.msra.mxu0 0.0
      %1062 = vmatprep.subr.mxu0 0.0
      %1063 = vmatpush1.msra.mxu0 0.0
      %1064 = vmatprep.subr.mxu0 0.0
      %1065 = vmatpush1.msra.mxu0 0.0
      %1066 = vmatprep.subr.mxu0 0.0
      %1067 = vmatpush1.msra.mxu0 0.0
      %1068 = vmatprep.subr.mxu0 0.0
      %1069 = vmatpush1.msra.mxu0 0.0
      %1070 = vmatprep.subr.mxu0 0.0
      %1071 = vmatpush1.msra.mxu0 0.0
      %1072 = vmatprep.subr.mxu0 0.0
      %1073 = vmatpush1.msra.mxu0 0.0
      %1074 = vmatprep.subr.mxu0 0.0
      %1075 = vmatpush1.msra.mxu0 0.0
      %1076 = vmatprep.subr.mxu0 0.0
      %1077 = vmatpush1.msra.mxu0 0.0
      %1078 = vmatprep.subr.mxu0 0.0
      %1079 = vmatpush1.msra.mxu0 0.0
      %1080 = vmatprep.subr.mxu0 0.0
      %1081 = vmatpush1.msra.mxu0 0.0
      %1082 = vmatprep.subr.mxu0 0.0
      %1083 = vmatpush1.msra.mxu0 0.0
      %1084 = vmatprep.subr.mxu0 0.0
      %1085 = vmatpush1.msra.mxu0 0.0
      %1086 = vmatprep.subr.mxu0 0.0
      %1087 = vmatpush1.msra.mxu0 0.0
      %1088 = vmatprep.subr.mxu0 0.0
      %1089 = vmatpush1.msra.mxu0 0.0
      %1090 = vmatprep.subr.mxu0 0.0
      %1091 = vmatpush1.msra.mxu0 0.0
      %1092 = vmatprep.subr.mxu0 0.0
      %1093 = vmatpush1.msra.mxu0 0.0
      %1094 = vmatprep.subr.mxu0 0.0
      %1095 = vmatpush1.msra.mxu0 0.0
      %1096 = vmatprep.subr.mxu0 0.0
      %1097 = vmatpush1.msra.mxu0 0.0
      %1098 = vmatprep.subr.mxu0 0.0
      %1099 = vmatpush1.msra.mxu0 0.0
      %1100 = vmatprep.subr.mxu0 0.0
      %1101 = vmatpush1.msra.mxu0 0.0
      %1102 = vmatprep.subr.mxu0 0.0
      %1103 = vmatpush1.msra.mxu0 0.0
      %1104 = vmatprep.mubr.f32.mxu0 0.0
      %1105 = vmatmul.mubr.f32.gmra.mrb[0].mxu0 %v1036
      %v1106 = vpop.f32.mrb[0].mxu0
      %v1107 = vadd.f32 0.0, %v1106
      %v1108 = vpop.f32.mrb[0].mxu0
      %1109 = vmatprep.mubr.f32.mxu0 0.0
      %1110 = vmatmul.mubr.f32.gmra.mrb[0].mxu0 %v1038
      %v1111 = vpop.f32.mrb[0].mxu0
      %v1112 = vadd.f32 0.0, %v1111
      %v1113 = vpop.f32.mrb[0].mxu0
      %1114 = vdwg.mxu0
      %v1115 = vsel %vm162, %v1025, 0
      %v1117 = vsel %vm162, %v1030, 0
      %1119 = vmatprep.subr.mxu0 0.0
      %1120 = vmatpush1.msra.mxu0 %v1034
      %1121 = vmatprep.subr.mxu0 0.0
      %1122 = vmatpush1.msra.mxu0 %v1035
      %1123 = vmatprep.subr.mxu0 0.0
      %1124 = vmatpush1.msra.mxu0 0.0
      %1125 = vmatprep.subr.mxu0 0.0
      %1126 = vmatpush1.msra.mxu0 0.0
      %1127 = vmatprep.subr.mxu0 0.0
      %1128 = vmatpush1.msra.mxu0 0.0
      %1129 = vmatprep.subr.mxu0 0.0
      %1130 = vmatpush1.msra.mxu0 0.0
      %1131 = vmatprep.subr.mxu0 0.0
      %1132 = vmatpush1.msra.mxu0 0.0
      %1133 = vmatprep.subr.mxu0 0.0
      %1134 = vmatpush1.msra.mxu0 0.0
      %1135 = vmatprep.subr.mxu0 0.0
      %1136 = vmatpush1.msra.mxu0 0.0
      %1137 = vmatprep.subr.mxu0 0.0
      %1138 = vmatpush1.msra.mxu0 0.0
      %1139 = vmatprep.subr.mxu0 0.0
      %1140 = vmatpush1.msra.mxu0 0.0
      %1141 = vmatprep.subr.mxu0 0.0
      %1142 = vmatpush1.msra.mxu0 0.0
      %1143 = vmatprep.subr.mxu0 0.0
      %1144 = vmatpush1.msra.mxu0 0.0
      %1145 = vmatprep.subr.mxu0 0.0
      %1146 = vmatpush1.msra.mxu0 0.0
      %1147 = vmatprep.subr.mxu0 0.0
      %1148 = vmatpush1.msra.mxu0 0.0
      %1149 = vmatprep.subr.mxu0 0.0
      %1150 = vmatpush1.msra.mxu0 0.0
      %1151 = vmatprep.subr.mxu0 0.0
      %1152 = vmatpush1.msra.mxu0 0.0
      %1153 = vmatprep.subr.mxu0 0.0
      %1154 = vmatpush1.msra.mxu0 0.0
      %1155 = vmatprep.subr.mxu0 0.0
      %1156 = vmatpush1.msra.mxu0 0.0
      %1157 = vmatprep.subr.mxu0 0.0
      %1158 = vmatpush1.msra.mxu0 0.0
      %1159 = vmatprep.subr.mxu0 0.0
      %1160 = vmatpush1.msra.mxu0 0.0
      %1161 = vmatprep.subr.mxu0 0.0
      %1162 = vmatpush1.msra.mxu0 0.0
      %1163 = vmatprep.subr.mxu0 0.0
      %1164 = vmatpush1.msra.mxu0 0.0
      %1165 = vmatprep.subr.mxu0 0.0
      %1166 = vmatpush1.msra.mxu0 0.0
      %1167 = vmatprep.subr.mxu0 0.0
      %1168 = vmatpush1.msra.mxu0 0.0
      %1169 = vmatprep.subr.mxu0 0.0
      %1170 = vmatpush1.msra.mxu0 0.0
      %1171 = vmatprep.subr.mxu0 0.0
      %1172 = vmatpush1.msra.mxu0 0.0
      %1173 = vmatprep.subr.mxu0 0.0
      %1174 = vmatpush1.msra.mxu0 0.0
      %1175 = vmatprep.subr.mxu0 0.0
      %1176 = vmatpush1.msra.mxu0 0.0
      %1177 = vmatprep.subr.mxu0 0.0
      %1178 = vmatpush1.msra.mxu0 0.0
      %1179 = vmatprep.subr.mxu0 0.0
      %1180 = vmatpush1.msra.mxu0 0.0
      %1181 = vmatprep.subr.mxu0 0.0
      %1182 = vmatpush1.msra.mxu0 0.0
      %1183 = vmatprep.mubr.f32.mxu0 0.0
      %1184 = vmatmul.mubr.f32.gmra.mrb[0].mxu0 %v1115
      %v1185 = vpop.f32.mrb[0].mxu0
      %v1186 = vadd.f32 0.0, %v1185
      %v1187 = vpop.f32.mrb[0].mxu0
      %1188 = vmatprep.mubr.f32.mxu0 0.0
      %1189 = vmatmul.mubr.f32.gmra.mrb[0].mxu0 %v1117
      %v1190 = vpop.f32.mrb[0].mxu0
      %v1191 = vadd.f32 0.0, %v1190
      %v1192 = vpop.f32.mrb[0].mxu0
      %1193 = vdwg.mxu0
      %v1194 = vmul.f32 %v1107, 0.00390625
      %v1195 = vmul.f32 %v1112, 0.00390625
      %v1196 = vmul.f32 %v1186, 0.00390625
      %v1197 = vmul.f32 %v1191, 0.00390625
      %v1198 = vsub.f32 %v449, %v1194
      %v1199 = vsub.f32 %v450, %v1195
      %v1200 = vsub.f32 %v451, %v1196
      %v1201 = vsub.f32 %v452, %v1197
      %1203 = vset.pattern.permute.xlu0 0
      %1204 = vperm.xlu0 %1203, %v525
      %v1205 = vpop.permute.xlu0 %1204
      %1208 = vset.pattern.permute.xlu0 0
      %1209 = vperm.xlu0 %1208, %v526
      %v1210 = vpop.permute.xlu0 %1209
      %1213 = vset.pattern.permute.xlu0 0
      %1214 = vperm.xlu0 %1213, %v527
      %v1215 = vpop.permute.xlu0 %1214
      %1218 = vset.pattern.permute.xlu0 0
      %1219 = vperm.xlu0 %1218, %v528
      %v1220 = vpop.permute.xlu0 %1219
      %v1222 = vmul.f32 %v1198, %v1205
      %v1223 = vmul.f32 %v1199, %v1210
      %v1224 = vmul.f32 %v1200, %v1215
      %v1225 = vmul.f32 %v1201, %v1220
      %v1226 = vmul.f32 %v626, %v1205
      %v1227 = vmul.f32 %v627, %v1210
      %v1228 = vmul.f32 %v626, %v1215
      %v1229 = vmul.f32 %v627, %v1220
      %v1231 = vsel %vm162, %v1222, 0
      %v1234 = vsel %vm162, %v1223, 0
      %1236 = vmatprep.subr.mxu0 0.0
      %1237 = vmatpush1.msra.mxu0 %v1226
      %1238 = vmatprep.subr.mxu0 0.0
      %1239 = vmatpush1.msra.mxu0 %v1227
      %1240 = vmatprep.subr.mxu0 0.0
      %1241 = vmatpush1.msra.mxu0 0.0
      %1242 = vmatprep.subr.mxu0 0.0
      %1243 = vmatpush1.msra.mxu0 0.0
      %1244 = vmatprep.subr.mxu0 0.0
      %1245 = vmatpush1.msra.mxu0 0.0
      %1246 = vmatprep.subr.mxu0 0.0
      %1247 = vmatpush1.msra.mxu0 0.0
      %1248 = vmatprep.subr.mxu0 0.0
      %1249 = vmatpush1.msra.mxu0 0.0
      %1250 = vmatprep.subr.mxu0 0.0
      %1251 = vmatpush1.msra.mxu0 0.0
      %1252 = vmatprep.subr.mxu0 0.0
      %1253 = vmatpush1.msra.mxu0 0.0
      %1254 = vmatprep.subr.mxu0 0.0
      %1255 = vmatpush1.msra.mxu0 0.0
      %1256 = vmatprep.subr.mxu0 0.0
      %1257 = vmatpush1.msra.mxu0 0.0
      %1258 = vmatprep.subr.mxu0 0.0
      %1259 = vmatpush1.msra.mxu0 0.0
      %1260 = vmatprep.subr.mxu0 0.0
      %1261 = vmatpush1.msra.mxu0 0.0
      %1262 = vmatprep.subr.mxu0 0.0
      %1263 = vmatpush1.msra.mxu0 0.0
      %1264 = vmatprep.subr.mxu0 0.0
      %1265 = vmatpush1.msra.mxu0 0.0
      %1266 = vmatprep.subr.mxu0 0.0
      %1267 = vmatpush1.msra.mxu0 0.0
      %1268 = vmatprep.subr.mxu0 0.0
      %1269 = vmatpush1.msra.mxu0 0.0
      %1270 = vmatprep.subr.mxu0 0.0
      %1271 = vmatpush1.msra.mxu0 0.0
      %1272 = vmatprep.subr.mxu0 0.0
      %1273 = vmatpush1.msra.mxu0 0.0
      %1274 = vmatprep.subr.mxu0 0.0
      %1275 = vmatpush1.msra.mxu0 0.0
      %1276 = vmatprep.subr.mxu0 0.0
      %1277 = vmatpush1.msra.mxu0 0.0
      %1278 = vmatprep.subr.mxu0 0.0
      %1279 = vmatpush1.msra.mxu0 0.0
      %1280 = vmatprep.subr.mxu0 0.0
      %1281 = vmatpush1.msra.mxu0 0.0
      %1282 = vmatprep.subr.mxu0 0.0
      %1283 = vmatpush1.msra.mxu0 0.0
      %1284 = vmatprep.subr.mxu0 0.0
      %1285 = vmatpush1.msra.mxu0 0.0
      %1286 = vmatprep.subr.mxu0 0.0
      %1287 = vmatpush1.msra.mxu0 0.0
      %1288 = vmatprep.subr.mxu0 0.0
      %1289 = vmatpush1.msra.mxu0 0.0
      %1290 = vmatprep.subr.mxu0 0.0
      %1291 = vmatpush1.msra.mxu0 0.0
      %1292 = vmatprep.subr.mxu0 0.0
      %1293 = vmatpush1.msra.mxu0 0.0
      %1294 = vmatprep.subr.mxu0 0.0
      %1295 = vmatpush1.msra.mxu0 0.0
      %1296 = vmatprep.subr.mxu0 0.0
      %1297 = vmatpush1.msra.mxu0 0.0
      %1298 = vmatprep.subr.mxu0 0.0
      %1299 = vmatpush1.msra.mxu0 0.0
      %1300 = vmatprep.mubr.f32.mxu0 0.0
      %1301 = vmatmul.mubr.f32.gmra.mrb[0].mxu0 %v1231
      %v1302 = vpop.f32.mrb[0].mxu0
      %v1303 = vadd.f32 0.0, %v1302
      %v1304 = vpop.f32.mrb[0].mxu0
      %1305 = vmatprep.mubr.f32.mxu0 0.0
      %1306 = vmatmul.mubr.f32.gmra.mrb[0].mxu0 %v1234
      %v1307 = vpop.f32.mrb[0].mxu0
      %v1308 = vadd.f32 0.0, %v1307
      %v1309 = vpop.f32.mrb[0].mxu0
      %1310 = vdwg.mxu0
      %v1312 = vsel %vm162, %v1224, 0
      %v1315 = vsel %vm162, %v1225, 0
      %1317 = vmatprep.subr.mxu0 0.0
      %1318 = vmatpush1.msra.mxu0 %v1228
      %1319 = vmatprep.subr.mxu0 0.0
      %1320 = vmatpush1.msra.mxu0 %v1229
      %1321 = vmatprep.subr.mxu0 0.0
      %1322 = vmatpush1.msra.mxu0 0.0
      %1323 = vmatprep.subr.mxu0 0.0
      %1324 = vmatpush1.msra.mxu0 0.0
      %1325 = vmatprep.subr.mxu0 0.0
      %1326 = vmatpush1.msra.mxu0 0.0
      %1327 = vmatprep.subr.mxu0 0.0
      %1328 = vmatpush1.msra.mxu0 0.0
      %1329 = vmatprep.subr.mxu0 0.0
      %1330 = vmatpush1.msra.mxu0 0.0
      %1331 = vmatprep.subr.mxu0 0.0
      %1332 = vmatpush1.msra.mxu0 0.0
      %1333 = vmatprep.subr.mxu0 0.0
      %1334 = vmatpush1.msra.mxu0 0.0
      %1335 = vmatprep.subr.mxu0 0.0
      %1336 = vmatpush1.msra.mxu0 0.0
      %1337 = vmatprep.subr.mxu0 0.0
      %1338 = vmatpush1.msra.mxu0 0.0
      %1339 = vmatprep.subr.mxu0 0.0
      %1340 = vmatpush1.msra.mxu0 0.0
      %1341 = vmatprep.subr.mxu0 0.0
      %1342 = vmatpush1.msra.mxu0 0.0
      %1343 = vmatprep.subr.mxu0 0.0
      %1344 = vmatpush1.msra.mxu0 0.0
      %1345 = vmatprep.subr.mxu0 0.0
      %1346 = vmatpush1.msra.mxu0 0.0
      %1347 = vmatprep.subr.mxu0 0.0
      %1348 = vmatpush1.msra.mxu0 0.0
      %1349 = vmatprep.subr.mxu0 0.0
      %1350 = vmatpush1.msra.mxu0 0.0
      %1351 = vmatprep.subr.mxu0 0.0
      %1352 = vmatpush1.msra.mxu0 0.0
      %1353 = vmatprep.subr.mxu0 0.0
      %1354 = vmatpush1.msra.mxu0 0.0
      %1355 = vmatprep.subr.mxu0 0.0
      %1356 = vmatpush1.msra.mxu0 0.0
      %1357 = vmatprep.subr.mxu0 0.0
      %1358 = vmatpush1.msra.mxu0 0.0
      %1359 = vmatprep.subr.mxu0 0.0
      %1360 = vmatpush1.msra.mxu0 0.0
      %1361 = vmatprep.subr.mxu0 0.0
      %1362 = vmatpush1.msra.mxu0 0.0
      %1363 = vmatprep.subr.mxu0 0.0
      %1364 = vmatpush1.msra.mxu0 0.0
      %1365 = vmatprep.subr.mxu0 0.0
      %1366 = vmatpush1.msra.mxu0 0.0
      %1367 = vmatprep.subr.mxu0 0.0
      %1368 = vmatpush1.msra.mxu0 0.0
      %1369 = vmatprep.subr.mxu0 0.0
      %1370 = vmatpush1.msra.mxu0 0.0
      %1371 = vmatprep.subr.mxu0 0.0
      %1372 = vmatpush1.msra.mxu0 0.0
      %1373 = vmatprep.subr.mxu0 0.0
      %1374 = vmatpush1.msra.mxu0 0.0
      %1375 = vmatprep.subr.mxu0 0.0
      %1376 = vmatpush1.msra.mxu0 0.0
      %1377 = vmatprep.subr.mxu0 0.0
      %1378 = vmatpush1.msra.mxu0 0.0
      %1379 = vmatprep.subr.mxu0 0.0
      %1380 = vmatpush1.msra.mxu0 0.0
      %1381 = vmatprep.mubr.f32.mxu0 0.0
      %1382 = vmatmul.mubr.f32.gmra.mrb[0].mxu0 %v1312
      %v1383 = vpop.f32.mrb[0].mxu0
      %v1384 = vadd.f32 0.0, %v1383
      %v1385 = vpop.f32.mrb[0].mxu0
      %1386 = vmatprep.mubr.f32.mxu0 0.0
      %1387 = vmatmul.mubr.f32.gmra.mrb[0].mxu0 %v1315
      %v1388 = vpop.f32.mrb[0].mxu0
      %v1389 = vadd.f32 0.0, %v1388
      %v1390 = vpop.f32.mrb[0].mxu0
      %1391 = vdwg.mxu0
      %v1392 = vmul.f32 %v1303, 0.00024414063
      %v1393 = vmul.f32 %v1308, 0.00024414063
      %v1394 = vmul.f32 %v1384, 0.00024414063
      %v1395 = vmul.f32 %v1389, 0.00024414063
      %v1396 = vsub.f32 %v1008, %v1392
      %v1397 = vsub.f32 %v1009, %v1393
      %v1398 = vsub.f32 %v1010, %v1394
      %v1399 = vsub.f32 %v1011, %v1395
      %v1400 = vmul.f32 %v1396, %v1396
      %v1401 = vmul.f32 %v1397, %v1397
      %v1402 = vmul.f32 %v1398, %v1398
      %v1403 = vmul.f32 %v1399, %v1399
      %v1404 = vsel %vm162, %v1400, 0.0
      %v1405 = vsel %vm162, %v1401, 0.0
      %v1406 = vadd.f32 %v1404, %v1405
      %v1407 = vsel %vm162, %v1402, 0.0
      %v1408 = vadd.f32 %v1406, %v1407
      %v1409 = vsel %vm162, %v1403, 0.0
      %v1410 = vadd.f32 %v1408, %v1409
      %1411 = vadd.xlane.f32.xlu0 %v1410
      %v1412 = vpop.xlane.xlu0 %1411
      %v1413 = vrot.slane %v1412, 4
      %v1414 = vadd.f32 %v1412, %v1413
      %v1415 = vrot.slane %v1414, 2
      %v1416 = vadd.f32 %v1414, %v1415
      %v1417 = vrot.slane %v1416, 1
      %v1418 = vadd.f32 %v1416, %v1417
      %s1419 = vtos %v1418
      %s1420 = smul.f32 %s616, 0.008544922
      %s1421 = scalar_lea.smem [#allocation9], 0
      %1422 = sst [smem:[%s1421]] %s1420
      %s1423 = smul.f32 %s1419, 47851.563
      %s1424 = scalar_lea.smem [#allocation9], 1
      %1425 = sst [smem:[%s1424]] %s1423
    $region13: #{a_call__.10} parent=1 // pred_fallthru
      _
    // Predicated region
    $region14: #{a_call__.10} parent=1 // pred_check
      _
    $region15: #{a_call__.10} parent=1 // pred_check_branch
      %1427 = sbr.rel (0) target = $region17
    $region16: #{a_call__.10} parent=1 // pred_region
      %s1429 = ssub.s32 16, 16
      %1430 = vsyncadd [#allocation10], %s1429
      %s1432 = sshll.u32 %s1, 4
      %s1433 = int_to_ptr.vmem [resolvable:$true] %s1432
      %1435 = dma.smem_to_vmem [#allocation9], 16, %s1433, [#allocation10]
    $region17: #{a_call__.10} parent=1 // pred_fallthru
      _
    // Predicated region
    $region18: #{a_call__.10} parent=1 // pred_check
      _
    $region19: #{a_call__.10} parent=1 // pred_check_branch
      %1437 = sbr.rel (0) target = $region21
    $region20: #{a_call__.10} parent=1 // pred_region
      %1438 = dma.done [#allocation10], 16
    $region21: #{a_call__.10} parent=1 // pred_fallthru
      _
    %1439 = sfence
    %1440 = vsyncpa [#allocation10], 1

// kernel: a_call__.8
$region0: #{a_call__.8}
  #allocation0 [shape = 'u32[]', space=smem, size = 0x4, offset = 0x4, fixed_abs, tag = 'smem constant byte address 0x4 - core index']
  #allocation1 [shape = 'u32[144,128]{1,0:T(1,128)}', space=vmem, size = 0x12000, scoped, tag = 'internal scratch']
  %s0 = inlined_call_operand.vmem [shape: bf16[4,16,82], index: 0, kind: input, shape index: {}]
  %s1 = inlined_call_operand.vmem [shape: bf16[9,16,16], index: 1, kind: input, shape index: {}]
  %s2 = inlined_call_operand.vmem [shape: f32[16,1], index: 2, kind: input, shape index: {}]
  %s3 = inlined_call_operand.vmem [shape: bf16[4,16,64], index: 3, kind: output, shape index: {}]
  %s4 = sld [smem:[#allocation0]]
  $region45: #{a_call__.8} parent=0
    _
  %s6 = ssub.s32 1, %s4
  %s7 = scalar_select 0, %s6, %s4
  loop: start=0, step=1, limit=6
  $region2: #{a_call__.8} parent=0 // loop_pre_header
    _
  $region3: #{a_call__.8} parent=0 // loop_header
    %s9 = sphi 0, %s13
    %p10 = scmp.ge.s32.totalorder %s9, 6
    %s19 = sphi 0, %s21
    %s22 = sphi 0, %s19
    %s23 = sphi 0, %s22
    %s39 = sphi 0, %s23
    %s43 = sphi 0, %s43
    %s45 = sphi 0, %s43
    %s46 = sphi 0, %s45
    %s60 = sphi 0, %s46
    %s64 = sphi 0, %s64
    %s66 = sphi 0, %s64
    %s67 = sphi 0, %s66
    %s81 = sphi 0, %s67
    %s87 = sphi 0, %s89
    %s90 = sphi 0, %s87
    %s91 = sphi 0, %s90
    %s107 = sphi 0, %s91
  $region4: #{a_call__.8} parent=0 // loop_header_branch
    %12 = sbr.rel (%p10) target = $region8
  $region5: #{a_call__.8} parent=0 // loop_body
    %s14 = ssub.s32 %s9, 1
    %s15 = ssub.s32 %s9, 2
    %s16 = sadd.s32 %s9, 1
    %s17 = ssub.s32 %s9, %s16
    %p18 = scmp.eq.s32.totalorder %s17, 0
    %s20 = sadd.s32 %s19, 1
    %s21 = scalar_select %p18, %s19, %s20
    %p24 = pneg %p18
    %p25 = scmp.eq.s32.totalorder %s9, 3
    %p26 = por %p24, %p25
    %p27 = scmp.ne.s32.totalorder %s19, %s22
    %p28 = scmp.eq.s32.totalorder %s9, 0
    %p29 = por %p27, %p28
    %p30 = scmp.ne.s32.totalorder %s19, %s22
    %p31 = scmp.eq.s32.totalorder %s14, 3
    %p32 = por %p30, %p31
    %p33 = scmp.ne.s32.totalorder %s22, %s23
    %p34 = scmp.eq.s32.totalorder %s14, 0
    %p35 = por %p33, %p34
    %p36 = scmp.ne.s32.totalorder %s22, %s23
    %p37 = scmp.eq.s32.totalorder %s15, 3
    %p38 = por %p36, %p37
    %p40 = scmp.ne.s32.totalorder %s23, %s39
    %p41 = scmp.eq.s32.totalorder %s15, 0
    %p42 = por %p40, %p41
    %s44 = sadd.s32 %s43, 1
    %p47 = scmp.eq.s32.totalorder %s9, 3
    %p48 = scmp.ne.s32.totalorder %s43, %s45
    %p49 = scmp.eq.s32.totalorder %s9, 0
    %p50 = por %p48, %p49
    %p51 = scmp.ne.s32.totalorder %s43, %s45
    %p52 = scmp.eq.s32.totalorder %s14, 3
    %p53 = por %p51, %p52
    %p54 = scmp.ne.s32.totalorder %s45, %s46
    %p55 = scmp.eq.s32.totalorder %s14, 0
    %p56 = por %p54, %p55
    %p57 = scmp.ne.s32.totalorder %s45, %s46
    %p58 = scmp.eq.s32.totalorder %s15, 3
    %p59 = por %p57, %p58
    %p61 = scmp.ne.s32.totalorder %s46, %s60
    %p62 = scmp.eq.s32.totalorder %s15, 0
    %p63 = por %p61, %p62
    %s65 = sadd.s32 %s64, 1
    %p68 = scmp.eq.s32.totalorder %s9, 3
    %p69 = scmp.ne.s32.totalorder %s64, %s66
    %p70 = scmp.eq.s32.totalorder %s9, 0
    %p71 = por %p69, %p70
    %p72 = scmp.ne.s32.totalorder %s64, %s66
    %p73 = scmp.eq.s32.totalorder %s14, 3
    %p74 = por %p72, %p73
    %p75 = scmp.ne.s32.totalorder %s66, %s67
    %p76 = scmp.eq.s32.totalorder %s14, 0
    %p77 = por %p75, %p76
    %p78 = scmp.ne.s32.totalorder %s66, %s67
    %p79 = scmp.eq.s32.totalorder %s15, 3
    %p80 = por %p78, %p79
    %p82 = scmp.ne.s32.totalorder %s67, %s81
    %p83 = scmp.eq.s32.totalorder %s15, 0
    %p84 = por %p82, %p83
    %s85 = ssub.s32 %s9, %s16
    %p86 = scmp.eq.s32.totalorder %s85, 0
    %s88 = sadd.s32 %s87, 1
    %s89 = scalar_select %p86, %s87, %s88
    %p92 = pneg %p86
    %p93 = scmp.eq.s32.totalorder %s9, 3
    %p94 = por %p92, %p93
    %p95 = scmp.ne.s32.totalorder %s87, %s90
    %p96 = scmp.eq.s32.totalorder %s9, 0
    %p97 = por %p95, %p96
    %p98 = scmp.ne.s32.totalorder %s87, %s90
    %p99 = scmp.eq.s32.totalorder %s14, 3
    %p100 = por %p98, %p99
    %p101 = scmp.ne.s32.totalorder %s90, %s91
    %p102 = scmp.eq.s32.totalorder %s14, 0
    %p103 = por %p101, %p102
    %p104 = scmp.ne.s32.totalorder %s90, %s91
    %p105 = scmp.eq.s32.totalorder %s15, 3
    %p106 = por %p104, %p105
    %p108 = scmp.ne.s32.totalorder %s91, %s107
    %p109 = scmp.eq.s32.totalorder %s15, 0
    %p110 = por %p108, %p109
    %p111 = scmp.le.s32.totalorder 1, %s9
    %p112 = scmp.lt.s32.totalorder %s9, 5
    %p113 = pnand %p111, %p112
    %p114 = pneg %p113
    // Predicated region
    $region9: #{a_call__.8} parent=5 // pred_check
      _
    $region10: #{a_call__.8} parent=5 // pred_check_branch
      %116 = sbr.rel (%p113) target = $region12
    $region11: #{a_call__.8} parent=5 // pred_region
      %s117 = ssub.s32 %s9, 1
      // Predicated region
      $region13: #{a_call__.8} parent=11 // pred_check
        %p118 = pneg %p56
      $region14: #{a_call__.8} parent=11 // pred_check_branch
        %120 = sbr.rel (%p118) target = $region16
      $region15: #{a_call__.8} parent=11 // pred_region
        _
      $region16: #{a_call__.8} parent=11 // pred_fallthru
        _
      // Predicated region
      $region17: #{a_call__.8} parent=11 // pred_check
        %p121 = pneg %p77
      $region18: #{a_call__.8} parent=11 // pred_check_branch
        %123 = sbr.rel (%p121) target = $region20
      $region19: #{a_call__.8} parent=11 // pred_region
        _
      $region20: #{a_call__.8} parent=11 // pred_fallthru
        _
    $region12: #{a_call__.8} parent=5 // pred_fallthru
      _
    %p124 = scmp.lt.s32.totalorder %s9, 4
    // Predicated region
    $region21: #{a_call__.8} parent=5 // pred_check
      %p125 = pneg %p124
    $region22: #{a_call__.8} parent=5 // pred_check_branch
      %127 = sbr.rel (%p125) target = $region24
    $region23: #{a_call__.8} parent=5 // pred_region
      // Predicated region
      $region25: #{a_call__.8} parent=23 // pred_check
        %p128 = pneg %p29
      $region26: #{a_call__.8} parent=23 // pred_check_branch
        %130 = sbr.rel (%p128) target = $region28
      $region27: #{a_call__.8} parent=23 // pred_region
        %p131 = scmp.lt.s32.totalorder %s9, 3
        %s132 = scalar_select %p131, %s9, 3
        %s133 = smul.addr %s132, 2
        %s134 = smul.addr %s133, 4
        %s135 = scalar_lea.vmem %s0, %s134
      $region28: #{a_call__.8} parent=23 // pred_fallthru
        _
    $region24: #{a_call__.8} parent=5 // pred_fallthru
      _
    %p136 = scmp.le.s32.totalorder 1, %s9
    %p137 = scmp.lt.s32.totalorder %s9, 5
    %p138 = pnand %p136, %p137
    %p139 = pneg %p138
    // Predicated region
    $region29: #{a_call__.8} parent=5 // pred_check
      _
    $region30: #{a_call__.8} parent=5 // pred_check_branch
      %141 = sbr.rel (%p138) target = $region32
    $region31: #{a_call__.8} parent=5 // pred_region
      %s142 = ssub.s32 %s9, 1
      %p143 = scmp.lt.s32.totalorder %s14, 3
      %s144 = scalar_select %p143, %s14, 3
      %s145 = smul.addr %s144, 2
      %s146 = smul.addr %s145, 4
      %s147 = scalar_lea.vmem %s0, %s146
      %p148 = pneg %p35
      %p149 = pneg %p32
      %p150 = pneg %p56
      %p151 = pneg %p53
      %p152 = pneg %p77
      %p153 = pneg %p74
      %p154 = pneg %p103
      %p155 = pneg %p100
      %p156 = scmp.lt.s32.totalorder %s14, 3
      %s157 = scalar_select %p156, %s14, 3
      %s158 = smul.addr %s157, 2
      %s159 = smul.addr %s158, 4
      %s160 = scalar_lea.vmem %s3, %s159
      %p161 = scmp.lt.s32.totalorder %s14, 3
      %s162 = scalar_select %p161, %s14, 3
      %s163 = smul.addr %s162, 2
      %s164 = smul.addr %s163, 4
      %s165 = scalar_lea.vmem %s0, %s164
      %p166 = scmp.lt.s32.totalorder %s14, 3
      %s167 = scalar_select %p166, %s14, 3
      %s168 = smul.addr %s167, 2
      %s169 = smul.addr %s168, 4
      %s170 = scalar_lea.vmem %s3, %s169
      %v172 = vlaneseq
      %v173 = vand.u32 %v172, 127
      %vm174 = vcmp.lt.s32.totalorder %v173, 0
      %v175 = vsub.s32 0, %v173
      %v176 = vsel %vm174, %v175, %v173
      %v177 = vshrl.u32 %v176, 3
      %v178 = vand.u32 %v176, 7
      %v179 = vsub.s32 0, %v178
      %v180 = vsel %vm174, %v179, %v178
      %vm181 = vcmp.ne.s32.totalorder %v180, 0
      %vm182 = vcmp.lt.s32.totalorder %v180, 0
      %vm183 = vmand %vm182, %vm181
      %v184 = vadd.s32 %v180, 8
      %v185 = vsel %vm183, %v184, %v180
      %v186 = vld [vmem:[%s165] sm:$0xf]
      %v187 = vld [vmem:[%s165 + $0x4] sm:$0xf]
      %v188 = vld [vmem:[%s1] sm:$0xf]
      %v189 = vld [vmem:[%s1 + $0x4] sm:$0xf]
      %s190 = scalar_lea.vmem %s1, 24
      %v191 = vld [vmem:[%s190] sm:$0xf]
      %v192 = vld [vmem:[%s190 + $0x4] sm:$0xf]
      %v195 = vunpack.c.l.b16 %v191
      %v196 = vunpack.c.l.b16 %v192
      %v197 = vpack.c.b16 %v196, %v195
      %v200 = vunpack.c.l.b16 %v186
      %v201 = vunpack.c.l.b16 %v187
      %v202 = vpack.c.b16 %v201, %v200
      %203 = vrot.lane.b32.xlu0 %v202, 120
      %v204 = vpop.permute.xlu0 %203
      %vm206 = vcmask 130048
      %v208 = vsel %vm206, %v197, 0
      %210 = vmatprep.subr.bf16.mxu0 0
      %211 = vmatpush1.bf16.msra.mxu0 %v204
      %212 = vmatprep.subr.bf16.mxu0 0
      %213 = vmatpush1.bf16.msra.mxu0 0
      %214 = vmatprep.subr.bf16.mxu0 0
      %215 = vmatpush1.bf16.msra.mxu0 0
      %216 = vmatprep.subr.bf16.mxu0 0
      %217 = vmatpush1.bf16.msra.mxu0 0
      %218 = vmatprep.subr.bf16.mxu0 0
      %219 = vmatpush1.bf16.msra.mxu0 0
      %220 = vmatprep.subr.bf16.mxu0 0
      %221 = vmatpush1.bf16.msra.mxu0 0
      %222 = vmatprep.subr.bf16.mxu0 0
      %223 = vmatpush1.bf16.msra.mxu0 0
      %224 = vmatprep.subr.bf16.mxu0 0
      %225 = vmatpush1.bf16.msra.mxu0 0
      %226 = vmatprep.subr.bf16.mxu0 0
      %227 = vmatpush1.bf16.msra.mxu0 0
      %228 = vmatprep.subr.bf16.mxu0 0
      %229 = vmatpush1.bf16.msra.mxu0 0
      %230 = vmatprep.subr.bf16.mxu0 0
      %231 = vmatpush1.bf16.msra.mxu0 0
      %232 = vmatprep.subr.bf16.mxu0 0
      %233 = vmatpush1.bf16.msra.mxu0 0
      %234 = vmatprep.subr.bf16.mxu0 0
      %235 = vmatpush1.bf16.msra.mxu0 0
      %236 = vmatprep.subr.bf16.mxu0 0
      %237 = vmatpush1.bf16.msra.mxu0 0
      %238 = vmatprep.subr.bf16.mxu0 0
      %239 = vmatpush1.bf16.msra.mxu0 0
      %240 = vmatprep.subr.bf16.mxu0 0
      %241 = vmatpush1.bf16.msra.mxu0 0
      %242 = vmatprep.mubr.bf16.mxu0 0
      %243 = vmatmul.mubr.bf16.gmra.mrb[0].mxu0 %v208
      %v244 = vpop.f32.mrb[0].mxu0
      %v245 = vadd.f32 0.0, %v244
      %v246 = vpop.f32.mrb[0].mxu0
      %v247 = vpop.f32.mrb[0].mxu0
      %v248 = vadd.f32 0.0, %v247
      %v249 = vpop.f32.mrb[0].mxu0
      %250 = vdwg.mxu0
      %v253 = vunpack.c.l.b16 %v188
      %v254 = vunpack.c.l.b16 %v189
      %v255 = vpack.c.b16 %v254, %v253
      %v258 = vsel %vm206, %v255, 0
      %260 = vmatprep.subr.bf16.mxu0 0
      %261 = vmatpush1.bf16.msra.mxu0 %v202
      %262 = vmatprep.subr.bf16.mxu0 0
      %263 = vmatpush1.bf16.msra.mxu0 0
      %264 = vmatprep.subr.bf16.mxu0 0
      %265 = vmatpush1.bf16.msra.mxu0 0
      %266 = vmatprep.subr.bf16.mxu0 0
      %267 = vmatpush1.bf16.msra.mxu0 0
      %268 = vmatprep.subr.bf16.mxu0 0
      %269 = vmatpush1.bf16.msra.mxu0 0
      %270 = vmatprep.subr.bf16.mxu0 0
      %271 = vmatpush1.bf16.msra.mxu0 0
      %272 = vmatprep.subr.bf16.mxu0 0
      %273 = vmatpush1.bf16.msra.mxu0 0
      %274 = vmatprep.subr.bf16.mxu0 0
      %275 = vmatpush1.bf16.msra.mxu0 0
      %276 = vmatprep.subr.bf16.mxu0 0
      %277 = vmatpush1.bf16.msra.mxu0 0
      %278 = vmatprep.subr.bf16.mxu0 0
      %279 = vmatpush1.bf16.msra.mxu0 0
      %280 = vmatprep.subr.bf16.mxu0 0
      %281 = vmatpush1.bf16.msra.mxu0 0
      %282 = vmatprep.subr.bf16.mxu0 0
      %283 = vmatpush1.bf16.msra.mxu0 0
      %284 = vmatprep.subr.bf16.mxu0 0
      %285 = vmatpush1.bf16.msra.mxu0 0
      %286 = vmatprep.subr.bf16.mxu0 0
      %287 = vmatpush1.bf16.msra.mxu0 0
      %288 = vmatprep.subr.bf16.mxu0 0
      %289 = vmatpush1.bf16.msra.mxu0 0
      %290 = vmatprep.subr.bf16.mxu0 0
      %291 = vmatpush1.bf16.msra.mxu0 0
      %292 = vmatprep.mubr.bf16.mxu0 0
      %293 = vmatmul.mubr.bf16.gmra.mrb[0].mxu0 %v258
      %v294 = vpop.f32.mrb[0].mxu0
      %v295 = vadd.f32 %v245, %v294
      %v296 = vpop.f32.mrb[0].mxu0
      %v297 = vpop.f32.mrb[0].mxu0
      %v298 = vadd.f32 %v248, %v297
      %v299 = vpop.f32.mrb[0].mxu0
      %300 = vdwg.mxu0
      %s301 = scalar_lea.vmem %s1, 48
      %v302 = vld [vmem:[%s301] sm:$0xf]
      %v303 = vld [vmem:[%s301 + $0x4] sm:$0xf]
      %v306 = vunpack.c.l.b16 %v302
      %v307 = vunpack.c.l.b16 %v303
      %v308 = vpack.c.b16 %v307, %v306
      %309 = vrot.lane.b32.xlu0 %v202, 112
      %v310 = vpop.permute.xlu0 %309
      %v313 = vsel %vm206, %v308, 0
      %315 = vmatprep.subr.bf16.mxu0 0
      %316 = vmatpush1.bf16.msra.mxu0 %v310
      %317 = vmatprep.subr.bf16.mxu0 0
      %318 = vmatpush1.bf16.msra.mxu0 0
      %319 = vmatprep.subr.bf16.mxu0 0
      %320 = vmatpush1.bf16.msra.mxu0 0
      %321 = vmatprep.subr.bf16.mxu0 0
      %322 = vmatpush1.bf16.msra.mxu0 0
      %323 = vmatprep.subr.bf16.mxu0 0
      %324 = vmatpush1.bf16.msra.mxu0 0
      %325 = vmatprep.subr.bf16.mxu0 0
      %326 = vmatpush1.bf16.msra.mxu0 0
      %327 = vmatprep.subr.bf16.mxu0 0
      %328 = vmatpush1.bf16.msra.mxu0 0
      %329 = vmatprep.subr.bf16.mxu0 0
      %330 = vmatpush1.bf16.msra.mxu0 0
      %331 = vmatprep.subr.bf16.mxu0 0
      %332 = vmatpush1.bf16.msra.mxu0 0
      %333 = vmatprep.subr.bf16.mxu0 0
      %334 = vmatpush1.bf16.msra.mxu0 0
      %335 = vmatprep.subr.bf16.mxu0 0
      %336 = vmatpush1.bf16.msra.mxu0 0
      %337 = vmatprep.subr.bf16.mxu0 0
      %338 = vmatpush1.bf16.msra.mxu0 0
      %339 = vmatprep.subr.bf16.mxu0 0
      %340 = vmatpush1.bf16.msra.mxu0 0
      %341 = vmatprep.subr.bf16.mxu0 0
      %342 = vmatpush1.bf16.msra.mxu0 0
      %343 = vmatprep.subr.bf16.mxu0 0
      %344 = vmatpush1.bf16.msra.mxu0 0
      %345 = vmatprep.subr.bf16.mxu0 0
      %346 = vmatpush1.bf16.msra.mxu0 0
      %347 = vmatprep.mubr.bf16.mxu0 0
      %348 = vmatmul.mubr.bf16.gmra.mrb[0].mxu0 %v313
      %v349 = vpop.f32.mrb[0].mxu0
      %v350 = vadd.f32 0.0, %v349
      %v351 = vpop.f32.mrb[0].mxu0
      %v352 = vpop.f32.mrb[0].mxu0
      %v353 = vadd.f32 0.0, %v352
      %v354 = vpop.f32.mrb[0].mxu0
      %355 = vdwg.mxu0
      %v356 = vadd.f32 %v295, %v350
      %v357 = vadd.f32 %v298, %v353
      %vm358 = vcmp.ge.s32.totalorder %v185, 1
      %v359 = vsel %vm358, 1, 0
      %vm360 = vcmp.eq.s32.totalorder %v359, 1
      %v361 = vsel %vm360, %v356, 0.0
      %v362 = vsel %vm360, %v357, 0.0
      %v363 = vadd.f32 %v361, 0.0
      %v364 = vadd.f32 %v362, 0.0
      %s365 = scalar_lea.vmem %s1, 8
      %v366 = vld [vmem:[%s365] sm:$0xf]
      %v367 = vld [vmem:[%s365 + $0x4] sm:$0xf]
      %s368 = scalar_lea.vmem %s1, 32
      %v369 = vld [vmem:[%s368] sm:$0xf]
      %v370 = vld [vmem:[%s368 + $0x4] sm:$0xf]
      %v373 = vunpack.c.l.b16 %v369
      %v374 = vunpack.c.l.b16 %v370
      %v375 = vpack.c.b16 %v374, %v373
      %376 = vrot.lane.b32.xlu0 %v202, 119
      %v377 = vpop.permute.xlu0 %376
      %v380 = vsel %vm206, %v375, 0
      %382 = vmatprep.subr.bf16.mxu0 0
      %383 = vmatpush1.bf16.msra.mxu0 %v377
      %384 = vmatprep.subr.bf16.mxu0 0
      %385 = vmatpush1.bf16.msra.mxu0 0
      %386 = vmatprep.subr.bf16.mxu0 0
      %387 = vmatpush1.bf16.msra.mxu0 0
      %388 = vmatprep.subr.bf16.mxu0 0
      %389 = vmatpush1.bf16.msra.mxu0 0
      %390 = vmatprep.subr.bf16.mxu0 0
      %391 = vmatpush1.bf16.msra.mxu0 0
      %392 = vmatprep.subr.bf16.mxu0 0
      %393 = vmatpush1.bf16.msra.mxu0 0
      %394 = vmatprep.subr.bf16.mxu0 0
      %395 = vmatpush1.bf16.msra.mxu0 0
      %396 = vmatprep.subr.bf16.mxu0 0
      %397 = vmatpush1.bf16.msra.mxu0 0
      %398 = vmatprep.subr.bf16.mxu0 0
      %399 = vmatpush1.bf16.msra.mxu0 0
      %400 = vmatprep.subr.bf16.mxu0 0
      %401 = vmatpush1.bf16.msra.mxu0 0
      %402 = vmatprep.subr.bf16.mxu0 0
      %403 = vmatpush1.bf16.msra.mxu0 0
      %404 = vmatprep.subr.bf16.mxu0 0
      %405 = vmatpush1.bf16.msra.mxu0 0
      %406 = vmatprep.subr.bf16.mxu0 0
      %407 = vmatpush1.bf16.msra.mxu0 0
      %408 = vmatprep.subr.bf16.mxu0 0
      %409 = vmatpush1.bf16.msra.mxu0 0
      %410 = vmatprep.subr.bf16.mxu0 0
      %411 = vmatpush1.bf16.msra.mxu0 0
      %412 = vmatprep.subr.bf16.mxu0 0
      %413 = vmatpush1.bf16.msra.mxu0 0
      %414 = vmatprep.mubr.bf16.mxu0 0
      %415 = vmatmul.mubr.bf16.gmra.mrb[0].mxu0 %v380
      %v416 = vpop.f32.mrb[0].mxu0
      %v417 = vadd.f32 0.0, %v416
      %v418 = vpop.f32.mrb[0].mxu0
      %v419 = vpop.f32.mrb[0].mxu0
      %v420 = vadd.f32 0.0, %v419
      %v421 = vpop.f32.mrb[0].mxu0
      %422 = vdwg.mxu0
      %v425 = vunpack.c.l.b16 %v366
      %v426 = vunpack.c.l.b16 %v367
      %v427 = vpack.c.b16 %v426, %v425
      %428 = vrot.lane.b32.xlu0 %v202, 127
      %v429 = vpop.permute.xlu0 %428
      %v432 = vsel %vm206, %v427, 0
      %434 = vmatprep.subr.bf16.mxu0 0
      %435 = vmatpush1.bf16.msra.mxu0 %v429
      %436 = vmatprep.subr.bf16.mxu0 0
      %437 = vmatpush1.bf16.msra.mxu0 0
      %438 = vmatprep.subr.bf16.mxu0 0
      %439 = vmatpush1.bf16.msra.mxu0 0
      %440 = vmatprep.subr.bf16.mxu0 0
      %441 = vmatpush1.bf16.msra.mxu0 0
      %442 = vmatprep.subr.bf16.mxu0 0
      %443 = vmatpush1.bf16.msra.mxu0 0
      %444 = vmatprep.subr.bf16.mxu0 0
      %445 = vmatpush1.bf16.msra.mxu0 0
      %446 = vmatprep.subr.bf16.mxu0 0
      %447 = vmatpush1.bf16.msra.mxu0 0
      %448 = vmatprep.subr.bf16.mxu0 0
      %449 = vmatpush1.bf16.msra.mxu0 0
      %450 = vmatprep.subr.bf16.mxu0 0
      %451 = vmatpush1.bf16.msra.mxu0 0
      %452 = vmatprep.subr.bf16.mxu0 0
      %453 = vmatpush1.bf16.msra.mxu0 0
      %454 = vmatprep.subr.bf16.mxu0 0
      %455 = vmatpush1.bf16.msra.mxu0 0
      %456 = vmatprep.subr.bf16.mxu0 0
      %457 = vmatpush1.bf16.msra.mxu0 0
      %458 = vmatprep.subr.bf16.mxu0 0
      %459 = vmatpush1.bf16.msra.mxu0 0
      %460 = vmatprep.subr.bf16.mxu0 0
      %461 = vmatpush1.bf16.msra.mxu0 0
      %462 = vmatprep.subr.bf16.mxu0 0
      %463 = vmatpush1.bf16.msra.mxu0 0
      %464 = vmatprep.subr.bf16.mxu0 0
      %465 = vmatpush1.bf16.msra.mxu0 0
      %466 = vmatprep.mubr.bf16.mxu0 0
      %467 = vmatmul.mubr.bf16.gmra.mrb[0].mxu0 %v432
      %v468 = vpop.f32.mrb[0].mxu0
      %v469 = vadd.f32 %v417, %v468
      %v470 = vpop.f32.mrb[0].mxu0
      %v471 = vpop.f32.mrb[0].mxu0
      %v472 = vadd.f32 %v420, %v471
      %v473 = vpop.f32.mrb[0].mxu0
      %474 = vdwg.mxu0
      %s475 = scalar_lea.vmem %s1, 56
      %v476 = vld [vmem:[%s475] sm:$0xf]
      %v477 = vld [vmem:[%s475 + $0x4] sm:$0xf]
      %v480 = vunpack.c.l.b16 %v476
      %v481 = vunpack.c.l.b16 %v477
      %v482 = vpack.c.b16 %v481, %v480
      %483 = vrot.lane.b32.xlu0 %v202, 111
      %v484 = vpop.permute.xlu0 %483
      %v487 = vsel %vm206, %v482, 0
      %489 = vmatprep.subr.bf16.mxu0 0
      %490 = vmatpush1.bf16.msra.mxu0 %v484
      %491 = vmatprep.subr.bf16.mxu0 0
      %492 = vmatpush1.bf16.msra.mxu0 0
      %493 = vmatprep.subr.bf16.mxu0 0
      %494 = vmatpush1.bf16.msra.mxu0 0
      %495 = vmatprep.subr.bf16.mxu0 0
      %496 = vmatpush1.bf16.msra.mxu0 0
      %497 = vmatprep.subr.bf16.mxu0 0
      %498 = vmatpush1.bf16.msra.mxu0 0
      %499 = vmatprep.subr.bf16.mxu0 0
      %500 = vmatpush1.bf16.msra.mxu0 0
      %501 = vmatprep.subr.bf16.mxu0 0
      %502 = vmatpush1.bf16.msra.mxu0 0
      %503 = vmatprep.subr.bf16.mxu0 0
      %504 = vmatpush1.bf16.msra.mxu0 0
      %505 = vmatprep.subr.bf16.mxu0 0
      %506 = vmatpush1.bf16.msra.mxu0 0
      %507 = vmatprep.subr.bf16.mxu0 0
      %508 = vmatpush1.bf16.msra.mxu0 0
      %509 = vmatprep.subr.bf16.mxu0 0
      %510 = vmatpush1.bf16.msra.mxu0 0
      %511 = vmatprep.subr.bf16.mxu0 0
      %512 = vmatpush1.bf16.msra.mxu0 0
      %513 = vmatprep.subr.bf16.mxu0 0
      %514 = vmatpush1.bf16.msra.mxu0 0
      %515 = vmatprep.subr.bf16.mxu0 0
      %516 = vmatpush1.bf16.msra.mxu0 0
      %517 = vmatprep.subr.bf16.mxu0 0
      %518 = vmatpush1.bf16.msra.mxu0 0
      %519 = vmatprep.subr.bf16.mxu0 0
      %520 = vmatpush1.bf16.msra.mxu0 0
      %521 = vmatprep.mubr.bf16.mxu0 0
      %522 = vmatmul.mubr.bf16.gmra.mrb[0].mxu0 %v487
      %v523 = vpop.f32.mrb[0].mxu0
      %v524 = vadd.f32 0.0, %v523
      %v525 = vpop.f32.mrb[0].mxu0
      %v526 = vpop.f32.mrb[0].mxu0
      %v527 = vadd.f32 0.0, %v526
      %v528 = vpop.f32.mrb[0].mxu0
      %529 = vdwg.mxu0
      %v530 = vadd.f32 %v469, %v524
      %v531 = vadd.f32 %v472, %v527
      %v532 = vadd.f32 %v363, %v530
      %v533 = vadd.f32 %v364, %v531
      %s534 = scalar_lea.vmem %s1, 16
      %v535 = vld [vmem:[%s534] sm:$0xf]
      %v536 = vld [vmem:[%s534 + $0x4] sm:$0xf]
      %s537 = scalar_lea.vmem %s1, 40
      %v538 = vld [vmem:[%s537] sm:$0xf]
      %v539 = vld [vmem:[%s537 + $0x4] sm:$0xf]
      %v542 = vunpack.c.l.b16 %v538
      %v543 = vunpack.c.l.b16 %v539
      %v544 = vpack.c.b16 %v543, %v542
      %545 = vrot.lane.b32.xlu0 %v202, 118
      %v546 = vpop.permute.xlu0 %545
      %v549 = vsel %vm206, %v544, 0
      %551 = vmatprep.subr.bf16.mxu0 0
      %552 = vmatpush1.bf16.msra.mxu0 %v546
      %553 = vmatprep.subr.bf16.mxu0 0
      %554 = vmatpush1.bf16.msra.mxu0 0
      %555 = vmatprep.subr.bf16.mxu0 0
      %556 = vmatpush1.bf16.msra.mxu0 0
      %557 = vmatprep.subr.bf16.mxu0 0
      %558 = vmatpush1.bf16.msra.mxu0 0
      %559 = vmatprep.subr.bf16.mxu0 0
      %560 = vmatpush1.bf16.msra.mxu0 0
      %561 = vmatprep.subr.bf16.mxu0 0
      %562 = vmatpush1.bf16.msra.mxu0 0
      %563 = vmatprep.subr.bf16.mxu0 0
      %564 = vmatpush1.bf16.msra.mxu0 0
      %565 = vmatprep.subr.bf16.mxu0 0
      %566 = vmatpush1.bf16.msra.mxu0 0
      %567 = vmatprep.subr.bf16.mxu0 0
      %568 = vmatpush1.bf16.msra.mxu0 0
      %569 = vmatprep.subr.bf16.mxu0 0
      %570 = vmatpush1.bf16.msra.mxu0 0
      %571 = vmatprep.subr.bf16.mxu0 0
      %572 = vmatpush1.bf16.msra.mxu0 0
      %573 = vmatprep.subr.bf16.mxu0 0
      %574 = vmatpush1.bf16.msra.mxu0 0
      %575 = vmatprep.subr.bf16.mxu0 0
      %576 = vmatpush1.bf16.msra.mxu0 0
      %577 = vmatprep.subr.bf16.mxu0 0
      %578 = vmatpush1.bf16.msra.mxu0 0
      %579 = vmatprep.subr.bf16.mxu0 0
      %580 = vmatpush1.bf16.msra.mxu0 0
      %581 = vmatprep.subr.bf16.mxu0 0
      %582 = vmatpush1.bf16.msra.mxu0 0
      %583 = vmatprep.mubr.bf16.mxu0 0
      %584 = vmatmul.mubr.bf16.gmra.mrb[0].mxu0 %v549
      %v585 = vpop.f32.mrb[0].mxu0
      %v586 = vadd.f32 0.0, %v585
      %v587 = vpop.f32.mrb[0].mxu0
      %v588 = vpop.f32.mrb[0].mxu0
      %v589 = vadd.f32 0.0, %v588
      %v590 = vpop.f32.mrb[0].mxu0
      %591 = vdwg.mxu0
      %v594 = vunpack.c.l.b16 %v535
      %v595 = vunpack.c.l.b16 %v536
      %v596 = vpack.c.b16 %v595, %v594
      %597 = vrot.lane.b32.xlu0 %v202, 126
      %v598 = vpop.permute.xlu0 %597
      %v601 = vsel %vm206, %v596, 0
      %603 = vmatprep.subr.bf16.mxu0 0
      %604 = vmatpush1.bf16.msra.mxu0 %v598
      %605 = vmatprep.subr.bf16.mxu0 0
      %606 = vmatpush1.bf16.msra.mxu0 0
      %607 = vmatprep.subr.bf16.mxu0 0
      %608 = vmatpush1.bf16.msra.mxu0 0
      %609 = vmatprep.subr.bf16.mxu0 0
      %610 = vmatpush1.bf16.msra.mxu0 0
      %611 = vmatprep.subr.bf16.mxu0 0
      %612 = vmatpush1.bf16.msra.mxu0 0
      %613 = vmatprep.subr.bf16.mxu0 0
      %614 = vmatpush1.bf16.msra.mxu0 0
      %615 = vmatprep.subr.bf16.mxu0 0
      %616 = vmatpush1.bf16.msra.mxu0 0
      %617 = vmatprep.subr.bf16.mxu0 0
      %618 = vmatpush1.bf16.msra.mxu0 0
      %619 = vmatprep.subr.bf16.mxu0 0
      %620 = vmatpush1.bf16.msra.mxu0 0
      %621 = vmatprep.subr.bf16.mxu0 0
      %622 = vmatpush1.bf16.msra.mxu0 0
      %623 = vmatprep.subr.bf16.mxu0 0
      %624 = vmatpush1.bf16.msra.mxu0 0
      %625 = vmatprep.subr.bf16.mxu0 0
      %626 = vmatpush1.bf16.msra.mxu0 0
      %627 = vmatprep.subr.bf16.mxu0 0
      %628 = vmatpush1.bf16.msra.mxu0 0
      %629 = vmatprep.subr.bf16.mxu0 0
      %630 = vmatpush1.bf16.msra.mxu0 0
      %631 = vmatprep.subr.bf16.mxu0 0
      %632 = vmatpush1.bf16.msra.mxu0 0
      %633 = vmatprep.subr.bf16.mxu0 0
      %634 = vmatpush1.bf16.msra.mxu0 0
      %635 = vmatprep.mubr.bf16.mxu0 0
      %636 = vmatmul.mubr.bf16.gmra.mrb[0].mxu0 %v601
      %v637 = vpop.f32.mrb[0].mxu0
      %v638 = vadd.f32 %v586, %v637
      %v639 = vpop.f32.mrb[0].mxu0
      %v640 = vpop.f32.mrb[0].mxu0
      %v641 = vadd.f32 %v589, %v640
      %v642 = vpop.f32.mrb[0].mxu0
      %643 = vdwg.mxu0
      %s644 = scalar_lea.vmem %s1, 64
      %v645 = vld [vmem:[%s644] sm:$0xf]
      %v646 = vld [vmem:[%s644 + $0x4] sm:$0xf]
      %v649 = vunpack.c.l.b16 %v645
      %v650 = vunpack.c.l.b16 %v646
      %v651 = vpack.c.b16 %v650, %v649
      %652 = vrot.lane.b32.xlu0 %v202, 110
      %v653 = vpop.permute.xlu0 %652
      %v656 = vsel %vm206, %v651, 0
      %658 = vmatprep.subr.bf16.mxu0 0
      %659 = vmatpush1.bf16.msra.mxu0 %v653
      %660 = vmatprep.subr.bf16.mxu0 0
      %661 = vmatpush1.bf16.msra.mxu0 0
      %662 = vmatprep.subr.bf16.mxu0 0
      %663 = vmatpush1.bf16.msra.mxu0 0
      %664 = vmatprep.subr.bf16.mxu0 0
      %665 = vmatpush1.bf16.msra.mxu0 0
      %666 = vmatprep.subr.bf16.mxu0 0
      %667 = vmatpush1.bf16.msra.mxu0 0
      %668 = vmatprep.subr.bf16.mxu0 0
      %669 = vmatpush1.bf16.msra.mxu0 0
      %670 = vmatprep.subr.bf16.mxu0 0
      %671 = vmatpush1.bf16.msra.mxu0 0
      %672 = vmatprep.subr.bf16.mxu0 0
      %673 = vmatpush1.bf16.msra.mxu0 0
      %674 = vmatprep.subr.bf16.mxu0 0
      %675 = vmatpush1.bf16.msra.mxu0 0
      %676 = vmatprep.subr.bf16.mxu0 0
      %677 = vmatpush1.bf16.msra.mxu0 0
      %678 = vmatprep.subr.bf16.mxu0 0
      %679 = vmatpush1.bf16.msra.mxu0 0
      %680 = vmatprep.subr.bf16.mxu0 0
      %681 = vmatpush1.bf16.msra.mxu0 0
      %682 = vmatprep.subr.bf16.mxu0 0
      %683 = vmatpush1.bf16.msra.mxu0 0
      %684 = vmatprep.subr.bf16.mxu0 0
      %685 = vmatpush1.bf16.msra.mxu0 0
      %686 = vmatprep.subr.bf16.mxu0 0
      %687 = vmatpush1.bf16.msra.mxu0 0
      %688 = vmatprep.subr.bf16.mxu0 0
      %689 = vmatpush1.bf16.msra.mxu0 0
      %690 = vmatprep.mubr.bf16.mxu0 0
      %691 = vmatmul.mubr.bf16.gmra.mrb[0].mxu0 %v656
      %v692 = vpop.f32.mrb[0].mxu0
      %v693 = vadd.f32 0.0, %v692
      %v694 = vpop.f32.mrb[0].mxu0
      %v695 = vpop.f32.mrb[0].mxu0
      %v696 = vadd.f32 0.0, %v695
      %v697 = vpop.f32.mrb[0].mxu0
      %698 = vdwg.mxu0
      %v699 = vadd.f32 %v638, %v693
      %v700 = vadd.f32 %v641, %v696
      %vm701 = vcmp.le.s32.totalorder %v185, 6
      %v702 = vsel %vm701, 1, 0
      %vm703 = vcmp.eq.s32.totalorder %v702, 1
      %v704 = vsel %vm703, %v699, 0.0
      %v705 = vsel %vm703, %v700, 0.0
      %v706 = vadd.f32 %v532, %v704
      %v707 = vadd.f32 %v533, %v705
      %v708 = vld [vmem:[%s2] sm:$0xff]
      %v709 = vld [vmem:[%s2 + $0x8] sm:$0xff]
      %711 = vset.pattern.permute.xlu0 0
      %712 = vperm.xlu0 %711, %v708
      %v713 = vpop.permute.xlu0 %712
      %716 = vset.pattern.permute.xlu0 0
      %717 = vperm.xlu0 %716, %v709
      %v718 = vpop.permute.xlu0 %717
      %v720 = vadd.f32 %v706, %v713
      %v721 = vadd.f32 %v707, %v718
      %v722 = vmax.f32 %v720, 0.0
      %v723 = vmax.f32 %v721, 0.0
      %v724 = vpack.c.bf16 %v723, %v722
      %v726 = vunpack.c.l.b16 %v724
      %v727 = vunpack.c.h.b16 %v724
      %v728 = vpack.c.b16 %v726, %v726
      %v729 = vpack.c.b16 %v727, %v727
      %vm732 = vcmask 519168
      %733 = vst.msk [vmem:[%s170] sm:$0xf] %vm732, %v728
      %734 = vst.msk [vmem:[%s170 + $0x4] sm:$0xf] %vm732, %v729
      %p735 = scmp.lt.s32.totalorder %s14, 3
      %s736 = scalar_select %p735, %s14, 3
      %s737 = smul.addr %s736, 2
      %s738 = smul.addr %s737, 4
      %s739 = scalar_lea.vmem %s3, %s738
      // Predicated region
      $region33: #{a_call__.8} parent=31 // pred_check
        %p740 = pneg %p100
      $region34: #{a_call__.8} parent=31 // pred_check_branch
        %742 = sbr.rel (%p740) target = $region36
      $region35: #{a_call__.8} parent=31 // pred_region
        _
      $region36: #{a_call__.8} parent=31 // pred_fallthru
        _
    $region32: #{a_call__.8} parent=5 // pred_fallthru
      _
    %p743 = scmp.le.s32.totalorder 2, %s9
    // Predicated region
    $region37: #{a_call__.8} parent=5 // pred_check
      %p744 = pneg %p743
    $region38: #{a_call__.8} parent=5 // pred_check_branch
      %746 = sbr.rel (%p744) target = $region40
    $region39: #{a_call__.8} parent=5 // pred_region
      %s747 = ssub.s32 %s9, 2
      // Predicated region
      $region41: #{a_call__.8} parent=39 // pred_check
        %p748 = pneg %p106
      $region42: #{a_call__.8} parent=39 // pred_check_branch
        %750 = sbr.rel (%p748) target = $region44
      $region43: #{a_call__.8} parent=39 // pred_region
        %p751 = scmp.lt.s32.totalorder %s15, 3
        %s752 = scalar_select %p751, %s15, 3
        %s753 = smul.addr %s752, 2
        %s754 = smul.addr %s753, 4
        %s755 = scalar_lea.vmem %s3, %s754
      $region44: #{a_call__.8} parent=39 // pred_fallthru
        _
    $region40: #{a_call__.8} parent=5 // pred_fallthru
      _
  $region6: #{a_call__.8} parent=0 // loop_footer
    %s13 = sadd.s32 1, %s9
  $region7: #{a_call__.8} parent=0 // loop_footer_branch
    %8 = sbr.rel target = $region3
  $region8: #{a_call__.8} parent=0 // loop_exit
    _

// kernel: a_call__.11
$region0: #{a_call__.11}
  #allocation0 [shape = 'u32[]', space=smem, size = 0x4, offset = 0x4, fixed_abs, tag = 'smem constant byte address 0x4 - core index']
  #allocation1 [shape = 'u32[144,128]{1,0:T(1,128)}', space=vmem, size = 0x12000, scoped, tag = 'internal scratch']
  #allocation2 [shape = 'f32[2,16,16]{2,1,0:T(8,128)}', space=vmem, size = 0x4000, scoped, tag = 'scratch operand']
  #allocation3 [shape = 'f32[2,16,16]{2,1,0:T(8,128)}', space=vmem, size = 0x4000, scoped, tag = 'scratch operand']
  #allocation4 [shape = 'f32[2,16,1]{2,1,0:T(8,128)}', space=vmem, size = 0x4000, scoped, tag = 'scratch operand']
  #allocation5 [shape = 'f32[2,16,1]{2,1,0:T(8,128)}', space=vmem, size = 0x4000, scoped, tag = 'scratch operand']
  #allocation6 [shape = 'f32[2,16,1]{2,1,0:T(8,128)}', space=vmem, size = 0x4000, scoped, tag = 'scratch operand']
  #allocation7 [shape = 'f32[2,16,1]{2,1,0:T(8,128)}', space=vmem, size = 0x4000, scoped, tag = 'scratch operand']
  #allocation8 [shape = 'f32[2,16,1]{2,1,0:T(8,128)}', space=vmem, size = 0x4000, scoped, tag = 'scratch operand']
  %s0 = inlined_call_operand.vmem [shape: bf16[4,16,64], index: 0, kind: input, shape index: {}]
  %s1 = inlined_call_operand.vmem [shape: f32[1,2], index: 1, kind: output, shape index: {}]
  %s2 = sld [smem:[#allocation0]]
  $region22: #{a_call__.11} parent=0
    _
  %s4 = ssub.s32 1, %s2
  %s5 = scalar_select 0, %s4, %s2
  $region1: #{a_call__.11} parent=0
    #allocation9 [shape = 'u8[512]{0}', space=smem, size = 0x200, scoped, tag = 'output window, operand 0, single buffered']
    #allocation10 [shape = 's32[1]{0}', space=sflag, size = 0x4, scoped, tag = 'scoped memory for a_call__.11']
    %6 = vsyncpa [#allocation10], 0
    // Predicated region
    $region2: #{a_call__.11} parent=1 // pred_check
      _
    $region3: #{a_call__.11} parent=1 // pred_check_branch
      %8 = sbr.rel (0) target = $region5
    $region4: #{a_call__.11} parent=1 // pred_region
      _
    $region5: #{a_call__.11} parent=1 // pred_fallthru
      _
    %p10 = scmp.eq.s32.totalorder 0, 0
    // Predicated region
    $region6: #{a_call__.11} parent=1 // pred_check
      %p11 = pneg %p10
    $region7: #{a_call__.11} parent=1 // pred_check_branch
      %13 = sbr.rel (%p11) target = $region9
    $region8: #{a_call__.11} parent=1 // pred_region
      %vm14 = vcmask 130048
      %15 = vst.msk [vmem:[#allocation2] sm:$0xff] %vm14, 0.0
      %16 = vst.msk [vmem:[#allocation2 + $0x8] sm:$0xff] %vm14, 0.0
      %17 = vst.msk [vmem:[#allocation2 + $0x10] sm:$0xff] %vm14, 0.0
      %18 = vst.msk [vmem:[#allocation2 + $0x18] sm:$0xff] %vm14, 0.0
      %19 = vst.msk [vmem:[#allocation3] sm:$0xff] %vm14, 0.0
      %20 = vst.msk [vmem:[#allocation3 + $0x8] sm:$0xff] %vm14, 0.0
      %21 = vst.msk [vmem:[#allocation3 + $0x10] sm:$0xff] %vm14, 0.0
      %22 = vst.msk [vmem:[#allocation3 + $0x18] sm:$0xff] %vm14, 0.0
      %vm23 = vcmask 7168
      %24 = vst.msk [vmem:[#allocation4] sm:$0xff] %vm23, 0.0
      %25 = vst.msk [vmem:[#allocation4 + $0x8] sm:$0xff] %vm23, 0.0
      %26 = vst.msk [vmem:[#allocation4 + $0x10] sm:$0xff] %vm23, 0.0
      %27 = vst.msk [vmem:[#allocation4 + $0x18] sm:$0xff] %vm23, 0.0
      %28 = vst.msk [vmem:[#allocation5] sm:$0xff] %vm23, 0.0
      %29 = vst.msk [vmem:[#allocation5 + $0x8] sm:$0xff] %vm23, 0.0
      %30 = vst.msk [vmem:[#allocation5 + $0x10] sm:$0xff] %vm23, 0.0
      %31 = vst.msk [vmem:[#allocation5 + $0x18] sm:$0xff] %vm23, 0.0
      %32 = vst.msk [vmem:[#allocation6] sm:$0xff] %vm23, 0.0
      %33 = vst.msk [vmem:[#allocation6 + $0x8] sm:$0xff] %vm23, 0.0
      %34 = vst.msk [vmem:[#allocation6 + $0x10] sm:$0xff] %vm23, 0.0
      %35 = vst.msk [vmem:[#allocation6 + $0x18] sm:$0xff] %vm23, 0.0
      %36 = vst.msk [vmem:[#allocation7] sm:$0xff] %vm23, 0.0
      %37 = vst.msk [vmem:[#allocation7 + $0x8] sm:$0xff] %vm23, 0.0
      %38 = vst.msk [vmem:[#allocation7 + $0x10] sm:$0xff] %vm23, 0.0
      %39 = vst.msk [vmem:[#allocation7 + $0x18] sm:$0xff] %vm23, 0.0
      %40 = vst.msk [vmem:[#allocation8] sm:$0xff] %vm23, 0.0
      %41 = vst.msk [vmem:[#allocation8 + $0x8] sm:$0xff] %vm23, 0.0
      %42 = vst.msk [vmem:[#allocation8 + $0x10] sm:$0xff] %vm23, 0.0
      %43 = vst.msk [vmem:[#allocation8 + $0x18] sm:$0xff] %vm23, 0.0
    $region9: #{a_call__.11} parent=1 // pred_fallthru
      _
    %v44 = vld [vmem:[%s0] sm:$0xf]
    %v45 = vld [vmem:[%s0 + $0x4] sm:$0xf]
    %v46 = vld [vmem:[%s0 + $0x8] sm:$0xf]
    %v47 = vld [vmem:[%s0 + $0xc] sm:$0xf]
    %v48 = vld [vmem:[%s0 + $0x10] sm:$0xf]
    %v49 = vld [vmem:[%s0 + $0x14] sm:$0xf]
    %v50 = vld [vmem:[%s0 + $0x18] sm:$0xf]
    %v51 = vld [vmem:[%s0 + $0x1c] sm:$0xf]
    %v52 = vld [vmem:[#allocation2] sm:$0xff]
    %v53 = vld [vmem:[#allocation2 + $0x8] sm:$0xff]
    %v54 = vld [vmem:[#allocation2 + $0x10] sm:$0xff]
    %v55 = vld [vmem:[#allocation2 + $0x18] sm:$0xff]
    %v58 = vunpack.c.l.b16 %v44
    %v59 = vunpack.c.l.b16 %v45
    %v60 = vpack.c.b16 %v59, %v58
    %vm61 = vcmask 523264
    %v63 = vsel %vm61, %v60, 0
    %65 = vmatprep.subr.bf16.mxu0 0
    %66 = vmatpush1.bf16.xpose.msra.mxu0 %v63
    %67 = vmatprep.subr.bf16.mxu0 0
    %68 = vmatpush1.bf16.xpose.msra.mxu0 0
    %69 = vmatprep.subr.bf16.mxu0 0
    %70 = vmatpush1.bf16.xpose.msra.mxu0 0
    %71 = vmatprep.subr.bf16.mxu0 0
    %72 = vmatpush1.bf16.xpose.msra.mxu0 0
    %73 = vmatprep.subr.bf16.mxu0 0
    %74 = vmatpush1.bf16.xpose.msra.mxu0 0
    %75 = vmatprep.subr.bf16.mxu0 0
    %76 = vmatpush1.bf16.xpose.msra.mxu0 0
    %77 = vmatprep.subr.bf16.mxu0 0
    %78 = vmatpush1.bf16.xpose.msra.mxu0 0
    %79 = vmatprep.subr.bf16.mxu0 0
    %80 = vmatpush1.bf16.xpose.msra.mxu0 0
    %81 = vmatprep.subr.bf16.mxu0 0
    %82 = vmatpush1.bf16.xpose.msra.mxu0 0
    %83 = vmatprep.subr.bf16.mxu0 0
    %84 = vmatpush1.bf16.xpose.msra.mxu0 0
    %85 = vmatprep.subr.bf16.mxu0 0
    %86 = vmatpush1.bf16.xpose.msra.mxu0 0
    %87 = vmatprep.subr.bf16.mxu0 0
    %88 = vmatpush1.bf16.xpose.msra.mxu0 0
    %89 = vmatprep.subr.bf16.mxu0 0
    %90 = vmatpush1.bf16.xpose.msra.mxu0 0
    %91 = vmatprep.subr.bf16.mxu0 0
    %92 = vmatpush1.bf16.xpose.msra.mxu0 0
    %93 = vmatprep.subr.bf16.mxu0 0
    %94 = vmatpush1.bf16.xpose.msra.mxu0 0
    %95 = vmatprep.subr.bf16.mxu0 0
    %96 = vmatpush1.bf16.xpose.msra.mxu0 0
    %97 = vmatprep.mubr.bf16.mxu0 0
    %98 = vmatmul.mubr.bf16.gmra.mrb[0].mxu0 %v63
    %v99 = vpop.f32.mrb[0].mxu0
    %v100 = vadd.f32 0.0, %v99
    %v101 = vpop.f32.mrb[0].mxu0
    %v102 = vpop.f32.mrb[0].mxu0
    %v103 = vadd.f32 0.0, %v102
    %v104 = vpop.f32.mrb[0].mxu0
    %105 = vdwg.mxu0
    %v108 = vunpack.c.l.b16 %v46
    %v109 = vunpack.c.l.b16 %v47
    %v110 = vpack.c.b16 %v109, %v108
    %v112 = vsel %vm61, %v110, 0
    %114 = vmatprep.subr.bf16.mxu0 0
    %115 = vmatpush1.bf16.xpose.msra.mxu0 %v112
    %116 = vmatprep.subr.bf16.mxu0 0
    %117 = vmatpush1.bf16.xpose.msra.mxu0 0
    %118 = vmatprep.subr.bf16.mxu0 0
    %119 = vmatpush1.bf16.xpose.msra.mxu0 0
    %120 = vmatprep.subr.bf16.mxu0 0
    %121 = vmatpush1.bf16.xpose.msra.mxu0 0
    %122 = vmatprep.subr.bf16.mxu0 0
    %123 = vmatpush1.bf16.xpose.msra.mxu0 0
    %124 = vmatprep.subr.bf16.mxu0 0
    %125 = vmatpush1.bf16.xpose.msra.mxu0 0
    %126 = vmatprep.subr.bf16.mxu0 0
    %127 = vmatpush1.bf16.xpose.msra.mxu0 0
    %128 = vmatprep.subr.bf16.mxu0 0
    %129 = vmatpush1.bf16.xpose.msra.mxu0 0
    %130 = vmatprep.subr.bf16.mxu0 0
    %131 = vmatpush1.bf16.xpose.msra.mxu0 0
    %132 = vmatprep.subr.bf16.mxu0 0
    %133 = vmatpush1.bf16.xpose.msra.mxu0 0
    %134 = vmatprep.subr.bf16.mxu0 0
    %135 = vmatpush1.bf16.xpose.msra.mxu0 0
    %136 = vmatprep.subr.bf16.mxu0 0
    %137 = vmatpush1.bf16.xpose.msra.mxu0 0
    %138 = vmatprep.subr.bf16.mxu0 0
    %139 = vmatpush1.bf16.xpose.msra.mxu0 0
    %140 = vmatprep.subr.bf16.mxu0 0
    %141 = vmatpush1.bf16.xpose.msra.mxu0 0
    %142 = vmatprep.subr.bf16.mxu0 0
    %143 = vmatpush1.bf16.xpose.msra.mxu0 0
    %144 = vmatprep.subr.bf16.mxu0 0
    %145 = vmatpush1.bf16.xpose.msra.mxu0 0
    %146 = vmatprep.mubr.bf16.mxu0 0
    %147 = vmatmul.mubr.bf16.gmra.mrb[0].mxu0 %v112
    %v148 = vpop.f32.mrb[0].mxu0
    %v149 = vadd.f32 0.0, %v148
    %v150 = vpop.f32.mrb[0].mxu0
    %v151 = vpop.f32.mrb[0].mxu0
    %v152 = vadd.f32 0.0, %v151
    %v153 = vpop.f32.mrb[0].mxu0
    %154 = vdwg.mxu0
    %v155 = vadd.f32 %v52, %v100
    %v156 = vadd.f32 %v53, %v103
    %v157 = vadd.f32 %v54, %v149
    %v158 = vadd.f32 %v55, %v152
    %vm159 = vcmask 130048
    %160 = vst.msk [vmem:[#allocation2] sm:$0xff] %vm159, %v155
    %161 = vst.msk [vmem:[#allocation2 + $0x8] sm:$0xff] %vm159, %v156
    %162 = vst.msk [vmem:[#allocation2 + $0x10] sm:$0xff] %vm159, %v157
    %163 = vst.msk [vmem:[#allocation2 + $0x18] sm:$0xff] %vm159, %v158
    %v164 = vld [vmem:[#allocation3] sm:$0xff]
    %v165 = vld [vmem:[#allocation3 + $0x8] sm:$0xff]
    %v166 = vld [vmem:[#allocation3 + $0x10] sm:$0xff]
    %v167 = vld [vmem:[#allocation3 + $0x18] sm:$0xff]
    %v170 = vunpack.c.l.b16 %v48
    %v171 = vunpack.c.l.b16 %v49
    %v172 = vpack.c.b16 %v171, %v170
    %v174 = vsel %vm61, %v172, 0
    %176 = vmatprep.subr.bf16.mxu0 0
    %177 = vmatpush1.bf16.xpose.msra.mxu0 %v174
    %178 = vmatprep.subr.bf16.mxu0 0
    %179 = vmatpush1.bf16.xpose.msra.mxu0 0
    %180 = vmatprep.subr.bf16.mxu0 0
    %181 = vmatpush1.bf16.xpose.msra.mxu0 0
    %182 = vmatprep.subr.bf16.mxu0 0
    %183 = vmatpush1.bf16.xpose.msra.mxu0 0
    %184 = vmatprep.subr.bf16.mxu0 0
    %185 = vmatpush1.bf16.xpose.msra.mxu0 0
    %186 = vmatprep.subr.bf16.mxu0 0
    %187 = vmatpush1.bf16.xpose.msra.mxu0 0
    %188 = vmatprep.subr.bf16.mxu0 0
    %189 = vmatpush1.bf16.xpose.msra.mxu0 0
    %190 = vmatprep.subr.bf16.mxu0 0
    %191 = vmatpush1.bf16.xpose.msra.mxu0 0
    %192 = vmatprep.subr.bf16.mxu0 0
    %193 = vmatpush1.bf16.xpose.msra.mxu0 0
    %194 = vmatprep.subr.bf16.mxu0 0
    %195 = vmatpush1.bf16.xpose.msra.mxu0 0
    %196 = vmatprep.subr.bf16.mxu0 0
    %197 = vmatpush1.bf16.xpose.msra.mxu0 0
    %198 = vmatprep.subr.bf16.mxu0 0
    %199 = vmatpush1.bf16.xpose.msra.mxu0 0
    %200 = vmatprep.subr.bf16.mxu0 0
    %201 = vmatpush1.bf16.xpose.msra.mxu0 0
    %202 = vmatprep.subr.bf16.mxu0 0
    %203 = vmatpush1.bf16.xpose.msra.mxu0 0
    %204 = vmatprep.subr.bf16.mxu0 0
    %205 = vmatpush1.bf16.xpose.msra.mxu0 0
    %206 = vmatprep.subr.bf16.mxu0 0
    %207 = vmatpush1.bf16.xpose.msra.mxu0 0
    %208 = vmatprep.mubr.bf16.mxu0 0
    %209 = vmatmul.mubr.bf16.gmra.mrb[0].mxu0 %v174
    %v210 = vpop.f32.mrb[0].mxu0
    %v211 = vadd.f32 0.0, %v210
    %v212 = vpop.f32.mrb[0].mxu0
    %v213 = vpop.f32.mrb[0].mxu0
    %v214 = vadd.f32 0.0, %v213
    %v215 = vpop.f32.mrb[0].mxu0
    %216 = vdwg.mxu0
    %v219 = vunpack.c.l.b16 %v50
    %v220 = vunpack.c.l.b16 %v51
    %v221 = vpack.c.b16 %v220, %v219
    %v223 = vsel %vm61, %v221, 0
    %225 = vmatprep.subr.bf16.mxu0 0
    %226 = vmatpush1.bf16.xpose.msra.mxu0 %v223
    %227 = vmatprep.subr.bf16.mxu0 0
    %228 = vmatpush1.bf16.xpose.msra.mxu0 0
    %229 = vmatprep.subr.bf16.mxu0 0
    %230 = vmatpush1.bf16.xpose.msra.mxu0 0
    %231 = vmatprep.subr.bf16.mxu0 0
    %232 = vmatpush1.bf16.xpose.msra.mxu0 0
    %233 = vmatprep.subr.bf16.mxu0 0
    %234 = vmatpush1.bf16.xpose.msra.mxu0 0
    %235 = vmatprep.subr.bf16.mxu0 0
    %236 = vmatpush1.bf16.xpose.msra.mxu0 0
    %237 = vmatprep.subr.bf16.mxu0 0
    %238 = vmatpush1.bf16.xpose.msra.mxu0 0
    %239 = vmatprep.subr.bf16.mxu0 0
    %240 = vmatpush1.bf16.xpose.msra.mxu0 0
    %241 = vmatprep.subr.bf16.mxu0 0
    %242 = vmatpush1.bf16.xpose.msra.mxu0 0
    %243 = vmatprep.subr.bf16.mxu0 0
    %244 = vmatpush1.bf16.xpose.msra.mxu0 0
    %245 = vmatprep.subr.bf16.mxu0 0
    %246 = vmatpush1.bf16.xpose.msra.mxu0 0
    %247 = vmatprep.subr.bf16.mxu0 0
    %248 = vmatpush1.bf16.xpose.msra.mxu0 0
    %249 = vmatprep.subr.bf16.mxu0 0
    %250 = vmatpush1.bf16.xpose.msra.mxu0 0
    %251 = vmatprep.subr.bf16.mxu0 0
    %252 = vmatpush1.bf16.xpose.msra.mxu0 0
    %253 = vmatprep.subr.bf16.mxu0 0
    %254 = vmatpush1.bf16.xpose.msra.mxu0 0
    %255 = vmatprep.subr.bf16.mxu0 0
    %256 = vmatpush1.bf16.xpose.msra.mxu0 0
    %257 = vmatprep.mubr.bf16.mxu0 0
    %258 = vmatmul.mubr.bf16.gmra.mrb[0].mxu0 %v223
    %v259 = vpop.f32.mrb[0].mxu0
    %v260 = vadd.f32 0.0, %v259
    %v261 = vpop.f32.mrb[0].mxu0
    %v262 = vpop.f32.mrb[0].mxu0
    %v263 = vadd.f32 0.0, %v262
    %v264 = vpop.f32.mrb[0].mxu0
    %265 = vdwg.mxu0
    %v266 = vadd.f32 %v164, %v211
    %v267 = vadd.f32 %v165, %v214
    %v268 = vadd.f32 %v166, %v260
    %v269 = vadd.f32 %v167, %v263
    %270 = vst.msk [vmem:[#allocation3] sm:$0xff] %vm159, %v266
    %271 = vst.msk [vmem:[#allocation3 + $0x8] sm:$0xff] %vm159, %v267
    %272 = vst.msk [vmem:[#allocation3 + $0x10] sm:$0xff] %vm159, %v268
    %273 = vst.msk [vmem:[#allocation3 + $0x18] sm:$0xff] %vm159, %v269
    %v274 = vunpack.c.l.bf16 %v44
    %v275 = vunpack.c.l.bf16 %v45
    %v276 = vunpack.c.l.bf16 %v46
    %v277 = vunpack.c.l.bf16 %v47
    %v278 = vunpack.c.l.bf16 %v48
    %v279 = vunpack.c.l.bf16 %v49
    %v280 = vunpack.c.l.bf16 %v50
    %v281 = vunpack.c.l.bf16 %v51
    %v282 = vld [vmem:[#allocation4] sm:$0xff]
    %v283 = vld [vmem:[#allocation4 + $0x8] sm:$0xff]
    %v284 = vld [vmem:[#allocation4 + $0x10] sm:$0xff]
    %v285 = vld [vmem:[#allocation4 + $0x18] sm:$0xff]
    %v286 = vsel %vm61, %v274, 0.0
    %287 = vadd.xlane.f32.xlu0 %v286
    %v288 = vpop.xlane.xlu0 %287
    %v289 = vsel %vm61, %v275, 0.0
    %290 = vadd.xlane.f32.xlu0 %v289
    %v291 = vpop.xlane.xlu0 %290
    %v292 = vsel %vm61, %v276, 0.0
    %293 = vadd.xlane.f32.xlu0 %v292
    %v294 = vpop.xlane.xlu0 %293
    %v295 = vsel %vm61, %v277, 0.0
    %296 = vadd.xlane.f32.xlu0 %v295
    %v297 = vpop.xlane.xlu0 %296
    %v298 = vadd.f32 %v282, %v288
    %v299 = vadd.f32 %v283, %v291
    %v300 = vadd.f32 %v284, %v294
    %v301 = vadd.f32 %v285, %v297
    %vm302 = vcmask 7168
    %303 = vst.msk [vmem:[#allocation4] sm:$0xff] %vm302, %v298
    %304 = vst.msk [vmem:[#allocation4 + $0x8] sm:$0xff] %vm302, %v299
    %305 = vst.msk [vmem:[#allocation4 + $0x10] sm:$0xff] %vm302, %v300
    %306 = vst.msk [vmem:[#allocation4 + $0x18] sm:$0xff] %vm302, %v301
    %v307 = vld [vmem:[#allocation5] sm:$0xff]
    %v308 = vld [vmem:[#allocation5 + $0x8] sm:$0xff]
    %v309 = vld [vmem:[#allocation5 + $0x10] sm:$0xff]
    %v310 = vld [vmem:[#allocation5 + $0x18] sm:$0xff]
    %v311 = vsel %vm61, %v278, 0.0
    %312 = vadd.xlane.f32.xlu0 %v311
    %v313 = vpop.xlane.xlu0 %312
    %v314 = vsel %vm61, %v279, 0.0
    %315 = vadd.xlane.f32.xlu0 %v314
    %v316 = vpop.xlane.xlu0 %315
    %v317 = vsel %vm61, %v280, 0.0
    %318 = vadd.xlane.f32.xlu0 %v317
    %v319 = vpop.xlane.xlu0 %318
    %v320 = vsel %vm61, %v281, 0.0
    %321 = vadd.xlane.f32.xlu0 %v320
    %v322 = vpop.xlane.xlu0 %321
    %v323 = vadd.f32 %v307, %v313
    %v324 = vadd.f32 %v308, %v316
    %v325 = vadd.f32 %v309, %v319
    %v326 = vadd.f32 %v310, %v322
    %327 = vst.msk [vmem:[#allocation5] sm:$0xff] %vm302, %v323
    %328 = vst.msk [vmem:[#allocation5 + $0x8] sm:$0xff] %vm302, %v324
    %329 = vst.msk [vmem:[#allocation5 + $0x10] sm:$0xff] %vm302, %v325
    %330 = vst.msk [vmem:[#allocation5 + $0x18] sm:$0xff] %vm302, %v326
    %v331 = vld [vmem:[#allocation6] sm:$0xff]
    %v332 = vld [vmem:[#allocation6 + $0x8] sm:$0xff]
    %v333 = vld [vmem:[#allocation6 + $0x10] sm:$0xff]
    %v334 = vld [vmem:[#allocation6 + $0x18] sm:$0xff]
    %v335 = vmul.f32 %v274, %v274
    %v336 = vmul.f32 %v275, %v275
    %v337 = vmul.f32 %v276, %v276
    %v338 = vmul.f32 %v277, %v277
    %v339 = vsel %vm61, %v335, 0.0
    %340 = vadd.xlane.f32.xlu0 %v339
    %v341 = vpop.xlane.xlu0 %340
    %v342 = vsel %vm61, %v336, 0.0
    %343 = vadd.xlane.f32.xlu0 %v342
    %v344 = vpop.xlane.xlu0 %343
    %v345 = vsel %vm61, %v337, 0.0
    %346 = vadd.xlane.f32.xlu0 %v345
    %v347 = vpop.xlane.xlu0 %346
    %v348 = vsel %vm61, %v338, 0.0
    %349 = vadd.xlane.f32.xlu0 %v348
    %v350 = vpop.xlane.xlu0 %349
    %v351 = vadd.f32 %v331, %v341
    %v352 = vadd.f32 %v332, %v344
    %v353 = vadd.f32 %v333, %v347
    %v354 = vadd.f32 %v334, %v350
    %355 = vst.msk [vmem:[#allocation6] sm:$0xff] %vm302, %v351
    %356 = vst.msk [vmem:[#allocation6 + $0x8] sm:$0xff] %vm302, %v352
    %357 = vst.msk [vmem:[#allocation6 + $0x10] sm:$0xff] %vm302, %v353
    %358 = vst.msk [vmem:[#allocation6 + $0x18] sm:$0xff] %vm302, %v354
    %v359 = vld [vmem:[#allocation7] sm:$0xff]
    %v360 = vld [vmem:[#allocation7 + $0x8] sm:$0xff]
    %v361 = vld [vmem:[#allocation7 + $0x10] sm:$0xff]
    %v362 = vld [vmem:[#allocation7 + $0x18] sm:$0xff]
    %v363 = vmul.f32 %v278, %v278
    %v364 = vmul.f32 %v279, %v279
    %v365 = vmul.f32 %v280, %v280
    %v366 = vmul.f32 %v281, %v281
    %v367 = vsel %vm61, %v363, 0.0
    %368 = vadd.xlane.f32.xlu0 %v367
    %v369 = vpop.xlane.xlu0 %368
    %v370 = vsel %vm61, %v364, 0.0
    %371 = vadd.xlane.f32.xlu0 %v370
    %v372 = vpop.xlane.xlu0 %371
    %v373 = vsel %vm61, %v365, 0.0
    %374 = vadd.xlane.f32.xlu0 %v373
    %v375 = vpop.xlane.xlu0 %374
    %v376 = vsel %vm61, %v366, 0.0
    %377 = vadd.xlane.f32.xlu0 %v376
    %v378 = vpop.xlane.xlu0 %377
    %v379 = vadd.f32 %v359, %v369
    %v380 = vadd.f32 %v360, %v372
    %v381 = vadd.f32 %v361, %v375
    %v382 = vadd.f32 %v362, %v378
    %383 = vst.msk [vmem:[#allocation7] sm:$0xff] %vm302, %v379
    %384 = vst.msk [vmem:[#allocation7 + $0x8] sm:$0xff] %vm302, %v380
    %385 = vst.msk [vmem:[#allocation7 + $0x10] sm:$0xff] %vm302, %v381
    %386 = vst.msk [vmem:[#allocation7 + $0x18] sm:$0xff] %vm302, %v382
    %v387 = vld [vmem:[#allocation8] sm:$0xff]
    %v388 = vld [vmem:[#allocation8 + $0x8] sm:$0xff]
    %v389 = vld [vmem:[#allocation8 + $0x10] sm:$0xff]
    %v390 = vld [vmem:[#allocation8 + $0x18] sm:$0xff]
    %v391 = vmul.f32 %v274, %v278
    %v392 = vmul.f32 %v275, %v279
    %v393 = vmul.f32 %v276, %v280
    %v394 = vmul.f32 %v277, %v281
    %v395 = vsel %vm61, %v391, 0.0
    %396 = vadd.xlane.f32.xlu0 %v395
    %v397 = vpop.xlane.xlu0 %396
    %v398 = vsel %vm61, %v392, 0.0
    %399 = vadd.xlane.f32.xlu0 %v398
    %v400 = vpop.xlane.xlu0 %399
    %v401 = vsel %vm61, %v393, 0.0
    %402 = vadd.xlane.f32.xlu0 %v401
    %v403 = vpop.xlane.xlu0 %402
    %v404 = vsel %vm61, %v394, 0.0
    %405 = vadd.xlane.f32.xlu0 %v404
    %v406 = vpop.xlane.xlu0 %405
    %v407 = vadd.f32 %v387, %v397
    %v408 = vadd.f32 %v388, %v400
    %v409 = vadd.f32 %v389, %v403
    %v410 = vadd.f32 %v390, %v406
    %411 = vst.msk [vmem:[#allocation8] sm:$0xff] %vm302, %v407
    %412 = vst.msk [vmem:[#allocation8 + $0x8] sm:$0xff] %vm302, %v408
    %413 = vst.msk [vmem:[#allocation8 + $0x10] sm:$0xff] %vm302, %v409
    %414 = vst.msk [vmem:[#allocation8 + $0x18] sm:$0xff] %vm302, %v410
    // Predicated region
    $region10: #{a_call__.11} parent=1 // pred_check
      %p415 = pneg %p10
    $region11: #{a_call__.11} parent=1 // pred_check_branch
      %417 = sbr.rel (%p415) target = $region13
    $region12: #{a_call__.11} parent=1 // pred_region
      %v418 = vld [vmem:[#allocation2] sm:$0xff]
      %v419 = vld [vmem:[#allocation2 + $0x8] sm:$0xff]
      %v420 = vld [vmem:[#allocation2 + $0x10] sm:$0xff]
      %v421 = vld [vmem:[#allocation2 + $0x18] sm:$0xff]
      %v422 = vld [vmem:[#allocation3] sm:$0xff]
      %v423 = vld [vmem:[#allocation3 + $0x8] sm:$0xff]
      %v424 = vld [vmem:[#allocation3 + $0x10] sm:$0xff]
      %v425 = vld [vmem:[#allocation3 + $0x18] sm:$0xff]
      %v426 = vld [vmem:[#allocation6] sm:$0xff]
      %v427 = vld [vmem:[#allocation6 + $0x8] sm:$0xff]
      %v428 = vld [vmem:[#allocation6 + $0x10] sm:$0xff]
      %v429 = vld [vmem:[#allocation6 + $0x18] sm:$0xff]
      %v430 = vld [vmem:[#allocation7] sm:$0xff]
      %v431 = vld [vmem:[#allocation7 + $0x8] sm:$0xff]
      %v432 = vld [vmem:[#allocation7 + $0x10] sm:$0xff]
      %v433 = vld [vmem:[#allocation7 + $0x18] sm:$0xff]
      %v434 = vld [vmem:[#allocation8] sm:$0xff]
      %v435 = vld [vmem:[#allocation8 + $0x8] sm:$0xff]
      %v436 = vld [vmem:[#allocation8 + $0x10] sm:$0xff]
      %v437 = vld [vmem:[#allocation8 + $0x18] sm:$0xff]
      %v438 = vadd.f32 %v426, %v430
      %v439 = vadd.f32 %v427, %v431
      %v440 = vadd.f32 %v428, %v432
      %v441 = vadd.f32 %v429, %v433
      %v442 = vmul.f32 %v434, 2.0
      %v443 = vmul.f32 %v435, 2.0
      %v444 = vmul.f32 %v436, 2.0
      %v445 = vmul.f32 %v437, 2.0
      %v446 = vsub.f32 %v438, %v442
      %v447 = vsub.f32 %v439, %v443
      %v448 = vsub.f32 %v440, %v444
      %v449 = vsub.f32 %v441, %v445
      %v450 = vsel %vm302, %v446, 0.0
      %v451 = vsel %vm302, %v447, 0.0
      %v452 = vadd.f32 %v450, %v451
      %v453 = vsel %vm302, %v448, 0.0
      %v454 = vadd.f32 %v452, %v453
      %v455 = vsel %vm302, %v449, 0.0
      %v456 = vadd.f32 %v454, %v455
      %457 = vadd.xlane.f32.xlu0 %v456
      %v458 = vpop.xlane.xlu0 %457
      %v459 = vrot.slane %v458, 4
      %v460 = vadd.f32 %v458, %v459
      %v461 = vrot.slane %v460, 2
      %v462 = vadd.f32 %v460, %v461
      %v463 = vrot.slane %v462, 1
      %v464 = vadd.f32 %v462, %v463
      %s465 = vtos %v464
      %v466 = vsub.f32 %v418, %v422
      %v467 = vsub.f32 %v419, %v423
      %v468 = vsub.f32 %v420, %v424
      %v469 = vsub.f32 %v421, %v425
      %v470 = vmul.f32 %v466, 0.0009765625
      %v471 = vmul.f32 %v467, 0.0009765625
      %v472 = vmul.f32 %v468, 0.0009765625
      %v473 = vmul.f32 %v469, 0.0009765625
      %v474 = vmul.f32 %v470, %v470
      %v475 = vmul.f32 %v471, %v471
      %v476 = vmul.f32 %v472, %v472
      %v477 = vmul.f32 %v473, %v473
      %v478 = vsel %vm159, %v474, 0.0
      %v479 = vsel %vm159, %v475, 0.0
      %v480 = vadd.f32 %v478, %v479
      %v481 = vsel %vm159, %v476, 0.0
      %v482 = vadd.f32 %v480, %v481
      %v483 = vsel %vm159, %v477, 0.0
      %v484 = vadd.f32 %v482, %v483
      %485 = vadd.xlane.f32.xlu0 %v484
      %v486 = vpop.xlane.xlu0 %485
      %v487 = vrot.slane %v486, 4
      %v488 = vadd.f32 %v486, %v487
      %v489 = vrot.slane %v488, 2
      %v490 = vadd.f32 %v488, %v489
      %v491 = vrot.slane %v490, 1
      %v492 = vadd.f32 %v490, %v491
      %s493 = vtos %v492
      %s494 = smul.f32 %s465, 0.0048828125
      %s495 = scalar_lea.smem [#allocation9], 0
      %496 = sst [smem:[%s495]] %s494
      %s497 = smul.f32 %s493, 976.5625
      %s498 = scalar_lea.smem [#allocation9], 1
      %499 = sst [smem:[%s498]] %s497
    $region13: #{a_call__.11} parent=1 // pred_fallthru
      _
    // Predicated region
    $region14: #{a_call__.11} parent=1 // pred_check
      _
    $region15: #{a_call__.11} parent=1 // pred_check_branch
      %501 = sbr.rel (0) target = $region17
    $region16: #{a_call__.11} parent=1 // pred_region
      %s503 = ssub.s32 16, 16
      %504 = vsyncadd [#allocation10], %s503
      %s506 = sshll.u32 %s1, 4
      %s507 = int_to_ptr.vmem [resolvable:$true] %s506
      %509 = dma.smem_to_vmem [#allocation9], 16, %s507, [#allocation10]
    $region17: #{a_call__.11} parent=1 // pred_fallthru
      _
    // Predicated region
    $region18: #{a_call__.11} parent=1 // pred_check
      _
    $region19: #{a_call__.11} parent=1 // pred_check_branch
      %511 = sbr.rel (0) target = $region21
    $region20: #{a_call__.11} parent=1 // pred_region
      %512 = dma.done [#allocation10], 16
    $region21: #{a_call__.11} parent=1 // pred_fallthru
      _
    %513 = sfence
    %514 = vsyncpa [#allocation10], 1

</llo_original>
